<compile_context>
chip_gen: v6e
topology: v6e:2x2x1
jax: 0.10.0
libtpu: 0.0.40
codegen_flags: <defaults>
</compile_context>

<pallas_src>
import functools
import math

import jax
import jax.numpy as jnp
from jax.experimental import pallas as pl
from jax.experimental.pallas import tpu as pltpu

LANE = 128


def _round_up(v, m):
    return (v + m - 1) // m * m


def _pad_axis(a, axis, new_size):
    pad = new_size - a.shape[axis]
    if pad == 0:
        return a
    widths = [(0, 0)] * a.ndim
    widths[axis] = (0, pad)
    return jnp.pad(a, widths)


# ----------------------------------------------------------------------------
# Kernel
# ----------------------------------------------------------------------------
def attentions_kernel(n_real, heads,
                      x_ref,
                      wqkv1_ref, wo1_ref, bo1_ref,
                      wq2_ref, wkv2_ref, wo2_ref, bo2_ref,
                      wn_ref, bn_ref,
                      out_ref):
    bb, seq, dp = x_ref.shape                 # batch block, padded seq, padded dim
    inner = wo1_ref.shape[0]                  # heads * d_head
    d_head = inner // heads
    m = bb * seq                              # folded matmul rows

    # Folded (bb*seq, dp) activation rows; input already bf16 (cast in wrapper).
    x_bf = x_ref[...].reshape(m, dp)

    # Key-padding mask for seq padded up to a multiple of 8 (computed once).
    if n_real < seq:
        key_ids = jax.lax.broadcasted_iota(jnp.int32, (seq, seq), 1)
        neg_mask = jnp.where(key_ids < n_real, 0.0, -1e30).astype(jnp.float32)[None]
    else:
        neg_mask = None

    def mha(q_all, k_all, v_all, wo_ref, bo_ref):
        # q_all/k_all/v_all: (m, inner) bf16; scale already folded into Wq.
        outs = []
        for h in range(heads):                # static unroll; per-head live set
            sl = slice(h * d_head, (h + 1) * d_head)   # is just sim/p (small).
            q3 = q_all[:, sl].reshape(bb, seq, d_head)
            k3 = k_all[:, sl].reshape(bb, seq, d_head)
            v3 = v_all[:, sl].reshape(bb, seq, d_head)

            sim = jnp.einsum('bid,bjd->bij', q3, k3,
                             preferred_element_type=jnp.float32)
            if neg_mask is not None:
                sim = sim + neg_mask
            sim = sim - jnp.max(sim, axis=-1, keepdims=True)       # f32 softmax
            p = jnp.exp(sim)
            p = p * pl.reciprocal(jnp.sum(p, axis=-1, keepdims=True), approx=True)

            o = jnp.einsum('bij,bjd->bid', p.astype(jnp.bfloat16), v3,
                           preferred_element_type=jnp.float32)     # (bb,seq,d)
            outs.append(o.reshape(m, d_head).astype(jnp.bfloat16))
        # Single full-width output projection: concat_h(o_h) @ Wo.
        o_all = jnp.concatenate(outs, axis=-1)                     # (m, inner)
        return jnp.dot(o_all, wo_ref[...],
                       preferred_element_type=jnp.float32) + bo_ref[...]

    # attn1: fused Q/K/V projection, (m, dp) @ (dp, 3*inner).
    qkv1 = jnp.dot(x_bf, wqkv1_ref[...],
                   preferred_element_type=jnp.float32).astype(jnp.bfloat16)
    q1 = qkv1[:, :inner]
    k1 = qkv1[:, inner:2 * inner]
    v1 = qkv1[:, 2 * inner:]
    x1 = mha(q1, k1, v1, wo1_ref, bo1_ref)                         # (m, dp) f32

    # attn2: query from x_1, key/value ("context") from x.
    x1_bf = x1.astype(jnp.bfloat16)
    q2 = jnp.dot(x1_bf, wq2_ref[...],
                 preferred_element_type=jnp.float32).astype(jnp.bfloat16)
    kv2 = jnp.dot(x_bf, wkv2_ref[...],
                  preferred_element_type=jnp.float32).astype(jnp.bfloat16)
    k2 = kv2[:, :inner]
    v2 = kv2[:, inner:]
    x2 = mha(q2, k2, v2, wo2_ref, bo2_ref)                         # (m, dp) f32

    # net: Dropout (identity) + Linear(dim, dim).
    x3 = jnp.dot(x2.astype(jnp.bfloat16), wn_ref[...],
                 preferred_element_type=jnp.float32) + bn_ref[...]

    out_ref[...] = x3.reshape(bb, seq, dp).astype(out_ref.dtype)


# ----------------------------------------------------------------------------
# Wrapper
# ----------------------------------------------------------------------------
def _estimate_vmem_bytes(block_b, seq_p, dp, inner, weight_bytes):
    """Per-grid-step VMEM estimate: double-buffered x/out blocks, single-
    buffered weights, and the in-kernel f32/bf16 intermediates."""
    m = block_b * seq_p
    io = 2 * (m * dp * 2) + 2 * (m * dp * 4)          # x (bf16) + out (f32), 2x buffered
    acts = (m * dp * 2                                 # x_bf
            + m * 3 * inner * (4 + 2)                  # fused qkv f32 + bf16 copy
            + m * inner * (4 + 2)                      # o_all / per-head outputs
            + 3 * m * dp * 4                           # x1 / x2 / x3 f32
            + 2 * block_b * seq_p * seq_p * 4)         # sim + p (one head live)
    return int(io + weight_bytes + acts)


def _tpu_vmem_capacity_bytes():
    try:
        return int(pltpu.get_tpu_info().vmem_capacity_bytes)
    except Exception:
        return 64 << 20                                # conservative (v7x-safe)


def _generation_config():
    """(vmem budget for blocks, target matmul rows, require >=2 grid steps)."""
    cap = _tpu_vmem_capacity_bytes()
    if cap >= (100 << 20):
        # v5e / v6e: 128 MiB VMEM, single TensorCore -> biggest blocks, 1 step OK.
        return cap, cap - (28 << 20), 512, False
    # v7x: 64 MiB per TC, 2 TCs -> keep >=2 parallel grid steps, tighter budget.
    return cap, max(cap - (16 << 20), 32 << 20), 256, True


def _pick_block_b(batch, seq_p, dp, inner, weight_bytes, vmem_budget,
                  target_rows, require_two_steps):
    best = 1
    for cand in range(1, batch + 1):
        if batch % cand:
            continue
        if require_two_steps and batch >= 2 and batch // cand < 2:
            continue
        if cand > 1 and cand * seq_p > target_rows:
            continue
        if _estimate_vmem_bytes(cand, seq_p, dp, inner, weight_bytes) > vmem_budget:
            continue
        best = cand
    return best


def _build_call(kernel, B, Np, dp, block_b, flat_params, out_dtype,
                vmem_limit, single_buffer_weights):
    def x_map(i):
        return (i, 0, 0)

    def const_spec(a):
        nd = a.ndim
        kwargs = {}
        if single_buffer_weights:
            # Constant index map -> single-buffer the resident weights.
            kwargs["pipeline_mode"] = pl.Buffered(1)
        return pl.BlockSpec(a.shape, lambda i, _nd=nd: (0,) * _nd, **kwargs)

    in_specs = [pl.BlockSpec((block_b, Np, dp), x_map)]
    in_specs += [const_spec(p) for p in flat_params]
    out_spec = pl.BlockSpec((block_b, Np, dp), x_map)

    return pl.pallas_call(
        kernel,
        out_shape=jax.ShapeDtypeStruct((B, Np, dp), out_dtype),
        grid=(B // block_b,),
        in_specs=in_specs,
        out_specs=out_spec,
        compiler_params=pltpu.CompilerParams(
            dimension_semantics=("parallel",),
            vmem_limit_bytes=vmem_limit,
        ),
    )


def attentions_forward(x, params, heads):
    (wqkv1, wo1, bo1, wq2, wkv2, wo2, bo2, wn, bn) = params
    flat_params = [wqkv1, wo1, bo1, wq2, wkv2, wo2, bo2, wn, bn]

    B, N, D = x.shape
    dp = wn.shape[-1]                          # lane-padded model dim (mult of 128)
    inner = wo1.shape[0]                       # heads * d_head
    Np = _round_up(N, 8)                       # sublane-aligned seq (no-copy reshapes)

    # bf16 input block (halves the x DMA); zero padding is exact (weights'
    # padded rows are zero, padded keys are masked in the kernel).
    x_p = _pad_axis(_pad_axis(x, 1, Np), 2, dp).astype(jnp.bfloat16)

    cap, vmem_budget, target_rows, two_steps = _generation_config()
    weight_bytes = sum(int(p.nbytes) for p in flat_params)
    block_b = _pick_block_b(B, Np, dp, inner, weight_bytes, vmem_budget,
                            target_rows, two_steps)
    assert B % block_b == 0

    need = _estimate_vmem_bytes(block_b, Np, dp, inner, weight_bytes)
    vmem_limit = int(min(max(need * 3 // 2 + (8 << 20), 32 << 20), cap))

    kernel = functools.partial(attentions_kernel, N, heads)

    try:
        fn = _build_call(kernel, B, Np, dp, block_b, flat_params, jnp.float32,
                         vmem_limit, single_buffer_weights=True)
        out = fn(x_p, *flat_params)
        jax.block_until_ready(out)
    except Exception:
        # Older runtimes may reject pipeline_mode=pl.Buffered(1); default buffering.
        fn = _build_call(kernel, B, Np, dp, block_b, flat_params, jnp.float32,
                         vmem_limit, single_buffer_weights=False)
        out = fn(x_p, *flat_params)

    return out[:, :N, :D]


# ----------------------------------------------------------------------------
# Parameters (synthetic, PyTorch nn.Linear-style init), host-side prep
# ----------------------------------------------------------------------------
def init_params(key, dim, heads, d_head):
    inner = heads * d_head

    def linear(k, fan_in, fan_out, bias=True):
        k1, k2 = jax.random.split(k)
        bound = 1.0 / math.sqrt(fan_in)
        w = jax.random.uniform(k1, (fan_in, fan_out), jnp.float32, -bound, bound)
        b = (jax.random.uniform(k2, (1, fan_out), jnp.float32, -bound, bound)
             if bias else None)
        return w, b

    key, kq1, kk1, kv1, ko1, kq2, kk2, kv2, ko2, kn = jax.random.split(key, 10)
    wq1, _ = linear(kq1, dim, inner, bias=False)      # attn1.to_q
    wk1, _ = linear(kk1, dim, inner, bias=False)      # attn1.to_k
    wv1, _ = linear(kv1, dim, inner, bias=False)      # attn1.to_v
    wo1, bo1 = linear(ko1, inner, dim)                # attn1.to_out[0]
    wq2, _ = linear(kq2, dim, inner, bias=False)      # attn2.to_q
    wk2, _ = linear(kk2, dim, inner, bias=False)      # attn2.to_k
    wv2, _ = linear(kv2, dim, inner, bias=False)      # attn2.to_v
    wo2, bo2 = linear(ko2, inner, dim)                # attn2.to_out[0]
    wn, bn = linear(kn, dim, dim)                     # net[1]
    return dict(wq1=wq1, wk1=wk1, wv1=wv1, wo1=wo1, bo1=bo1,
                wq2=wq2, wk2=wk2, wv2=wv2, wo2=wo2, bo2=bo2, wn=wn, bn=bn)


def prepare_params(p, heads, d_head, dim):
    """Pad the model dim to a multiple of 128 (lane-dense, zero-pad => exact),
    fuse Q/K/V weights column-wise for full-width MXU dots, fold the softmax
    scale into Wq, and cast weights to bf16 (biases stay f32)."""
    dp = _round_up(dim, LANE)
    scale = 1.0 / math.sqrt(d_head)

    def pad_in(w):     # (dim, out) -> (dp, out)
        return _pad_axis(w, 0, dp)

    wqkv1 = jnp.concatenate(
        [pad_in(p['wq1']) * scale, pad_in(p['wk1']), pad_in(p['wv1'])],
        axis=1).astype(jnp.bfloat16)                          # (dp, 3*inner)
    wq2 = (pad_in(p['wq2']) * scale).astype(jnp.bfloat16)     # (dp, inner)
    wkv2 = jnp.concatenate(
        [pad_in(p['wk2']), pad_in(p['wv2'])], axis=1).astype(jnp.bfloat16)

    wo1 = _pad_axis(p['wo1'], 1, dp).astype(jnp.bfloat16)     # (inner, dp)
    wo2 = _pad_axis(p['wo2'], 1, dp).astype(jnp.bfloat16)
    wn = _pad_axis(_pad_axis(p['wn'], 0, dp), 1, dp).astype(jnp.bfloat16)

    def vec(b):        # (1, dim) -> (1, dp), keep f32 (added to f32 accumulators)
        return _pad_axis(b, 1, dp).astype(jnp.float32)

    return (wqkv1, wo1, vec(p['bo1']),
            wq2, wkv2, wo2, vec(p['bo2']),
            wn, vec(p['bn']))


# ----------------------------------------------------------------------------
# Pure-JAX reference (f32) for a sanity check
# ----------------------------------------------------------------------------
def attentions_reference(x, p, heads, d_head):
    def cross_attn(q_in, kv_in, wq, wk, wv, wo, bo):
        B, N, _ = q_in.shape
        Nk = kv_in.shape[1]
        q, k, v = q_in @ wq, kv_in @ wk, kv_in @ wv

        def split(t, n):
            return t.reshape(B, n, heads, d_head).transpose(0, 2, 1, 3)

        q, k, v = split(q, N), split(k, Nk), split(v, Nk)
        sim = jnp.einsum('bhid,bhjd->bhij', q, k) * (d_head ** -0.5)
        attn = jax.nn.softmax(sim, axis=-1)
        o = jnp.einsum('bhij,bhjd->bhid', attn, v)
        o = o.transpose(0, 2, 1, 3).reshape(B, N, heads * d_head)
        return o @ wo + bo

    x1 = cross_attn(x, x, p['wq1'], p['wk1'], p['wv1'], p['wo1'], p['bo1'])
    x2 = cross_attn(x1, x, p['wq2'], p['wk2'], p['wv2'], p['wo2'], p['bo2'])
    return x2 @ p['wn'] + p['bn']


if __name__ == "__main__":
    # Small shapes consistent with the module: dim = n_heads * d_head.
    B, N, HEADS, D_HEAD = 4, 8, 4, 32
    DIM = HEADS * D_HEAD                     # 128 -> lane-dense by construction

    key = jax.random.PRNGKey(0)
    kx, kp = jax.random.split(key)
    x = jax.random.normal(kx, (B, N, DIM), jnp.float32)

    raw = init_params(kp, DIM, HEADS, D_HEAD)
    params = prepare_params(raw, HEADS, D_HEAD, DIM)

    y = attentions_forward(x, params, HEADS)
    jax.block_until_ready(y)

    assert y.shape == (B, N, DIM) and y.dtype == jnp.float32
    assert bool(jnp.all(jnp.isfinite(y)))

    # Loose tolerance: kernel uses bf16 MXU operands + approx reciprocal.
    y_ref = attentions_reference(x, raw, HEADS, D_HEAD)
    max_err = float(jnp.max(jnp.abs(y - y_ref)))
    assert max_err < 5e-2, f"max abs err vs f32 reference: {max_err}"

    print("KERNEL_OK")
</pallas_src>

<mosaic_0001>
module attributes {stable_mosaic.version = 11 : i64} {
  func.func @attentions_kernel(%arg0: i32, %arg1: memref<2x8x128xbf16, #tpu.memory_space<vmem>>, %arg2: memref<128x384xbf16, #tpu.memory_space<vmem>>, %arg3: memref<128x128xbf16, #tpu.memory_space<vmem>>, %arg4: memref<1x128xf32, #tpu.memory_space<vmem>>, %arg5: memref<128x128xbf16, #tpu.memory_space<vmem>>, %arg6: memref<128x256xbf16, #tpu.memory_space<vmem>>, %arg7: memref<128x128xbf16, #tpu.memory_space<vmem>>, %arg8: memref<1x128xf32, #tpu.memory_space<vmem>>, %arg9: memref<128x128xbf16, #tpu.memory_space<vmem>>, %arg10: memref<1x128xf32, #tpu.memory_space<vmem>>, %arg11: memref<2x8x128xf32, #tpu.memory_space<vmem>>) attributes {dimension_semantics = [#tpu.dimension_semantics<parallel>], iteration_bounds = array<i64: 2>, scalar_prefetch = 0 : i64, scratch_operands = 0 : i64, tpu.core_type = #tpu.core_type<tc>, window_params = [{transform_indices = @transform_0, window_bounds = array<i64: 2, 8, 128>}, {pipeline_mode = #tpu.pipeline_mode<synchronous>, transform_indices = @transform_1, window_bounds = array<i64: 128, 384>}, {pipeline_mode = #tpu.pipeline_mode<synchronous>, transform_indices = @transform_2, window_bounds = array<i64: 128, 128>}, {pipeline_mode = #tpu.pipeline_mode<synchronous>, transform_indices = @transform_3, window_bounds = array<i64: 1, 128>}, {pipeline_mode = #tpu.pipeline_mode<synchronous>, transform_indices = @transform_4, window_bounds = array<i64: 128, 128>}, {pipeline_mode = #tpu.pipeline_mode<synchronous>, transform_indices = @transform_5, window_bounds = array<i64: 128, 256>}, {pipeline_mode = #tpu.pipeline_mode<synchronous>, transform_indices = @transform_6, window_bounds = array<i64: 128, 128>}, {pipeline_mode = #tpu.pipeline_mode<synchronous>, transform_indices = @transform_7, window_bounds = array<i64: 1, 128>}, {pipeline_mode = #tpu.pipeline_mode<synchronous>, transform_indices = @transform_8, window_bounds = array<i64: 128, 128>}, {pipeline_mode = #tpu.pipeline_mode<synchronous>, transform_indices = @transform_9, window_bounds = array<i64: 1, 128>}, {transform_indices = @transform_10, window_bounds = array<i64: 2, 8, 128>}]} {
    %c0 = arith.constant 0 : index
    %c0_0 = arith.constant 0 : index
    %c0_1 = arith.constant 0 : index
    %0 = vector.load %arg1[%c0, %c0_0, %c0_1] : memref<2x8x128xbf16, #tpu.memory_space<vmem>>, vector<2x8x128xbf16>
    %1 = vector.shape_cast %0 : vector<2x8x128xbf16> to vector<16x128xbf16>
    %c0_2 = arith.constant 0 : index
    %c0_3 = arith.constant 0 : index
    %2 = vector.load %arg2[%c0_2, %c0_3] : memref<128x384xbf16, #tpu.memory_space<vmem>>, vector<128x384xbf16>
    %cst = arith.constant dense<0.000000e+00> : vector<16x384xf32>
    %3 = tpu.matmul %1, %2, %cst {dimension_numbers = #tpu.dot_dimension_numbers<[1], [0], [0], [1], [0, 0, 1, 1], [], []>} : vector<16x128xbf16>, vector<128x384xbf16>, vector<16x384xf32> -> vector<16x384xf32>
    %4 = arith.truncf %3 : vector<16x384xf32> to vector<16x384xbf16>
    %5 = vector.extract_strided_slice %4 {offsets = [0, 0], sizes = [16, 128], strides = [1, 1]} : vector<16x384xbf16> to vector<16x128xbf16>
    %6 = vector.extract_strided_slice %4 {offsets = [0, 128], sizes = [16, 128], strides = [1, 1]} : vector<16x384xbf16> to vector<16x128xbf16>
    %7 = vector.extract_strided_slice %4 {offsets = [0, 256], sizes = [16, 128], strides = [1, 1]} : vector<16x384xbf16> to vector<16x128xbf16>
    %8 = vector.extract_strided_slice %5 {offsets = [0, 0], sizes = [16, 32], strides = [1, 1]} : vector<16x128xbf16> to vector<16x32xbf16>
    %9 = vector.shape_cast %8 : vector<16x32xbf16> to vector<2x8x32xbf16>
    %10 = vector.extract_strided_slice %6 {offsets = [0, 0], sizes = [16, 32], strides = [1, 1]} : vector<16x128xbf16> to vector<16x32xbf16>
    %11 = vector.shape_cast %10 : vector<16x32xbf16> to vector<2x8x32xbf16>
    %12 = vector.extract_strided_slice %7 {offsets = [0, 0], sizes = [16, 32], strides = [1, 1]} : vector<16x128xbf16> to vector<16x32xbf16>
    %13 = vector.shape_cast %12 : vector<16x32xbf16> to vector<2x8x32xbf16>
    "tpu.trace_start"() <{level = 10 : i32, message = "bid,bjd->bij"}> : () -> ()
    %cst_4 = arith.constant dense<0.000000e+00> : vector<2x8x8xf32>
    %14 = tpu.matmul %9, %11, %cst_4 {dimension_numbers = #tpu.dot_dimension_numbers<[2], [2], [1], [1], [0, 0, 0, 1, 1, 1], [0], [0]>} : vector<2x8x32xbf16>, vector<2x8x32xbf16>, vector<2x8x8xf32> -> vector<2x8x8xf32>
    "tpu.trace_stop"() : () -> ()
    %cst_5 = arith.constant dense<0xFF800000> : vector<2x8xf32>
    %15 = vector.multi_reduction <maximumf>, %14, %cst_5 [2] : vector<2x8x8xf32> to vector<2x8xf32>
    %16 = vector.shape_cast %15 : vector<2x8xf32> to vector<2x8x1xf32>
    %17 = vector.broadcast %16 : vector<2x8x1xf32> to vector<2x8x8xf32>
    %18 = arith.subf %14, %17 : vector<2x8x8xf32>
    %19 = math.exp %18 : vector<2x8x8xf32>
    %cst_6 = arith.constant dense<0.000000e+00> : vector<2x8xf32>
    %20 = vector.multi_reduction <add>, %19, %cst_6 [2] : vector<2x8x8xf32> to vector<2x8xf32>
    %21 = vector.shape_cast %20 : vector<2x8xf32> to vector<2x8x1xf32>
    %22 = tpu.reciprocal %21 {approx = true} : vector<2x8x1xf32> -> vector<2x8x1xf32>
    %23 = vector.broadcast %22 : vector<2x8x1xf32> to vector<2x8x8xf32>
    %24 = arith.mulf %19, %23 : vector<2x8x8xf32>
    %25 = arith.truncf %24 : vector<2x8x8xf32> to vector<2x8x8xbf16>
    "tpu.trace_start"() <{level = 10 : i32, message = "bij,bjd->bid"}> : () -> ()
    %cst_7 = arith.constant dense<0.000000e+00> : vector<2x8x32xf32>
    %26 = tpu.matmul %25, %13, %cst_7 {dimension_numbers = #tpu.dot_dimension_numbers<[2], [1], [1], [2], [0, 0, 0, 1, 1, 2], [0], [0]>} : vector<2x8x8xbf16>, vector<2x8x32xbf16>, vector<2x8x32xf32> -> vector<2x8x32xf32>
    "tpu.trace_stop"() : () -> ()
    %27 = vector.shape_cast %26 : vector<2x8x32xf32> to vector<16x32xf32>
    %28 = arith.truncf %27 : vector<16x32xf32> to vector<16x32xbf16>
    %29 = vector.extract_strided_slice %5 {offsets = [0, 32], sizes = [16, 32], strides = [1, 1]} : vector<16x128xbf16> to vector<16x32xbf16>
    %30 = vector.shape_cast %29 : vector<16x32xbf16> to vector<2x8x32xbf16>
    %31 = vector.extract_strided_slice %6 {offsets = [0, 32], sizes = [16, 32], strides = [1, 1]} : vector<16x128xbf16> to vector<16x32xbf16>
    %32 = vector.shape_cast %31 : vector<16x32xbf16> to vector<2x8x32xbf16>
    %33 = vector.extract_strided_slice %7 {offsets = [0, 32], sizes = [16, 32], strides = [1, 1]} : vector<16x128xbf16> to vector<16x32xbf16>
    %34 = vector.shape_cast %33 : vector<16x32xbf16> to vector<2x8x32xbf16>
    "tpu.trace_start"() <{level = 10 : i32, message = "bid,bjd->bij"}> : () -> ()
    %cst_8 = arith.constant dense<0.000000e+00> : vector<2x8x8xf32>
    %35 = tpu.matmul %30, %32, %cst_8 {dimension_numbers = #tpu.dot_dimension_numbers<[2], [2], [1], [1], [0, 0, 0, 1, 1, 1], [0], [0]>} : vector<2x8x32xbf16>, vector<2x8x32xbf16>, vector<2x8x8xf32> -> vector<2x8x8xf32>
    "tpu.trace_stop"() : () -> ()
    %cst_9 = arith.constant dense<0xFF800000> : vector<2x8xf32>
    %36 = vector.multi_reduction <maximumf>, %35, %cst_9 [2] : vector<2x8x8xf32> to vector<2x8xf32>
    %37 = vector.shape_cast %36 : vector<2x8xf32> to vector<2x8x1xf32>
    %38 = vector.broadcast %37 : vector<2x8x1xf32> to vector<2x8x8xf32>
    %39 = arith.subf %35, %38 : vector<2x8x8xf32>
    %40 = math.exp %39 : vector<2x8x8xf32>
    %cst_10 = arith.constant dense<0.000000e+00> : vector<2x8xf32>
    %41 = vector.multi_reduction <add>, %40, %cst_10 [2] : vector<2x8x8xf32> to vector<2x8xf32>
    %42 = vector.shape_cast %41 : vector<2x8xf32> to vector<2x8x1xf32>
    %43 = tpu.reciprocal %42 {approx = true} : vector<2x8x1xf32> -> vector<2x8x1xf32>
    %44 = vector.broadcast %43 : vector<2x8x1xf32> to vector<2x8x8xf32>
    %45 = arith.mulf %40, %44 : vector<2x8x8xf32>
    %46 = arith.truncf %45 : vector<2x8x8xf32> to vector<2x8x8xbf16>
    "tpu.trace_start"() <{level = 10 : i32, message = "bij,bjd->bid"}> : () -> ()
    %cst_11 = arith.constant dense<0.000000e+00> : vector<2x8x32xf32>
    %47 = tpu.matmul %46, %34, %cst_11 {dimension_numbers = #tpu.dot_dimension_numbers<[2], [1], [1], [2], [0, 0, 0, 1, 1, 2], [0], [0]>} : vector<2x8x8xbf16>, vector<2x8x32xbf16>, vector<2x8x32xf32> -> vector<2x8x32xf32>
    "tpu.trace_stop"() : () -> ()
    %48 = vector.shape_cast %47 : vector<2x8x32xf32> to vector<16x32xf32>
    %49 = arith.truncf %48 : vector<16x32xf32> to vector<16x32xbf16>
    %50 = vector.extract_strided_slice %5 {offsets = [0, 64], sizes = [16, 32], strides = [1, 1]} : vector<16x128xbf16> to vector<16x32xbf16>
    %51 = vector.shape_cast %50 : vector<16x32xbf16> to vector<2x8x32xbf16>
    %52 = vector.extract_strided_slice %6 {offsets = [0, 64], sizes = [16, 32], strides = [1, 1]} : vector<16x128xbf16> to vector<16x32xbf16>
    %53 = vector.shape_cast %52 : vector<16x32xbf16> to vector<2x8x32xbf16>
    %54 = vector.extract_strided_slice %7 {offsets = [0, 64], sizes = [16, 32], strides = [1, 1]} : vector<16x128xbf16> to vector<16x32xbf16>
    %55 = vector.shape_cast %54 : vector<16x32xbf16> to vector<2x8x32xbf16>
    "tpu.trace_start"() <{level = 10 : i32, message = "bid,bjd->bij"}> : () -> ()
    %cst_12 = arith.constant dense<0.000000e+00> : vector<2x8x8xf32>
    %56 = tpu.matmul %51, %53, %cst_12 {dimension_numbers = #tpu.dot_dimension_numbers<[2], [2], [1], [1], [0, 0, 0, 1, 1, 1], [0], [0]>} : vector<2x8x32xbf16>, vector<2x8x32xbf16>, vector<2x8x8xf32> -> vector<2x8x8xf32>
    "tpu.trace_stop"() : () -> ()
    %cst_13 = arith.constant dense<0xFF800000> : vector<2x8xf32>
    %57 = vector.multi_reduction <maximumf>, %56, %cst_13 [2] : vector<2x8x8xf32> to vector<2x8xf32>
    %58 = vector.shape_cast %57 : vector<2x8xf32> to vector<2x8x1xf32>
    %59 = vector.broadcast %58 : vector<2x8x1xf32> to vector<2x8x8xf32>
    %60 = arith.subf %56, %59 : vector<2x8x8xf32>
    %61 = math.exp %60 : vector<2x8x8xf32>
    %cst_14 = arith.constant dense<0.000000e+00> : vector<2x8xf32>
    %62 = vector.multi_reduction <add>, %61, %cst_14 [2] : vector<2x8x8xf32> to vector<2x8xf32>
    %63 = vector.shape_cast %62 : vector<2x8xf32> to vector<2x8x1xf32>
    %64 = tpu.reciprocal %63 {approx = true} : vector<2x8x1xf32> -> vector<2x8x1xf32>
    %65 = vector.broadcast %64 : vector<2x8x1xf32> to vector<2x8x8xf32>
    %66 = arith.mulf %61, %65 : vector<2x8x8xf32>
    %67 = arith.truncf %66 : vector<2x8x8xf32> to vector<2x8x8xbf16>
    "tpu.trace_start"() <{level = 10 : i32, message = "bij,bjd->bid"}> : () -> ()
    %cst_15 = arith.constant dense<0.000000e+00> : vector<2x8x32xf32>
    %68 = tpu.matmul %67, %55, %cst_15 {dimension_numbers = #tpu.dot_dimension_numbers<[2], [1], [1], [2], [0, 0, 0, 1, 1, 2], [0], [0]>} : vector<2x8x8xbf16>, vector<2x8x32xbf16>, vector<2x8x32xf32> -> vector<2x8x32xf32>
    "tpu.trace_stop"() : () -> ()
    %69 = vector.shape_cast %68 : vector<2x8x32xf32> to vector<16x32xf32>
    %70 = arith.truncf %69 : vector<16x32xf32> to vector<16x32xbf16>
    %71 = vector.extract_strided_slice %5 {offsets = [0, 96], sizes = [16, 32], strides = [1, 1]} : vector<16x128xbf16> to vector<16x32xbf16>
    %72 = vector.shape_cast %71 : vector<16x32xbf16> to vector<2x8x32xbf16>
    %73 = vector.extract_strided_slice %6 {offsets = [0, 96], sizes = [16, 32], strides = [1, 1]} : vector<16x128xbf16> to vector<16x32xbf16>
    %74 = vector.shape_cast %73 : vector<16x32xbf16> to vector<2x8x32xbf16>
    %75 = vector.extract_strided_slice %7 {offsets = [0, 96], sizes = [16, 32], strides = [1, 1]} : vector<16x128xbf16> to vector<16x32xbf16>
    %76 = vector.shape_cast %75 : vector<16x32xbf16> to vector<2x8x32xbf16>
    "tpu.trace_start"() <{level = 10 : i32, message = "bid,bjd->bij"}> : () -> ()
    %cst_16 = arith.constant dense<0.000000e+00> : vector<2x8x8xf32>
    %77 = tpu.matmul %72, %74, %cst_16 {dimension_numbers = #tpu.dot_dimension_numbers<[2], [2], [1], [1], [0, 0, 0, 1, 1, 1], [0], [0]>} : vector<2x8x32xbf16>, vector<2x8x32xbf16>, vector<2x8x8xf32> -> vector<2x8x8xf32>
    "tpu.trace_stop"() : () -> ()
    %cst_17 = arith.constant dense<0xFF800000> : vector<2x8xf32>
    %78 = vector.multi_reduction <maximumf>, %77, %cst_17 [2] : vector<2x8x8xf32> to vector<2x8xf32>
    %79 = vector.shape_cast %78 : vector<2x8xf32> to vector<2x8x1xf32>
    %80 = vector.broadcast %79 : vector<2x8x1xf32> to vector<2x8x8xf32>
    %81 = arith.subf %77, %80 : vector<2x8x8xf32>
    %82 = math.exp %81 : vector<2x8x8xf32>
    %cst_18 = arith.constant dense<0.000000e+00> : vector<2x8xf32>
    %83 = vector.multi_reduction <add>, %82, %cst_18 [2] : vector<2x8x8xf32> to vector<2x8xf32>
    %84 = vector.shape_cast %83 : vector<2x8xf32> to vector<2x8x1xf32>
    %85 = tpu.reciprocal %84 {approx = true} : vector<2x8x1xf32> -> vector<2x8x1xf32>
    %86 = vector.broadcast %85 : vector<2x8x1xf32> to vector<2x8x8xf32>
    %87 = arith.mulf %82, %86 : vector<2x8x8xf32>
    %88 = arith.truncf %87 : vector<2x8x8xf32> to vector<2x8x8xbf16>
    "tpu.trace_start"() <{level = 10 : i32, message = "bij,bjd->bid"}> : () -> ()
    %cst_19 = arith.constant dense<0.000000e+00> : vector<2x8x32xf32>
    %89 = tpu.matmul %88, %76, %cst_19 {dimension_numbers = #tpu.dot_dimension_numbers<[2], [1], [1], [2], [0, 0, 0, 1, 1, 2], [0], [0]>} : vector<2x8x8xbf16>, vector<2x8x32xbf16>, vector<2x8x32xf32> -> vector<2x8x32xf32>
    "tpu.trace_stop"() : () -> ()
    %90 = vector.shape_cast %89 : vector<2x8x32xf32> to vector<16x32xf32>
    %91 = arith.truncf %90 : vector<16x32xf32> to vector<16x32xbf16>
    %92 = tpu.concatenate %28, %49, %70, %91 in 1 : vector<16x32xbf16>, vector<16x32xbf16>, vector<16x32xbf16>, vector<16x32xbf16> -> vector<16x128xbf16>
    %c0_20 = arith.constant 0 : index
    %c0_21 = arith.constant 0 : index
    %93 = vector.load %arg3[%c0_20, %c0_21] : memref<128x128xbf16, #tpu.memory_space<vmem>>, vector<128x128xbf16>
    %cst_22 = arith.constant dense<0.000000e+00> : vector<16x128xf32>
    %94 = tpu.matmul %92, %93, %cst_22 {dimension_numbers = #tpu.dot_dimension_numbers<[1], [0], [0], [1], [0, 0, 1, 1], [], []>} : vector<16x128xbf16>, vector<128x128xbf16>, vector<16x128xf32> -> vector<16x128xf32>
    %c0_23 = arith.constant 0 : index
    %c0_24 = arith.constant 0 : index
    %95 = vector.load %arg4[%c0_23, %c0_24] : memref<1x128xf32, #tpu.memory_space<vmem>>, vector<1x128xf32>
    %96 = vector.broadcast %95 : vector<1x128xf32> to vector<16x128xf32>
    %97 = arith.addf %94, %96 : vector<16x128xf32>
    %98 = arith.truncf %97 : vector<16x128xf32> to vector<16x128xbf16>
    %c0_25 = arith.constant 0 : index
    %c0_26 = arith.constant 0 : index
    %99 = vector.load %arg5[%c0_25, %c0_26] : memref<128x128xbf16, #tpu.memory_space<vmem>>, vector<128x128xbf16>
    %cst_27 = arith.constant dense<0.000000e+00> : vector<16x128xf32>
    %100 = tpu.matmul %98, %99, %cst_27 {dimension_numbers = #tpu.dot_dimension_numbers<[1], [0], [0], [1], [0, 0, 1, 1], [], []>} : vector<16x128xbf16>, vector<128x128xbf16>, vector<16x128xf32> -> vector<16x128xf32>
    %101 = arith.truncf %100 : vector<16x128xf32> to vector<16x128xbf16>
    %c0_28 = arith.constant 0 : index
    %c0_29 = arith.constant 0 : index
    %102 = vector.load %arg6[%c0_28, %c0_29] : memref<128x256xbf16, #tpu.memory_space<vmem>>, vector<128x256xbf16>
    %cst_30 = arith.constant dense<0.000000e+00> : vector<16x256xf32>
    %103 = tpu.matmul %1, %102, %cst_30 {dimension_numbers = #tpu.dot_dimension_numbers<[1], [0], [0], [1], [0, 0, 1, 1], [], []>} : vector<16x128xbf16>, vector<128x256xbf16>, vector<16x256xf32> -> vector<16x256xf32>
    %104 = arith.truncf %103 : vector<16x256xf32> to vector<16x256xbf16>
    %105 = vector.extract_strided_slice %104 {offsets = [0, 0], sizes = [16, 128], strides = [1, 1]} : vector<16x256xbf16> to vector<16x128xbf16>
    %106 = vector.extract_strided_slice %104 {offsets = [0, 128], sizes = [16, 128], strides = [1, 1]} : vector<16x256xbf16> to vector<16x128xbf16>
    %107 = vector.extract_strided_slice %101 {offsets = [0, 0], sizes = [16, 32], strides = [1, 1]} : vector<16x128xbf16> to vector<16x32xbf16>
    %108 = vector.shape_cast %107 : vector<16x32xbf16> to vector<2x8x32xbf16>
    %109 = vector.extract_strided_slice %105 {offsets = [0, 0], sizes = [16, 32], strides = [1, 1]} : vector<16x128xbf16> to vector<16x32xbf16>
    %110 = vector.shape_cast %109 : vector<16x32xbf16> to vector<2x8x32xbf16>
    %111 = vector.extract_strided_slice %106 {offsets = [0, 0], sizes = [16, 32], strides = [1, 1]} : vector<16x128xbf16> to vector<16x32xbf16>
    %112 = vector.shape_cast %111 : vector<16x32xbf16> to vector<2x8x32xbf16>
    "tpu.trace_start"() <{level = 10 : i32, message = "bid,bjd->bij"}> : () -> ()
    %cst_31 = arith.constant dense<0.000000e+00> : vector<2x8x8xf32>
    %113 = tpu.matmul %108, %110, %cst_31 {dimension_numbers = #tpu.dot_dimension_numbers<[2], [2], [1], [1], [0, 0, 0, 1, 1, 1], [0], [0]>} : vector<2x8x32xbf16>, vector<2x8x32xbf16>, vector<2x8x8xf32> -> vector<2x8x8xf32>
    "tpu.trace_stop"() : () -> ()
    %cst_32 = arith.constant dense<0xFF800000> : vector<2x8xf32>
    %114 = vector.multi_reduction <maximumf>, %113, %cst_32 [2] : vector<2x8x8xf32> to vector<2x8xf32>
    %115 = vector.shape_cast %114 : vector<2x8xf32> to vector<2x8x1xf32>
    %116 = vector.broadcast %115 : vector<2x8x1xf32> to vector<2x8x8xf32>
    %117 = arith.subf %113, %116 : vector<2x8x8xf32>
    %118 = math.exp %117 : vector<2x8x8xf32>
    %cst_33 = arith.constant dense<0.000000e+00> : vector<2x8xf32>
    %119 = vector.multi_reduction <add>, %118, %cst_33 [2] : vector<2x8x8xf32> to vector<2x8xf32>
    %120 = vector.shape_cast %119 : vector<2x8xf32> to vector<2x8x1xf32>
    %121 = tpu.reciprocal %120 {approx = true} : vector<2x8x1xf32> -> vector<2x8x1xf32>
    %122 = vector.broadcast %121 : vector<2x8x1xf32> to vector<2x8x8xf32>
    %123 = arith.mulf %118, %122 : vector<2x8x8xf32>
    %124 = arith.truncf %123 : vector<2x8x8xf32> to vector<2x8x8xbf16>
    "tpu.trace_start"() <{level = 10 : i32, message = "bij,bjd->bid"}> : () -> ()
    %cst_34 = arith.constant dense<0.000000e+00> : vector<2x8x32xf32>
    %125 = tpu.matmul %124, %112, %cst_34 {dimension_numbers = #tpu.dot_dimension_numbers<[2], [1], [1], [2], [0, 0, 0, 1, 1, 2], [0], [0]>} : vector<2x8x8xbf16>, vector<2x8x32xbf16>, vector<2x8x32xf32> -> vector<2x8x32xf32>
    "tpu.trace_stop"() : () -> ()
    %126 = vector.shape_cast %125 : vector<2x8x32xf32> to vector<16x32xf32>
    %127 = arith.truncf %126 : vector<16x32xf32> to vector<16x32xbf16>
    %128 = vector.extract_strided_slice %101 {offsets = [0, 32], sizes = [16, 32], strides = [1, 1]} : vector<16x128xbf16> to vector<16x32xbf16>
    %129 = vector.shape_cast %128 : vector<16x32xbf16> to vector<2x8x32xbf16>
    %130 = vector.extract_strided_slice %105 {offsets = [0, 32], sizes = [16, 32], strides = [1, 1]} : vector<16x128xbf16> to vector<16x32xbf16>
    %131 = vector.shape_cast %130 : vector<16x32xbf16> to vector<2x8x32xbf16>
    %132 = vector.extract_strided_slice %106 {offsets = [0, 32], sizes = [16, 32], strides = [1, 1]} : vector<16x128xbf16> to vector<16x32xbf16>
    %133 = vector.shape_cast %132 : vector<16x32xbf16> to vector<2x8x32xbf16>
    "tpu.trace_start"() <{level = 10 : i32, message = "bid,bjd->bij"}> : () -> ()
    %cst_35 = arith.constant dense<0.000000e+00> : vector<2x8x8xf32>
    %134 = tpu.matmul %129, %131, %cst_35 {dimension_numbers = #tpu.dot_dimension_numbers<[2], [2], [1], [1], [0, 0, 0, 1, 1, 1], [0], [0]>} : vector<2x8x32xbf16>, vector<2x8x32xbf16>, vector<2x8x8xf32> -> vector<2x8x8xf32>
    "tpu.trace_stop"() : () -> ()
    %cst_36 = arith.constant dense<0xFF800000> : vector<2x8xf32>
    %135 = vector.multi_reduction <maximumf>, %134, %cst_36 [2] : vector<2x8x8xf32> to vector<2x8xf32>
    %136 = vector.shape_cast %135 : vector<2x8xf32> to vector<2x8x1xf32>
    %137 = vector.broadcast %136 : vector<2x8x1xf32> to vector<2x8x8xf32>
    %138 = arith.subf %134, %137 : vector<2x8x8xf32>
    %139 = math.exp %138 : vector<2x8x8xf32>
    %cst_37 = arith.constant dense<0.000000e+00> : vector<2x8xf32>
    %140 = vector.multi_reduction <add>, %139, %cst_37 [2] : vector<2x8x8xf32> to vector<2x8xf32>
    %141 = vector.shape_cast %140 : vector<2x8xf32> to vector<2x8x1xf32>
    %142 = tpu.reciprocal %141 {approx = true} : vector<2x8x1xf32> -> vector<2x8x1xf32>
    %143 = vector.broadcast %142 : vector<2x8x1xf32> to vector<2x8x8xf32>
    %144 = arith.mulf %139, %143 : vector<2x8x8xf32>
    %145 = arith.truncf %144 : vector<2x8x8xf32> to vector<2x8x8xbf16>
    "tpu.trace_start"() <{level = 10 : i32, message = "bij,bjd->bid"}> : () -> ()
    %cst_38 = arith.constant dense<0.000000e+00> : vector<2x8x32xf32>
    %146 = tpu.matmul %145, %133, %cst_38 {dimension_numbers = #tpu.dot_dimension_numbers<[2], [1], [1], [2], [0, 0, 0, 1, 1, 2], [0], [0]>} : vector<2x8x8xbf16>, vector<2x8x32xbf16>, vector<2x8x32xf32> -> vector<2x8x32xf32>
    "tpu.trace_stop"() : () -> ()
    %147 = vector.shape_cast %146 : vector<2x8x32xf32> to vector<16x32xf32>
    %148 = arith.truncf %147 : vector<16x32xf32> to vector<16x32xbf16>
    %149 = vector.extract_strided_slice %101 {offsets = [0, 64], sizes = [16, 32], strides = [1, 1]} : vector<16x128xbf16> to vector<16x32xbf16>
    %150 = vector.shape_cast %149 : vector<16x32xbf16> to vector<2x8x32xbf16>
    %151 = vector.extract_strided_slice %105 {offsets = [0, 64], sizes = [16, 32], strides = [1, 1]} : vector<16x128xbf16> to vector<16x32xbf16>
    %152 = vector.shape_cast %151 : vector<16x32xbf16> to vector<2x8x32xbf16>
    %153 = vector.extract_strided_slice %106 {offsets = [0, 64], sizes = [16, 32], strides = [1, 1]} : vector<16x128xbf16> to vector<16x32xbf16>
    %154 = vector.shape_cast %153 : vector<16x32xbf16> to vector<2x8x32xbf16>
    "tpu.trace_start"() <{level = 10 : i32, message = "bid,bjd->bij"}> : () -> ()
    %cst_39 = arith.constant dense<0.000000e+00> : vector<2x8x8xf32>
    %155 = tpu.matmul %150, %152, %cst_39 {dimension_numbers = #tpu.dot_dimension_numbers<[2], [2], [1], [1], [0, 0, 0, 1, 1, 1], [0], [0]>} : vector<2x8x32xbf16>, vector<2x8x32xbf16>, vector<2x8x8xf32> -> vector<2x8x8xf32>
    "tpu.trace_stop"() : () -> ()
    %cst_40 = arith.constant dense<0xFF800000> : vector<2x8xf32>
    %156 = vector.multi_reduction <maximumf>, %155, %cst_40 [2] : vector<2x8x8xf32> to vector<2x8xf32>
    %157 = vector.shape_cast %156 : vector<2x8xf32> to vector<2x8x1xf32>
    %158 = vector.broadcast %157 : vector<2x8x1xf32> to vector<2x8x8xf32>
    %159 = arith.subf %155, %158 : vector<2x8x8xf32>
    %160 = math.exp %159 : vector<2x8x8xf32>
    %cst_41 = arith.constant dense<0.000000e+00> : vector<2x8xf32>
    %161 = vector.multi_reduction <add>, %160, %cst_41 [2] : vector<2x8x8xf32> to vector<2x8xf32>
    %162 = vector.shape_cast %161 : vector<2x8xf32> to vector<2x8x1xf32>
    %163 = tpu.reciprocal %162 {approx = true} : vector<2x8x1xf32> -> vector<2x8x1xf32>
    %164 = vector.broadcast %163 : vector<2x8x1xf32> to vector<2x8x8xf32>
    %165 = arith.mulf %160, %164 : vector<2x8x8xf32>
    %166 = arith.truncf %165 : vector<2x8x8xf32> to vector<2x8x8xbf16>
    "tpu.trace_start"() <{level = 10 : i32, message = "bij,bjd->bid"}> : () -> ()
    %cst_42 = arith.constant dense<0.000000e+00> : vector<2x8x32xf32>
    %167 = tpu.matmul %166, %154, %cst_42 {dimension_numbers = #tpu.dot_dimension_numbers<[2], [1], [1], [2], [0, 0, 0, 1, 1, 2], [0], [0]>} : vector<2x8x8xbf16>, vector<2x8x32xbf16>, vector<2x8x32xf32> -> vector<2x8x32xf32>
    "tpu.trace_stop"() : () -> ()
    %168 = vector.shape_cast %167 : vector<2x8x32xf32> to vector<16x32xf32>
    %169 = arith.truncf %168 : vector<16x32xf32> to vector<16x32xbf16>
    %170 = vector.extract_strided_slice %101 {offsets = [0, 96], sizes = [16, 32], strides = [1, 1]} : vector<16x128xbf16> to vector<16x32xbf16>
    %171 = vector.shape_cast %170 : vector<16x32xbf16> to vector<2x8x32xbf16>
    %172 = vector.extract_strided_slice %105 {offsets = [0, 96], sizes = [16, 32], strides = [1, 1]} : vector<16x128xbf16> to vector<16x32xbf16>
    %173 = vector.shape_cast %172 : vector<16x32xbf16> to vector<2x8x32xbf16>
    %174 = vector.extract_strided_slice %106 {offsets = [0, 96], sizes = [16, 32], strides = [1, 1]} : vector<16x128xbf16> to vector<16x32xbf16>
    %175 = vector.shape_cast %174 : vector<16x32xbf16> to vector<2x8x32xbf16>
    "tpu.trace_start"() <{level = 10 : i32, message = "bid,bjd->bij"}> : () -> ()
    %cst_43 = arith.constant dense<0.000000e+00> : vector<2x8x8xf32>
    %176 = tpu.matmul %171, %173, %cst_43 {dimension_numbers = #tpu.dot_dimension_numbers<[2], [2], [1], [1], [0, 0, 0, 1, 1, 1], [0], [0]>} : vector<2x8x32xbf16>, vector<2x8x32xbf16>, vector<2x8x8xf32> -> vector<2x8x8xf32>
    "tpu.trace_stop"() : () -> ()
    %cst_44 = arith.constant dense<0xFF800000> : vector<2x8xf32>
    %177 = vector.multi_reduction <maximumf>, %176, %cst_44 [2] : vector<2x8x8xf32> to vector<2x8xf32>
    %178 = vector.shape_cast %177 : vector<2x8xf32> to vector<2x8x1xf32>
    %179 = vector.broadcast %178 : vector<2x8x1xf32> to vector<2x8x8xf32>
    %180 = arith.subf %176, %179 : vector<2x8x8xf32>
    %181 = math.exp %180 : vector<2x8x8xf32>
    %cst_45 = arith.constant dense<0.000000e+00> : vector<2x8xf32>
    %182 = vector.multi_reduction <add>, %181, %cst_45 [2] : vector<2x8x8xf32> to vector<2x8xf32>
    %183 = vector.shape_cast %182 : vector<2x8xf32> to vector<2x8x1xf32>
    %184 = tpu.reciprocal %183 {approx = true} : vector<2x8x1xf32> -> vector<2x8x1xf32>
    %185 = vector.broadcast %184 : vector<2x8x1xf32> to vector<2x8x8xf32>
    %186 = arith.mulf %181, %185 : vector<2x8x8xf32>
    %187 = arith.truncf %186 : vector<2x8x8xf32> to vector<2x8x8xbf16>
    "tpu.trace_start"() <{level = 10 : i32, message = "bij,bjd->bid"}> : () -> ()
    %cst_46 = arith.constant dense<0.000000e+00> : vector<2x8x32xf32>
    %188 = tpu.matmul %187, %175, %cst_46 {dimension_numbers = #tpu.dot_dimension_numbers<[2], [1], [1], [2], [0, 0, 0, 1, 1, 2], [0], [0]>} : vector<2x8x8xbf16>, vector<2x8x32xbf16>, vector<2x8x32xf32> -> vector<2x8x32xf32>
    "tpu.trace_stop"() : () -> ()
    %189 = vector.shape_cast %188 : vector<2x8x32xf32> to vector<16x32xf32>
    %190 = arith.truncf %189 : vector<16x32xf32> to vector<16x32xbf16>
    %191 = tpu.concatenate %127, %148, %169, %190 in 1 : vector<16x32xbf16>, vector<16x32xbf16>, vector<16x32xbf16>, vector<16x32xbf16> -> vector<16x128xbf16>
    %c0_47 = arith.constant 0 : index
    %c0_48 = arith.constant 0 : index
    %192 = vector.load %arg7[%c0_47, %c0_48] : memref<128x128xbf16, #tpu.memory_space<vmem>>, vector<128x128xbf16>
    %cst_49 = arith.constant dense<0.000000e+00> : vector<16x128xf32>
    %193 = tpu.matmul %191, %192, %cst_49 {dimension_numbers = #tpu.dot_dimension_numbers<[1], [0], [0], [1], [0, 0, 1, 1], [], []>} : vector<16x128xbf16>, vector<128x128xbf16>, vector<16x128xf32> -> vector<16x128xf32>
    %c0_50 = arith.constant 0 : index
    %c0_51 = arith.constant 0 : index
    %194 = vector.load %arg8[%c0_50, %c0_51] : memref<1x128xf32, #tpu.memory_space<vmem>>, vector<1x128xf32>
    %195 = vector.broadcast %194 : vector<1x128xf32> to vector<16x128xf32>
    %196 = arith.addf %193, %195 : vector<16x128xf32>
    %197 = arith.truncf %196 : vector<16x128xf32> to vector<16x128xbf16>
    %c0_52 = arith.constant 0 : index
    %c0_53 = arith.constant 0 : index
    %198 = vector.load %arg9[%c0_52, %c0_53] : memref<128x128xbf16, #tpu.memory_space<vmem>>, vector<128x128xbf16>
    %cst_54 = arith.constant dense<0.000000e+00> : vector<16x128xf32>
    %199 = tpu.matmul %197, %198, %cst_54 {dimension_numbers = #tpu.dot_dimension_numbers<[1], [0], [0], [1], [0, 0, 1, 1], [], []>} : vector<16x128xbf16>, vector<128x128xbf16>, vector<16x128xf32> -> vector<16x128xf32>
    %c0_55 = arith.constant 0 : index
    %c0_56 = arith.constant 0 : index
    %200 = vector.load %arg10[%c0_55, %c0_56] : memref<1x128xf32, #tpu.memory_space<vmem>>, vector<1x128xf32>
    %201 = vector.broadcast %200 : vector<1x128xf32> to vector<16x128xf32>
    %202 = arith.addf %199, %201 : vector<16x128xf32>
    %203 = vector.shape_cast %202 : vector<16x128xf32> to vector<2x8x128xf32>
    %c0_57 = arith.constant 0 : index
    %c0_58 = arith.constant 0 : index
    %c0_59 = arith.constant 0 : index
    %204 = vector.load %arg11[%c0_57, %c0_58, %c0_59] : memref<2x8x128xf32, #tpu.memory_space<vmem>>, vector<2x8x128xf32>
    tpu.vector_store %arg11[%c0_57, %c0_58, %c0_59], %203 {strides = array<i32>} : memref<2x8x128xf32, #tpu.memory_space<vmem>>, vector<2x8x128xf32>,
    return
  }
  func.func @transform_0(%arg0: i32) -> (i32, i32, i32) {
    %c0_i32 = arith.constant 0 : i32
    %c0_i32_0 = arith.constant 0 : i32
    %c0_i32_1 = arith.constant 0 : i32
    return %arg0, %c0_i32, %c0_i32_0 : i32, i32, i32
  }
  func.func @transform_1(%arg0: i32) -> (i32, i32) {
    %c0_i32 = arith.constant 0 : i32
    %c0_i32_0 = arith.constant 0 : i32
    %c0_i32_1 = arith.constant 0 : i32
    return %c0_i32, %c0_i32_0 : i32, i32
  }
  func.func @transform_2(%arg0: i32) -> (i32, i32) {
    %c0_i32 = arith.constant 0 : i32
    %c0_i32_0 = arith.constant 0 : i32
    %c0_i32_1 = arith.constant 0 : i32
    return %c0_i32, %c0_i32_0 : i32, i32
  }
  func.func @transform_3(%arg0: i32) -> (i32, i32) {
    %c0_i32 = arith.constant 0 : i32
    %c0_i32_0 = arith.constant 0 : i32
    %c0_i32_1 = arith.constant 0 : i32
    return %c0_i32, %c0_i32_0 : i32, i32
  }
  func.func @transform_4(%arg0: i32) -> (i32, i32) {
    %c0_i32 = arith.constant 0 : i32
    %c0_i32_0 = arith.constant 0 : i32
    %c0_i32_1 = arith.constant 0 : i32
    return %c0_i32, %c0_i32_0 : i32, i32
  }
  func.func @transform_5(%arg0: i32) -> (i32, i32) {
    %c0_i32 = arith.constant 0 : i32
    %c0_i32_0 = arith.constant 0 : i32
    %c0_i32_1 = arith.constant 0 : i32
    return %c0_i32, %c0_i32_0 : i32, i32
  }
  func.func @transform_6(%arg0: i32) -> (i32, i32) {
    %c0_i32 = arith.constant 0 : i32
    %c0_i32_0 = arith.constant 0 : i32
    %c0_i32_1 = arith.constant 0 : i32
    return %c0_i32, %c0_i32_0 : i32, i32
  }
  func.func @transform_7(%arg0: i32) -> (i32, i32) {
    %c0_i32 = arith.constant 0 : i32
    %c0_i32_0 = arith.constant 0 : i32
    %c0_i32_1 = arith.constant 0 : i32
    return %c0_i32, %c0_i32_0 : i32, i32
  }
  func.func @transform_8(%arg0: i32) -> (i32, i32) {
    %c0_i32 = arith.constant 0 : i32
    %c0_i32_0 = arith.constant 0 : i32
    %c0_i32_1 = arith.constant 0 : i32
    return %c0_i32, %c0_i32_0 : i32, i32
  }
  func.func @transform_9(%arg0: i32) -> (i32, i32) {
    %c0_i32 = arith.constant 0 : i32
    %c0_i32_0 = arith.constant 0 : i32
    %c0_i32_1 = arith.constant 0 : i32
    return %c0_i32, %c0_i32_0 : i32, i32
  }
  func.func @transform_10(%arg0: i32) -> (i32, i32, i32) {
    %c0_i32 = arith.constant 0 : i32
    %c0_i32_0 = arith.constant 0 : i32
    %c0_i32_1 = arith.constant 0 : i32
    return %arg0, %c0_i32, %c0_i32_0 : i32, i32, i32
  }
}

module attributes {stable_mosaic.version = 11 : i64} {
  func.func @attentions_kernel(%arg0: i32, %arg1: memref<2x8x128xbf16, #tpu.memory_space<vmem>>, %arg2: memref<128x384xbf16, #tpu.memory_space<vmem>>, %arg3: memref<128x128xbf16, #tpu.memory_space<vmem>>, %arg4: memref<1x128xf32, #tpu.memory_space<vmem>>, %arg5: memref<128x128xbf16, #tpu.memory_space<vmem>>, %arg6: memref<128x256xbf16, #tpu.memory_space<vmem>>, %arg7: memref<128x128xbf16, #tpu.memory_space<vmem>>, %arg8: memref<1x128xf32, #tpu.memory_space<vmem>>, %arg9: memref<128x128xbf16, #tpu.memory_space<vmem>>, %arg10: memref<1x128xf32, #tpu.memory_space<vmem>>, %arg11: memref<2x8x128xf32, #tpu.memory_space<vmem>>) attributes {dimension_semantics = [#tpu.dimension_semantics<parallel>], iteration_bounds = array<i64: 2>, scalar_prefetch = 0 : i64, scratch_operands = 0 : i64, tpu.core_type = #tpu.core_type<tc>, window_params = [{transform_indices = @transform_0, window_bounds = array<i64: 2, 8, 128>}, {pipeline_mode = #tpu.pipeline_mode<synchronous>, transform_indices = @transform_1, window_bounds = array<i64: 128, 384>}, {pipeline_mode = #tpu.pipeline_mode<synchronous>, transform_indices = @transform_2, window_bounds = array<i64: 128, 128>}, {pipeline_mode = #tpu.pipeline_mode<synchronous>, transform_indices = @transform_3, window_bounds = array<i64: 1, 128>}, {pipeline_mode = #tpu.pipeline_mode<synchronous>, transform_indices = @transform_4, window_bounds = array<i64: 128, 128>}, {pipeline_mode = #tpu.pipeline_mode<synchronous>, transform_indices = @transform_5, window_bounds = array<i64: 128, 256>}, {pipeline_mode = #tpu.pipeline_mode<synchronous>, transform_indices = @transform_6, window_bounds = array<i64: 128, 128>}, {pipeline_mode = #tpu.pipeline_mode<synchronous>, transform_indices = @transform_7, window_bounds = array<i64: 1, 128>}, {pipeline_mode = #tpu.pipeline_mode<synchronous>, transform_indices = @transform_8, window_bounds = array<i64: 128, 128>}, {pipeline_mode = #tpu.pipeline_mode<synchronous>, transform_indices = @transform_9, window_bounds = array<i64: 1, 128>}, {transform_indices = @transform_10, window_bounds = array<i64: 2, 8, 128>}]} {
    %c0 = arith.constant 0 : index
    %c0_0 = arith.constant 0 : index
    %c0_1 = arith.constant 0 : index
    %0 = vector.load %arg1[%c0, %c0_0, %c0_1] : memref<2x8x128xbf16, #tpu.memory_space<vmem>>, vector<2x8x128xbf16>
    %1 = vector.shape_cast %0 : vector<2x8x128xbf16> to vector<16x128xbf16>
    %c0_2 = arith.constant 0 : index
    %c0_3 = arith.constant 0 : index
    %2 = vector.load %arg2[%c0_2, %c0_3] : memref<128x384xbf16, #tpu.memory_space<vmem>>, vector<128x384xbf16>
    %cst = arith.constant dense<0.000000e+00> : vector<16x384xf32>
    %3 = tpu.matmul %1, %2, %cst {dimension_numbers = #tpu.dot_dimension_numbers<[1], [0], [0], [1], [0, 0, 1, 1], [], []>} : vector<16x128xbf16>, vector<128x384xbf16>, vector<16x384xf32> -> vector<16x384xf32>
    %4 = arith.truncf %3 : vector<16x384xf32> to vector<16x384xbf16>
    %5 = vector.extract_strided_slice %4 {offsets = [0, 0], sizes = [16, 128], strides = [1, 1]} : vector<16x384xbf16> to vector<16x128xbf16>
    %6 = vector.extract_strided_slice %4 {offsets = [0, 128], sizes = [16, 128], strides = [1, 1]} : vector<16x384xbf16> to vector<16x128xbf16>
    %7 = vector.extract_strided_slice %4 {offsets = [0, 256], sizes = [16, 128], strides = [1, 1]} : vector<16x384xbf16> to vector<16x128xbf16>
    %8 = vector.extract_strided_slice %5 {offsets = [0, 0], sizes = [16, 32], strides = [1, 1]} : vector<16x128xbf16> to vector<16x32xbf16>
    %9 = vector.shape_cast %8 : vector<16x32xbf16> to vector<2x8x32xbf16>
    %10 = vector.extract_strided_slice %6 {offsets = [0, 0], sizes = [16, 32], strides = [1, 1]} : vector<16x128xbf16> to vector<16x32xbf16>
    %11 = vector.shape_cast %10 : vector<16x32xbf16> to vector<2x8x32xbf16>
    %12 = vector.extract_strided_slice %7 {offsets = [0, 0], sizes = [16, 32], strides = [1, 1]} : vector<16x128xbf16> to vector<16x32xbf16>
    %13 = vector.shape_cast %12 : vector<16x32xbf16> to vector<2x8x32xbf16>
    "tpu.trace_start"() <{level = 10 : i32, message = "bid,bjd->bij"}> : () -> ()
    %cst_4 = arith.constant dense<0.000000e+00> : vector<2x8x8xf32>
    %14 = tpu.matmul %9, %11, %cst_4 {dimension_numbers = #tpu.dot_dimension_numbers<[2], [2], [1], [1], [0, 0, 0, 1, 1, 1], [0], [0]>} : vector<2x8x32xbf16>, vector<2x8x32xbf16>, vector<2x8x8xf32> -> vector<2x8x8xf32>
    "tpu.trace_stop"() : () -> ()
    %cst_5 = arith.constant dense<0xFF800000> : vector<2x8xf32>
    %15 = vector.multi_reduction <maximumf>, %14, %cst_5 [2] : vector<2x8x8xf32> to vector<2x8xf32>
    %16 = vector.shape_cast %15 : vector<2x8xf32> to vector<2x8x1xf32>
    %17 = vector.broadcast %16 : vector<2x8x1xf32> to vector<2x8x8xf32>
    %18 = arith.subf %14, %17 : vector<2x8x8xf32>
    %19 = math.exp %18 : vector<2x8x8xf32>
    %cst_6 = arith.constant dense<0.000000e+00> : vector<2x8xf32>
    %20 = vector.multi_reduction <add>, %19, %cst_6 [2] : vector<2x8x8xf32> to vector<2x8xf32>
    %21 = vector.shape_cast %20 : vector<2x8xf32> to vector<2x8x1xf32>
    %22 = tpu.reciprocal %21 {approx = true} : vector<2x8x1xf32> -> vector<2x8x1xf32>
    %23 = vector.broadcast %22 : vector<2x8x1xf32> to vector<2x8x8xf32>
    %24 = arith.mulf %19, %23 : vector<2x8x8xf32>
    %25 = arith.truncf %24 : vector<2x8x8xf32> to vector<2x8x8xbf16>
    "tpu.trace_start"() <{level = 10 : i32, message = "bij,bjd->bid"}> : () -> ()
    %cst_7 = arith.constant dense<0.000000e+00> : vector<2x8x32xf32>
    %26 = tpu.matmul %25, %13, %cst_7 {dimension_numbers = #tpu.dot_dimension_numbers<[2], [1], [1], [2], [0, 0, 0, 1, 1, 2], [0], [0]>} : vector<2x8x8xbf16>, vector<2x8x32xbf16>, vector<2x8x32xf32> -> vector<2x8x32xf32>
    "tpu.trace_stop"() : () -> ()
    %27 = vector.shape_cast %26 : vector<2x8x32xf32> to vector<16x32xf32>
    %28 = arith.truncf %27 : vector<16x32xf32> to vector<16x32xbf16>
    %29 = vector.extract_strided_slice %5 {offsets = [0, 32], sizes = [16, 32], strides = [1, 1]} : vector<16x128xbf16> to vector<16x32xbf16>
    %30 = vector.shape_cast %29 : vector<16x32xbf16> to vector<2x8x32xbf16>
    %31 = vector.extract_strided_slice %6 {offsets = [0, 32], sizes = [16, 32], strides = [1, 1]} : vector<16x128xbf16> to vector<16x32xbf16>
    %32 = vector.shape_cast %31 : vector<16x32xbf16> to vector<2x8x32xbf16>
    %33 = vector.extract_strided_slice %7 {offsets = [0, 32], sizes = [16, 32], strides = [1, 1]} : vector<16x128xbf16> to vector<16x32xbf16>
    %34 = vector.shape_cast %33 : vector<16x32xbf16> to vector<2x8x32xbf16>
    "tpu.trace_start"() <{level = 10 : i32, message = "bid,bjd->bij"}> : () -> ()
    %cst_8 = arith.constant dense<0.000000e+00> : vector<2x8x8xf32>
    %35 = tpu.matmul %30, %32, %cst_8 {dimension_numbers = #tpu.dot_dimension_numbers<[2], [2], [1], [1], [0, 0, 0, 1, 1, 1], [0], [0]>} : vector<2x8x32xbf16>, vector<2x8x32xbf16>, vector<2x8x8xf32> -> vector<2x8x8xf32>
    "tpu.trace_stop"() : () -> ()
    %cst_9 = arith.constant dense<0xFF800000> : vector<2x8xf32>
    %36 = vector.multi_reduction <maximumf>, %35, %cst_9 [2] : vector<2x8x8xf32> to vector<2x8xf32>
    %37 = vector.shape_cast %36 : vector<2x8xf32> to vector<2x8x1xf32>
    %38 = vector.broadcast %37 : vector<2x8x1xf32> to vector<2x8x8xf32>
    %39 = arith.subf %35, %38 : vector<2x8x8xf32>
    %40 = math.exp %39 : vector<2x8x8xf32>
    %cst_10 = arith.constant dense<0.000000e+00> : vector<2x8xf32>
    %41 = vector.multi_reduction <add>, %40, %cst_10 [2] : vector<2x8x8xf32> to vector<2x8xf32>
    %42 = vector.shape_cast %41 : vector<2x8xf32> to vector<2x8x1xf32>
    %43 = tpu.reciprocal %42 {approx = true} : vector<2x8x1xf32> -> vector<2x8x1xf32>
    %44 = vector.broadcast %43 : vector<2x8x1xf32> to vector<2x8x8xf32>
    %45 = arith.mulf %40, %44 : vector<2x8x8xf32>
    %46 = arith.truncf %45 : vector<2x8x8xf32> to vector<2x8x8xbf16>
    "tpu.trace_start"() <{level = 10 : i32, message = "bij,bjd->bid"}> : () -> ()
    %cst_11 = arith.constant dense<0.000000e+00> : vector<2x8x32xf32>
    %47 = tpu.matmul %46, %34, %cst_11 {dimension_numbers = #tpu.dot_dimension_numbers<[2], [1], [1], [2], [0, 0, 0, 1, 1, 2], [0], [0]>} : vector<2x8x8xbf16>, vector<2x8x32xbf16>, vector<2x8x32xf32> -> vector<2x8x32xf32>
    "tpu.trace_stop"() : () -> ()
    %48 = vector.shape_cast %47 : vector<2x8x32xf32> to vector<16x32xf32>
    %49 = arith.truncf %48 : vector<16x32xf32> to vector<16x32xbf16>
    %50 = vector.extract_strided_slice %5 {offsets = [0, 64], sizes = [16, 32], strides = [1, 1]} : vector<16x128xbf16> to vector<16x32xbf16>
    %51 = vector.shape_cast %50 : vector<16x32xbf16> to vector<2x8x32xbf16>
    %52 = vector.extract_strided_slice %6 {offsets = [0, 64], sizes = [16, 32], strides = [1, 1]} : vector<16x128xbf16> to vector<16x32xbf16>
    %53 = vector.shape_cast %52 : vector<16x32xbf16> to vector<2x8x32xbf16>
    %54 = vector.extract_strided_slice %7 {offsets = [0, 64], sizes = [16, 32], strides = [1, 1]} : vector<16x128xbf16> to vector<16x32xbf16>
    %55 = vector.shape_cast %54 : vector<16x32xbf16> to vector<2x8x32xbf16>
    "tpu.trace_start"() <{level = 10 : i32, message = "bid,bjd->bij"}> : () -> ()
    %cst_12 = arith.constant dense<0.000000e+00> : vector<2x8x8xf32>
    %56 = tpu.matmul %51, %53, %cst_12 {dimension_numbers = #tpu.dot_dimension_numbers<[2], [2], [1], [1], [0, 0, 0, 1, 1, 1], [0], [0]>} : vector<2x8x32xbf16>, vector<2x8x32xbf16>, vector<2x8x8xf32> -> vector<2x8x8xf32>
    "tpu.trace_stop"() : () -> ()
    %cst_13 = arith.constant dense<0xFF800000> : vector<2x8xf32>
    %57 = vector.multi_reduction <maximumf>, %56, %cst_13 [2] : vector<2x8x8xf32> to vector<2x8xf32>
    %58 = vector.shape_cast %57 : vector<2x8xf32> to vector<2x8x1xf32>
    %59 = vector.broadcast %58 : vector<2x8x1xf32> to vector<2x8x8xf32>
    %60 = arith.subf %56, %59 : vector<2x8x8xf32>
    %61 = math.exp %60 : vector<2x8x8xf32>
    %cst_14 = arith.constant dense<0.000000e+00> : vector<2x8xf32>
    %62 = vector.multi_reduction <add>, %61, %cst_14 [2] : vector<2x8x8xf32> to vector<2x8xf32>
    %63 = vector.shape_cast %62 : vector<2x8xf32> to vector<2x8x1xf32>
    %64 = tpu.reciprocal %63 {approx = true} : vector<2x8x1xf32> -> vector<2x8x1xf32>
    %65 = vector.broadcast %64 : vector<2x8x1xf32> to vector<2x8x8xf32>
    %66 = arith.mulf %61, %65 : vector<2x8x8xf32>
    %67 = arith.truncf %66 : vector<2x8x8xf32> to vector<2x8x8xbf16>
    "tpu.trace_start"() <{level = 10 : i32, message = "bij,bjd->bid"}> : () -> ()
    %cst_15 = arith.constant dense<0.000000e+00> : vector<2x8x32xf32>
    %68 = tpu.matmul %67, %55, %cst_15 {dimension_numbers = #tpu.dot_dimension_numbers<[2], [1], [1], [2], [0, 0, 0, 1, 1, 2], [0], [0]>} : vector<2x8x8xbf16>, vector<2x8x32xbf16>, vector<2x8x32xf32> -> vector<2x8x32xf32>
    "tpu.trace_stop"() : () -> ()
    %69 = vector.shape_cast %68 : vector<2x8x32xf32> to vector<16x32xf32>
    %70 = arith.truncf %69 : vector<16x32xf32> to vector<16x32xbf16>
    %71 = vector.extract_strided_slice %5 {offsets = [0, 96], sizes = [16, 32], strides = [1, 1]} : vector<16x128xbf16> to vector<16x32xbf16>
    %72 = vector.shape_cast %71 : vector<16x32xbf16> to vector<2x8x32xbf16>
    %73 = vector.extract_strided_slice %6 {offsets = [0, 96], sizes = [16, 32], strides = [1, 1]} : vector<16x128xbf16> to vector<16x32xbf16>
    %74 = vector.shape_cast %73 : vector<16x32xbf16> to vector<2x8x32xbf16>
    %75 = vector.extract_strided_slice %7 {offsets = [0, 96], sizes = [16, 32], strides = [1, 1]} : vector<16x128xbf16> to vector<16x32xbf16>
    %76 = vector.shape_cast %75 : vector<16x32xbf16> to vector<2x8x32xbf16>
    "tpu.trace_start"() <{level = 10 : i32, message = "bid,bjd->bij"}> : () -> ()
    %cst_16 = arith.constant dense<0.000000e+00> : vector<2x8x8xf32>
    %77 = tpu.matmul %72, %74, %cst_16 {dimension_numbers = #tpu.dot_dimension_numbers<[2], [2], [1], [1], [0, 0, 0, 1, 1, 1], [0], [0]>} : vector<2x8x32xbf16>, vector<2x8x32xbf16>, vector<2x8x8xf32> -> vector<2x8x8xf32>
    "tpu.trace_stop"() : () -> ()
    %cst_17 = arith.constant dense<0xFF800000> : vector<2x8xf32>
    %78 = vector.multi_reduction <maximumf>, %77, %cst_17 [2] : vector<2x8x8xf32> to vector<2x8xf32>
    %79 = vector.shape_cast %78 : vector<2x8xf32> to vector<2x8x1xf32>
    %80 = vector.broadcast %79 : vector<2x8x1xf32> to vector<2x8x8xf32>
    %81 = arith.subf %77, %80 : vector<2x8x8xf32>
    %82 = math.exp %81 : vector<2x8x8xf32>
    %cst_18 = arith.constant dense<0.000000e+00> : vector<2x8xf32>
    %83 = vector.multi_reduction <add>, %82, %cst_18 [2] : vector<2x8x8xf32> to vector<2x8xf32>
    %84 = vector.shape_cast %83 : vector<2x8xf32> to vector<2x8x1xf32>
    %85 = tpu.reciprocal %84 {approx = true} : vector<2x8x1xf32> -> vector<2x8x1xf32>
    %86 = vector.broadcast %85 : vector<2x8x1xf32> to vector<2x8x8xf32>
    %87 = arith.mulf %82, %86 : vector<2x8x8xf32>
    %88 = arith.truncf %87 : vector<2x8x8xf32> to vector<2x8x8xbf16>
    "tpu.trace_start"() <{level = 10 : i32, message = "bij,bjd->bid"}> : () -> ()
    %cst_19 = arith.constant dense<0.000000e+00> : vector<2x8x32xf32>
    %89 = tpu.matmul %88, %76, %cst_19 {dimension_numbers = #tpu.dot_dimension_numbers<[2], [1], [1], [2], [0, 0, 0, 1, 1, 2], [0], [0]>} : vector<2x8x8xbf16>, vector<2x8x32xbf16>, vector<2x8x32xf32> -> vector<2x8x32xf32>
    "tpu.trace_stop"() : () -> ()
    %90 = vector.shape_cast %89 : vector<2x8x32xf32> to vector<16x32xf32>
    %91 = arith.truncf %90 : vector<16x32xf32> to vector<16x32xbf16>
    %92 = tpu.concatenate %28, %49, %70, %91 in 1 : vector<16x32xbf16>, vector<16x32xbf16>, vector<16x32xbf16>, vector<16x32xbf16> -> vector<16x128xbf16>
    %c0_20 = arith.constant 0 : index
    %c0_21 = arith.constant 0 : index
    %93 = vector.load %arg3[%c0_20, %c0_21] : memref<128x128xbf16, #tpu.memory_space<vmem>>, vector<128x128xbf16>
    %cst_22 = arith.constant dense<0.000000e+00> : vector<16x128xf32>
    %94 = tpu.matmul %92, %93, %cst_22 {dimension_numbers = #tpu.dot_dimension_numbers<[1], [0], [0], [1], [0, 0, 1, 1], [], []>} : vector<16x128xbf16>, vector<128x128xbf16>, vector<16x128xf32> -> vector<16x128xf32>
    %c0_23 = arith.constant 0 : index
    %c0_24 = arith.constant 0 : index
    %95 = vector.load %arg4[%c0_23, %c0_24] : memref<1x128xf32, #tpu.memory_space<vmem>>, vector<1x128xf32>
    %96 = vector.broadcast %95 : vector<1x128xf32> to vector<16x128xf32>
    %97 = arith.addf %94, %96 : vector<16x128xf32>
    %98 = arith.truncf %97 : vector<16x128xf32> to vector<16x128xbf16>
    %c0_25 = arith.constant 0 : index
    %c0_26 = arith.constant 0 : index
    %99 = vector.load %arg5[%c0_25, %c0_26] : memref<128x128xbf16, #tpu.memory_space<vmem>>, vector<128x128xbf16>
    %cst_27 = arith.constant dense<0.000000e+00> : vector<16x128xf32>
    %100 = tpu.matmul %98, %99, %cst_27 {dimension_numbers = #tpu.dot_dimension_numbers<[1], [0], [0], [1], [0, 0, 1, 1], [], []>} : vector<16x128xbf16>, vector<128x128xbf16>, vector<16x128xf32> -> vector<16x128xf32>
    %101 = arith.truncf %100 : vector<16x128xf32> to vector<16x128xbf16>
    %c0_28 = arith.constant 0 : index
    %c0_29 = arith.constant 0 : index
    %102 = vector.load %arg6[%c0_28, %c0_29] : memref<128x256xbf16, #tpu.memory_space<vmem>>, vector<128x256xbf16>
    %cst_30 = arith.constant dense<0.000000e+00> : vector<16x256xf32>
    %103 = tpu.matmul %1, %102, %cst_30 {dimension_numbers = #tpu.dot_dimension_numbers<[1], [0], [0], [1], [0, 0, 1, 1], [], []>} : vector<16x128xbf16>, vector<128x256xbf16>, vector<16x256xf32> -> vector<16x256xf32>
    %104 = arith.truncf %103 : vector<16x256xf32> to vector<16x256xbf16>
    %105 = vector.extract_strided_slice %104 {offsets = [0, 0], sizes = [16, 128], strides = [1, 1]} : vector<16x256xbf16> to vector<16x128xbf16>
    %106 = vector.extract_strided_slice %104 {offsets = [0, 128], sizes = [16, 128], strides = [1, 1]} : vector<16x256xbf16> to vector<16x128xbf16>
    %107 = vector.extract_strided_slice %101 {offsets = [0, 0], sizes = [16, 32], strides = [1, 1]} : vector<16x128xbf16> to vector<16x32xbf16>
    %108 = vector.shape_cast %107 : vector<16x32xbf16> to vector<2x8x32xbf16>
    %109 = vector.extract_strided_slice %105 {offsets = [0, 0], sizes = [16, 32], strides = [1, 1]} : vector<16x128xbf16> to vector<16x32xbf16>
    %110 = vector.shape_cast %109 : vector<16x32xbf16> to vector<2x8x32xbf16>
    %111 = vector.extract_strided_slice %106 {offsets = [0, 0], sizes = [16, 32], strides = [1, 1]} : vector<16x128xbf16> to vector<16x32xbf16>
    %112 = vector.shape_cast %111 : vector<16x32xbf16> to vector<2x8x32xbf16>
    "tpu.trace_start"() <{level = 10 : i32, message = "bid,bjd->bij"}> : () -> ()
    %cst_31 = arith.constant dense<0.000000e+00> : vector<2x8x8xf32>
    %113 = tpu.matmul %108, %110, %cst_31 {dimension_numbers = #tpu.dot_dimension_numbers<[2], [2], [1], [1], [0, 0, 0, 1, 1, 1], [0], [0]>} : vector<2x8x32xbf16>, vector<2x8x32xbf16>, vector<2x8x8xf32> -> vector<2x8x8xf32>
    "tpu.trace_stop"() : () -> ()
    %cst_32 = arith.constant dense<0xFF800000> : vector<2x8xf32>
    %114 = vector.multi_reduction <maximumf>, %113, %cst_32 [2] : vector<2x8x8xf32> to vector<2x8xf32>
    %115 = vector.shape_cast %114 : vector<2x8xf32> to vector<2x8x1xf32>
    %116 = vector.broadcast %115 : vector<2x8x1xf32> to vector<2x8x8xf32>
    %117 = arith.subf %113, %116 : vector<2x8x8xf32>
    %118 = math.exp %117 : vector<2x8x8xf32>
    %cst_33 = arith.constant dense<0.000000e+00> : vector<2x8xf32>
    %119 = vector.multi_reduction <add>, %118, %cst_33 [2] : vector<2x8x8xf32> to vector<2x8xf32>
    %120 = vector.shape_cast %119 : vector<2x8xf32> to vector<2x8x1xf32>
    %121 = tpu.reciprocal %120 {approx = true} : vector<2x8x1xf32> -> vector<2x8x1xf32>
    %122 = vector.broadcast %121 : vector<2x8x1xf32> to vector<2x8x8xf32>
    %123 = arith.mulf %118, %122 : vector<2x8x8xf32>
    %124 = arith.truncf %123 : vector<2x8x8xf32> to vector<2x8x8xbf16>
    "tpu.trace_start"() <{level = 10 : i32, message = "bij,bjd->bid"}> : () -> ()
    %cst_34 = arith.constant dense<0.000000e+00> : vector<2x8x32xf32>
    %125 = tpu.matmul %124, %112, %cst_34 {dimension_numbers = #tpu.dot_dimension_numbers<[2], [1], [1], [2], [0, 0, 0, 1, 1, 2], [0], [0]>} : vector<2x8x8xbf16>, vector<2x8x32xbf16>, vector<2x8x32xf32> -> vector<2x8x32xf32>
    "tpu.trace_stop"() : () -> ()
    %126 = vector.shape_cast %125 : vector<2x8x32xf32> to vector<16x32xf32>
    %127 = arith.truncf %126 : vector<16x32xf32> to vector<16x32xbf16>
    %128 = vector.extract_strided_slice %101 {offsets = [0, 32], sizes = [16, 32], strides = [1, 1]} : vector<16x128xbf16> to vector<16x32xbf16>
    %129 = vector.shape_cast %128 : vector<16x32xbf16> to vector<2x8x32xbf16>
    %130 = vector.extract_strided_slice %105 {offsets = [0, 32], sizes = [16, 32], strides = [1, 1]} : vector<16x128xbf16> to vector<16x32xbf16>
    %131 = vector.shape_cast %130 : vector<16x32xbf16> to vector<2x8x32xbf16>
    %132 = vector.extract_strided_slice %106 {offsets = [0, 32], sizes = [16, 32], strides = [1, 1]} : vector<16x128xbf16> to vector<16x32xbf16>
    %133 = vector.shape_cast %132 : vector<16x32xbf16> to vector<2x8x32xbf16>
    "tpu.trace_start"() <{level = 10 : i32, message = "bid,bjd->bij"}> : () -> ()
    %cst_35 = arith.constant dense<0.000000e+00> : vector<2x8x8xf32>
    %134 = tpu.matmul %129, %131, %cst_35 {dimension_numbers = #tpu.dot_dimension_numbers<[2], [2], [1], [1], [0, 0, 0, 1, 1, 1], [0], [0]>} : vector<2x8x32xbf16>, vector<2x8x32xbf16>, vector<2x8x8xf32> -> vector<2x8x8xf32>
    "tpu.trace_stop"() : () -> ()
    %cst_36 = arith.constant dense<0xFF800000> : vector<2x8xf32>
    %135 = vector.multi_reduction <maximumf>, %134, %cst_36 [2] : vector<2x8x8xf32> to vector<2x8xf32>
    %136 = vector.shape_cast %135 : vector<2x8xf32> to vector<2x8x1xf32>
    %137 = vector.broadcast %136 : vector<2x8x1xf32> to vector<2x8x8xf32>
    %138 = arith.subf %134, %137 : vector<2x8x8xf32>
    %139 = math.exp %138 : vector<2x8x8xf32>
    %cst_37 = arith.constant dense<0.000000e+00> : vector<2x8xf32>
    %140 = vector.multi_reduction <add>, %139, %cst_37 [2] : vector<2x8x8xf32> to vector<2x8xf32>
    %141 = vector.shape_cast %140 : vector<2x8xf32> to vector<2x8x1xf32>
    %142 = tpu.reciprocal %141 {approx = true} : vector<2x8x1xf32> -> vector<2x8x1xf32>
    %143 = vector.broadcast %142 : vector<2x8x1xf32> to vector<2x8x8xf32>
    %144 = arith.mulf %139, %143 : vector<2x8x8xf32>
    %145 = arith.truncf %144 : vector<2x8x8xf32> to vector<2x8x8xbf16>
    "tpu.trace_start"() <{level = 10 : i32, message = "bij,bjd->bid"}> : () -> ()
    %cst_38 = arith.constant dense<0.000000e+00> : vector<2x8x32xf32>
    %146 = tpu.matmul %145, %133, %cst_38 {dimension_numbers = #tpu.dot_dimension_numbers<[2], [1], [1], [2], [0, 0, 0, 1, 1, 2], [0], [0]>} : vector<2x8x8xbf16>, vector<2x8x32xbf16>, vector<2x8x32xf32> -> vector<2x8x32xf32>
    "tpu.trace_stop"() : () -> ()
    %147 = vector.shape_cast %146 : vector<2x8x32xf32> to vector<16x32xf32>
    %148 = arith.truncf %147 : vector<16x32xf32> to vector<16x32xbf16>
    %149 = vector.extract_strided_slice %101 {offsets = [0, 64], sizes = [16, 32], strides = [1, 1]} : vector<16x128xbf16> to vector<16x32xbf16>
    %150 = vector.shape_cast %149 : vector<16x32xbf16> to vector<2x8x32xbf16>
    %151 = vector.extract_strided_slice %105 {offsets = [0, 64], sizes = [16, 32], strides = [1, 1]} : vector<16x128xbf16> to vector<16x32xbf16>
    %152 = vector.shape_cast %151 : vector<16x32xbf16> to vector<2x8x32xbf16>
    %153 = vector.extract_strided_slice %106 {offsets = [0, 64], sizes = [16, 32], strides = [1, 1]} : vector<16x128xbf16> to vector<16x32xbf16>
    %154 = vector.shape_cast %153 : vector<16x32xbf16> to vector<2x8x32xbf16>
    "tpu.trace_start"() <{level = 10 : i32, message = "bid,bjd->bij"}> : () -> ()
    %cst_39 = arith.constant dense<0.000000e+00> : vector<2x8x8xf32>
    %155 = tpu.matmul %150, %152, %cst_39 {dimension_numbers = #tpu.dot_dimension_numbers<[2], [2], [1], [1], [0, 0, 0, 1, 1, 1], [0], [0]>} : vector<2x8x32xbf16>, vector<2x8x32xbf16>, vector<2x8x8xf32> -> vector<2x8x8xf32>
    "tpu.trace_stop"() : () -> ()
    %cst_40 = arith.constant dense<0xFF800000> : vector<2x8xf32>
    %156 = vector.multi_reduction <maximumf>, %155, %cst_40 [2] : vector<2x8x8xf32> to vector<2x8xf32>
    %157 = vector.shape_cast %156 : vector<2x8xf32> to vector<2x8x1xf32>
    %158 = vector.broadcast %157 : vector<2x8x1xf32> to vector<2x8x8xf32>
    %159 = arith.subf %155, %158 : vector<2x8x8xf32>
    %160 = math.exp %159 : vector<2x8x8xf32>
    %cst_41 = arith.constant dense<0.000000e+00> : vector<2x8xf32>
    %161 = vector.multi_reduction <add>, %160, %cst_41 [2] : vector<2x8x8xf32> to vector<2x8xf32>
    %162 = vector.shape_cast %161 : vector<2x8xf32> to vector<2x8x1xf32>
    %163 = tpu.reciprocal %162 {approx = true} : vector<2x8x1xf32> -> vector<2x8x1xf32>
    %164 = vector.broadcast %163 : vector<2x8x1xf32> to vector<2x8x8xf32>
    %165 = arith.mulf %160, %164 : vector<2x8x8xf32>
    %166 = arith.truncf %165 : vector<2x8x8xf32> to vector<2x8x8xbf16>
    "tpu.trace_start"() <{level = 10 : i32, message = "bij,bjd->bid"}> : () -> ()
    %cst_42 = arith.constant dense<0.000000e+00> : vector<2x8x32xf32>
    %167 = tpu.matmul %166, %154, %cst_42 {dimension_numbers = #tpu.dot_dimension_numbers<[2], [1], [1], [2], [0, 0, 0, 1, 1, 2], [0], [0]>} : vector<2x8x8xbf16>, vector<2x8x32xbf16>, vector<2x8x32xf32> -> vector<2x8x32xf32>
    "tpu.trace_stop"() : () -> ()
    %168 = vector.shape_cast %167 : vector<2x8x32xf32> to vector<16x32xf32>
    %169 = arith.truncf %168 : vector<16x32xf32> to vector<16x32xbf16>
    %170 = vector.extract_strided_slice %101 {offsets = [0, 96], sizes = [16, 32], strides = [1, 1]} : vector<16x128xbf16> to vector<16x32xbf16>
    %171 = vector.shape_cast %170 : vector<16x32xbf16> to vector<2x8x32xbf16>
    %172 = vector.extract_strided_slice %105 {offsets = [0, 96], sizes = [16, 32], strides = [1, 1]} : vector<16x128xbf16> to vector<16x32xbf16>
    %173 = vector.shape_cast %172 : vector<16x32xbf16> to vector<2x8x32xbf16>
    %174 = vector.extract_strided_slice %106 {offsets = [0, 96], sizes = [16, 32], strides = [1, 1]} : vector<16x128xbf16> to vector<16x32xbf16>
    %175 = vector.shape_cast %174 : vector<16x32xbf16> to vector<2x8x32xbf16>
    "tpu.trace_start"() <{level = 10 : i32, message = "bid,bjd->bij"}> : () -> ()
    %cst_43 = arith.constant dense<0.000000e+00> : vector<2x8x8xf32>
    %176 = tpu.matmul %171, %173, %cst_43 {dimension_numbers = #tpu.dot_dimension_numbers<[2], [2], [1], [1], [0, 0, 0, 1, 1, 1], [0], [0]>} : vector<2x8x32xbf16>, vector<2x8x32xbf16>, vector<2x8x8xf32> -> vector<2x8x8xf32>
    "tpu.trace_stop"() : () -> ()
    %cst_44 = arith.constant dense<0xFF800000> : vector<2x8xf32>
    %177 = vector.multi_reduction <maximumf>, %176, %cst_44 [2] : vector<2x8x8xf32> to vector<2x8xf32>
    %178 = vector.shape_cast %177 : vector<2x8xf32> to vector<2x8x1xf32>
    %179 = vector.broadcast %178 : vector<2x8x1xf32> to vector<2x8x8xf32>
    %180 = arith.subf %176, %179 : vector<2x8x8xf32>
    %181 = math.exp %180 : vector<2x8x8xf32>
    %cst_45 = arith.constant dense<0.000000e+00> : vector<2x8xf32>
    %182 = vector.multi_reduction <add>, %181, %cst_45 [2] : vector<2x8x8xf32> to vector<2x8xf32>
    %183 = vector.shape_cast %182 : vector<2x8xf32> to vector<2x8x1xf32>
    %184 = tpu.reciprocal %183 {approx = true} : vector<2x8x1xf32> -> vector<2x8x1xf32>
    %185 = vector.broadcast %184 : vector<2x8x1xf32> to vector<2x8x8xf32>
    %186 = arith.mulf %181, %185 : vector<2x8x8xf32>
    %187 = arith.truncf %186 : vector<2x8x8xf32> to vector<2x8x8xbf16>
    "tpu.trace_start"() <{level = 10 : i32, message = "bij,bjd->bid"}> : () -> ()
    %cst_46 = arith.constant dense<0.000000e+00> : vector<2x8x32xf32>
    %188 = tpu.matmul %187, %175, %cst_46 {dimension_numbers = #tpu.dot_dimension_numbers<[2], [1], [1], [2], [0, 0, 0, 1, 1, 2], [0], [0]>} : vector<2x8x8xbf16>, vector<2x8x32xbf16>, vector<2x8x32xf32> -> vector<2x8x32xf32>
    "tpu.trace_stop"() : () -> ()
    %189 = vector.shape_cast %188 : vector<2x8x32xf32> to vector<16x32xf32>
    %190 = arith.truncf %189 : vector<16x32xf32> to vector<16x32xbf16>
    %191 = tpu.concatenate %127, %148, %169, %190 in 1 : vector<16x32xbf16>, vector<16x32xbf16>, vector<16x32xbf16>, vector<16x32xbf16> -> vector<16x128xbf16>
    %c0_47 = arith.constant 0 : index
    %c0_48 = arith.constant 0 : index
    %192 = vector.load %arg7[%c0_47, %c0_48] : memref<128x128xbf16, #tpu.memory_space<vmem>>, vector<128x128xbf16>
    %cst_49 = arith.constant dense<0.000000e+00> : vector<16x128xf32>
    %193 = tpu.matmul %191, %192, %cst_49 {dimension_numbers = #tpu.dot_dimension_numbers<[1], [0], [0], [1], [0, 0, 1, 1], [], []>} : vector<16x128xbf16>, vector<128x128xbf16>, vector<16x128xf32> -> vector<16x128xf32>
    %c0_50 = arith.constant 0 : index
    %c0_51 = arith.constant 0 : index
    %194 = vector.load %arg8[%c0_50, %c0_51] : memref<1x128xf32, #tpu.memory_space<vmem>>, vector<1x128xf32>
    %195 = vector.broadcast %194 : vector<1x128xf32> to vector<16x128xf32>
    %196 = arith.addf %193, %195 : vector<16x128xf32>
    %197 = arith.truncf %196 : vector<16x128xf32> to vector<16x128xbf16>
    %c0_52 = arith.constant 0 : index
    %c0_53 = arith.constant 0 : index
    %198 = vector.load %arg9[%c0_52, %c0_53] : memref<128x128xbf16, #tpu.memory_space<vmem>>, vector<128x128xbf16>
    %cst_54 = arith.constant dense<0.000000e+00> : vector<16x128xf32>
    %199 = tpu.matmul %197, %198, %cst_54 {dimension_numbers = #tpu.dot_dimension_numbers<[1], [0], [0], [1], [0, 0, 1, 1], [], []>} : vector<16x128xbf16>, vector<128x128xbf16>, vector<16x128xf32> -> vector<16x128xf32>
    %c0_55 = arith.constant 0 : index
    %c0_56 = arith.constant 0 : index
    %200 = vector.load %arg10[%c0_55, %c0_56] : memref<1x128xf32, #tpu.memory_space<vmem>>, vector<1x128xf32>
    %201 = vector.broadcast %200 : vector<1x128xf32> to vector<16x128xf32>
    %202 = arith.addf %199, %201 : vector<16x128xf32>
    %203 = vector.shape_cast %202 : vector<16x128xf32> to vector<2x8x128xf32>
    %c0_57 = arith.constant 0 : index
    %c0_58 = arith.constant 0 : index
    %c0_59 = arith.constant 0 : index
    %204 = vector.load %arg11[%c0_57, %c0_58, %c0_59] : memref<2x8x128xf32, #tpu.memory_space<vmem>>, vector<2x8x128xf32>
    tpu.vector_store %arg11[%c0_57, %c0_58, %c0_59], %203 {strides = array<i32>} : memref<2x8x128xf32, #tpu.memory_space<vmem>>, vector<2x8x128xf32>,
    return
  }
  func.func @transform_0(%arg0: i32) -> (i32, i32, i32) {
    %c0_i32 = arith.constant 0 : i32
    %c0_i32_0 = arith.constant 0 : i32
    %c0_i32_1 = arith.constant 0 : i32
    return %arg0, %c0_i32, %c0_i32_0 : i32, i32, i32
  }
  func.func @transform_1(%arg0: i32) -> (i32, i32) {
    %c0_i32 = arith.constant 0 : i32
    %c0_i32_0 = arith.constant 0 : i32
    %c0_i32_1 = arith.constant 0 : i32
    return %c0_i32, %c0_i32_0 : i32, i32
  }
  func.func @transform_2(%arg0: i32) -> (i32, i32) {
    %c0_i32 = arith.constant 0 : i32
    %c0_i32_0 = arith.constant 0 : i32
    %c0_i32_1 = arith.constant 0 : i32
    return %c0_i32, %c0_i32_0 : i32, i32
  }
  func.func @transform_3(%arg0: i32) -> (i32, i32) {
    %c0_i32 = arith.constant 0 : i32
    %c0_i32_0 = arith.constant 0 : i32
    %c0_i32_1 = arith.constant 0 : i32
    return %c0_i32, %c0_i32_0 : i32, i32
  }
  func.func @transform_4(%arg0: i32) -> (i32, i32) {
    %c0_i32 = arith.constant 0 : i32
    %c0_i32_0 = arith.constant 0 : i32
    %c0_i32_1 = arith.constant 0 : i32
    return %c0_i32, %c0_i32_0 : i32, i32
  }
  func.func @transform_5(%arg0: i32) -> (i32, i32) {
    %c0_i32 = arith.constant 0 : i32
    %c0_i32_0 = arith.constant 0 : i32
    %c0_i32_1 = arith.constant 0 : i32
    return %c0_i32, %c0_i32_0 : i32, i32
  }
  func.func @transform_6(%arg0: i32) -> (i32, i32) {
    %c0_i32 = arith.constant 0 : i32
    %c0_i32_0 = arith.constant 0 : i32
    %c0_i32_1 = arith.constant 0 : i32
    return %c0_i32, %c0_i32_0 : i32, i32
  }
  func.func @transform_7(%arg0: i32) -> (i32, i32) {
    %c0_i32 = arith.constant 0 : i32
    %c0_i32_0 = arith.constant 0 : i32
    %c0_i32_1 = arith.constant 0 : i32
    return %c0_i32, %c0_i32_0 : i32, i32
  }
  func.func @transform_8(%arg0: i32) -> (i32, i32) {
    %c0_i32 = arith.constant 0 : i32
    %c0_i32_0 = arith.constant 0 : i32
    %c0_i32_1 = arith.constant 0 : i32
    return %c0_i32, %c0_i32_0 : i32, i32
  }
  func.func @transform_9(%arg0: i32) -> (i32, i32) {
    %c0_i32 = arith.constant 0 : i32
    %c0_i32_0 = arith.constant 0 : i32
    %c0_i32_1 = arith.constant 0 : i32
    return %c0_i32, %c0_i32_0 : i32, i32
  }
  func.func @transform_10(%arg0: i32) -> (i32, i32, i32) {
    %c0_i32 = arith.constant 0 : i32
    %c0_i32_0 = arith.constant 0 : i32
    %c0_i32_1 = arith.constant 0 : i32
    return %arg0, %c0_i32, %c0_i32_0 : i32, i32, i32
  }
}

</mosaic_0001>

<llo_original>
// kernel: tpu_custom_call.1
$region0: #{tpu_custom_call.1}
  #allocation0 [shape = 'u32[]', space=smem, size = 0x4, offset = 0x4, fixed_abs, tag = 'smem constant byte address 0x4 - core index']
  #allocation1 [shape = 'u32[144,128]{1,0:T(1,128)}', space=vmem, size = 0x12000, scoped, tag = 'internal scratch']
  %s0 = inlined_call_operand.hbm [shape: bf16[4,8,128], index: 0, kind: input, shape index: {}]
  %s1 = inlined_call_operand.hbm [shape: bf16[128,384], index: 1, kind: input, shape index: {}]
  %s2 = inlined_call_operand.hbm [shape: bf16[128,128], index: 2, kind: input, shape index: {}]
  %s3 = inlined_call_operand.vmem [shape: f32[1,128], index: 3, kind: input, shape index: {}]
  %s4 = inlined_call_operand.hbm [shape: bf16[128,128], index: 4, kind: input, shape index: {}]
  %s5 = inlined_call_operand.hbm [shape: bf16[128,256], index: 5, kind: input, shape index: {}]
  %s6 = inlined_call_operand.hbm [shape: bf16[128,128], index: 6, kind: input, shape index: {}]
  %s7 = inlined_call_operand.vmem [shape: f32[1,128], index: 7, kind: input, shape index: {}]
  %s8 = inlined_call_operand.hbm [shape: bf16[128,128], index: 8, kind: input, shape index: {}]
  %s9 = inlined_call_operand.vmem [shape: f32[1,128], index: 9, kind: input, shape index: {}]
  %s10 = inlined_call_operand.hbm [shape: f32[4,8,128], index: 10, kind: output, shape index: {}]
  %s11 = sld [smem:[#allocation0]]
  $region101: #{tpu_custom_call.1} parent=0
    _
  %s13 = ssub.s32 1, %s11
  %s14 = scalar_select 0, %s13, %s11
  $region1: #{tpu_custom_call.1} parent=0
    #allocation2 [shape = 'u8[8192]{0}', space=vmem, size = 0x2000, scoped, tag = 'input window, operand 0']
    #allocation3 [shape = 's32[2]{0}', space=sflag, size = 0x8, scoped, tag = 'scoped memory for tpu_custom_call.1']
    #allocation4 [shape = 's32[2]{0}', space=sflag, size = 0x8, scoped, tag = 'scoped memory for tpu_custom_call.1']
    #allocation5 [shape = 'u8[98304]{0}', space=vmem, size = 0x18000, scoped, tag = 'input window, operand 1, single buffered']
    #allocation6 [shape = 's32[1]{0}', space=sflag, size = 0x4, scoped, tag = 'scoped memory for tpu_custom_call.1']
    #allocation7 [shape = 'u8[32768]{0}', space=vmem, size = 0x8000, scoped, tag = 'input window, operand 2, single buffered']
    #allocation8 [shape = 'u8[32768]{0}', space=vmem, size = 0x8000, scoped, tag = 'input window, operand 4, single buffered']
    #allocation9 [shape = 's32[1]{0}', space=sflag, size = 0x4, scoped, tag = 'scoped memory for tpu_custom_call.1']
    #allocation10 [shape = 'u8[65536]{0}', space=vmem, size = 0x10000, scoped, tag = 'input window, operand 5, single buffered']
    #allocation11 [shape = 'u8[32768]{0}', space=vmem, size = 0x8000, scoped, tag = 'input window, operand 6, single buffered']
    #allocation12 [shape = 's32[1]{0}', space=sflag, size = 0x4, scoped, tag = 'scoped memory for tpu_custom_call.1']
    #allocation13 [shape = 'u8[32768]{0}', space=vmem, size = 0x8000, scoped, tag = 'input window, operand 8, single buffered']
    #allocation14 [shape = 'u8[16384]{0}', space=vmem, size = 0x4000, scoped, tag = 'output window, operand 0']
    %15 = vsyncpa [#allocation3], 0
    %s16 = scalar_lea.sflag [#allocation3], 1
    %17 = vsyncpa %s16, 0
    %18 = vsyncpa [#allocation6], 0
    %19 = vsyncpa [#allocation9], 0
    %20 = vsyncpa [#allocation12], 0
    %21 = vsyncpa [#allocation4], 0
    %s22 = scalar_lea.sflag [#allocation4], 1
    %23 = vsyncpa %s22, 0
    loop: start=0, step=1, limit=4
    $region2: #{tpu_custom_call.1} parent=1 // loop_pre_header
      _
    $region3: #{tpu_custom_call.1} parent=1 // loop_header
      %s25 = sphi 0, %s29
      %p26 = scmp.ge.s32.totalorder %s25, 4
      %s35 = sphi 0, %s37
      %s38 = sphi 0, %s35
      %s39 = sphi 0, %s38
      %s55 = sphi 0, %s39
      %s59 = sphi 0, %s59
      %s61 = sphi 0, %s59
      %s62 = sphi 0, %s61
      %s76 = sphi 0, %s62
      %s80 = sphi 0, %s80
      %s82 = sphi 0, %s80
      %s83 = sphi 0, %s82
      %s97 = sphi 0, %s83
      %s101 = sphi 0, %s101
      %s103 = sphi 0, %s101
      %s104 = sphi 0, %s103
      %s118 = sphi 0, %s104
      %s122 = sphi 0, %s122
      %s124 = sphi 0, %s122
      %s125 = sphi 0, %s124
      %s139 = sphi 0, %s125
      %s143 = sphi 0, %s143
      %s145 = sphi 0, %s143
      %s146 = sphi 0, %s145
      %s160 = sphi 0, %s146
      %s164 = sphi 0, %s164
      %s166 = sphi 0, %s164
      %s167 = sphi 0, %s166
      %s181 = sphi 0, %s167
      %s185 = sphi 0, %s185
      %s187 = sphi 0, %s185
      %s188 = sphi 0, %s187
      %s202 = sphi 0, %s188
      %s206 = sphi 0, %s206
      %s208 = sphi 0, %s206
      %s209 = sphi 0, %s208
      %s223 = sphi 0, %s209
      %s227 = sphi 0, %s227
      %s229 = sphi 0, %s227
      %s230 = sphi 0, %s229
      %s244 = sphi 0, %s230
      %s250 = sphi 0, %s252
      %s253 = sphi 0, %s250
      %s254 = sphi 0, %s253
      %s270 = sphi 0, %s254
    $region4: #{tpu_custom_call.1} parent=1 // loop_header_branch
      %28 = sbr.rel (%p26) target = $region8
    $region5: #{tpu_custom_call.1} parent=1 // loop_body
      %s30 = ssub.s32 %s25, 1
      %s31 = ssub.s32 %s25, 2
      %s32 = sadd.s32 %s25, 1
      %s33 = ssub.s32 %s25, %s32
      %p34 = scmp.eq.s32.totalorder %s33, 0
      %s36 = sadd.s32 %s35, 1
      %s37 = scalar_select %p34, %s35, %s36
      %p40 = pneg %p34
      %p41 = scmp.eq.s32.totalorder %s25, 1
      %p42 = por %p40, %p41
      %p43 = scmp.ne.s32.totalorder %s35, %s38
      %p44 = scmp.eq.s32.totalorder %s25, 0
      %p45 = por %p43, %p44
      %p46 = scmp.ne.s32.totalorder %s35, %s38
      %p47 = scmp.eq.s32.totalorder %s30, 1
      %p48 = por %p46, %p47
      %p49 = scmp.ne.s32.totalorder %s38, %s39
      %p50 = scmp.eq.s32.totalorder %s30, 0
      %p51 = por %p49, %p50
      %p52 = scmp.ne.s32.totalorder %s38, %s39
      %p53 = scmp.eq.s32.totalorder %s31, 1
      %p54 = por %p52, %p53
      %p56 = scmp.ne.s32.totalorder %s39, %s55
      %p57 = scmp.eq.s32.totalorder %s31, 0
      %p58 = por %p56, %p57
      %s60 = sadd.s32 %s59, 1
      %p63 = scmp.eq.s32.totalorder %s25, 1
      %p64 = scmp.ne.s32.totalorder %s59, %s61
      %p65 = scmp.eq.s32.totalorder %s25, 0
      %p66 = por %p64, %p65
      %p67 = scmp.ne.s32.totalorder %s59, %s61
      %p68 = scmp.eq.s32.totalorder %s30, 1
      %p69 = por %p67, %p68
      %p70 = scmp.ne.s32.totalorder %s61, %s62
      %p71 = scmp.eq.s32.totalorder %s30, 0
      %p72 = por %p70, %p71
      %p73 = scmp.ne.s32.totalorder %s61, %s62
      %p74 = scmp.eq.s32.totalorder %s31, 1
      %p75 = por %p73, %p74
      %p77 = scmp.ne.s32.totalorder %s62, %s76
      %p78 = scmp.eq.s32.totalorder %s31, 0
      %p79 = por %p77, %p78
      %s81 = sadd.s32 %s80, 1
      %p84 = scmp.eq.s32.totalorder %s25, 1
      %p85 = scmp.ne.s32.totalorder %s80, %s82
      %p86 = scmp.eq.s32.totalorder %s25, 0
      %p87 = por %p85, %p86
      %p88 = scmp.ne.s32.totalorder %s80, %s82
      %p89 = scmp.eq.s32.totalorder %s30, 1
      %p90 = por %p88, %p89
      %p91 = scmp.ne.s32.totalorder %s82, %s83
      %p92 = scmp.eq.s32.totalorder %s30, 0
      %p93 = por %p91, %p92
      %p94 = scmp.ne.s32.totalorder %s82, %s83
      %p95 = scmp.eq.s32.totalorder %s31, 1
      %p96 = por %p94, %p95
      %p98 = scmp.ne.s32.totalorder %s83, %s97
      %p99 = scmp.eq.s32.totalorder %s31, 0
      %p100 = por %p98, %p99
      %s102 = sadd.s32 %s101, 1
      %p105 = scmp.eq.s32.totalorder %s25, 1
      %p106 = scmp.ne.s32.totalorder %s101, %s103
      %p107 = scmp.eq.s32.totalorder %s25, 0
      %p108 = por %p106, %p107
      %p109 = scmp.ne.s32.totalorder %s101, %s103
      %p110 = scmp.eq.s32.totalorder %s30, 1
      %p111 = por %p109, %p110
      %p112 = scmp.ne.s32.totalorder %s103, %s104
      %p113 = scmp.eq.s32.totalorder %s30, 0
      %p114 = por %p112, %p113
      %p115 = scmp.ne.s32.totalorder %s103, %s104
      %p116 = scmp.eq.s32.totalorder %s31, 1
      %p117 = por %p115, %p116
      %p119 = scmp.ne.s32.totalorder %s104, %s118
      %p120 = scmp.eq.s32.totalorder %s31, 0
      %p121 = por %p119, %p120
      %s123 = sadd.s32 %s122, 1
      %p126 = scmp.eq.s32.totalorder %s25, 1
      %p127 = scmp.ne.s32.totalorder %s122, %s124
      %p128 = scmp.eq.s32.totalorder %s25, 0
      %p129 = por %p127, %p128
      %p130 = scmp.ne.s32.totalorder %s122, %s124
      %p131 = scmp.eq.s32.totalorder %s30, 1
      %p132 = por %p130, %p131
      %p133 = scmp.ne.s32.totalorder %s124, %s125
      %p134 = scmp.eq.s32.totalorder %s30, 0
      %p135 = por %p133, %p134
      %p136 = scmp.ne.s32.totalorder %s124, %s125
      %p137 = scmp.eq.s32.totalorder %s31, 1
      %p138 = por %p136, %p137
      %p140 = scmp.ne.s32.totalorder %s125, %s139
      %p141 = scmp.eq.s32.totalorder %s31, 0
      %p142 = por %p140, %p141
      %s144 = sadd.s32 %s143, 1
      %p147 = scmp.eq.s32.totalorder %s25, 1
      %p148 = scmp.ne.s32.totalorder %s143, %s145
      %p149 = scmp.eq.s32.totalorder %s25, 0
      %p150 = por %p148, %p149
      %p151 = scmp.ne.s32.totalorder %s143, %s145
      %p152 = scmp.eq.s32.totalorder %s30, 1
      %p153 = por %p151, %p152
      %p154 = scmp.ne.s32.totalorder %s145, %s146
      %p155 = scmp.eq.s32.totalorder %s30, 0
      %p156 = por %p154, %p155
      %p157 = scmp.ne.s32.totalorder %s145, %s146
      %p158 = scmp.eq.s32.totalorder %s31, 1
      %p159 = por %p157, %p158
      %p161 = scmp.ne.s32.totalorder %s146, %s160
      %p162 = scmp.eq.s32.totalorder %s31, 0
      %p163 = por %p161, %p162
      %s165 = sadd.s32 %s164, 1
      %p168 = scmp.eq.s32.totalorder %s25, 1
      %p169 = scmp.ne.s32.totalorder %s164, %s166
      %p170 = scmp.eq.s32.totalorder %s25, 0
      %p171 = por %p169, %p170
      %p172 = scmp.ne.s32.totalorder %s164, %s166
      %p173 = scmp.eq.s32.totalorder %s30, 1
      %p174 = por %p172, %p173
      %p175 = scmp.ne.s32.totalorder %s166, %s167
      %p176 = scmp.eq.s32.totalorder %s30, 0
      %p177 = por %p175, %p176
      %p178 = scmp.ne.s32.totalorder %s166, %s167
      %p179 = scmp.eq.s32.totalorder %s31, 1
      %p180 = por %p178, %p179
      %p182 = scmp.ne.s32.totalorder %s167, %s181
      %p183 = scmp.eq.s32.totalorder %s31, 0
      %p184 = por %p182, %p183
      %s186 = sadd.s32 %s185, 1
      %p189 = scmp.eq.s32.totalorder %s25, 1
      %p190 = scmp.ne.s32.totalorder %s185, %s187
      %p191 = scmp.eq.s32.totalorder %s25, 0
      %p192 = por %p190, %p191
      %p193 = scmp.ne.s32.totalorder %s185, %s187
      %p194 = scmp.eq.s32.totalorder %s30, 1
      %p195 = por %p193, %p194
      %p196 = scmp.ne.s32.totalorder %s187, %s188
      %p197 = scmp.eq.s32.totalorder %s30, 0
      %p198 = por %p196, %p197
      %p199 = scmp.ne.s32.totalorder %s187, %s188
      %p200 = scmp.eq.s32.totalorder %s31, 1
      %p201 = por %p199, %p200
      %p203 = scmp.ne.s32.totalorder %s188, %s202
      %p204 = scmp.eq.s32.totalorder %s31, 0
      %p205 = por %p203, %p204
      %s207 = sadd.s32 %s206, 1
      %p210 = scmp.eq.s32.totalorder %s25, 1
      %p211 = scmp.ne.s32.totalorder %s206, %s208
      %p212 = scmp.eq.s32.totalorder %s25, 0
      %p213 = por %p211, %p212
      %p214 = scmp.ne.s32.totalorder %s206, %s208
      %p215 = scmp.eq.s32.totalorder %s30, 1
      %p216 = por %p214, %p215
      %p217 = scmp.ne.s32.totalorder %s208, %s209
      %p218 = scmp.eq.s32.totalorder %s30, 0
      %p219 = por %p217, %p218
      %p220 = scmp.ne.s32.totalorder %s208, %s209
      %p221 = scmp.eq.s32.totalorder %s31, 1
      %p222 = por %p220, %p221
      %p224 = scmp.ne.s32.totalorder %s209, %s223
      %p225 = scmp.eq.s32.totalorder %s31, 0
      %p226 = por %p224, %p225
      %s228 = sadd.s32 %s227, 1
      %p231 = scmp.eq.s32.totalorder %s25, 1
      %p232 = scmp.ne.s32.totalorder %s227, %s229
      %p233 = scmp.eq.s32.totalorder %s25, 0
      %p234 = por %p232, %p233
      %p235 = scmp.ne.s32.totalorder %s227, %s229
      %p236 = scmp.eq.s32.totalorder %s30, 1
      %p237 = por %p235, %p236
      %p238 = scmp.ne.s32.totalorder %s229, %s230
      %p239 = scmp.eq.s32.totalorder %s30, 0
      %p240 = por %p238, %p239
      %p241 = scmp.ne.s32.totalorder %s229, %s230
      %p242 = scmp.eq.s32.totalorder %s31, 1
      %p243 = por %p241, %p242
      %p245 = scmp.ne.s32.totalorder %s230, %s244
      %p246 = scmp.eq.s32.totalorder %s31, 0
      %p247 = por %p245, %p246
      %s248 = ssub.s32 %s25, %s32
      %p249 = scmp.eq.s32.totalorder %s248, 0
      %s251 = sadd.s32 %s250, 1
      %s252 = scalar_select %p249, %s250, %s251
      %p255 = pneg %p249
      %p256 = scmp.eq.s32.totalorder %s25, 1
      %p257 = por %p255, %p256
      %p258 = scmp.ne.s32.totalorder %s250, %s253
      %p259 = scmp.eq.s32.totalorder %s25, 0
      %p260 = por %p258, %p259
      %p261 = scmp.ne.s32.totalorder %s250, %s253
      %p262 = scmp.eq.s32.totalorder %s30, 1
      %p263 = por %p261, %p262
      %p264 = scmp.ne.s32.totalorder %s253, %s254
      %p265 = scmp.eq.s32.totalorder %s30, 0
      %p266 = por %p264, %p265
      %p267 = scmp.ne.s32.totalorder %s253, %s254
      %p268 = scmp.eq.s32.totalorder %s31, 1
      %p269 = por %p267, %p268
      %p271 = scmp.ne.s32.totalorder %s254, %s270
      %p272 = scmp.eq.s32.totalorder %s31, 0
      %p273 = por %p271, %p272
      %p274 = scmp.le.s32.totalorder 1, %s25
      %p275 = scmp.lt.s32.totalorder %s25, 3
      %p276 = pnand %p274, %p275
      %p277 = pneg %p276
      // Predicated region
      $region9: #{tpu_custom_call.1} parent=5 // pred_check
        _
      $region10: #{tpu_custom_call.1} parent=5 // pred_check_branch
        %279 = sbr.rel (%p276) target = $region12
      $region11: #{tpu_custom_call.1} parent=5 // pred_region
        %s280 = ssub.s32 %s25, 1
        // Predicated region
        $region13: #{tpu_custom_call.1} parent=11 // pred_check
          %p281 = pneg %p72
        $region14: #{tpu_custom_call.1} parent=11 // pred_check_branch
          %283 = sbr.rel (%p281) target = $region16
        $region15: #{tpu_custom_call.1} parent=11 // pred_region
          %s285 = ssub.s32 3072, 3072
          %286 = vsyncadd [#allocation6], %s285
          %s287 = sshll.u32 [#allocation5], 4
          %s288 = int_to_ptr.vmem [resolvable:$true] %s287
          %293 = dma.hbm_to_vmem [thread:$0]  %s1, 3072, %s288, [#allocation6], 192, 192, 12
        $region16: #{tpu_custom_call.1} parent=11 // pred_fallthru
          _
        // Predicated region
        $region17: #{tpu_custom_call.1} parent=11 // pred_check
          %p294 = pneg %p93
        $region18: #{tpu_custom_call.1} parent=11 // pred_check_branch
          %296 = sbr.rel (%p294) target = $region20
        $region19: #{tpu_custom_call.1} parent=11 // pred_region
          %s298 = ssub.s32 1024, 1024
          %299 = vsyncadd [#allocation6], %s298
          %s300 = sshll.u32 [#allocation7], 4
          %s301 = int_to_ptr.vmem [resolvable:$true] %s300
          %306 = dma.hbm_to_vmem [thread:$0]  %s2, 1024, %s301, [#allocation6], 64, 64, 4
        $region20: #{tpu_custom_call.1} parent=11 // pred_fallthru
          _
        // Predicated region
        $region21: #{tpu_custom_call.1} parent=11 // pred_check
          %p307 = pneg %p114
        $region22: #{tpu_custom_call.1} parent=11 // pred_check_branch
          %309 = sbr.rel (%p307) target = $region24
        $region23: #{tpu_custom_call.1} parent=11 // pred_region
          _
        $region24: #{tpu_custom_call.1} parent=11 // pred_fallthru
          _
        // Predicated region
        $region25: #{tpu_custom_call.1} parent=11 // pred_check
          %p310 = pneg %p135
        $region26: #{tpu_custom_call.1} parent=11 // pred_check_branch
          %312 = sbr.rel (%p310) target = $region28
        $region27: #{tpu_custom_call.1} parent=11 // pred_region
          %s314 = ssub.s32 1024, 1024
          %315 = vsyncadd [#allocation9], %s314
          %s316 = sshll.u32 [#allocation8], 4
          %s317 = int_to_ptr.vmem [resolvable:$true] %s316
          %322 = dma.hbm_to_vmem [thread:$0]  %s4, 1024, %s317, [#allocation9], 64, 64, 4
        $region28: #{tpu_custom_call.1} parent=11 // pred_fallthru
          _
        // Predicated region
        $region29: #{tpu_custom_call.1} parent=11 // pred_check
          %p323 = pneg %p156
        $region30: #{tpu_custom_call.1} parent=11 // pred_check_branch
          %325 = sbr.rel (%p323) target = $region32
        $region31: #{tpu_custom_call.1} parent=11 // pred_region
          %s327 = ssub.s32 2048, 2048
          %328 = vsyncadd [#allocation9], %s327
          %s329 = sshll.u32 [#allocation10], 4
          %s330 = int_to_ptr.vmem [resolvable:$true] %s329
          %335 = dma.hbm_to_vmem [thread:$0]  %s5, 2048, %s330, [#allocation9], 128, 128, 8
        $region32: #{tpu_custom_call.1} parent=11 // pred_fallthru
          _
        // Predicated region
        $region33: #{tpu_custom_call.1} parent=11 // pred_check
          %p336 = pneg %p177
        $region34: #{tpu_custom_call.1} parent=11 // pred_check_branch
          %338 = sbr.rel (%p336) target = $region36
        $region35: #{tpu_custom_call.1} parent=11 // pred_region
          %s340 = ssub.s32 1024, 1024
          %341 = vsyncadd [#allocation12], %s340
          %s342 = sshll.u32 [#allocation11], 4
          %s343 = int_to_ptr.vmem [resolvable:$true] %s342
          %348 = dma.hbm_to_vmem [thread:$0]  %s6, 1024, %s343, [#allocation12], 64, 64, 4
        $region36: #{tpu_custom_call.1} parent=11 // pred_fallthru
          _
        // Predicated region
        $region37: #{tpu_custom_call.1} parent=11 // pred_check
          %p349 = pneg %p198
        $region38: #{tpu_custom_call.1} parent=11 // pred_check_branch
          %351 = sbr.rel (%p349) target = $region40
        $region39: #{tpu_custom_call.1} parent=11 // pred_region
          _
        $region40: #{tpu_custom_call.1} parent=11 // pred_fallthru
          _
        // Predicated region
        $region41: #{tpu_custom_call.1} parent=11 // pred_check
          %p352 = pneg %p219
        $region42: #{tpu_custom_call.1} parent=11 // pred_check_branch
          %354 = sbr.rel (%p352) target = $region44
        $region43: #{tpu_custom_call.1} parent=11 // pred_region
          %s356 = ssub.s32 1024, 1024
          %357 = vsyncadd [#allocation12], %s356
          %s358 = sshll.u32 [#allocation13], 4
          %s359 = int_to_ptr.vmem [resolvable:$true] %s358
          %364 = dma.hbm_to_vmem [thread:$0]  %s8, 1024, %s359, [#allocation12], 64, 64, 4
        $region44: #{tpu_custom_call.1} parent=11 // pred_fallthru
          _
        // Predicated region
        $region45: #{tpu_custom_call.1} parent=11 // pred_check
          %p365 = pneg %p240
        $region46: #{tpu_custom_call.1} parent=11 // pred_check_branch
          %367 = sbr.rel (%p365) target = $region48
        $region47: #{tpu_custom_call.1} parent=11 // pred_region
          _
        $region48: #{tpu_custom_call.1} parent=11 // pred_fallthru
          _
      $region12: #{tpu_custom_call.1} parent=5 // pred_fallthru
        _
      %p368 = scmp.lt.s32.totalorder %s25, 2
      // Predicated region
      $region49: #{tpu_custom_call.1} parent=5 // pred_check
        %p369 = pneg %p368
      $region50: #{tpu_custom_call.1} parent=5 // pred_check_branch
        %371 = sbr.rel (%p369) target = $region52
      $region51: #{tpu_custom_call.1} parent=5 // pred_region
        // Predicated region
        $region53: #{tpu_custom_call.1} parent=51 // pred_check
          %p372 = pneg %p45
        $region54: #{tpu_custom_call.1} parent=51 // pred_check_branch
          %374 = sbr.rel (%p372) target = $region56
        $region55: #{tpu_custom_call.1} parent=51 // pred_region
          %s375 = sand.u32 %s35, 1
          %s376 = scalar_lea.sflag [#allocation3], %s375
          %s377 = sand.u32 %s35, 1
          %s378 = smul.addr %s377, 8
          %s379 = scalar_lea.vmem [#allocation2], %s378
          %s380 = smul.u32 2, %s25
          %s382 = ssub.s32 128, 128
          %383 = vsyncadd %s376, %s382
          %s384 = smul.addr %s380, 64
          %s385 = scalar_lea.hbm %s0, %s384
          %s386 = sshll.u32 %s379, 4
          %s387 = int_to_ptr.vmem [resolvable:$true] %s386
          %392 = dma.hbm_to_vmem [thread:$0]  %s385, 128, %s387, %s376, 64, 64, 4
        $region56: #{tpu_custom_call.1} parent=51 // pred_fallthru
          _
      $region52: #{tpu_custom_call.1} parent=5 // pred_fallthru
        _
      %p393 = scmp.le.s32.totalorder 1, %s25
      %p394 = scmp.lt.s32.totalorder %s25, 3
      %p395 = pnand %p393, %p394
      %p396 = pneg %p395
      // Predicated region
      $region57: #{tpu_custom_call.1} parent=5 // pred_check
        _
      $region58: #{tpu_custom_call.1} parent=5 // pred_check_branch
        %398 = sbr.rel (%p395) target = $region60
      $region59: #{tpu_custom_call.1} parent=5 // pred_region
        %s399 = ssub.s32 %s25, 1
        %s400 = sand.u32 %s38, 1
        %s401 = scalar_lea.sflag [#allocation3], %s400
        %s402 = sand.u32 %s38, 1
        %s403 = smul.addr %s402, 8
        %s404 = scalar_lea.vmem [#allocation2], %s403
        // Predicated region
        $region61: #{tpu_custom_call.1} parent=59 // pred_check
          %p405 = pneg %p51
        $region62: #{tpu_custom_call.1} parent=59 // pred_check_branch
          %407 = sbr.rel (%p405) target = $region64
        $region63: #{tpu_custom_call.1} parent=59 // pred_region
          %408 = dma.done %s401, 128
        $region64: #{tpu_custom_call.1} parent=59 // pred_fallthru
          _
        // Predicated region
        $region65: #{tpu_custom_call.1} parent=59 // pred_check
          %p409 = pneg %p72
        $region66: #{tpu_custom_call.1} parent=59 // pred_check_branch
          %411 = sbr.rel (%p409) target = $region68
        $region67: #{tpu_custom_call.1} parent=59 // pred_region
          %412 = dma.done [#allocation6], 3072
        $region68: #{tpu_custom_call.1} parent=59 // pred_fallthru
          _
        // Predicated region
        $region69: #{tpu_custom_call.1} parent=59 // pred_check
          %p413 = pneg %p93
        $region70: #{tpu_custom_call.1} parent=59 // pred_check_branch
          %415 = sbr.rel (%p413) target = $region72
        $region71: #{tpu_custom_call.1} parent=59 // pred_region
          %416 = dma.done [#allocation6], 1024
        $region72: #{tpu_custom_call.1} parent=59 // pred_fallthru
          _
        // Predicated region
        $region73: #{tpu_custom_call.1} parent=59 // pred_check
          %p417 = pneg %p135
        $region74: #{tpu_custom_call.1} parent=59 // pred_check_branch
          %419 = sbr.rel (%p417) target = $region76
        $region75: #{tpu_custom_call.1} parent=59 // pred_region
          %420 = dma.done [#allocation9], 1024
        $region76: #{tpu_custom_call.1} parent=59 // pred_fallthru
          _
        // Predicated region
        $region77: #{tpu_custom_call.1} parent=59 // pred_check
          %p421 = pneg %p156
        $region78: #{tpu_custom_call.1} parent=59 // pred_check_branch
          %423 = sbr.rel (%p421) target = $region80
        $region79: #{tpu_custom_call.1} parent=59 // pred_region
          %424 = dma.done [#allocation9], 2048
        $region80: #{tpu_custom_call.1} parent=59 // pred_fallthru
          _
        // Predicated region
        $region81: #{tpu_custom_call.1} parent=59 // pred_check
          %p425 = pneg %p177
        $region82: #{tpu_custom_call.1} parent=59 // pred_check_branch
          %427 = sbr.rel (%p425) target = $region84
        $region83: #{tpu_custom_call.1} parent=59 // pred_region
          %428 = dma.done [#allocation12], 1024
        $region84: #{tpu_custom_call.1} parent=59 // pred_fallthru
          _
        // Predicated region
        $region85: #{tpu_custom_call.1} parent=59 // pred_check
          %p429 = pneg %p219
        $region86: #{tpu_custom_call.1} parent=59 // pred_check_branch
          %431 = sbr.rel (%p429) target = $region88
        $region87: #{tpu_custom_call.1} parent=59 // pred_region
          %432 = dma.done [#allocation12], 1024
        $region88: #{tpu_custom_call.1} parent=59 // pred_fallthru
          _
        %s433 = sand.u32 %s38, 1
        %s434 = scalar_lea.sflag [#allocation3], %s433
        %s435 = sand.u32 %s38, 1
        %s436 = smul.addr %s435, 8
        %s437 = scalar_lea.vmem [#allocation2], %s436
        %p438 = pneg %p51
        %p439 = pneg %p48
        %p440 = pneg %p72
        %p441 = pneg %p69
        %p442 = pneg %p93
        %p443 = pneg %p90
        %p444 = pneg %p114
        %p445 = pneg %p111
        %p446 = pneg %p135
        %p447 = pneg %p132
        %p448 = pneg %p156
        %p449 = pneg %p153
        %p450 = pneg %p177
        %p451 = pneg %p174
        %p452 = pneg %p198
        %p453 = pneg %p195
        %p454 = pneg %p219
        %p455 = pneg %p216
        %p456 = pneg %p240
        %p457 = pneg %p237
        %p458 = pneg %p266
        %p459 = pneg %p263
        %s460 = sand.u32 %s253, 1
        %s461 = scalar_lea.sflag [#allocation4], %s460
        %s462 = sand.u32 %s253, 1
        %s463 = smul.addr %s462, 16
        %s464 = scalar_lea.vmem [#allocation14], %s463
        %s465 = smul.u32 2, %s30
        %s466 = smul.u32 2, %s30
        %v468 = vld [vmem:[%s404] sm:$0xf]
        %v469 = vld [vmem:[%s404 + $0x4] sm:$0xf]
        %v470 = vld [vmem:[#allocation5] sm:$0xff]
        %v471 = vld [vmem:[#allocation5 + $0x8] sm:$0xf]
        %v472 = vld [vmem:[#allocation5 + $0xc] sm:$0xff]
        %v473 = vld [vmem:[#allocation5 + $0x14] sm:$0xf]
        %v474 = vld [vmem:[#allocation5 + $0x18] sm:$0xff]
        %v475 = vld [vmem:[#allocation5 + $0x20] sm:$0xf]
        %v476 = vld [vmem:[#allocation5 + $0x24] sm:$0xff]
        %v477 = vld [vmem:[#allocation5 + $0x2c] sm:$0xf]
        %v478 = vld [vmem:[#allocation5 + $0x30] sm:$0xff]
        %v479 = vld [vmem:[#allocation5 + $0x38] sm:$0xf]
        %v480 = vld [vmem:[#allocation5 + $0x3c] sm:$0xff]
        %v481 = vld [vmem:[#allocation5 + $0x44] sm:$0xf]
        %v482 = vld [vmem:[#allocation5 + $0x48] sm:$0xff]
        %v483 = vld [vmem:[#allocation5 + $0x50] sm:$0xf]
        %v484 = vld [vmem:[#allocation5 + $0x54] sm:$0xff]
        %v485 = vld [vmem:[#allocation5 + $0x5c] sm:$0xf]
        %v486 = vld [vmem:[#allocation5 + $0x60] sm:$0xff]
        %v487 = vld [vmem:[#allocation5 + $0x68] sm:$0xf]
        %v488 = vld [vmem:[#allocation5 + $0x6c] sm:$0xff]
        %v489 = vld [vmem:[#allocation5 + $0x74] sm:$0xf]
        %v490 = vld [vmem:[#allocation5 + $0x78] sm:$0xff]
        %v491 = vld [vmem:[#allocation5 + $0x80] sm:$0xf]
        %v492 = vld [vmem:[#allocation5 + $0x84] sm:$0xff]
        %v493 = vld [vmem:[#allocation5 + $0x8c] sm:$0xf]
        %v494 = vld [vmem:[#allocation5 + $0x90] sm:$0xff]
        %v495 = vld [vmem:[#allocation5 + $0x98] sm:$0xf]
        %v496 = vld [vmem:[#allocation5 + $0x9c] sm:$0xff]
        %v497 = vld [vmem:[#allocation5 + $0xa4] sm:$0xf]
        %v498 = vld [vmem:[#allocation5 + $0xa8] sm:$0xff]
        %v499 = vld [vmem:[#allocation5 + $0xb0] sm:$0xf]
        %v500 = vld [vmem:[#allocation5 + $0xb4] sm:$0xff]
        %v501 = vld [vmem:[#allocation5 + $0xbc] sm:$0xf]
        %v504 = vunpack.c.l.b16 %v468
        %v505 = vunpack.c.l.b16 %v469
        %v506 = vpack.c.b16 %v505, %v504
        %v540 = vunpack.c.l.b16 %v470
        %v541 = vunpack.c.h.b16 %v470
        %v542 = vunpack.c.l.b16 %v471
        %v543 = vunpack.c.l.b16 %v472
        %v544 = vunpack.c.h.b16 %v472
        %v545 = vunpack.c.l.b16 %v473
        %v546 = vunpack.c.l.b16 %v474
        %v547 = vunpack.c.h.b16 %v474
        %v548 = vunpack.c.l.b16 %v475
        %v549 = vunpack.c.l.b16 %v476
        %v550 = vunpack.c.h.b16 %v476
        %v551 = vunpack.c.l.b16 %v477
        %v552 = vunpack.c.l.b16 %v478
        %v553 = vunpack.c.h.b16 %v478
        %v554 = vunpack.c.l.b16 %v479
        %v555 = vunpack.c.l.b16 %v480
        %v556 = vunpack.c.h.b16 %v480
        %v557 = vunpack.c.l.b16 %v481
        %v558 = vunpack.c.l.b16 %v482
        %v559 = vunpack.c.h.b16 %v482
        %v560 = vunpack.c.l.b16 %v483
        %v561 = vunpack.c.l.b16 %v484
        %v562 = vunpack.c.h.b16 %v484
        %v563 = vunpack.c.l.b16 %v485
        %v564 = vunpack.c.l.b16 %v486
        %v565 = vunpack.c.h.b16 %v486
        %v566 = vunpack.c.l.b16 %v487
        %v567 = vunpack.c.l.b16 %v488
        %v568 = vunpack.c.h.b16 %v488
        %v569 = vunpack.c.l.b16 %v489
        %v570 = vunpack.c.l.b16 %v490
        %v571 = vunpack.c.h.b16 %v490
        %v572 = vunpack.c.l.b16 %v491
        %v573 = vunpack.c.l.b16 %v492
        %v574 = vunpack.c.h.b16 %v492
        %v575 = vunpack.c.l.b16 %v493
        %v576 = vunpack.c.l.b16 %v494
        %v577 = vunpack.c.h.b16 %v494
        %v578 = vunpack.c.l.b16 %v495
        %v579 = vunpack.c.l.b16 %v496
        %v580 = vunpack.c.h.b16 %v496
        %v581 = vunpack.c.l.b16 %v497
        %v582 = vunpack.c.l.b16 %v498
        %v583 = vunpack.c.h.b16 %v498
        %v584 = vunpack.c.l.b16 %v499
        %v585 = vunpack.c.l.b16 %v500
        %v586 = vunpack.c.h.b16 %v500
        %v587 = vunpack.c.l.b16 %v501
        %v588 = vpack.c.b16 %v543, %v540
        %v589 = vpack.c.b16 %v544, %v541
        %v590 = vpack.c.b16 %v545, %v542
        %v591 = vpack.c.b16 %v549, %v546
        %v592 = vpack.c.b16 %v550, %v547
        %v593 = vpack.c.b16 %v551, %v548
        %v594 = vpack.c.b16 %v555, %v552
        %v595 = vpack.c.b16 %v556, %v553
        %v596 = vpack.c.b16 %v557, %v554
        %v597 = vpack.c.b16 %v561, %v558
        %v598 = vpack.c.b16 %v562, %v559
        %v599 = vpack.c.b16 %v563, %v560
        %v600 = vpack.c.b16 %v567, %v564
        %v601 = vpack.c.b16 %v568, %v565
        %v602 = vpack.c.b16 %v569, %v566
        %v603 = vpack.c.b16 %v573, %v570
        %v604 = vpack.c.b16 %v574, %v571
        %v605 = vpack.c.b16 %v575, %v572
        %v606 = vpack.c.b16 %v579, %v576
        %v607 = vpack.c.b16 %v580, %v577
        %v608 = vpack.c.b16 %v581, %v578
        %v609 = vpack.c.b16 %v585, %v582
        %v610 = vpack.c.b16 %v586, %v583
        %v611 = vpack.c.b16 %v587, %v584
        %636 = vmatprep.subr.bf16.mxu0 %v610
        %637 = vmatpush1.bf16.msra.mxu0 %v609
        %638 = vmatprep.subr.bf16.mxu0 %v607
        %639 = vmatpush1.bf16.msra.mxu0 %v606
        %640 = vmatprep.subr.bf16.mxu0 %v604
        %641 = vmatpush1.bf16.msra.mxu0 %v603
        %642 = vmatprep.subr.bf16.mxu0 %v601
        %643 = vmatpush1.bf16.msra.mxu0 %v600
        %644 = vmatprep.subr.bf16.mxu0 %v598
        %645 = vmatpush1.bf16.msra.mxu0 %v597
        %646 = vmatprep.subr.bf16.mxu0 %v595
        %647 = vmatpush1.bf16.msra.mxu0 %v594
        %648 = vmatprep.subr.bf16.mxu0 %v592
        %649 = vmatpush1.bf16.msra.mxu0 %v591
        %650 = vmatprep.subr.bf16.mxu0 %v589
        %651 = vmatpush1.bf16.msra.mxu0 %v588
        %652 = vmatprep.subr.bf16.mxu0 0
        %653 = vmatpush2.bf16.msra.mxu0 0
        %654 = vmatprep.subr.bf16.mxu0 0
        %655 = vmatpush2.bf16.msra.mxu0 0
        %656 = vmatprep.subr.bf16.mxu0 0
        %657 = vmatpush2.bf16.msra.mxu0 0
        %658 = vmatprep.subr.bf16.mxu0 0
        %659 = vmatpush2.bf16.msra.mxu0 0
        %660 = vmatprep.subr.bf16.mxu0 0
        %661 = vmatpush2.bf16.msra.mxu0 0
        %662 = vmatprep.subr.bf16.mxu0 0
        %663 = vmatpush2.bf16.msra.mxu0 0
        %664 = vmatprep.subr.bf16.mxu0 0
        %665 = vmatpush2.bf16.msra.mxu0 0
        %666 = vmatprep.subr.bf16.mxu0 0
        %667 = vmatpush2.bf16.msra.mxu0 0
        %668 = vmatprep.mubr.bf16.mxu0 0
        %669 = vmatmul.mubr.bf16.gmra.mxu0 %v506
        %v670 = vpop.f32.mrf.mxu0
        %v671 = vadd.f32 0.0, %v670
        %v672 = vpop.f32.mrf.mxu0
        %v673 = vadd.f32 0.0, %v672
        %v674 = vpop.f32.mrf.mxu0
        %v675 = vadd.f32 0.0, %v674
        %v676 = vpop.f32.mrf.mxu0
        %v677 = vadd.f32 0.0, %v676
        %678 = vdwg.mxu0
        %679 = vmatprep.subr.bf16.mxu0 0
        %680 = vmatpush1.bf16.msra.mxu0 %v611
        %681 = vmatprep.subr.bf16.mxu0 0
        %682 = vmatpush1.bf16.msra.mxu0 %v608
        %683 = vmatprep.subr.bf16.mxu0 0
        %684 = vmatpush1.bf16.msra.mxu0 %v605
        %685 = vmatprep.subr.bf16.mxu0 0
        %686 = vmatpush1.bf16.msra.mxu0 %v602
        %687 = vmatprep.subr.bf16.mxu0 0
        %688 = vmatpush1.bf16.msra.mxu0 %v599
        %689 = vmatprep.subr.bf16.mxu0 0
        %690 = vmatpush1.bf16.msra.mxu0 %v596
        %691 = vmatprep.subr.bf16.mxu0 0
        %692 = vmatpush1.bf16.msra.mxu0 %v593
        %693 = vmatprep.subr.bf16.mxu0 0
        %694 = vmatpush1.bf16.msra.mxu0 %v590
        %695 = vmatprep.subr.bf16.mxu0 0
        %696 = vmatpush2.bf16.msra.mxu0 0
        %697 = vmatprep.subr.bf16.mxu0 0
        %698 = vmatpush2.bf16.msra.mxu0 0
        %699 = vmatprep.subr.bf16.mxu0 0
        %700 = vmatpush2.bf16.msra.mxu0 0
        %701 = vmatprep.subr.bf16.mxu0 0
        %702 = vmatpush2.bf16.msra.mxu0 0
        %703 = vmatprep.subr.bf16.mxu0 0
        %704 = vmatpush2.bf16.msra.mxu0 0
        %705 = vmatprep.subr.bf16.mxu0 0
        %706 = vmatpush2.bf16.msra.mxu0 0
        %707 = vmatprep.subr.bf16.mxu0 0
        %708 = vmatpush2.bf16.msra.mxu0 0
        %709 = vmatprep.subr.bf16.mxu0 0
        %710 = vmatpush2.bf16.msra.mxu0 0
        %711 = vmatprep.mubr.bf16.mxu0 0
        %712 = vmatmul.mubr.bf16.gmra.mxu0 %v506
        %v713 = vpop.f32.mrf.mxu0
        %v714 = vadd.f32 0.0, %v713
        %v715 = vpop.f32.mrf.mxu0
        %v716 = vpop.f32.mrf.mxu0
        %v717 = vadd.f32 0.0, %v716
        %v718 = vpop.f32.mrf.mxu0
        %719 = vdwg.mxu0
        %v720 = vpack.c.bf16 %v675, %v671
        %v721 = vpack.c.bf16 %v677, %v673
        %v722 = vpack.c.bf16 %v717, %v714
        %v724 = vunpack.c.l.b16 %v720
        %v725 = vunpack.c.h.b16 %v720
        %v726 = vpack.c.b16 %v724, %v724
        %v727 = vpack.c.b16 %v725, %v725
        %v729 = vunpack.c.l.b16 %v721
        %v730 = vunpack.c.h.b16 %v721
        %v731 = vpack.c.b16 %v729, %v729
        %v732 = vpack.c.b16 %v730, %v730
        %v734 = vunpack.c.l.b16 %v722
        %v735 = vunpack.c.h.b16 %v722
        %v736 = vpack.c.b16 %v734, %v734
        %v737 = vpack.c.b16 %v735, %v735
        %vm738 = vcmask 261120
        %v740 = vsel %vm738, %v726, 0
        %v743 = vsel %vm738, %v731, 0
        %745 = vmatprep.subr.bf16.mxu0 0
        %746 = vmatpush1.bf16.xpose.msra.mxu0 0
        %747 = vmatprep.subr.bf16.mxu0 0
        %748 = vmatpush1.bf16.xpose.msra.mxu0 0
        %749 = vmatprep.subr.bf16.mxu0 0
        %750 = vmatpush1.bf16.xpose.msra.mxu0 0
        %751 = vmatprep.subr.bf16.mxu0 0
        %752 = vmatpush1.bf16.xpose.msra.mxu0 0
        %753 = vmatprep.subr.bf16.mxu0 0
        %754 = vmatpush1.bf16.xpose.msra.mxu0 0
        %755 = vmatprep.subr.bf16.mxu0 0
        %756 = vmatpush1.bf16.xpose.msra.mxu0 0
        %757 = vmatprep.subr.bf16.mxu0 0
        %758 = vmatpush1.bf16.xpose.msra.mxu0 0
        %759 = vmatprep.subr.bf16.mxu0 0
        %760 = vmatpush1.bf16.xpose.msra.mxu0 %v743
        %761 = vmatprep.subr.bf16.mxu0 0
        %762 = vmatpush2.bf16.xpose.msra.mxu0 0
        %763 = vmatprep.subr.bf16.mxu0 0
        %764 = vmatpush2.bf16.xpose.msra.mxu0 0
        %765 = vmatprep.subr.bf16.mxu0 0
        %766 = vmatpush2.bf16.xpose.msra.mxu0 0
        %767 = vmatprep.subr.bf16.mxu0 0
        %768 = vmatpush2.bf16.xpose.msra.mxu0 0
        %769 = vmatprep.subr.bf16.mxu0 0
        %770 = vmatpush2.bf16.xpose.msra.mxu0 0
        %771 = vmatprep.subr.bf16.mxu0 0
        %772 = vmatpush2.bf16.xpose.msra.mxu0 0
        %773 = vmatprep.subr.bf16.mxu0 0
        %774 = vmatpush2.bf16.xpose.msra.mxu0 0
        %775 = vmatprep.subr.bf16.mxu0 0
        %776 = vmatpush2.bf16.xpose.msra.mxu0 0
        %777 = vmatprep.mubr.bf16.mxu0 0
        %778 = vmatmul.mubr.bf16.gmra.mxu0 %v740
        %v779 = vpop.f32.mrf.mxu0
        %v780 = vadd.f32 0.0, %v779
        %v781 = vpop.f32.mrf.mxu0
        %v782 = vpop.f32.mrf.mxu0
        %v783 = vpop.f32.mrf.mxu0
        %784 = vdwg.mxu0
        %v786 = vsel %vm738, %v727, 0
        %v789 = vsel %vm738, %v732, 0
        %791 = vmatprep.subr.bf16.mxu0 0
        %792 = vmatpush1.bf16.xpose.msra.mxu0 0
        %793 = vmatprep.subr.bf16.mxu0 0
        %794 = vmatpush1.bf16.xpose.msra.mxu0 0
        %795 = vmatprep.subr.bf16.mxu0 0
        %796 = vmatpush1.bf16.xpose.msra.mxu0 0
        %797 = vmatprep.subr.bf16.mxu0 0
        %798 = vmatpush1.bf16.xpose.msra.mxu0 0
        %799 = vmatprep.subr.bf16.mxu0 0
        %800 = vmatpush1.bf16.xpose.msra.mxu0 0
        %801 = vmatprep.subr.bf16.mxu0 0
        %802 = vmatpush1.bf16.xpose.msra.mxu0 0
        %803 = vmatprep.subr.bf16.mxu0 0
        %804 = vmatpush1.bf16.xpose.msra.mxu0 0
        %805 = vmatprep.subr.bf16.mxu0 0
        %806 = vmatpush1.bf16.xpose.msra.mxu0 %v789
        %807 = vmatprep.subr.bf16.mxu0 0
        %808 = vmatpush2.bf16.xpose.msra.mxu0 0
        %809 = vmatprep.subr.bf16.mxu0 0
        %810 = vmatpush2.bf16.xpose.msra.mxu0 0
        %811 = vmatprep.subr.bf16.mxu0 0
        %812 = vmatpush2.bf16.xpose.msra.mxu0 0
        %813 = vmatprep.subr.bf16.mxu0 0
        %814 = vmatpush2.bf16.xpose.msra.mxu0 0
        %815 = vmatprep.subr.bf16.mxu0 0
        %816 = vmatpush2.bf16.xpose.msra.mxu0 0
        %817 = vmatprep.subr.bf16.mxu0 0
        %818 = vmatpush2.bf16.xpose.msra.mxu0 0
        %819 = vmatprep.subr.bf16.mxu0 0
        %820 = vmatpush2.bf16.xpose.msra.mxu0 0
        %821 = vmatprep.subr.bf16.mxu0 0
        %822 = vmatpush2.bf16.xpose.msra.mxu0 0
        %823 = vmatprep.mubr.bf16.mxu0 0
        %824 = vmatmul.mubr.bf16.gmra.mxu0 %v786
        %v825 = vpop.f32.mrf.mxu0
        %v826 = vadd.f32 0.0, %v825
        %v827 = vpop.f32.mrf.mxu0
        %v828 = vpop.f32.mrf.mxu0
        %v829 = vpop.f32.mrf.mxu0
        %830 = vdwg.mxu0
        %vm831 = vcmask 64512
        %v832 = vsel %vm831, %v780, -inf
        %833 = vmax.xlane.f32.xlu0 %v832
        %v834 = vpop.xlane.xlu0 %833
        %v835 = vsel %vm831, %v826, -inf
        %836 = vmax.xlane.f32.xlu0 %v835
        %v837 = vpop.xlane.xlu0 %836
        %v838 = vsub.f32 %v780, %v834
        %v839 = vsub.f32 %v826, %v837
        %v840 = vmul.f32 %v838, 1.442695
        %v841 = vpow.pop %v840
        %v842 = vmul.f32 %v839, 1.442695
        %v843 = vpow.pop %v842
        %v844 = vsel %vm831, %v841, 0.0
        %845 = vadd.xlane.f32.xlu0 %v844
        %v846 = vpop.xlane.xlu0 %845
        %v847 = vsel %vm831, %v843, 0.0
        %848 = vadd.xlane.f32.xlu0 %v847
        %v849 = vpop.xlane.xlu0 %848
        %v850 = vrcp.pop %v846
        %v851 = vrcp.pop %v849
        %v852 = vmul.f32 %v841, %v850
        %v853 = vmul.f32 %v843, %v851
        %v854 = vpack.c.bf16 %v852, %v852
        %v855 = vpack.c.bf16 %v853, %v853
        %v857 = vsel %vm831, %v854, 0
        %vm859 = vcmask 1043456
        %v861 = vsel %vm859, %v736, 0
        %863 = vmatprep.subr.bf16.mxu0 0
        %864 = vmatpush1.bf16.msra.mxu0 0
        %865 = vmatprep.subr.bf16.mxu0 0
        %866 = vmatpush1.bf16.msra.mxu0 0
        %867 = vmatprep.subr.bf16.mxu0 0
        %868 = vmatpush1.bf16.msra.mxu0 0
        %869 = vmatprep.subr.bf16.mxu0 0
        %870 = vmatpush1.bf16.msra.mxu0 0
        %871 = vmatprep.subr.bf16.mxu0 0
        %872 = vmatpush1.bf16.msra.mxu0 0
        %873 = vmatprep.subr.bf16.mxu0 0
        %874 = vmatpush1.bf16.msra.mxu0 0
        %875 = vmatprep.subr.bf16.mxu0 0
        %876 = vmatpush1.bf16.msra.mxu0 0
        %877 = vmatprep.subr.bf16.mxu0 0
        %878 = vmatpush1.bf16.msra.mxu0 %v861
        %879 = vmatprep.subr.bf16.mxu0 0
        %880 = vmatpush2.bf16.msra.mxu0 0
        %881 = vmatprep.subr.bf16.mxu0 0
        %882 = vmatpush2.bf16.msra.mxu0 0
        %883 = vmatprep.subr.bf16.mxu0 0
        %884 = vmatpush2.bf16.msra.mxu0 0
        %885 = vmatprep.subr.bf16.mxu0 0
        %886 = vmatpush2.bf16.msra.mxu0 0
        %887 = vmatprep.subr.bf16.mxu0 0
        %888 = vmatpush2.bf16.msra.mxu0 0
        %889 = vmatprep.subr.bf16.mxu0 0
        %890 = vmatpush2.bf16.msra.mxu0 0
        %891 = vmatprep.subr.bf16.mxu0 0
        %892 = vmatpush2.bf16.msra.mxu0 0
        %893 = vmatprep.subr.bf16.mxu0 0
        %894 = vmatpush2.bf16.msra.mxu0 0
        %895 = vmatprep.mubr.bf16.mxu0 0
        %896 = vmatmul.mubr.bf16.gmra.mxu0 %v857
        %v897 = vpop.f32.mrf.mxu0
        %v898 = vadd.f32 0.0, %v897
        %v899 = vpop.f32.mrf.mxu0
        %v900 = vpop.f32.mrf.mxu0
        %v901 = vpop.f32.mrf.mxu0
        %902 = vdwg.mxu0
        %v904 = vsel %vm831, %v855, 0
        %v907 = vsel %vm859, %v737, 0
        %909 = vmatprep.subr.bf16.mxu0 0
        %910 = vmatpush1.bf16.msra.mxu0 0
        %911 = vmatprep.subr.bf16.mxu0 0
        %912 = vmatpush1.bf16.msra.mxu0 0
        %913 = vmatprep.subr.bf16.mxu0 0
        %914 = vmatpush1.bf16.msra.mxu0 0
        %915 = vmatprep.subr.bf16.mxu0 0
        %916 = vmatpush1.bf16.msra.mxu0 0
        %917 = vmatprep.subr.bf16.mxu0 0
        %918 = vmatpush1.bf16.msra.mxu0 0
        %919 = vmatprep.subr.bf16.mxu0 0
        %920 = vmatpush1.bf16.msra.mxu0 0
        %921 = vmatprep.subr.bf16.mxu0 0
        %922 = vmatpush1.bf16.msra.mxu0 0
        %923 = vmatprep.subr.bf16.mxu0 0
        %924 = vmatpush1.bf16.msra.mxu0 %v907
        %925 = vmatprep.subr.bf16.mxu0 0
        %926 = vmatpush2.bf16.msra.mxu0 0
        %927 = vmatprep.subr.bf16.mxu0 0
        %928 = vmatpush2.bf16.msra.mxu0 0
        %929 = vmatprep.subr.bf16.mxu0 0
        %930 = vmatpush2.bf16.msra.mxu0 0
        %931 = vmatprep.subr.bf16.mxu0 0
        %932 = vmatpush2.bf16.msra.mxu0 0
        %933 = vmatprep.subr.bf16.mxu0 0
        %934 = vmatpush2.bf16.msra.mxu0 0
        %935 = vmatprep.subr.bf16.mxu0 0
        %936 = vmatpush2.bf16.msra.mxu0 0
        %937 = vmatprep.subr.bf16.mxu0 0
        %938 = vmatpush2.bf16.msra.mxu0 0
        %939 = vmatprep.subr.bf16.mxu0 0
        %940 = vmatpush2.bf16.msra.mxu0 0
        %941 = vmatprep.mubr.bf16.mxu0 0
        %942 = vmatmul.mubr.bf16.gmra.mxu0 %v904
        %v943 = vpop.f32.mrf.mxu0
        %v944 = vadd.f32 0.0, %v943
        %v945 = vpop.f32.mrf.mxu0
        %v946 = vpop.f32.mrf.mxu0
        %v947 = vpop.f32.mrf.mxu0
        %948 = vdwg.mxu0
        %v949 = vpack.c.bf16 %v944, %v898
        %950 = vrot.lane.b32.xlu0 %v726, 96
        %v951 = vpop.permute.xlu0 %950
        %952 = vrot.lane.b32.xlu0 %v731, 96
        %v953 = vpop.permute.xlu0 %952
        %v955 = vsel %vm738, %v951, 0
        %v958 = vsel %vm738, %v953, 0
        %960 = vmatprep.subr.bf16.mxu0 0
        %961 = vmatpush1.bf16.xpose.msra.mxu0 0
        %962 = vmatprep.subr.bf16.mxu0 0
        %963 = vmatpush1.bf16.xpose.msra.mxu0 0
        %964 = vmatprep.subr.bf16.mxu0 0
        %965 = vmatpush1.bf16.xpose.msra.mxu0 0
        %966 = vmatprep.subr.bf16.mxu0 0
        %967 = vmatpush1.bf16.xpose.msra.mxu0 0
        %968 = vmatprep.subr.bf16.mxu0 0
        %969 = vmatpush1.bf16.xpose.msra.mxu0 0
        %970 = vmatprep.subr.bf16.mxu0 0
        %971 = vmatpush1.bf16.xpose.msra.mxu0 0
        %972 = vmatprep.subr.bf16.mxu0 0
        %973 = vmatpush1.bf16.xpose.msra.mxu0 0
        %974 = vmatprep.subr.bf16.mxu0 0
        %975 = vmatpush1.bf16.xpose.msra.mxu0 %v958
        %976 = vmatprep.subr.bf16.mxu0 0
        %977 = vmatpush2.bf16.xpose.msra.mxu0 0
        %978 = vmatprep.subr.bf16.mxu0 0
        %979 = vmatpush2.bf16.xpose.msra.mxu0 0
        %980 = vmatprep.subr.bf16.mxu0 0
        %981 = vmatpush2.bf16.xpose.msra.mxu0 0
        %982 = vmatprep.subr.bf16.mxu0 0
        %983 = vmatpush2.bf16.xpose.msra.mxu0 0
        %984 = vmatprep.subr.bf16.mxu0 0
        %985 = vmatpush2.bf16.xpose.msra.mxu0 0
        %986 = vmatprep.subr.bf16.mxu0 0
        %987 = vmatpush2.bf16.xpose.msra.mxu0 0
        %988 = vmatprep.subr.bf16.mxu0 0
        %989 = vmatpush2.bf16.xpose.msra.mxu0 0
        %990 = vmatprep.subr.bf16.mxu0 0
        %991 = vmatpush2.bf16.xpose.msra.mxu0 0
        %992 = vmatprep.mubr.bf16.mxu0 0
        %993 = vmatmul.mubr.bf16.gmra.mxu0 %v955
        %v994 = vpop.f32.mrf.mxu0
        %v995 = vadd.f32 0.0, %v994
        %v996 = vpop.f32.mrf.mxu0
        %v997 = vpop.f32.mrf.mxu0
        %v998 = vpop.f32.mrf.mxu0
        %999 = vdwg.mxu0
        %1000 = vrot.lane.b32.xlu0 %v727, 96
        %v1001 = vpop.permute.xlu0 %1000
        %1002 = vrot.lane.b32.xlu0 %v732, 96
        %v1003 = vpop.permute.xlu0 %1002
        %v1005 = vsel %vm738, %v1001, 0
        %v1008 = vsel %vm738, %v1003, 0
        %1010 = vmatprep.subr.bf16.mxu0 0
        %1011 = vmatpush1.bf16.xpose.msra.mxu0 0
        %1012 = vmatprep.subr.bf16.mxu0 0
        %1013 = vmatpush1.bf16.xpose.msra.mxu0 0
        %1014 = vmatprep.subr.bf16.mxu0 0
        %1015 = vmatpush1.bf16.xpose.msra.mxu0 0
        %1016 = vmatprep.subr.bf16.mxu0 0
        %1017 = vmatpush1.bf16.xpose.msra.mxu0 0
        %1018 = vmatprep.subr.bf16.mxu0 0
        %1019 = vmatpush1.bf16.xpose.msra.mxu0 0
        %1020 = vmatprep.subr.bf16.mxu0 0
        %1021 = vmatpush1.bf16.xpose.msra.mxu0 0
        %1022 = vmatprep.subr.bf16.mxu0 0
        %1023 = vmatpush1.bf16.xpose.msra.mxu0 0
        %1024 = vmatprep.subr.bf16.mxu0 0
        %1025 = vmatpush1.bf16.xpose.msra.mxu0 %v1008
        %1026 = vmatprep.subr.bf16.mxu0 0
        %1027 = vmatpush2.bf16.xpose.msra.mxu0 0
        %1028 = vmatprep.subr.bf16.mxu0 0
        %1029 = vmatpush2.bf16.xpose.msra.mxu0 0
        %1030 = vmatprep.subr.bf16.mxu0 0
        %1031 = vmatpush2.bf16.xpose.msra.mxu0 0
        %1032 = vmatprep.subr.bf16.mxu0 0
        %1033 = vmatpush2.bf16.xpose.msra.mxu0 0
        %1034 = vmatprep.subr.bf16.mxu0 0
        %1035 = vmatpush2.bf16.xpose.msra.mxu0 0
        %1036 = vmatprep.subr.bf16.mxu0 0
        %1037 = vmatpush2.bf16.xpose.msra.mxu0 0
        %1038 = vmatprep.subr.bf16.mxu0 0
        %1039 = vmatpush2.bf16.xpose.msra.mxu0 0
        %1040 = vmatprep.subr.bf16.mxu0 0
        %1041 = vmatpush2.bf16.xpose.msra.mxu0 0
        %1042 = vmatprep.mubr.bf16.mxu0 0
        %1043 = vmatmul.mubr.bf16.gmra.mxu0 %v1005
        %v1044 = vpop.f32.mrf.mxu0
        %v1045 = vadd.f32 0.0, %v1044
        %v1046 = vpop.f32.mrf.mxu0
        %v1047 = vpop.f32.mrf.mxu0
        %v1048 = vpop.f32.mrf.mxu0
        %1049 = vdwg.mxu0
        %v1050 = vsel %vm831, %v995, -inf
        %1051 = vmax.xlane.f32.xlu0 %v1050
        %v1052 = vpop.xlane.xlu0 %1051
        %v1053 = vsel %vm831, %v1045, -inf
        %1054 = vmax.xlane.f32.xlu0 %v1053
        %v1055 = vpop.xlane.xlu0 %1054
        %v1056 = vsub.f32 %v995, %v1052
        %v1057 = vsub.f32 %v1045, %v1055
        %v1058 = vmul.f32 %v1056, 1.442695
        %v1059 = vpow.pop %v1058
        %v1060 = vmul.f32 %v1057, 1.442695
        %v1061 = vpow.pop %v1060
        %v1062 = vsel %vm831, %v1059, 0.0
        %1063 = vadd.xlane.f32.xlu0 %v1062
        %v1064 = vpop.xlane.xlu0 %1063
        %v1065 = vsel %vm831, %v1061, 0.0
        %1066 = vadd.xlane.f32.xlu0 %v1065
        %v1067 = vpop.xlane.xlu0 %1066
        %v1068 = vrcp.pop %v1064
        %v1069 = vrcp.pop %v1067
        %v1070 = vmul.f32 %v1059, %v1068
        %v1071 = vmul.f32 %v1061, %v1069
        %v1072 = vpack.c.bf16 %v1070, %v1070
        %v1073 = vpack.c.bf16 %v1071, %v1071
        %1074 = vrot.lane.b32.xlu0 %v736, 96
        %v1075 = vpop.permute.xlu0 %1074
        %v1077 = vsel %vm831, %v1072, 0
        %v1080 = vsel %vm859, %v1075, 0
        %1082 = vmatprep.subr.bf16.mxu0 0
        %1083 = vmatpush1.bf16.msra.mxu0 0
        %1084 = vmatprep.subr.bf16.mxu0 0
        %1085 = vmatpush1.bf16.msra.mxu0 0
        %1086 = vmatprep.subr.bf16.mxu0 0
        %1087 = vmatpush1.bf16.msra.mxu0 0
        %1088 = vmatprep.subr.bf16.mxu0 0
        %1089 = vmatpush1.bf16.msra.mxu0 0
        %1090 = vmatprep.subr.bf16.mxu0 0
        %1091 = vmatpush1.bf16.msra.mxu0 0
        %1092 = vmatprep.subr.bf16.mxu0 0
        %1093 = vmatpush1.bf16.msra.mxu0 0
        %1094 = vmatprep.subr.bf16.mxu0 0
        %1095 = vmatpush1.bf16.msra.mxu0 0
        %1096 = vmatprep.subr.bf16.mxu0 0
        %1097 = vmatpush1.bf16.msra.mxu0 %v1080
        %1098 = vmatprep.subr.bf16.mxu0 0
        %1099 = vmatpush2.bf16.msra.mxu0 0
        %1100 = vmatprep.subr.bf16.mxu0 0
        %1101 = vmatpush2.bf16.msra.mxu0 0
        %1102 = vmatprep.subr.bf16.mxu0 0
        %1103 = vmatpush2.bf16.msra.mxu0 0
        %1104 = vmatprep.subr.bf16.mxu0 0
        %1105 = vmatpush2.bf16.msra.mxu0 0
        %1106 = vmatprep.subr.bf16.mxu0 0
        %1107 = vmatpush2.bf16.msra.mxu0 0
        %1108 = vmatprep.subr.bf16.mxu0 0
        %1109 = vmatpush2.bf16.msra.mxu0 0
        %1110 = vmatprep.subr.bf16.mxu0 0
        %1111 = vmatpush2.bf16.msra.mxu0 0
        %1112 = vmatprep.subr.bf16.mxu0 0
        %1113 = vmatpush2.bf16.msra.mxu0 0
        %1114 = vmatprep.mubr.bf16.mxu0 0
        %1115 = vmatmul.mubr.bf16.gmra.mxu0 %v1077
        %v1116 = vpop.f32.mrf.mxu0
        %v1117 = vadd.f32 0.0, %v1116
        %v1118 = vpop.f32.mrf.mxu0
        %v1119 = vpop.f32.mrf.mxu0
        %v1120 = vpop.f32.mrf.mxu0
        %1121 = vdwg.mxu0
        %1122 = vrot.lane.b32.xlu0 %v737, 96
        %v1123 = vpop.permute.xlu0 %1122
        %v1125 = vsel %vm831, %v1073, 0
        %v1128 = vsel %vm859, %v1123, 0
        %1130 = vmatprep.subr.bf16.mxu0 0
        %1131 = vmatpush1.bf16.msra.mxu0 0
        %1132 = vmatprep.subr.bf16.mxu0 0
        %1133 = vmatpush1.bf16.msra.mxu0 0
        %1134 = vmatprep.subr.bf16.mxu0 0
        %1135 = vmatpush1.bf16.msra.mxu0 0
        %1136 = vmatprep.subr.bf16.mxu0 0
        %1137 = vmatpush1.bf16.msra.mxu0 0
        %1138 = vmatprep.subr.bf16.mxu0 0
        %1139 = vmatpush1.bf16.msra.mxu0 0
        %1140 = vmatprep.subr.bf16.mxu0 0
        %1141 = vmatpush1.bf16.msra.mxu0 0
        %1142 = vmatprep.subr.bf16.mxu0 0
        %1143 = vmatpush1.bf16.msra.mxu0 0
        %1144 = vmatprep.subr.bf16.mxu0 0
        %1145 = vmatpush1.bf16.msra.mxu0 %v1128
        %1146 = vmatprep.subr.bf16.mxu0 0
        %1147 = vmatpush2.bf16.msra.mxu0 0
        %1148 = vmatprep.subr.bf16.mxu0 0
        %1149 = vmatpush2.bf16.msra.mxu0 0
        %1150 = vmatprep.subr.bf16.mxu0 0
        %1151 = vmatpush2.bf16.msra.mxu0 0
        %1152 = vmatprep.subr.bf16.mxu0 0
        %1153 = vmatpush2.bf16.msra.mxu0 0
        %1154 = vmatprep.subr.bf16.mxu0 0
        %1155 = vmatpush2.bf16.msra.mxu0 0
        %1156 = vmatprep.subr.bf16.mxu0 0
        %1157 = vmatpush2.bf16.msra.mxu0 0
        %1158 = vmatprep.subr.bf16.mxu0 0
        %1159 = vmatpush2.bf16.msra.mxu0 0
        %1160 = vmatprep.subr.bf16.mxu0 0
        %1161 = vmatpush2.bf16.msra.mxu0 0
        %1162 = vmatprep.mubr.bf16.mxu0 0
        %1163 = vmatmul.mubr.bf16.gmra.mxu0 %v1125
        %v1164 = vpop.f32.mrf.mxu0
        %v1165 = vadd.f32 0.0, %v1164
        %v1166 = vpop.f32.mrf.mxu0
        %v1167 = vpop.f32.mrf.mxu0
        %v1168 = vpop.f32.mrf.mxu0
        %1169 = vdwg.mxu0
        %v1170 = vpack.c.bf16 %v1165, %v1117
        %1171 = vrot.lane.b32.xlu0 %v726, 64
        %v1172 = vpop.permute.xlu0 %1171
        %1173 = vrot.lane.b32.xlu0 %v731, 64
        %v1174 = vpop.permute.xlu0 %1173
        %v1176 = vsel %vm738, %v1172, 0
        %v1179 = vsel %vm738, %v1174, 0
        %1181 = vmatprep.subr.bf16.mxu0 0
        %1182 = vmatpush1.bf16.xpose.msra.mxu0 0
        %1183 = vmatprep.subr.bf16.mxu0 0
        %1184 = vmatpush1.bf16.xpose.msra.mxu0 0
        %1185 = vmatprep.subr.bf16.mxu0 0
        %1186 = vmatpush1.bf16.xpose.msra.mxu0 0
        %1187 = vmatprep.subr.bf16.mxu0 0
        %1188 = vmatpush1.bf16.xpose.msra.mxu0 0
        %1189 = vmatprep.subr.bf16.mxu0 0
        %1190 = vmatpush1.bf16.xpose.msra.mxu0 0
        %1191 = vmatprep.subr.bf16.mxu0 0
        %1192 = vmatpush1.bf16.xpose.msra.mxu0 0
        %1193 = vmatprep.subr.bf16.mxu0 0
        %1194 = vmatpush1.bf16.xpose.msra.mxu0 0
        %1195 = vmatprep.subr.bf16.mxu0 0
        %1196 = vmatpush1.bf16.xpose.msra.mxu0 %v1179
        %1197 = vmatprep.subr.bf16.mxu0 0
        %1198 = vmatpush2.bf16.xpose.msra.mxu0 0
        %1199 = vmatprep.subr.bf16.mxu0 0
        %1200 = vmatpush2.bf16.xpose.msra.mxu0 0
        %1201 = vmatprep.subr.bf16.mxu0 0
        %1202 = vmatpush2.bf16.xpose.msra.mxu0 0
        %1203 = vmatprep.subr.bf16.mxu0 0
        %1204 = vmatpush2.bf16.xpose.msra.mxu0 0
        %1205 = vmatprep.subr.bf16.mxu0 0
        %1206 = vmatpush2.bf16.xpose.msra.mxu0 0
        %1207 = vmatprep.subr.bf16.mxu0 0
        %1208 = vmatpush2.bf16.xpose.msra.mxu0 0
        %1209 = vmatprep.subr.bf16.mxu0 0
        %1210 = vmatpush2.bf16.xpose.msra.mxu0 0
        %1211 = vmatprep.subr.bf16.mxu0 0
        %1212 = vmatpush2.bf16.xpose.msra.mxu0 0
        %1213 = vmatprep.mubr.bf16.mxu0 0
        %1214 = vmatmul.mubr.bf16.gmra.mxu0 %v1176
        %v1215 = vpop.f32.mrf.mxu0
        %v1216 = vadd.f32 0.0, %v1215
        %v1217 = vpop.f32.mrf.mxu0
        %v1218 = vpop.f32.mrf.mxu0
        %v1219 = vpop.f32.mrf.mxu0
        %1220 = vdwg.mxu0
        %1221 = vrot.lane.b32.xlu0 %v727, 64
        %v1222 = vpop.permute.xlu0 %1221
        %1223 = vrot.lane.b32.xlu0 %v732, 64
        %v1224 = vpop.permute.xlu0 %1223
        %v1226 = vsel %vm738, %v1222, 0
        %v1229 = vsel %vm738, %v1224, 0
        %1231 = vmatprep.subr.bf16.mxu0 0
        %1232 = vmatpush1.bf16.xpose.msra.mxu0 0
        %1233 = vmatprep.subr.bf16.mxu0 0
        %1234 = vmatpush1.bf16.xpose.msra.mxu0 0
        %1235 = vmatprep.subr.bf16.mxu0 0
        %1236 = vmatpush1.bf16.xpose.msra.mxu0 0
        %1237 = vmatprep.subr.bf16.mxu0 0
        %1238 = vmatpush1.bf16.xpose.msra.mxu0 0
        %1239 = vmatprep.subr.bf16.mxu0 0
        %1240 = vmatpush1.bf16.xpose.msra.mxu0 0
        %1241 = vmatprep.subr.bf16.mxu0 0
        %1242 = vmatpush1.bf16.xpose.msra.mxu0 0
        %1243 = vmatprep.subr.bf16.mxu0 0
        %1244 = vmatpush1.bf16.xpose.msra.mxu0 0
        %1245 = vmatprep.subr.bf16.mxu0 0
        %1246 = vmatpush1.bf16.xpose.msra.mxu0 %v1229
        %1247 = vmatprep.subr.bf16.mxu0 0
        %1248 = vmatpush2.bf16.xpose.msra.mxu0 0
        %1249 = vmatprep.subr.bf16.mxu0 0
        %1250 = vmatpush2.bf16.xpose.msra.mxu0 0
        %1251 = vmatprep.subr.bf16.mxu0 0
        %1252 = vmatpush2.bf16.xpose.msra.mxu0 0
        %1253 = vmatprep.subr.bf16.mxu0 0
        %1254 = vmatpush2.bf16.xpose.msra.mxu0 0
        %1255 = vmatprep.subr.bf16.mxu0 0
        %1256 = vmatpush2.bf16.xpose.msra.mxu0 0
        %1257 = vmatprep.subr.bf16.mxu0 0
        %1258 = vmatpush2.bf16.xpose.msra.mxu0 0
        %1259 = vmatprep.subr.bf16.mxu0 0
        %1260 = vmatpush2.bf16.xpose.msra.mxu0 0
        %1261 = vmatprep.subr.bf16.mxu0 0
        %1262 = vmatpush2.bf16.xpose.msra.mxu0 0
        %1263 = vmatprep.mubr.bf16.mxu0 0
        %1264 = vmatmul.mubr.bf16.gmra.mxu0 %v1226
        %v1265 = vpop.f32.mrf.mxu0
        %v1266 = vadd.f32 0.0, %v1265
        %v1267 = vpop.f32.mrf.mxu0
        %v1268 = vpop.f32.mrf.mxu0
        %v1269 = vpop.f32.mrf.mxu0
        %1270 = vdwg.mxu0
        %v1271 = vsel %vm831, %v1216, -inf
        %1272 = vmax.xlane.f32.xlu0 %v1271
        %v1273 = vpop.xlane.xlu0 %1272
        %v1274 = vsel %vm831, %v1266, -inf
        %1275 = vmax.xlane.f32.xlu0 %v1274
        %v1276 = vpop.xlane.xlu0 %1275
        %v1277 = vsub.f32 %v1216, %v1273
        %v1278 = vsub.f32 %v1266, %v1276
        %v1279 = vmul.f32 %v1277, 1.442695
        %v1280 = vpow.pop %v1279
        %v1281 = vmul.f32 %v1278, 1.442695
        %v1282 = vpow.pop %v1281
        %v1283 = vsel %vm831, %v1280, 0.0
        %1284 = vadd.xlane.f32.xlu0 %v1283
        %v1285 = vpop.xlane.xlu0 %1284
        %v1286 = vsel %vm831, %v1282, 0.0
        %1287 = vadd.xlane.f32.xlu0 %v1286
        %v1288 = vpop.xlane.xlu0 %1287
        %v1289 = vrcp.pop %v1285
        %v1290 = vrcp.pop %v1288
        %v1291 = vmul.f32 %v1280, %v1289
        %v1292 = vmul.f32 %v1282, %v1290
        %v1293 = vpack.c.bf16 %v1291, %v1291
        %v1294 = vpack.c.bf16 %v1292, %v1292
        %1295 = vrot.lane.b32.xlu0 %v736, 64
        %v1296 = vpop.permute.xlu0 %1295
        %v1298 = vsel %vm831, %v1293, 0
        %v1301 = vsel %vm859, %v1296, 0
        %1303 = vmatprep.subr.bf16.mxu0 0
        %1304 = vmatpush1.bf16.msra.mxu0 0
        %1305 = vmatprep.subr.bf16.mxu0 0
        %1306 = vmatpush1.bf16.msra.mxu0 0
        %1307 = vmatprep.subr.bf16.mxu0 0
        %1308 = vmatpush1.bf16.msra.mxu0 0
        %1309 = vmatprep.subr.bf16.mxu0 0
        %1310 = vmatpush1.bf16.msra.mxu0 0
        %1311 = vmatprep.subr.bf16.mxu0 0
        %1312 = vmatpush1.bf16.msra.mxu0 0
        %1313 = vmatprep.subr.bf16.mxu0 0
        %1314 = vmatpush1.bf16.msra.mxu0 0
        %1315 = vmatprep.subr.bf16.mxu0 0
        %1316 = vmatpush1.bf16.msra.mxu0 0
        %1317 = vmatprep.subr.bf16.mxu0 0
        %1318 = vmatpush1.bf16.msra.mxu0 %v1301
        %1319 = vmatprep.subr.bf16.mxu0 0
        %1320 = vmatpush2.bf16.msra.mxu0 0
        %1321 = vmatprep.subr.bf16.mxu0 0
        %1322 = vmatpush2.bf16.msra.mxu0 0
        %1323 = vmatprep.subr.bf16.mxu0 0
        %1324 = vmatpush2.bf16.msra.mxu0 0
        %1325 = vmatprep.subr.bf16.mxu0 0
        %1326 = vmatpush2.bf16.msra.mxu0 0
        %1327 = vmatprep.subr.bf16.mxu0 0
        %1328 = vmatpush2.bf16.msra.mxu0 0
        %1329 = vmatprep.subr.bf16.mxu0 0
        %1330 = vmatpush2.bf16.msra.mxu0 0
        %1331 = vmatprep.subr.bf16.mxu0 0
        %1332 = vmatpush2.bf16.msra.mxu0 0
        %1333 = vmatprep.subr.bf16.mxu0 0
        %1334 = vmatpush2.bf16.msra.mxu0 0
        %1335 = vmatprep.mubr.bf16.mxu0 0
        %1336 = vmatmul.mubr.bf16.gmra.mxu0 %v1298
        %v1337 = vpop.f32.mrf.mxu0
        %v1338 = vadd.f32 0.0, %v1337
        %v1339 = vpop.f32.mrf.mxu0
        %v1340 = vpop.f32.mrf.mxu0
        %v1341 = vpop.f32.mrf.mxu0
        %1342 = vdwg.mxu0
        %1343 = vrot.lane.b32.xlu0 %v737, 64
        %v1344 = vpop.permute.xlu0 %1343
        %v1346 = vsel %vm831, %v1294, 0
        %v1349 = vsel %vm859, %v1344, 0
        %1351 = vmatprep.subr.bf16.mxu0 0
        %1352 = vmatpush1.bf16.msra.mxu0 0
        %1353 = vmatprep.subr.bf16.mxu0 0
        %1354 = vmatpush1.bf16.msra.mxu0 0
        %1355 = vmatprep.subr.bf16.mxu0 0
        %1356 = vmatpush1.bf16.msra.mxu0 0
        %1357 = vmatprep.subr.bf16.mxu0 0
        %1358 = vmatpush1.bf16.msra.mxu0 0
        %1359 = vmatprep.subr.bf16.mxu0 0
        %1360 = vmatpush1.bf16.msra.mxu0 0
        %1361 = vmatprep.subr.bf16.mxu0 0
        %1362 = vmatpush1.bf16.msra.mxu0 0
        %1363 = vmatprep.subr.bf16.mxu0 0
        %1364 = vmatpush1.bf16.msra.mxu0 0
        %1365 = vmatprep.subr.bf16.mxu0 0
        %1366 = vmatpush1.bf16.msra.mxu0 %v1349
        %1367 = vmatprep.subr.bf16.mxu0 0
        %1368 = vmatpush2.bf16.msra.mxu0 0
        %1369 = vmatprep.subr.bf16.mxu0 0
        %1370 = vmatpush2.bf16.msra.mxu0 0
        %1371 = vmatprep.subr.bf16.mxu0 0
        %1372 = vmatpush2.bf16.msra.mxu0 0
        %1373 = vmatprep.subr.bf16.mxu0 0
        %1374 = vmatpush2.bf16.msra.mxu0 0
        %1375 = vmatprep.subr.bf16.mxu0 0
        %1376 = vmatpush2.bf16.msra.mxu0 0
        %1377 = vmatprep.subr.bf16.mxu0 0
        %1378 = vmatpush2.bf16.msra.mxu0 0
        %1379 = vmatprep.subr.bf16.mxu0 0
        %1380 = vmatpush2.bf16.msra.mxu0 0
        %1381 = vmatprep.subr.bf16.mxu0 0
        %1382 = vmatpush2.bf16.msra.mxu0 0
        %1383 = vmatprep.mubr.bf16.mxu0 0
        %1384 = vmatmul.mubr.bf16.gmra.mxu0 %v1346
        %v1385 = vpop.f32.mrf.mxu0
        %v1386 = vadd.f32 0.0, %v1385
        %v1387 = vpop.f32.mrf.mxu0
        %v1388 = vpop.f32.mrf.mxu0
        %v1389 = vpop.f32.mrf.mxu0
        %1390 = vdwg.mxu0
        %v1391 = vpack.c.bf16 %v1386, %v1338
        %1392 = vrot.lane.b32.xlu0 %v726, 32
        %v1393 = vpop.permute.xlu0 %1392
        %1394 = vrot.lane.b32.xlu0 %v731, 32
        %v1395 = vpop.permute.xlu0 %1394
        %v1397 = vsel %vm738, %v1393, 0
        %v1400 = vsel %vm738, %v1395, 0
        %1402 = vmatprep.subr.bf16.mxu0 0
        %1403 = vmatpush1.bf16.xpose.msra.mxu0 0
        %1404 = vmatprep.subr.bf16.mxu0 0
        %1405 = vmatpush1.bf16.xpose.msra.mxu0 0
        %1406 = vmatprep.subr.bf16.mxu0 0
        %1407 = vmatpush1.bf16.xpose.msra.mxu0 0
        %1408 = vmatprep.subr.bf16.mxu0 0
        %1409 = vmatpush1.bf16.xpose.msra.mxu0 0
        %1410 = vmatprep.subr.bf16.mxu0 0
        %1411 = vmatpush1.bf16.xpose.msra.mxu0 0
        %1412 = vmatprep.subr.bf16.mxu0 0
        %1413 = vmatpush1.bf16.xpose.msra.mxu0 0
        %1414 = vmatprep.subr.bf16.mxu0 0
        %1415 = vmatpush1.bf16.xpose.msra.mxu0 0
        %1416 = vmatprep.subr.bf16.mxu0 0
        %1417 = vmatpush1.bf16.xpose.msra.mxu0 %v1400
        %1418 = vmatprep.subr.bf16.mxu0 0
        %1419 = vmatpush2.bf16.xpose.msra.mxu0 0
        %1420 = vmatprep.subr.bf16.mxu0 0
        %1421 = vmatpush2.bf16.xpose.msra.mxu0 0
        %1422 = vmatprep.subr.bf16.mxu0 0
        %1423 = vmatpush2.bf16.xpose.msra.mxu0 0
        %1424 = vmatprep.subr.bf16.mxu0 0
        %1425 = vmatpush2.bf16.xpose.msra.mxu0 0
        %1426 = vmatprep.subr.bf16.mxu0 0
        %1427 = vmatpush2.bf16.xpose.msra.mxu0 0
        %1428 = vmatprep.subr.bf16.mxu0 0
        %1429 = vmatpush2.bf16.xpose.msra.mxu0 0
        %1430 = vmatprep.subr.bf16.mxu0 0
        %1431 = vmatpush2.bf16.xpose.msra.mxu0 0
        %1432 = vmatprep.subr.bf16.mxu0 0
        %1433 = vmatpush2.bf16.xpose.msra.mxu0 0
        %1434 = vmatprep.mubr.bf16.mxu0 0
        %1435 = vmatmul.mubr.bf16.gmra.mxu0 %v1397
        %v1436 = vpop.f32.mrf.mxu0
        %v1437 = vadd.f32 0.0, %v1436
        %v1438 = vpop.f32.mrf.mxu0
        %v1439 = vpop.f32.mrf.mxu0
        %v1440 = vpop.f32.mrf.mxu0
        %1441 = vdwg.mxu0
        %1442 = vrot.lane.b32.xlu0 %v727, 32
        %v1443 = vpop.permute.xlu0 %1442
        %1444 = vrot.lane.b32.xlu0 %v732, 32
        %v1445 = vpop.permute.xlu0 %1444
        %v1447 = vsel %vm738, %v1443, 0
        %v1450 = vsel %vm738, %v1445, 0
        %1452 = vmatprep.subr.bf16.mxu0 0
        %1453 = vmatpush1.bf16.xpose.msra.mxu0 0
        %1454 = vmatprep.subr.bf16.mxu0 0
        %1455 = vmatpush1.bf16.xpose.msra.mxu0 0
        %1456 = vmatprep.subr.bf16.mxu0 0
        %1457 = vmatpush1.bf16.xpose.msra.mxu0 0
        %1458 = vmatprep.subr.bf16.mxu0 0
        %1459 = vmatpush1.bf16.xpose.msra.mxu0 0
        %1460 = vmatprep.subr.bf16.mxu0 0
        %1461 = vmatpush1.bf16.xpose.msra.mxu0 0
        %1462 = vmatprep.subr.bf16.mxu0 0
        %1463 = vmatpush1.bf16.xpose.msra.mxu0 0
        %1464 = vmatprep.subr.bf16.mxu0 0
        %1465 = vmatpush1.bf16.xpose.msra.mxu0 0
        %1466 = vmatprep.subr.bf16.mxu0 0
        %1467 = vmatpush1.bf16.xpose.msra.mxu0 %v1450
        %1468 = vmatprep.subr.bf16.mxu0 0
        %1469 = vmatpush2.bf16.xpose.msra.mxu0 0
        %1470 = vmatprep.subr.bf16.mxu0 0
        %1471 = vmatpush2.bf16.xpose.msra.mxu0 0
        %1472 = vmatprep.subr.bf16.mxu0 0
        %1473 = vmatpush2.bf16.xpose.msra.mxu0 0
        %1474 = vmatprep.subr.bf16.mxu0 0
        %1475 = vmatpush2.bf16.xpose.msra.mxu0 0
        %1476 = vmatprep.subr.bf16.mxu0 0
        %1477 = vmatpush2.bf16.xpose.msra.mxu0 0
        %1478 = vmatprep.subr.bf16.mxu0 0
        %1479 = vmatpush2.bf16.xpose.msra.mxu0 0
        %1480 = vmatprep.subr.bf16.mxu0 0
        %1481 = vmatpush2.bf16.xpose.msra.mxu0 0
        %1482 = vmatprep.subr.bf16.mxu0 0
        %1483 = vmatpush2.bf16.xpose.msra.mxu0 0
        %1484 = vmatprep.mubr.bf16.mxu0 0
        %1485 = vmatmul.mubr.bf16.gmra.mxu0 %v1447
        %v1486 = vpop.f32.mrf.mxu0
        %v1487 = vadd.f32 0.0, %v1486
        %v1488 = vpop.f32.mrf.mxu0
        %v1489 = vpop.f32.mrf.mxu0
        %v1490 = vpop.f32.mrf.mxu0
        %1491 = vdwg.mxu0
        %v1492 = vsel %vm831, %v1437, -inf
        %1493 = vmax.xlane.f32.xlu0 %v1492
        %v1494 = vpop.xlane.xlu0 %1493
        %v1495 = vsel %vm831, %v1487, -inf
        %1496 = vmax.xlane.f32.xlu0 %v1495
        %v1497 = vpop.xlane.xlu0 %1496
        %v1498 = vsub.f32 %v1437, %v1494
        %v1499 = vsub.f32 %v1487, %v1497
        %v1500 = vmul.f32 %v1498, 1.442695
        %v1501 = vpow.pop %v1500
        %v1502 = vmul.f32 %v1499, 1.442695
        %v1503 = vpow.pop %v1502
        %v1504 = vsel %vm831, %v1501, 0.0
        %1505 = vadd.xlane.f32.xlu0 %v1504
        %v1506 = vpop.xlane.xlu0 %1505
        %v1507 = vsel %vm831, %v1503, 0.0
        %1508 = vadd.xlane.f32.xlu0 %v1507
        %v1509 = vpop.xlane.xlu0 %1508
        %v1510 = vrcp.pop %v1506
        %v1511 = vrcp.pop %v1509
        %v1512 = vmul.f32 %v1501, %v1510
        %v1513 = vmul.f32 %v1503, %v1511
        %v1514 = vpack.c.bf16 %v1512, %v1512
        %v1515 = vpack.c.bf16 %v1513, %v1513
        %1516 = vrot.lane.b32.xlu0 %v736, 32
        %v1517 = vpop.permute.xlu0 %1516
        %v1519 = vsel %vm831, %v1514, 0
        %v1522 = vsel %vm859, %v1517, 0
        %1524 = vmatprep.subr.bf16.mxu0 0
        %1525 = vmatpush1.bf16.msra.mxu0 0
        %1526 = vmatprep.subr.bf16.mxu0 0
        %1527 = vmatpush1.bf16.msra.mxu0 0
        %1528 = vmatprep.subr.bf16.mxu0 0
        %1529 = vmatpush1.bf16.msra.mxu0 0
        %1530 = vmatprep.subr.bf16.mxu0 0
        %1531 = vmatpush1.bf16.msra.mxu0 0
        %1532 = vmatprep.subr.bf16.mxu0 0
        %1533 = vmatpush1.bf16.msra.mxu0 0
        %1534 = vmatprep.subr.bf16.mxu0 0
        %1535 = vmatpush1.bf16.msra.mxu0 0
        %1536 = vmatprep.subr.bf16.mxu0 0
        %1537 = vmatpush1.bf16.msra.mxu0 0
        %1538 = vmatprep.subr.bf16.mxu0 0
        %1539 = vmatpush1.bf16.msra.mxu0 %v1522
        %1540 = vmatprep.subr.bf16.mxu0 0
        %1541 = vmatpush2.bf16.msra.mxu0 0
        %1542 = vmatprep.subr.bf16.mxu0 0
        %1543 = vmatpush2.bf16.msra.mxu0 0
        %1544 = vmatprep.subr.bf16.mxu0 0
        %1545 = vmatpush2.bf16.msra.mxu0 0
        %1546 = vmatprep.subr.bf16.mxu0 0
        %1547 = vmatpush2.bf16.msra.mxu0 0
        %1548 = vmatprep.subr.bf16.mxu0 0
        %1549 = vmatpush2.bf16.msra.mxu0 0
        %1550 = vmatprep.subr.bf16.mxu0 0
        %1551 = vmatpush2.bf16.msra.mxu0 0
        %1552 = vmatprep.subr.bf16.mxu0 0
        %1553 = vmatpush2.bf16.msra.mxu0 0
        %1554 = vmatprep.subr.bf16.mxu0 0
        %1555 = vmatpush2.bf16.msra.mxu0 0
        %1556 = vmatprep.mubr.bf16.mxu0 0
        %1557 = vmatmul.mubr.bf16.gmra.mxu0 %v1519
        %v1558 = vpop.f32.mrf.mxu0
        %v1559 = vadd.f32 0.0, %v1558
        %v1560 = vpop.f32.mrf.mxu0
        %v1561 = vpop.f32.mrf.mxu0
        %v1562 = vpop.f32.mrf.mxu0
        %1563 = vdwg.mxu0
        %1564 = vrot.lane.b32.xlu0 %v737, 32
        %v1565 = vpop.permute.xlu0 %1564
        %v1567 = vsel %vm831, %v1515, 0
        %v1570 = vsel %vm859, %v1565, 0
        %1572 = vmatprep.subr.bf16.mxu0 0
        %1573 = vmatpush1.bf16.msra.mxu0 0
        %1574 = vmatprep.subr.bf16.mxu0 0
        %1575 = vmatpush1.bf16.msra.mxu0 0
        %1576 = vmatprep.subr.bf16.mxu0 0
        %1577 = vmatpush1.bf16.msra.mxu0 0
        %1578 = vmatprep.subr.bf16.mxu0 0
        %1579 = vmatpush1.bf16.msra.mxu0 0
        %1580 = vmatprep.subr.bf16.mxu0 0
        %1581 = vmatpush1.bf16.msra.mxu0 0
        %1582 = vmatprep.subr.bf16.mxu0 0
        %1583 = vmatpush1.bf16.msra.mxu0 0
        %1584 = vmatprep.subr.bf16.mxu0 0
        %1585 = vmatpush1.bf16.msra.mxu0 0
        %1586 = vmatprep.subr.bf16.mxu0 0
        %1587 = vmatpush1.bf16.msra.mxu0 %v1570
        %1588 = vmatprep.subr.bf16.mxu0 0
        %1589 = vmatpush2.bf16.msra.mxu0 0
        %1590 = vmatprep.subr.bf16.mxu0 0
        %1591 = vmatpush2.bf16.msra.mxu0 0
        %1592 = vmatprep.subr.bf16.mxu0 0
        %1593 = vmatpush2.bf16.msra.mxu0 0
        %1594 = vmatprep.subr.bf16.mxu0 0
        %1595 = vmatpush2.bf16.msra.mxu0 0
        %1596 = vmatprep.subr.bf16.mxu0 0
        %1597 = vmatpush2.bf16.msra.mxu0 0
        %1598 = vmatprep.subr.bf16.mxu0 0
        %1599 = vmatpush2.bf16.msra.mxu0 0
        %1600 = vmatprep.subr.bf16.mxu0 0
        %1601 = vmatpush2.bf16.msra.mxu0 0
        %1602 = vmatprep.subr.bf16.mxu0 0
        %1603 = vmatpush2.bf16.msra.mxu0 0
        %1604 = vmatprep.mubr.bf16.mxu0 0
        %1605 = vmatmul.mubr.bf16.gmra.mxu0 %v1567
        %v1606 = vpop.f32.mrf.mxu0
        %v1607 = vadd.f32 0.0, %v1606
        %v1608 = vpop.f32.mrf.mxu0
        %v1609 = vpop.f32.mrf.mxu0
        %v1610 = vpop.f32.mrf.mxu0
        %1611 = vdwg.mxu0
        %v1612 = vpack.c.bf16 %v1607, %v1559
        %1614 = vrot.lane.b32.xlu0 %v1170, 32
        %v1615 = vpop.permute.xlu0 %1614
        %1617 = vrot.lane.b32.xlu0 %v1391, 64
        %v1618 = vpop.permute.xlu0 %1617
        %1620 = vrot.lane.b32.xlu0 %v1612, 96
        %v1621 = vpop.permute.xlu0 %1620
        %v1624 = vsel %vm738, %v949, %v1615
        %vm1625 = vcmask 523264
        %v1627 = vsel %vm1625, %v1624, %v1618
        %vm1628 = vcmask 785408
        %v1630 = vsel %vm1628, %v1627, %v1621
        %v1632 = vld [vmem:[#allocation7] sm:$0xf]
        %v1633 = vld [vmem:[#allocation7 + $0x4] sm:$0xf]
        %v1634 = vld [vmem:[#allocation7 + $0x8] sm:$0xf]
        %v1635 = vld [vmem:[#allocation7 + $0xc] sm:$0xf]
        %v1636 = vld [vmem:[#allocation7 + $0x10] sm:$0xf]
        %v1637 = vld [vmem:[#allocation7 + $0x14] sm:$0xf]
        %v1638 = vld [vmem:[#allocation7 + $0x18] sm:$0xf]
        %v1639 = vld [vmem:[#allocation7 + $0x1c] sm:$0xf]
        %v1640 = vld [vmem:[#allocation7 + $0x20] sm:$0xf]
        %v1641 = vld [vmem:[#allocation7 + $0x24] sm:$0xf]
        %v1642 = vld [vmem:[#allocation7 + $0x28] sm:$0xf]
        %v1643 = vld [vmem:[#allocation7 + $0x2c] sm:$0xf]
        %v1644 = vld [vmem:[#allocation7 + $0x30] sm:$0xf]
        %v1645 = vld [vmem:[#allocation7 + $0x34] sm:$0xf]
        %v1646 = vld [vmem:[#allocation7 + $0x38] sm:$0xf]
        %v1647 = vld [vmem:[#allocation7 + $0x3c] sm:$0xf]
        %v1648 = vld [vmem:[%s3] sm:$0x1]
        %v1650 = vlaneseq
        %v1651 = vshrl.u32 %v1650, 7
        %v1652 = vsub.s32 0, %v1651
        %v1653 = vrot.slane %v1648, %v1652
        %v1671 = vunpack.c.l.b16 %v1632
        %v1672 = vunpack.c.l.b16 %v1633
        %v1673 = vunpack.c.l.b16 %v1634
        %v1674 = vunpack.c.l.b16 %v1635
        %v1675 = vunpack.c.l.b16 %v1636
        %v1676 = vunpack.c.l.b16 %v1637
        %v1677 = vunpack.c.l.b16 %v1638
        %v1678 = vunpack.c.l.b16 %v1639
        %v1679 = vunpack.c.l.b16 %v1640
        %v1680 = vunpack.c.l.b16 %v1641
        %v1681 = vunpack.c.l.b16 %v1642
        %v1682 = vunpack.c.l.b16 %v1643
        %v1683 = vunpack.c.l.b16 %v1644
        %v1684 = vunpack.c.l.b16 %v1645
        %v1685 = vunpack.c.l.b16 %v1646
        %v1686 = vunpack.c.l.b16 %v1647
        %v1687 = vpack.c.b16 %v1672, %v1671
        %v1688 = vpack.c.b16 %v1674, %v1673
        %v1689 = vpack.c.b16 %v1676, %v1675
        %v1690 = vpack.c.b16 %v1678, %v1677
        %v1691 = vpack.c.b16 %v1680, %v1679
        %v1692 = vpack.c.b16 %v1682, %v1681
        %v1693 = vpack.c.b16 %v1684, %v1683
        %v1694 = vpack.c.b16 %v1686, %v1685
        %1703 = vmatprep.subr.bf16.mxu0 0
        %1704 = vmatpush1.bf16.msra.mxu0 %v1694
        %1705 = vmatprep.subr.bf16.mxu0 0
        %1706 = vmatpush1.bf16.msra.mxu0 %v1693
        %1707 = vmatprep.subr.bf16.mxu0 0
        %1708 = vmatpush1.bf16.msra.mxu0 %v1692
        %1709 = vmatprep.subr.bf16.mxu0 0
        %1710 = vmatpush1.bf16.msra.mxu0 %v1691
        %1711 = vmatprep.subr.bf16.mxu0 0
        %1712 = vmatpush1.bf16.msra.mxu0 %v1690
        %1713 = vmatprep.subr.bf16.mxu0 0
        %1714 = vmatpush1.bf16.msra.mxu0 %v1689
        %1715 = vmatprep.subr.bf16.mxu0 0
        %1716 = vmatpush1.bf16.msra.mxu0 %v1688
        %1717 = vmatprep.subr.bf16.mxu0 0
        %1718 = vmatpush1.bf16.msra.mxu0 %v1687
        %1719 = vmatprep.subr.bf16.mxu0 0
        %1720 = vmatpush2.bf16.msra.mxu0 0
        %1721 = vmatprep.subr.bf16.mxu0 0
        %1722 = vmatpush2.bf16.msra.mxu0 0
        %1723 = vmatprep.subr.bf16.mxu0 0
        %1724 = vmatpush2.bf16.msra.mxu0 0
        %1725 = vmatprep.subr.bf16.mxu0 0
        %1726 = vmatpush2.bf16.msra.mxu0 0
        %1727 = vmatprep.subr.bf16.mxu0 0
        %1728 = vmatpush2.bf16.msra.mxu0 0
        %1729 = vmatprep.subr.bf16.mxu0 0
        %1730 = vmatpush2.bf16.msra.mxu0 0
        %1731 = vmatprep.subr.bf16.mxu0 0
        %1732 = vmatpush2.bf16.msra.mxu0 0
        %1733 = vmatprep.subr.bf16.mxu0 0
        %1734 = vmatpush2.bf16.msra.mxu0 0
        %1735 = vmatprep.mubr.bf16.mxu0 0
        %1736 = vmatmul.mubr.bf16.gmra.mxu0 %v1630
        %v1737 = vpop.f32.mrf.mxu0
        %v1738 = vadd.f32 %v1653, %v1737
        %v1739 = vpop.f32.mrf.mxu0
        %v1740 = vpop.f32.mrf.mxu0
        %v1741 = vadd.f32 %v1653, %v1740
        %v1742 = vpop.f32.mrf.mxu0
        %1743 = vdwg.mxu0
        %v1744 = vpack.c.bf16 %v1741, %v1738
        %v1745 = vld [vmem:[#allocation8] sm:$0xf]
        %v1746 = vld [vmem:[#allocation8 + $0x4] sm:$0xf]
        %v1747 = vld [vmem:[#allocation8 + $0x8] sm:$0xf]
        %v1748 = vld [vmem:[#allocation8 + $0xc] sm:$0xf]
        %v1749 = vld [vmem:[#allocation8 + $0x10] sm:$0xf]
        %v1750 = vld [vmem:[#allocation8 + $0x14] sm:$0xf]
        %v1751 = vld [vmem:[#allocation8 + $0x18] sm:$0xf]
        %v1752 = vld [vmem:[#allocation8 + $0x1c] sm:$0xf]
        %v1753 = vld [vmem:[#allocation8 + $0x20] sm:$0xf]
        %v1754 = vld [vmem:[#allocation8 + $0x24] sm:$0xf]
        %v1755 = vld [vmem:[#allocation8 + $0x28] sm:$0xf]
        %v1756 = vld [vmem:[#allocation8 + $0x2c] sm:$0xf]
        %v1757 = vld [vmem:[#allocation8 + $0x30] sm:$0xf]
        %v1758 = vld [vmem:[#allocation8 + $0x34] sm:$0xf]
        %v1759 = vld [vmem:[#allocation8 + $0x38] sm:$0xf]
        %v1760 = vld [vmem:[#allocation8 + $0x3c] sm:$0xf]
        %v1777 = vunpack.c.l.b16 %v1745
        %v1778 = vunpack.c.l.b16 %v1746
        %v1779 = vunpack.c.l.b16 %v1747
        %v1780 = vunpack.c.l.b16 %v1748
        %v1781 = vunpack.c.l.b16 %v1749
        %v1782 = vunpack.c.l.b16 %v1750
        %v1783 = vunpack.c.l.b16 %v1751
        %v1784 = vunpack.c.l.b16 %v1752
        %v1785 = vunpack.c.l.b16 %v1753
        %v1786 = vunpack.c.l.b16 %v1754
        %v1787 = vunpack.c.l.b16 %v1755
        %v1788 = vunpack.c.l.b16 %v1756
        %v1789 = vunpack.c.l.b16 %v1757
        %v1790 = vunpack.c.l.b16 %v1758
        %v1791 = vunpack.c.l.b16 %v1759
        %v1792 = vunpack.c.l.b16 %v1760
        %v1793 = vpack.c.b16 %v1778, %v1777
        %v1794 = vpack.c.b16 %v1780, %v1779
        %v1795 = vpack.c.b16 %v1782, %v1781
        %v1796 = vpack.c.b16 %v1784, %v1783
        %v1797 = vpack.c.b16 %v1786, %v1785
        %v1798 = vpack.c.b16 %v1788, %v1787
        %v1799 = vpack.c.b16 %v1790, %v1789
        %v1800 = vpack.c.b16 %v1792, %v1791
        %1809 = vmatprep.subr.bf16.mxu0 0
        %1810 = vmatpush1.bf16.msra.mxu0 %v1800
        %1811 = vmatprep.subr.bf16.mxu0 0
        %1812 = vmatpush1.bf16.msra.mxu0 %v1799
        %1813 = vmatprep.subr.bf16.mxu0 0
        %1814 = vmatpush1.bf16.msra.mxu0 %v1798
        %1815 = vmatprep.subr.bf16.mxu0 0
        %1816 = vmatpush1.bf16.msra.mxu0 %v1797
        %1817 = vmatprep.subr.bf16.mxu0 0
        %1818 = vmatpush1.bf16.msra.mxu0 %v1796
        %1819 = vmatprep.subr.bf16.mxu0 0
        %1820 = vmatpush1.bf16.msra.mxu0 %v1795
        %1821 = vmatprep.subr.bf16.mxu0 0
        %1822 = vmatpush1.bf16.msra.mxu0 %v1794
        %1823 = vmatprep.subr.bf16.mxu0 0
        %1824 = vmatpush1.bf16.msra.mxu0 %v1793
        %1825 = vmatprep.subr.bf16.mxu0 0
        %1826 = vmatpush2.bf16.msra.mxu0 0
        %1827 = vmatprep.subr.bf16.mxu0 0
        %1828 = vmatpush2.bf16.msra.mxu0 0
        %1829 = vmatprep.subr.bf16.mxu0 0
        %1830 = vmatpush2.bf16.msra.mxu0 0
        %1831 = vmatprep.subr.bf16.mxu0 0
        %1832 = vmatpush2.bf16.msra.mxu0 0
        %1833 = vmatprep.subr.bf16.mxu0 0
        %1834 = vmatpush2.bf16.msra.mxu0 0
        %1835 = vmatprep.subr.bf16.mxu0 0
        %1836 = vmatpush2.bf16.msra.mxu0 0
        %1837 = vmatprep.subr.bf16.mxu0 0
        %1838 = vmatpush2.bf16.msra.mxu0 0
        %1839 = vmatprep.subr.bf16.mxu0 0
        %1840 = vmatpush2.bf16.msra.mxu0 0
        %1841 = vmatprep.mubr.bf16.mxu0 0
        %1842 = vmatmul.mubr.bf16.gmra.mxu0 %v1744
        %v1843 = vpop.f32.mrf.mxu0
        %v1844 = vadd.f32 0.0, %v1843
        %v1845 = vpop.f32.mrf.mxu0
        %v1846 = vpop.f32.mrf.mxu0
        %v1847 = vadd.f32 0.0, %v1846
        %v1848 = vpop.f32.mrf.mxu0
        %1849 = vdwg.mxu0
        %v1850 = vpack.c.bf16 %v1847, %v1844
        %v1851 = vld [vmem:[#allocation10] sm:$0xff]
        %v1852 = vld [vmem:[#allocation10 + $0x8] sm:$0xff]
        %v1853 = vld [vmem:[#allocation10 + $0x10] sm:$0xff]
        %v1854 = vld [vmem:[#allocation10 + $0x18] sm:$0xff]
        %v1855 = vld [vmem:[#allocation10 + $0x20] sm:$0xff]
        %v1856 = vld [vmem:[#allocation10 + $0x28] sm:$0xff]
        %v1857 = vld [vmem:[#allocation10 + $0x30] sm:$0xff]
        %v1858 = vld [vmem:[#allocation10 + $0x38] sm:$0xff]
        %v1859 = vld [vmem:[#allocation10 + $0x40] sm:$0xff]
        %v1860 = vld [vmem:[#allocation10 + $0x48] sm:$0xff]
        %v1861 = vld [vmem:[#allocation10 + $0x50] sm:$0xff]
        %v1862 = vld [vmem:[#allocation10 + $0x58] sm:$0xff]
        %v1863 = vld [vmem:[#allocation10 + $0x60] sm:$0xff]
        %v1864 = vld [vmem:[#allocation10 + $0x68] sm:$0xff]
        %v1865 = vld [vmem:[#allocation10 + $0x70] sm:$0xff]
        %v1866 = vld [vmem:[#allocation10 + $0x78] sm:$0xff]
        %v1883 = vunpack.c.l.b16 %v1851
        %v1884 = vunpack.c.h.b16 %v1851
        %v1885 = vunpack.c.l.b16 %v1852
        %v1886 = vunpack.c.h.b16 %v1852
        %v1887 = vunpack.c.l.b16 %v1853
        %v1888 = vunpack.c.h.b16 %v1853
        %v1889 = vunpack.c.l.b16 %v1854
        %v1890 = vunpack.c.h.b16 %v1854
        %v1891 = vunpack.c.l.b16 %v1855
        %v1892 = vunpack.c.h.b16 %v1855
        %v1893 = vunpack.c.l.b16 %v1856
        %v1894 = vunpack.c.h.b16 %v1856
        %v1895 = vunpack.c.l.b16 %v1857
        %v1896 = vunpack.c.h.b16 %v1857
        %v1897 = vunpack.c.l.b16 %v1858
        %v1898 = vunpack.c.h.b16 %v1858
        %v1899 = vunpack.c.l.b16 %v1859
        %v1900 = vunpack.c.h.b16 %v1859
        %v1901 = vunpack.c.l.b16 %v1860
        %v1902 = vunpack.c.h.b16 %v1860
        %v1903 = vunpack.c.l.b16 %v1861
        %v1904 = vunpack.c.h.b16 %v1861
        %v1905 = vunpack.c.l.b16 %v1862
        %v1906 = vunpack.c.h.b16 %v1862
        %v1907 = vunpack.c.l.b16 %v1863
        %v1908 = vunpack.c.h.b16 %v1863
        %v1909 = vunpack.c.l.b16 %v1864
        %v1910 = vunpack.c.h.b16 %v1864
        %v1911 = vunpack.c.l.b16 %v1865
        %v1912 = vunpack.c.h.b16 %v1865
        %v1913 = vunpack.c.l.b16 %v1866
        %v1914 = vunpack.c.h.b16 %v1866
        %v1915 = vpack.c.b16 %v1885, %v1883
        %v1916 = vpack.c.b16 %v1886, %v1884
        %v1917 = vpack.c.b16 %v1889, %v1887
        %v1918 = vpack.c.b16 %v1890, %v1888
        %v1919 = vpack.c.b16 %v1893, %v1891
        %v1920 = vpack.c.b16 %v1894, %v1892
        %v1921 = vpack.c.b16 %v1897, %v1895
        %v1922 = vpack.c.b16 %v1898, %v1896
        %v1923 = vpack.c.b16 %v1901, %v1899
        %v1924 = vpack.c.b16 %v1902, %v1900
        %v1925 = vpack.c.b16 %v1905, %v1903
        %v1926 = vpack.c.b16 %v1906, %v1904
        %v1927 = vpack.c.b16 %v1909, %v1907
        %v1928 = vpack.c.b16 %v1910, %v1908
        %v1929 = vpack.c.b16 %v1913, %v1911
        %v1930 = vpack.c.b16 %v1914, %v1912
        %1947 = vmatprep.subr.bf16.mxu0 %v1930
        %1948 = vmatpush1.bf16.msra.mxu0 %v1929
        %1949 = vmatprep.subr.bf16.mxu0 %v1928
        %1950 = vmatpush1.bf16.msra.mxu0 %v1927
        %1951 = vmatprep.subr.bf16.mxu0 %v1926
        %1952 = vmatpush1.bf16.msra.mxu0 %v1925
        %1953 = vmatprep.subr.bf16.mxu0 %v1924
        %1954 = vmatpush1.bf16.msra.mxu0 %v1923
        %1955 = vmatprep.subr.bf16.mxu0 %v1922
        %1956 = vmatpush1.bf16.msra.mxu0 %v1921
        %1957 = vmatprep.subr.bf16.mxu0 %v1920
        %1958 = vmatpush1.bf16.msra.mxu0 %v1919
        %1959 = vmatprep.subr.bf16.mxu0 %v1918
        %1960 = vmatpush1.bf16.msra.mxu0 %v1917
        %1961 = vmatprep.subr.bf16.mxu0 %v1916
        %1962 = vmatpush1.bf16.msra.mxu0 %v1915
        %1963 = vmatprep.subr.bf16.mxu0 0
        %1964 = vmatpush2.bf16.msra.mxu0 0
        %1965 = vmatprep.subr.bf16.mxu0 0
        %1966 = vmatpush2.bf16.msra.mxu0 0
        %1967 = vmatprep.subr.bf16.mxu0 0
        %1968 = vmatpush2.bf16.msra.mxu0 0
        %1969 = vmatprep.subr.bf16.mxu0 0
        %1970 = vmatpush2.bf16.msra.mxu0 0
        %1971 = vmatprep.subr.bf16.mxu0 0
        %1972 = vmatpush2.bf16.msra.mxu0 0
        %1973 = vmatprep.subr.bf16.mxu0 0
        %1974 = vmatpush2.bf16.msra.mxu0 0
        %1975 = vmatprep.subr.bf16.mxu0 0
        %1976 = vmatpush2.bf16.msra.mxu0 0
        %1977 = vmatprep.subr.bf16.mxu0 0
        %1978 = vmatpush2.bf16.msra.mxu0 0
        %1979 = vmatprep.mubr.bf16.mxu0 0
        %1980 = vmatmul.mubr.bf16.gmra.mxu0 %v506
        %v1981 = vpop.f32.mrf.mxu0
        %v1982 = vadd.f32 0.0, %v1981
        %v1983 = vpop.f32.mrf.mxu0
        %v1984 = vadd.f32 0.0, %v1983
        %v1985 = vpop.f32.mrf.mxu0
        %v1986 = vadd.f32 0.0, %v1985
        %v1987 = vpop.f32.mrf.mxu0
        %v1988 = vadd.f32 0.0, %v1987
        %1989 = vdwg.mxu0
        %v1990 = vpack.c.bf16 %v1986, %v1982
        %v1991 = vpack.c.bf16 %v1988, %v1984
        %v1993 = vunpack.c.l.b16 %v1850
        %v1994 = vunpack.c.h.b16 %v1850
        %v1995 = vpack.c.b16 %v1993, %v1993
        %v1996 = vpack.c.b16 %v1994, %v1994
        %v1998 = vunpack.c.l.b16 %v1990
        %v1999 = vunpack.c.h.b16 %v1990
        %v2000 = vpack.c.b16 %v1998, %v1998
        %v2001 = vpack.c.b16 %v1999, %v1999
        %v2003 = vunpack.c.l.b16 %v1991
        %v2004 = vunpack.c.h.b16 %v1991
        %v2005 = vpack.c.b16 %v2003, %v2003
        %v2006 = vpack.c.b16 %v2004, %v2004
        %v2008 = vsel %vm738, %v1995, 0
        %v2011 = vsel %vm738, %v2000, 0
        %2013 = vmatprep.subr.bf16.mxu0 0
        %2014 = vmatpush1.bf16.xpose.msra.mxu0 0
        %2015 = vmatprep.subr.bf16.mxu0 0
        %2016 = vmatpush1.bf16.xpose.msra.mxu0 0
        %2017 = vmatprep.subr.bf16.mxu0 0
        %2018 = vmatpush1.bf16.xpose.msra.mxu0 0
        %2019 = vmatprep.subr.bf16.mxu0 0
        %2020 = vmatpush1.bf16.xpose.msra.mxu0 0
        %2021 = vmatprep.subr.bf16.mxu0 0
        %2022 = vmatpush1.bf16.xpose.msra.mxu0 0
        %2023 = vmatprep.subr.bf16.mxu0 0
        %2024 = vmatpush1.bf16.xpose.msra.mxu0 0
        %2025 = vmatprep.subr.bf16.mxu0 0
        %2026 = vmatpush1.bf16.xpose.msra.mxu0 0
        %2027 = vmatprep.subr.bf16.mxu0 0
        %2028 = vmatpush1.bf16.xpose.msra.mxu0 %v2011
        %2029 = vmatprep.subr.bf16.mxu0 0
        %2030 = vmatpush2.bf16.xpose.msra.mxu0 0
        %2031 = vmatprep.subr.bf16.mxu0 0
        %2032 = vmatpush2.bf16.xpose.msra.mxu0 0
        %2033 = vmatprep.subr.bf16.mxu0 0
        %2034 = vmatpush2.bf16.xpose.msra.mxu0 0
        %2035 = vmatprep.subr.bf16.mxu0 0
        %2036 = vmatpush2.bf16.xpose.msra.mxu0 0
        %2037 = vmatprep.subr.bf16.mxu0 0
        %2038 = vmatpush2.bf16.xpose.msra.mxu0 0
        %2039 = vmatprep.subr.bf16.mxu0 0
        %2040 = vmatpush2.bf16.xpose.msra.mxu0 0
        %2041 = vmatprep.subr.bf16.mxu0 0
        %2042 = vmatpush2.bf16.xpose.msra.mxu0 0
        %2043 = vmatprep.subr.bf16.mxu0 0
        %2044 = vmatpush2.bf16.xpose.msra.mxu0 0
        %2045 = vmatprep.mubr.bf16.mxu0 0
        %2046 = vmatmul.mubr.bf16.gmra.mxu0 %v2008
        %v2047 = vpop.f32.mrf.mxu0
        %v2048 = vadd.f32 0.0, %v2047
        %v2049 = vpop.f32.mrf.mxu0
        %v2050 = vpop.f32.mrf.mxu0
        %v2051 = vpop.f32.mrf.mxu0
        %2052 = vdwg.mxu0
        %v2054 = vsel %vm738, %v1996, 0
        %v2057 = vsel %vm738, %v2001, 0
        %2059 = vmatprep.subr.bf16.mxu0 0
        %2060 = vmatpush1.bf16.xpose.msra.mxu0 0
        %2061 = vmatprep.subr.bf16.mxu0 0
        %2062 = vmatpush1.bf16.xpose.msra.mxu0 0
        %2063 = vmatprep.subr.bf16.mxu0 0
        %2064 = vmatpush1.bf16.xpose.msra.mxu0 0
        %2065 = vmatprep.subr.bf16.mxu0 0
        %2066 = vmatpush1.bf16.xpose.msra.mxu0 0
        %2067 = vmatprep.subr.bf16.mxu0 0
        %2068 = vmatpush1.bf16.xpose.msra.mxu0 0
        %2069 = vmatprep.subr.bf16.mxu0 0
        %2070 = vmatpush1.bf16.xpose.msra.mxu0 0
        %2071 = vmatprep.subr.bf16.mxu0 0
        %2072 = vmatpush1.bf16.xpose.msra.mxu0 0
        %2073 = vmatprep.subr.bf16.mxu0 0
        %2074 = vmatpush1.bf16.xpose.msra.mxu0 %v2057
        %2075 = vmatprep.subr.bf16.mxu0 0
        %2076 = vmatpush2.bf16.xpose.msra.mxu0 0
        %2077 = vmatprep.subr.bf16.mxu0 0
        %2078 = vmatpush2.bf16.xpose.msra.mxu0 0
        %2079 = vmatprep.subr.bf16.mxu0 0
        %2080 = vmatpush2.bf16.xpose.msra.mxu0 0
        %2081 = vmatprep.subr.bf16.mxu0 0
        %2082 = vmatpush2.bf16.xpose.msra.mxu0 0
        %2083 = vmatprep.subr.bf16.mxu0 0
        %2084 = vmatpush2.bf16.xpose.msra.mxu0 0
        %2085 = vmatprep.subr.bf16.mxu0 0
        %2086 = vmatpush2.bf16.xpose.msra.mxu0 0
        %2087 = vmatprep.subr.bf16.mxu0 0
        %2088 = vmatpush2.bf16.xpose.msra.mxu0 0
        %2089 = vmatprep.subr.bf16.mxu0 0
        %2090 = vmatpush2.bf16.xpose.msra.mxu0 0
        %2091 = vmatprep.mubr.bf16.mxu0 0
        %2092 = vmatmul.mubr.bf16.gmra.mxu0 %v2054
        %v2093 = vpop.f32.mrf.mxu0
        %v2094 = vadd.f32 0.0, %v2093
        %v2095 = vpop.f32.mrf.mxu0
        %v2096 = vpop.f32.mrf.mxu0
        %v2097 = vpop.f32.mrf.mxu0
        %2098 = vdwg.mxu0
        %v2099 = vsel %vm831, %v2048, -inf
        %2100 = vmax.xlane.f32.xlu0 %v2099
        %v2101 = vpop.xlane.xlu0 %2100
        %v2102 = vsel %vm831, %v2094, -inf
        %2103 = vmax.xlane.f32.xlu0 %v2102
        %v2104 = vpop.xlane.xlu0 %2103
        %v2105 = vsub.f32 %v2048, %v2101
        %v2106 = vsub.f32 %v2094, %v2104
        %v2107 = vmul.f32 %v2105, 1.442695
        %v2108 = vpow.pop %v2107
        %v2109 = vmul.f32 %v2106, 1.442695
        %v2110 = vpow.pop %v2109
        %v2111 = vsel %vm831, %v2108, 0.0
        %2112 = vadd.xlane.f32.xlu0 %v2111
        %v2113 = vpop.xlane.xlu0 %2112
        %v2114 = vsel %vm831, %v2110, 0.0
        %2115 = vadd.xlane.f32.xlu0 %v2114
        %v2116 = vpop.xlane.xlu0 %2115
        %v2117 = vrcp.pop %v2113
        %v2118 = vrcp.pop %v2116
        %v2119 = vmul.f32 %v2108, %v2117
        %v2120 = vmul.f32 %v2110, %v2118
        %v2121 = vpack.c.bf16 %v2119, %v2119
        %v2122 = vpack.c.bf16 %v2120, %v2120
        %v2124 = vsel %vm831, %v2121, 0
        %v2127 = vsel %vm859, %v2005, 0
        %2129 = vmatprep.subr.bf16.mxu0 0
        %2130 = vmatpush1.bf16.msra.mxu0 0
        %2131 = vmatprep.subr.bf16.mxu0 0
        %2132 = vmatpush1.bf16.msra.mxu0 0
        %2133 = vmatprep.subr.bf16.mxu0 0
        %2134 = vmatpush1.bf16.msra.mxu0 0
        %2135 = vmatprep.subr.bf16.mxu0 0
        %2136 = vmatpush1.bf16.msra.mxu0 0
        %2137 = vmatprep.subr.bf16.mxu0 0
        %2138 = vmatpush1.bf16.msra.mxu0 0
        %2139 = vmatprep.subr.bf16.mxu0 0
        %2140 = vmatpush1.bf16.msra.mxu0 0
        %2141 = vmatprep.subr.bf16.mxu0 0
        %2142 = vmatpush1.bf16.msra.mxu0 0
        %2143 = vmatprep.subr.bf16.mxu0 0
        %2144 = vmatpush1.bf16.msra.mxu0 %v2127
        %2145 = vmatprep.subr.bf16.mxu0 0
        %2146 = vmatpush2.bf16.msra.mxu0 0
        %2147 = vmatprep.subr.bf16.mxu0 0
        %2148 = vmatpush2.bf16.msra.mxu0 0
        %2149 = vmatprep.subr.bf16.mxu0 0
        %2150 = vmatpush2.bf16.msra.mxu0 0
        %2151 = vmatprep.subr.bf16.mxu0 0
        %2152 = vmatpush2.bf16.msra.mxu0 0
        %2153 = vmatprep.subr.bf16.mxu0 0
        %2154 = vmatpush2.bf16.msra.mxu0 0
        %2155 = vmatprep.subr.bf16.mxu0 0
        %2156 = vmatpush2.bf16.msra.mxu0 0
        %2157 = vmatprep.subr.bf16.mxu0 0
        %2158 = vmatpush2.bf16.msra.mxu0 0
        %2159 = vmatprep.subr.bf16.mxu0 0
        %2160 = vmatpush2.bf16.msra.mxu0 0
        %2161 = vmatprep.mubr.bf16.mxu0 0
        %2162 = vmatmul.mubr.bf16.gmra.mxu0 %v2124
        %v2163 = vpop.f32.mrf.mxu0
        %v2164 = vadd.f32 0.0, %v2163
        %v2165 = vpop.f32.mrf.mxu0
        %v2166 = vpop.f32.mrf.mxu0
        %v2167 = vpop.f32.mrf.mxu0
        %2168 = vdwg.mxu0
        %v2170 = vsel %vm831, %v2122, 0
        %v2173 = vsel %vm859, %v2006, 0
        %2175 = vmatprep.subr.bf16.mxu0 0
        %2176 = vmatpush1.bf16.msra.mxu0 0
        %2177 = vmatprep.subr.bf16.mxu0 0
        %2178 = vmatpush1.bf16.msra.mxu0 0
        %2179 = vmatprep.subr.bf16.mxu0 0
        %2180 = vmatpush1.bf16.msra.mxu0 0
        %2181 = vmatprep.subr.bf16.mxu0 0
        %2182 = vmatpush1.bf16.msra.mxu0 0
        %2183 = vmatprep.subr.bf16.mxu0 0
        %2184 = vmatpush1.bf16.msra.mxu0 0
        %2185 = vmatprep.subr.bf16.mxu0 0
        %2186 = vmatpush1.bf16.msra.mxu0 0
        %2187 = vmatprep.subr.bf16.mxu0 0
        %2188 = vmatpush1.bf16.msra.mxu0 0
        %2189 = vmatprep.subr.bf16.mxu0 0
        %2190 = vmatpush1.bf16.msra.mxu0 %v2173
        %2191 = vmatprep.subr.bf16.mxu0 0
        %2192 = vmatpush2.bf16.msra.mxu0 0
        %2193 = vmatprep.subr.bf16.mxu0 0
        %2194 = vmatpush2.bf16.msra.mxu0 0
        %2195 = vmatprep.subr.bf16.mxu0 0
        %2196 = vmatpush2.bf16.msra.mxu0 0
        %2197 = vmatprep.subr.bf16.mxu0 0
        %2198 = vmatpush2.bf16.msra.mxu0 0
        %2199 = vmatprep.subr.bf16.mxu0 0
        %2200 = vmatpush2.bf16.msra.mxu0 0
        %2201 = vmatprep.subr.bf16.mxu0 0
        %2202 = vmatpush2.bf16.msra.mxu0 0
        %2203 = vmatprep.subr.bf16.mxu0 0
        %2204 = vmatpush2.bf16.msra.mxu0 0
        %2205 = vmatprep.subr.bf16.mxu0 0
        %2206 = vmatpush2.bf16.msra.mxu0 0
        %2207 = vmatprep.mubr.bf16.mxu0 0
        %2208 = vmatmul.mubr.bf16.gmra.mxu0 %v2170
        %v2209 = vpop.f32.mrf.mxu0
        %v2210 = vadd.f32 0.0, %v2209
        %v2211 = vpop.f32.mrf.mxu0
        %v2212 = vpop.f32.mrf.mxu0
        %v2213 = vpop.f32.mrf.mxu0
        %2214 = vdwg.mxu0
        %v2215 = vpack.c.bf16 %v2210, %v2164
        %2216 = vrot.lane.b32.xlu0 %v1995, 96
        %v2217 = vpop.permute.xlu0 %2216
        %2218 = vrot.lane.b32.xlu0 %v2000, 96
        %v2219 = vpop.permute.xlu0 %2218
        %v2221 = vsel %vm738, %v2217, 0
        %v2224 = vsel %vm738, %v2219, 0
        %2226 = vmatprep.subr.bf16.mxu0 0
        %2227 = vmatpush1.bf16.xpose.msra.mxu0 0
        %2228 = vmatprep.subr.bf16.mxu0 0
        %2229 = vmatpush1.bf16.xpose.msra.mxu0 0
        %2230 = vmatprep.subr.bf16.mxu0 0
        %2231 = vmatpush1.bf16.xpose.msra.mxu0 0
        %2232 = vmatprep.subr.bf16.mxu0 0
        %2233 = vmatpush1.bf16.xpose.msra.mxu0 0
        %2234 = vmatprep.subr.bf16.mxu0 0
        %2235 = vmatpush1.bf16.xpose.msra.mxu0 0
        %2236 = vmatprep.subr.bf16.mxu0 0
        %2237 = vmatpush1.bf16.xpose.msra.mxu0 0
        %2238 = vmatprep.subr.bf16.mxu0 0
        %2239 = vmatpush1.bf16.xpose.msra.mxu0 0
        %2240 = vmatprep.subr.bf16.mxu0 0
        %2241 = vmatpush1.bf16.xpose.msra.mxu0 %v2224
        %2242 = vmatprep.subr.bf16.mxu0 0
        %2243 = vmatpush2.bf16.xpose.msra.mxu0 0
        %2244 = vmatprep.subr.bf16.mxu0 0
        %2245 = vmatpush2.bf16.xpose.msra.mxu0 0
        %2246 = vmatprep.subr.bf16.mxu0 0
        %2247 = vmatpush2.bf16.xpose.msra.mxu0 0
        %2248 = vmatprep.subr.bf16.mxu0 0
        %2249 = vmatpush2.bf16.xpose.msra.mxu0 0
        %2250 = vmatprep.subr.bf16.mxu0 0
        %2251 = vmatpush2.bf16.xpose.msra.mxu0 0
        %2252 = vmatprep.subr.bf16.mxu0 0
        %2253 = vmatpush2.bf16.xpose.msra.mxu0 0
        %2254 = vmatprep.subr.bf16.mxu0 0
        %2255 = vmatpush2.bf16.xpose.msra.mxu0 0
        %2256 = vmatprep.subr.bf16.mxu0 0
        %2257 = vmatpush2.bf16.xpose.msra.mxu0 0
        %2258 = vmatprep.mubr.bf16.mxu0 0
        %2259 = vmatmul.mubr.bf16.gmra.mxu0 %v2221
        %v2260 = vpop.f32.mrf.mxu0
        %v2261 = vadd.f32 0.0, %v2260
        %v2262 = vpop.f32.mrf.mxu0
        %v2263 = vpop.f32.mrf.mxu0
        %v2264 = vpop.f32.mrf.mxu0
        %2265 = vdwg.mxu0
        %2266 = vrot.lane.b32.xlu0 %v1996, 96
        %v2267 = vpop.permute.xlu0 %2266
        %2268 = vrot.lane.b32.xlu0 %v2001, 96
        %v2269 = vpop.permute.xlu0 %2268
        %v2271 = vsel %vm738, %v2267, 0
        %v2274 = vsel %vm738, %v2269, 0
        %2276 = vmatprep.subr.bf16.mxu0 0
        %2277 = vmatpush1.bf16.xpose.msra.mxu0 0
        %2278 = vmatprep.subr.bf16.mxu0 0
        %2279 = vmatpush1.bf16.xpose.msra.mxu0 0
        %2280 = vmatprep.subr.bf16.mxu0 0
        %2281 = vmatpush1.bf16.xpose.msra.mxu0 0
        %2282 = vmatprep.subr.bf16.mxu0 0
        %2283 = vmatpush1.bf16.xpose.msra.mxu0 0
        %2284 = vmatprep.subr.bf16.mxu0 0
        %2285 = vmatpush1.bf16.xpose.msra.mxu0 0
        %2286 = vmatprep.subr.bf16.mxu0 0
        %2287 = vmatpush1.bf16.xpose.msra.mxu0 0
        %2288 = vmatprep.subr.bf16.mxu0 0
        %2289 = vmatpush1.bf16.xpose.msra.mxu0 0
        %2290 = vmatprep.subr.bf16.mxu0 0
        %2291 = vmatpush1.bf16.xpose.msra.mxu0 %v2274
        %2292 = vmatprep.subr.bf16.mxu0 0
        %2293 = vmatpush2.bf16.xpose.msra.mxu0 0
        %2294 = vmatprep.subr.bf16.mxu0 0
        %2295 = vmatpush2.bf16.xpose.msra.mxu0 0
        %2296 = vmatprep.subr.bf16.mxu0 0
        %2297 = vmatpush2.bf16.xpose.msra.mxu0 0
        %2298 = vmatprep.subr.bf16.mxu0 0
        %2299 = vmatpush2.bf16.xpose.msra.mxu0 0
        %2300 = vmatprep.subr.bf16.mxu0 0
        %2301 = vmatpush2.bf16.xpose.msra.mxu0 0
        %2302 = vmatprep.subr.bf16.mxu0 0
        %2303 = vmatpush2.bf16.xpose.msra.mxu0 0
        %2304 = vmatprep.subr.bf16.mxu0 0
        %2305 = vmatpush2.bf16.xpose.msra.mxu0 0
        %2306 = vmatprep.subr.bf16.mxu0 0
        %2307 = vmatpush2.bf16.xpose.msra.mxu0 0
        %2308 = vmatprep.mubr.bf16.mxu0 0
        %2309 = vmatmul.mubr.bf16.gmra.mxu0 %v2271
        %v2310 = vpop.f32.mrf.mxu0
        %v2311 = vadd.f32 0.0, %v2310
        %v2312 = vpop.f32.mrf.mxu0
        %v2313 = vpop.f32.mrf.mxu0
        %v2314 = vpop.f32.mrf.mxu0
        %2315 = vdwg.mxu0
        %v2316 = vsel %vm831, %v2261, -inf
        %2317 = vmax.xlane.f32.xlu0 %v2316
        %v2318 = vpop.xlane.xlu0 %2317
        %v2319 = vsel %vm831, %v2311, -inf
        %2320 = vmax.xlane.f32.xlu0 %v2319
        %v2321 = vpop.xlane.xlu0 %2320
        %v2322 = vsub.f32 %v2261, %v2318
        %v2323 = vsub.f32 %v2311, %v2321
        %v2324 = vmul.f32 %v2322, 1.442695
        %v2325 = vpow.pop %v2324
        %v2326 = vmul.f32 %v2323, 1.442695
        %v2327 = vpow.pop %v2326
        %v2328 = vsel %vm831, %v2325, 0.0
        %2329 = vadd.xlane.f32.xlu0 %v2328
        %v2330 = vpop.xlane.xlu0 %2329
        %v2331 = vsel %vm831, %v2327, 0.0
        %2332 = vadd.xlane.f32.xlu0 %v2331
        %v2333 = vpop.xlane.xlu0 %2332
        %v2334 = vrcp.pop %v2330
        %v2335 = vrcp.pop %v2333
        %v2336 = vmul.f32 %v2325, %v2334
        %v2337 = vmul.f32 %v2327, %v2335
        %v2338 = vpack.c.bf16 %v2336, %v2336
        %v2339 = vpack.c.bf16 %v2337, %v2337
        %2340 = vrot.lane.b32.xlu0 %v2005, 96
        %v2341 = vpop.permute.xlu0 %2340
        %v2343 = vsel %vm831, %v2338, 0
        %v2346 = vsel %vm859, %v2341, 0
        %2348 = vmatprep.subr.bf16.mxu0 0
        %2349 = vmatpush1.bf16.msra.mxu0 0
        %2350 = vmatprep.subr.bf16.mxu0 0
        %2351 = vmatpush1.bf16.msra.mxu0 0
        %2352 = vmatprep.subr.bf16.mxu0 0
        %2353 = vmatpush1.bf16.msra.mxu0 0
        %2354 = vmatprep.subr.bf16.mxu0 0
        %2355 = vmatpush1.bf16.msra.mxu0 0
        %2356 = vmatprep.subr.bf16.mxu0 0
        %2357 = vmatpush1.bf16.msra.mxu0 0
        %2358 = vmatprep.subr.bf16.mxu0 0
        %2359 = vmatpush1.bf16.msra.mxu0 0
        %2360 = vmatprep.subr.bf16.mxu0 0
        %2361 = vmatpush1.bf16.msra.mxu0 0
        %2362 = vmatprep.subr.bf16.mxu0 0
        %2363 = vmatpush1.bf16.msra.mxu0 %v2346
        %2364 = vmatprep.subr.bf16.mxu0 0
        %2365 = vmatpush2.bf16.msra.mxu0 0
        %2366 = vmatprep.subr.bf16.mxu0 0
        %2367 = vmatpush2.bf16.msra.mxu0 0
        %2368 = vmatprep.subr.bf16.mxu0 0
        %2369 = vmatpush2.bf16.msra.mxu0 0
        %2370 = vmatprep.subr.bf16.mxu0 0
        %2371 = vmatpush2.bf16.msra.mxu0 0
        %2372 = vmatprep.subr.bf16.mxu0 0
        %2373 = vmatpush2.bf16.msra.mxu0 0
        %2374 = vmatprep.subr.bf16.mxu0 0
        %2375 = vmatpush2.bf16.msra.mxu0 0
        %2376 = vmatprep.subr.bf16.mxu0 0
        %2377 = vmatpush2.bf16.msra.mxu0 0
        %2378 = vmatprep.subr.bf16.mxu0 0
        %2379 = vmatpush2.bf16.msra.mxu0 0
        %2380 = vmatprep.mubr.bf16.mxu0 0
        %2381 = vmatmul.mubr.bf16.gmra.mxu0 %v2343
        %v2382 = vpop.f32.mrf.mxu0
        %v2383 = vadd.f32 0.0, %v2382
        %v2384 = vpop.f32.mrf.mxu0
        %v2385 = vpop.f32.mrf.mxu0
        %v2386 = vpop.f32.mrf.mxu0
        %2387 = vdwg.mxu0
        %2388 = vrot.lane.b32.xlu0 %v2006, 96
        %v2389 = vpop.permute.xlu0 %2388
        %v2391 = vsel %vm831, %v2339, 0
        %v2394 = vsel %vm859, %v2389, 0
        %2396 = vmatprep.subr.bf16.mxu0 0
        %2397 = vmatpush1.bf16.msra.mxu0 0
        %2398 = vmatprep.subr.bf16.mxu0 0
        %2399 = vmatpush1.bf16.msra.mxu0 0
        %2400 = vmatprep.subr.bf16.mxu0 0
        %2401 = vmatpush1.bf16.msra.mxu0 0
        %2402 = vmatprep.subr.bf16.mxu0 0
        %2403 = vmatpush1.bf16.msra.mxu0 0
        %2404 = vmatprep.subr.bf16.mxu0 0
        %2405 = vmatpush1.bf16.msra.mxu0 0
        %2406 = vmatprep.subr.bf16.mxu0 0
        %2407 = vmatpush1.bf16.msra.mxu0 0
        %2408 = vmatprep.subr.bf16.mxu0 0
        %2409 = vmatpush1.bf16.msra.mxu0 0
        %2410 = vmatprep.subr.bf16.mxu0 0
        %2411 = vmatpush1.bf16.msra.mxu0 %v2394
        %2412 = vmatprep.subr.bf16.mxu0 0
        %2413 = vmatpush2.bf16.msra.mxu0 0
        %2414 = vmatprep.subr.bf16.mxu0 0
        %2415 = vmatpush2.bf16.msra.mxu0 0
        %2416 = vmatprep.subr.bf16.mxu0 0
        %2417 = vmatpush2.bf16.msra.mxu0 0
        %2418 = vmatprep.subr.bf16.mxu0 0
        %2419 = vmatpush2.bf16.msra.mxu0 0
        %2420 = vmatprep.subr.bf16.mxu0 0
        %2421 = vmatpush2.bf16.msra.mxu0 0
        %2422 = vmatprep.subr.bf16.mxu0 0
        %2423 = vmatpush2.bf16.msra.mxu0 0
        %2424 = vmatprep.subr.bf16.mxu0 0
        %2425 = vmatpush2.bf16.msra.mxu0 0
        %2426 = vmatprep.subr.bf16.mxu0 0
        %2427 = vmatpush2.bf16.msra.mxu0 0
        %2428 = vmatprep.mubr.bf16.mxu0 0
        %2429 = vmatmul.mubr.bf16.gmra.mxu0 %v2391
        %v2430 = vpop.f32.mrf.mxu0
        %v2431 = vadd.f32 0.0, %v2430
        %v2432 = vpop.f32.mrf.mxu0
        %v2433 = vpop.f32.mrf.mxu0
        %v2434 = vpop.f32.mrf.mxu0
        %2435 = vdwg.mxu0
        %v2436 = vpack.c.bf16 %v2431, %v2383
        %2437 = vrot.lane.b32.xlu0 %v1995, 64
        %v2438 = vpop.permute.xlu0 %2437
        %2439 = vrot.lane.b32.xlu0 %v2000, 64
        %v2440 = vpop.permute.xlu0 %2439
        %v2442 = vsel %vm738, %v2438, 0
        %v2445 = vsel %vm738, %v2440, 0
        %2447 = vmatprep.subr.bf16.mxu0 0
        %2448 = vmatpush1.bf16.xpose.msra.mxu0 0
        %2449 = vmatprep.subr.bf16.mxu0 0
        %2450 = vmatpush1.bf16.xpose.msra.mxu0 0
        %2451 = vmatprep.subr.bf16.mxu0 0
        %2452 = vmatpush1.bf16.xpose.msra.mxu0 0
        %2453 = vmatprep.subr.bf16.mxu0 0
        %2454 = vmatpush1.bf16.xpose.msra.mxu0 0
        %2455 = vmatprep.subr.bf16.mxu0 0
        %2456 = vmatpush1.bf16.xpose.msra.mxu0 0
        %2457 = vmatprep.subr.bf16.mxu0 0
        %2458 = vmatpush1.bf16.xpose.msra.mxu0 0
        %2459 = vmatprep.subr.bf16.mxu0 0
        %2460 = vmatpush1.bf16.xpose.msra.mxu0 0
        %2461 = vmatprep.subr.bf16.mxu0 0
        %2462 = vmatpush1.bf16.xpose.msra.mxu0 %v2445
        %2463 = vmatprep.subr.bf16.mxu0 0
        %2464 = vmatpush2.bf16.xpose.msra.mxu0 0
        %2465 = vmatprep.subr.bf16.mxu0 0
        %2466 = vmatpush2.bf16.xpose.msra.mxu0 0
        %2467 = vmatprep.subr.bf16.mxu0 0
        %2468 = vmatpush2.bf16.xpose.msra.mxu0 0
        %2469 = vmatprep.subr.bf16.mxu0 0
        %2470 = vmatpush2.bf16.xpose.msra.mxu0 0
        %2471 = vmatprep.subr.bf16.mxu0 0
        %2472 = vmatpush2.bf16.xpose.msra.mxu0 0
        %2473 = vmatprep.subr.bf16.mxu0 0
        %2474 = vmatpush2.bf16.xpose.msra.mxu0 0
        %2475 = vmatprep.subr.bf16.mxu0 0
        %2476 = vmatpush2.bf16.xpose.msra.mxu0 0
        %2477 = vmatprep.subr.bf16.mxu0 0
        %2478 = vmatpush2.bf16.xpose.msra.mxu0 0
        %2479 = vmatprep.mubr.bf16.mxu0 0
        %2480 = vmatmul.mubr.bf16.gmra.mxu0 %v2442
        %v2481 = vpop.f32.mrf.mxu0
        %v2482 = vadd.f32 0.0, %v2481
        %v2483 = vpop.f32.mrf.mxu0
        %v2484 = vpop.f32.mrf.mxu0
        %v2485 = vpop.f32.mrf.mxu0
        %2486 = vdwg.mxu0
        %2487 = vrot.lane.b32.xlu0 %v1996, 64
        %v2488 = vpop.permute.xlu0 %2487
        %2489 = vrot.lane.b32.xlu0 %v2001, 64
        %v2490 = vpop.permute.xlu0 %2489
        %v2492 = vsel %vm738, %v2488, 0
        %v2495 = vsel %vm738, %v2490, 0
        %2497 = vmatprep.subr.bf16.mxu0 0
        %2498 = vmatpush1.bf16.xpose.msra.mxu0 0
        %2499 = vmatprep.subr.bf16.mxu0 0
        %2500 = vmatpush1.bf16.xpose.msra.mxu0 0
        %2501 = vmatprep.subr.bf16.mxu0 0
        %2502 = vmatpush1.bf16.xpose.msra.mxu0 0
        %2503 = vmatprep.subr.bf16.mxu0 0
        %2504 = vmatpush1.bf16.xpose.msra.mxu0 0
        %2505 = vmatprep.subr.bf16.mxu0 0
        %2506 = vmatpush1.bf16.xpose.msra.mxu0 0
        %2507 = vmatprep.subr.bf16.mxu0 0
        %2508 = vmatpush1.bf16.xpose.msra.mxu0 0
        %2509 = vmatprep.subr.bf16.mxu0 0
        %2510 = vmatpush1.bf16.xpose.msra.mxu0 0
        %2511 = vmatprep.subr.bf16.mxu0 0
        %2512 = vmatpush1.bf16.xpose.msra.mxu0 %v2495
        %2513 = vmatprep.subr.bf16.mxu0 0
        %2514 = vmatpush2.bf16.xpose.msra.mxu0 0
        %2515 = vmatprep.subr.bf16.mxu0 0
        %2516 = vmatpush2.bf16.xpose.msra.mxu0 0
        %2517 = vmatprep.subr.bf16.mxu0 0
        %2518 = vmatpush2.bf16.xpose.msra.mxu0 0
        %2519 = vmatprep.subr.bf16.mxu0 0
        %2520 = vmatpush2.bf16.xpose.msra.mxu0 0
        %2521 = vmatprep.subr.bf16.mxu0 0
        %2522 = vmatpush2.bf16.xpose.msra.mxu0 0
        %2523 = vmatprep.subr.bf16.mxu0 0
        %2524 = vmatpush2.bf16.xpose.msra.mxu0 0
        %2525 = vmatprep.subr.bf16.mxu0 0
        %2526 = vmatpush2.bf16.xpose.msra.mxu0 0
        %2527 = vmatprep.subr.bf16.mxu0 0
        %2528 = vmatpush2.bf16.xpose.msra.mxu0 0
        %2529 = vmatprep.mubr.bf16.mxu0 0
        %2530 = vmatmul.mubr.bf16.gmra.mxu0 %v2492
        %v2531 = vpop.f32.mrf.mxu0
        %v2532 = vadd.f32 0.0, %v2531
        %v2533 = vpop.f32.mrf.mxu0
        %v2534 = vpop.f32.mrf.mxu0
        %v2535 = vpop.f32.mrf.mxu0
        %2536 = vdwg.mxu0
        %v2537 = vsel %vm831, %v2482, -inf
        %2538 = vmax.xlane.f32.xlu0 %v2537
        %v2539 = vpop.xlane.xlu0 %2538
        %v2540 = vsel %vm831, %v2532, -inf
        %2541 = vmax.xlane.f32.xlu0 %v2540
        %v2542 = vpop.xlane.xlu0 %2541
        %v2543 = vsub.f32 %v2482, %v2539
        %v2544 = vsub.f32 %v2532, %v2542
        %v2545 = vmul.f32 %v2543, 1.442695
        %v2546 = vpow.pop %v2545
        %v2547 = vmul.f32 %v2544, 1.442695
        %v2548 = vpow.pop %v2547
        %v2549 = vsel %vm831, %v2546, 0.0
        %2550 = vadd.xlane.f32.xlu0 %v2549
        %v2551 = vpop.xlane.xlu0 %2550
        %v2552 = vsel %vm831, %v2548, 0.0
        %2553 = vadd.xlane.f32.xlu0 %v2552
        %v2554 = vpop.xlane.xlu0 %2553
        %v2555 = vrcp.pop %v2551
        %v2556 = vrcp.pop %v2554
        %v2557 = vmul.f32 %v2546, %v2555
        %v2558 = vmul.f32 %v2548, %v2556
        %v2559 = vpack.c.bf16 %v2557, %v2557
        %v2560 = vpack.c.bf16 %v2558, %v2558
        %2561 = vrot.lane.b32.xlu0 %v2005, 64
        %v2562 = vpop.permute.xlu0 %2561
        %v2564 = vsel %vm831, %v2559, 0
        %v2567 = vsel %vm859, %v2562, 0
        %2569 = vmatprep.subr.bf16.mxu0 0
        %2570 = vmatpush1.bf16.msra.mxu0 0
        %2571 = vmatprep.subr.bf16.mxu0 0
        %2572 = vmatpush1.bf16.msra.mxu0 0
        %2573 = vmatprep.subr.bf16.mxu0 0
        %2574 = vmatpush1.bf16.msra.mxu0 0
        %2575 = vmatprep.subr.bf16.mxu0 0
        %2576 = vmatpush1.bf16.msra.mxu0 0
        %2577 = vmatprep.subr.bf16.mxu0 0
        %2578 = vmatpush1.bf16.msra.mxu0 0
        %2579 = vmatprep.subr.bf16.mxu0 0
        %2580 = vmatpush1.bf16.msra.mxu0 0
        %2581 = vmatprep.subr.bf16.mxu0 0
        %2582 = vmatpush1.bf16.msra.mxu0 0
        %2583 = vmatprep.subr.bf16.mxu0 0
        %2584 = vmatpush1.bf16.msra.mxu0 %v2567
        %2585 = vmatprep.subr.bf16.mxu0 0
        %2586 = vmatpush2.bf16.msra.mxu0 0
        %2587 = vmatprep.subr.bf16.mxu0 0
        %2588 = vmatpush2.bf16.msra.mxu0 0
        %2589 = vmatprep.subr.bf16.mxu0 0
        %2590 = vmatpush2.bf16.msra.mxu0 0
        %2591 = vmatprep.subr.bf16.mxu0 0
        %2592 = vmatpush2.bf16.msra.mxu0 0
        %2593 = vmatprep.subr.bf16.mxu0 0
        %2594 = vmatpush2.bf16.msra.mxu0 0
        %2595 = vmatprep.subr.bf16.mxu0 0
        %2596 = vmatpush2.bf16.msra.mxu0 0
        %2597 = vmatprep.subr.bf16.mxu0 0
        %2598 = vmatpush2.bf16.msra.mxu0 0
        %2599 = vmatprep.subr.bf16.mxu0 0
        %2600 = vmatpush2.bf16.msra.mxu0 0
        %2601 = vmatprep.mubr.bf16.mxu0 0
        %2602 = vmatmul.mubr.bf16.gmra.mxu0 %v2564
        %v2603 = vpop.f32.mrf.mxu0
        %v2604 = vadd.f32 0.0, %v2603
        %v2605 = vpop.f32.mrf.mxu0
        %v2606 = vpop.f32.mrf.mxu0
        %v2607 = vpop.f32.mrf.mxu0
        %2608 = vdwg.mxu0
        %2609 = vrot.lane.b32.xlu0 %v2006, 64
        %v2610 = vpop.permute.xlu0 %2609
        %v2612 = vsel %vm831, %v2560, 0
        %v2615 = vsel %vm859, %v2610, 0
        %2617 = vmatprep.subr.bf16.mxu0 0
        %2618 = vmatpush1.bf16.msra.mxu0 0
        %2619 = vmatprep.subr.bf16.mxu0 0
        %2620 = vmatpush1.bf16.msra.mxu0 0
        %2621 = vmatprep.subr.bf16.mxu0 0
        %2622 = vmatpush1.bf16.msra.mxu0 0
        %2623 = vmatprep.subr.bf16.mxu0 0
        %2624 = vmatpush1.bf16.msra.mxu0 0
        %2625 = vmatprep.subr.bf16.mxu0 0
        %2626 = vmatpush1.bf16.msra.mxu0 0
        %2627 = vmatprep.subr.bf16.mxu0 0
        %2628 = vmatpush1.bf16.msra.mxu0 0
        %2629 = vmatprep.subr.bf16.mxu0 0
        %2630 = vmatpush1.bf16.msra.mxu0 0
        %2631 = vmatprep.subr.bf16.mxu0 0
        %2632 = vmatpush1.bf16.msra.mxu0 %v2615
        %2633 = vmatprep.subr.bf16.mxu0 0
        %2634 = vmatpush2.bf16.msra.mxu0 0
        %2635 = vmatprep.subr.bf16.mxu0 0
        %2636 = vmatpush2.bf16.msra.mxu0 0
        %2637 = vmatprep.subr.bf16.mxu0 0
        %2638 = vmatpush2.bf16.msra.mxu0 0
        %2639 = vmatprep.subr.bf16.mxu0 0
        %2640 = vmatpush2.bf16.msra.mxu0 0
        %2641 = vmatprep.subr.bf16.mxu0 0
        %2642 = vmatpush2.bf16.msra.mxu0 0
        %2643 = vmatprep.subr.bf16.mxu0 0
        %2644 = vmatpush2.bf16.msra.mxu0 0
        %2645 = vmatprep.subr.bf16.mxu0 0
        %2646 = vmatpush2.bf16.msra.mxu0 0
        %2647 = vmatprep.subr.bf16.mxu0 0
        %2648 = vmatpush2.bf16.msra.mxu0 0
        %2649 = vmatprep.mubr.bf16.mxu0 0
        %2650 = vmatmul.mubr.bf16.gmra.mxu0 %v2612
        %v2651 = vpop.f32.mrf.mxu0
        %v2652 = vadd.f32 0.0, %v2651
        %v2653 = vpop.f32.mrf.mxu0
        %v2654 = vpop.f32.mrf.mxu0
        %v2655 = vpop.f32.mrf.mxu0
        %2656 = vdwg.mxu0
        %v2657 = vpack.c.bf16 %v2652, %v2604
        %2658 = vrot.lane.b32.xlu0 %v1995, 32
        %v2659 = vpop.permute.xlu0 %2658
        %2660 = vrot.lane.b32.xlu0 %v2000, 32
        %v2661 = vpop.permute.xlu0 %2660
        %v2663 = vsel %vm738, %v2659, 0
        %v2666 = vsel %vm738, %v2661, 0
        %2668 = vmatprep.subr.bf16.mxu0 0
        %2669 = vmatpush1.bf16.xpose.msra.mxu0 0
        %2670 = vmatprep.subr.bf16.mxu0 0
        %2671 = vmatpush1.bf16.xpose.msra.mxu0 0
        %2672 = vmatprep.subr.bf16.mxu0 0
        %2673 = vmatpush1.bf16.xpose.msra.mxu0 0
        %2674 = vmatprep.subr.bf16.mxu0 0
        %2675 = vmatpush1.bf16.xpose.msra.mxu0 0
        %2676 = vmatprep.subr.bf16.mxu0 0
        %2677 = vmatpush1.bf16.xpose.msra.mxu0 0
        %2678 = vmatprep.subr.bf16.mxu0 0
        %2679 = vmatpush1.bf16.xpose.msra.mxu0 0
        %2680 = vmatprep.subr.bf16.mxu0 0
        %2681 = vmatpush1.bf16.xpose.msra.mxu0 0
        %2682 = vmatprep.subr.bf16.mxu0 0
        %2683 = vmatpush1.bf16.xpose.msra.mxu0 %v2666
        %2684 = vmatprep.subr.bf16.mxu0 0
        %2685 = vmatpush2.bf16.xpose.msra.mxu0 0
        %2686 = vmatprep.subr.bf16.mxu0 0
        %2687 = vmatpush2.bf16.xpose.msra.mxu0 0
        %2688 = vmatprep.subr.bf16.mxu0 0
        %2689 = vmatpush2.bf16.xpose.msra.mxu0 0
        %2690 = vmatprep.subr.bf16.mxu0 0
        %2691 = vmatpush2.bf16.xpose.msra.mxu0 0
        %2692 = vmatprep.subr.bf16.mxu0 0
        %2693 = vmatpush2.bf16.xpose.msra.mxu0 0
        %2694 = vmatprep.subr.bf16.mxu0 0
        %2695 = vmatpush2.bf16.xpose.msra.mxu0 0
        %2696 = vmatprep.subr.bf16.mxu0 0
        %2697 = vmatpush2.bf16.xpose.msra.mxu0 0
        %2698 = vmatprep.subr.bf16.mxu0 0
        %2699 = vmatpush2.bf16.xpose.msra.mxu0 0
        %2700 = vmatprep.mubr.bf16.mxu0 0
        %2701 = vmatmul.mubr.bf16.gmra.mxu0 %v2663
        %v2702 = vpop.f32.mrf.mxu0
        %v2703 = vadd.f32 0.0, %v2702
        %v2704 = vpop.f32.mrf.mxu0
        %v2705 = vpop.f32.mrf.mxu0
        %v2706 = vpop.f32.mrf.mxu0
        %2707 = vdwg.mxu0
        %2708 = vrot.lane.b32.xlu0 %v1996, 32
        %v2709 = vpop.permute.xlu0 %2708
        %2710 = vrot.lane.b32.xlu0 %v2001, 32
        %v2711 = vpop.permute.xlu0 %2710
        %v2713 = vsel %vm738, %v2709, 0
        %v2716 = vsel %vm738, %v2711, 0
        %2718 = vmatprep.subr.bf16.mxu0 0
        %2719 = vmatpush1.bf16.xpose.msra.mxu0 0
        %2720 = vmatprep.subr.bf16.mxu0 0
        %2721 = vmatpush1.bf16.xpose.msra.mxu0 0
        %2722 = vmatprep.subr.bf16.mxu0 0
        %2723 = vmatpush1.bf16.xpose.msra.mxu0 0
        %2724 = vmatprep.subr.bf16.mxu0 0
        %2725 = vmatpush1.bf16.xpose.msra.mxu0 0
        %2726 = vmatprep.subr.bf16.mxu0 0
        %2727 = vmatpush1.bf16.xpose.msra.mxu0 0
        %2728 = vmatprep.subr.bf16.mxu0 0
        %2729 = vmatpush1.bf16.xpose.msra.mxu0 0
        %2730 = vmatprep.subr.bf16.mxu0 0
        %2731 = vmatpush1.bf16.xpose.msra.mxu0 0
        %2732 = vmatprep.subr.bf16.mxu0 0
        %2733 = vmatpush1.bf16.xpose.msra.mxu0 %v2716
        %2734 = vmatprep.subr.bf16.mxu0 0
        %2735 = vmatpush2.bf16.xpose.msra.mxu0 0
        %2736 = vmatprep.subr.bf16.mxu0 0
        %2737 = vmatpush2.bf16.xpose.msra.mxu0 0
        %2738 = vmatprep.subr.bf16.mxu0 0
        %2739 = vmatpush2.bf16.xpose.msra.mxu0 0
        %2740 = vmatprep.subr.bf16.mxu0 0
        %2741 = vmatpush2.bf16.xpose.msra.mxu0 0
        %2742 = vmatprep.subr.bf16.mxu0 0
        %2743 = vmatpush2.bf16.xpose.msra.mxu0 0
        %2744 = vmatprep.subr.bf16.mxu0 0
        %2745 = vmatpush2.bf16.xpose.msra.mxu0 0
        %2746 = vmatprep.subr.bf16.mxu0 0
        %2747 = vmatpush2.bf16.xpose.msra.mxu0 0
        %2748 = vmatprep.subr.bf16.mxu0 0
        %2749 = vmatpush2.bf16.xpose.msra.mxu0 0
        %2750 = vmatprep.mubr.bf16.mxu0 0
        %2751 = vmatmul.mubr.bf16.gmra.mxu0 %v2713
        %v2752 = vpop.f32.mrf.mxu0
        %v2753 = vadd.f32 0.0, %v2752
        %v2754 = vpop.f32.mrf.mxu0
        %v2755 = vpop.f32.mrf.mxu0
        %v2756 = vpop.f32.mrf.mxu0
        %2757 = vdwg.mxu0
        %v2758 = vsel %vm831, %v2703, -inf
        %2759 = vmax.xlane.f32.xlu0 %v2758
        %v2760 = vpop.xlane.xlu0 %2759
        %v2761 = vsel %vm831, %v2753, -inf
        %2762 = vmax.xlane.f32.xlu0 %v2761
        %v2763 = vpop.xlane.xlu0 %2762
        %v2764 = vsub.f32 %v2703, %v2760
        %v2765 = vsub.f32 %v2753, %v2763
        %v2766 = vmul.f32 %v2764, 1.442695
        %v2767 = vpow.pop %v2766
        %v2768 = vmul.f32 %v2765, 1.442695
        %v2769 = vpow.pop %v2768
        %v2770 = vsel %vm831, %v2767, 0.0
        %2771 = vadd.xlane.f32.xlu0 %v2770
        %v2772 = vpop.xlane.xlu0 %2771
        %v2773 = vsel %vm831, %v2769, 0.0
        %2774 = vadd.xlane.f32.xlu0 %v2773
        %v2775 = vpop.xlane.xlu0 %2774
        %v2776 = vrcp.pop %v2772
        %v2777 = vrcp.pop %v2775
        %v2778 = vmul.f32 %v2767, %v2776
        %v2779 = vmul.f32 %v2769, %v2777
        %v2780 = vpack.c.bf16 %v2778, %v2778
        %v2781 = vpack.c.bf16 %v2779, %v2779
        %2782 = vrot.lane.b32.xlu0 %v2005, 32
        %v2783 = vpop.permute.xlu0 %2782
        %v2785 = vsel %vm831, %v2780, 0
        %v2788 = vsel %vm859, %v2783, 0
        %2790 = vmatprep.subr.bf16.mxu0 0
        %2791 = vmatpush1.bf16.msra.mxu0 0
        %2792 = vmatprep.subr.bf16.mxu0 0
        %2793 = vmatpush1.bf16.msra.mxu0 0
        %2794 = vmatprep.subr.bf16.mxu0 0
        %2795 = vmatpush1.bf16.msra.mxu0 0
        %2796 = vmatprep.subr.bf16.mxu0 0
        %2797 = vmatpush1.bf16.msra.mxu0 0
        %2798 = vmatprep.subr.bf16.mxu0 0
        %2799 = vmatpush1.bf16.msra.mxu0 0
        %2800 = vmatprep.subr.bf16.mxu0 0
        %2801 = vmatpush1.bf16.msra.mxu0 0
        %2802 = vmatprep.subr.bf16.mxu0 0
        %2803 = vmatpush1.bf16.msra.mxu0 0
        %2804 = vmatprep.subr.bf16.mxu0 0
        %2805 = vmatpush1.bf16.msra.mxu0 %v2788
        %2806 = vmatprep.subr.bf16.mxu0 0
        %2807 = vmatpush2.bf16.msra.mxu0 0
        %2808 = vmatprep.subr.bf16.mxu0 0
        %2809 = vmatpush2.bf16.msra.mxu0 0
        %2810 = vmatprep.subr.bf16.mxu0 0
        %2811 = vmatpush2.bf16.msra.mxu0 0
        %2812 = vmatprep.subr.bf16.mxu0 0
        %2813 = vmatpush2.bf16.msra.mxu0 0
        %2814 = vmatprep.subr.bf16.mxu0 0
        %2815 = vmatpush2.bf16.msra.mxu0 0
        %2816 = vmatprep.subr.bf16.mxu0 0
        %2817 = vmatpush2.bf16.msra.mxu0 0
        %2818 = vmatprep.subr.bf16.mxu0 0
        %2819 = vmatpush2.bf16.msra.mxu0 0
        %2820 = vmatprep.subr.bf16.mxu0 0
        %2821 = vmatpush2.bf16.msra.mxu0 0
        %2822 = vmatprep.mubr.bf16.mxu0 0
        %2823 = vmatmul.mubr.bf16.gmra.mxu0 %v2785
        %v2824 = vpop.f32.mrf.mxu0
        %v2825 = vadd.f32 0.0, %v2824
        %v2826 = vpop.f32.mrf.mxu0
        %v2827 = vpop.f32.mrf.mxu0
        %v2828 = vpop.f32.mrf.mxu0
        %2829 = vdwg.mxu0
        %2830 = vrot.lane.b32.xlu0 %v2006, 32
        %v2831 = vpop.permute.xlu0 %2830
        %v2833 = vsel %vm831, %v2781, 0
        %v2836 = vsel %vm859, %v2831, 0
        %2838 = vmatprep.subr.bf16.mxu0 0
        %2839 = vmatpush1.bf16.msra.mxu0 0
        %2840 = vmatprep.subr.bf16.mxu0 0
        %2841 = vmatpush1.bf16.msra.mxu0 0
        %2842 = vmatprep.subr.bf16.mxu0 0
        %2843 = vmatpush1.bf16.msra.mxu0 0
        %2844 = vmatprep.subr.bf16.mxu0 0
        %2845 = vmatpush1.bf16.msra.mxu0 0
        %2846 = vmatprep.subr.bf16.mxu0 0
        %2847 = vmatpush1.bf16.msra.mxu0 0
        %2848 = vmatprep.subr.bf16.mxu0 0
        %2849 = vmatpush1.bf16.msra.mxu0 0
        %2850 = vmatprep.subr.bf16.mxu0 0
        %2851 = vmatpush1.bf16.msra.mxu0 0
        %2852 = vmatprep.subr.bf16.mxu0 0
        %2853 = vmatpush1.bf16.msra.mxu0 %v2836
        %2854 = vmatprep.subr.bf16.mxu0 0
        %2855 = vmatpush2.bf16.msra.mxu0 0
        %2856 = vmatprep.subr.bf16.mxu0 0
        %2857 = vmatpush2.bf16.msra.mxu0 0
        %2858 = vmatprep.subr.bf16.mxu0 0
        %2859 = vmatpush2.bf16.msra.mxu0 0
        %2860 = vmatprep.subr.bf16.mxu0 0
        %2861 = vmatpush2.bf16.msra.mxu0 0
        %2862 = vmatprep.subr.bf16.mxu0 0
        %2863 = vmatpush2.bf16.msra.mxu0 0
        %2864 = vmatprep.subr.bf16.mxu0 0
        %2865 = vmatpush2.bf16.msra.mxu0 0
        %2866 = vmatprep.subr.bf16.mxu0 0
        %2867 = vmatpush2.bf16.msra.mxu0 0
        %2868 = vmatprep.subr.bf16.mxu0 0
        %2869 = vmatpush2.bf16.msra.mxu0 0
        %2870 = vmatprep.mubr.bf16.mxu0 0
        %2871 = vmatmul.mubr.bf16.gmra.mxu0 %v2833
        %v2872 = vpop.f32.mrf.mxu0
        %v2873 = vadd.f32 0.0, %v2872
        %v2874 = vpop.f32.mrf.mxu0
        %v2875 = vpop.f32.mrf.mxu0
        %v2876 = vpop.f32.mrf.mxu0
        %2877 = vdwg.mxu0
        %v2878 = vpack.c.bf16 %v2873, %v2825
        %2880 = vrot.lane.b32.xlu0 %v2436, 32
        %v2881 = vpop.permute.xlu0 %2880
        %2883 = vrot.lane.b32.xlu0 %v2657, 64
        %v2884 = vpop.permute.xlu0 %2883
        %2886 = vrot.lane.b32.xlu0 %v2878, 96
        %v2887 = vpop.permute.xlu0 %2886
        %v2890 = vsel %vm738, %v2215, %v2881
        %v2892 = vsel %vm1625, %v2890, %v2884
        %v2894 = vsel %vm1628, %v2892, %v2887
        %v2896 = vld [vmem:[#allocation11] sm:$0xf]
        %v2897 = vld [vmem:[#allocation11 + $0x4] sm:$0xf]
        %v2898 = vld [vmem:[#allocation11 + $0x8] sm:$0xf]
        %v2899 = vld [vmem:[#allocation11 + $0xc] sm:$0xf]
        %v2900 = vld [vmem:[#allocation11 + $0x10] sm:$0xf]
        %v2901 = vld [vmem:[#allocation11 + $0x14] sm:$0xf]
        %v2902 = vld [vmem:[#allocation11 + $0x18] sm:$0xf]
        %v2903 = vld [vmem:[#allocation11 + $0x1c] sm:$0xf]
        %v2904 = vld [vmem:[#allocation11 + $0x20] sm:$0xf]
        %v2905 = vld [vmem:[#allocation11 + $0x24] sm:$0xf]
        %v2906 = vld [vmem:[#allocation11 + $0x28] sm:$0xf]
        %v2907 = vld [vmem:[#allocation11 + $0x2c] sm:$0xf]
        %v2908 = vld [vmem:[#allocation11 + $0x30] sm:$0xf]
        %v2909 = vld [vmem:[#allocation11 + $0x34] sm:$0xf]
        %v2910 = vld [vmem:[#allocation11 + $0x38] sm:$0xf]
        %v2911 = vld [vmem:[#allocation11 + $0x3c] sm:$0xf]
        %v2912 = vld [vmem:[%s7] sm:$0x1]
        %v2914 = vlaneseq
        %v2915 = vshrl.u32 %v2914, 7
        %v2916 = vsub.s32 0, %v2915
        %v2917 = vrot.slane %v2912, %v2916
        %v2935 = vunpack.c.l.b16 %v2896
        %v2936 = vunpack.c.l.b16 %v2897
        %v2937 = vunpack.c.l.b16 %v2898
        %v2938 = vunpack.c.l.b16 %v2899
        %v2939 = vunpack.c.l.b16 %v2900
        %v2940 = vunpack.c.l.b16 %v2901
        %v2941 = vunpack.c.l.b16 %v2902
        %v2942 = vunpack.c.l.b16 %v2903
        %v2943 = vunpack.c.l.b16 %v2904
        %v2944 = vunpack.c.l.b16 %v2905
        %v2945 = vunpack.c.l.b16 %v2906
        %v2946 = vunpack.c.l.b16 %v2907
        %v2947 = vunpack.c.l.b16 %v2908
        %v2948 = vunpack.c.l.b16 %v2909
        %v2949 = vunpack.c.l.b16 %v2910
        %v2950 = vunpack.c.l.b16 %v2911
        %v2951 = vpack.c.b16 %v2936, %v2935
        %v2952 = vpack.c.b16 %v2938, %v2937
        %v2953 = vpack.c.b16 %v2940, %v2939
        %v2954 = vpack.c.b16 %v2942, %v2941
        %v2955 = vpack.c.b16 %v2944, %v2943
        %v2956 = vpack.c.b16 %v2946, %v2945
        %v2957 = vpack.c.b16 %v2948, %v2947
        %v2958 = vpack.c.b16 %v2950, %v2949
        %2967 = vmatprep.subr.bf16.mxu0 0
        %2968 = vmatpush1.bf16.msra.mxu0 %v2958
        %2969 = vmatprep.subr.bf16.mxu0 0
        %2970 = vmatpush1.bf16.msra.mxu0 %v2957
        %2971 = vmatprep.subr.bf16.mxu0 0
        %2972 = vmatpush1.bf16.msra.mxu0 %v2956
        %2973 = vmatprep.subr.bf16.mxu0 0
        %2974 = vmatpush1.bf16.msra.mxu0 %v2955
        %2975 = vmatprep.subr.bf16.mxu0 0
        %2976 = vmatpush1.bf16.msra.mxu0 %v2954
        %2977 = vmatprep.subr.bf16.mxu0 0
        %2978 = vmatpush1.bf16.msra.mxu0 %v2953
        %2979 = vmatprep.subr.bf16.mxu0 0
        %2980 = vmatpush1.bf16.msra.mxu0 %v2952
        %2981 = vmatprep.subr.bf16.mxu0 0
        %2982 = vmatpush1.bf16.msra.mxu0 %v2951
        %2983 = vmatprep.subr.bf16.mxu0 0
        %2984 = vmatpush2.bf16.msra.mxu0 0
        %2985 = vmatprep.subr.bf16.mxu0 0
        %2986 = vmatpush2.bf16.msra.mxu0 0
        %2987 = vmatprep.subr.bf16.mxu0 0
        %2988 = vmatpush2.bf16.msra.mxu0 0
        %2989 = vmatprep.subr.bf16.mxu0 0
        %2990 = vmatpush2.bf16.msra.mxu0 0
        %2991 = vmatprep.subr.bf16.mxu0 0
        %2992 = vmatpush2.bf16.msra.mxu0 0
        %2993 = vmatprep.subr.bf16.mxu0 0
        %2994 = vmatpush2.bf16.msra.mxu0 0
        %2995 = vmatprep.subr.bf16.mxu0 0
        %2996 = vmatpush2.bf16.msra.mxu0 0
        %2997 = vmatprep.subr.bf16.mxu0 0
        %2998 = vmatpush2.bf16.msra.mxu0 0
        %2999 = vmatprep.mubr.bf16.mxu0 0
        %3000 = vmatmul.mubr.bf16.gmra.mxu0 %v2894
        %v3001 = vpop.f32.mrf.mxu0
        %v3002 = vadd.f32 %v2917, %v3001
        %v3003 = vpop.f32.mrf.mxu0
        %v3004 = vpop.f32.mrf.mxu0
        %v3005 = vadd.f32 %v2917, %v3004
        %v3006 = vpop.f32.mrf.mxu0
        %3007 = vdwg.mxu0
        %v3008 = vpack.c.bf16 %v3005, %v3002
        %v3009 = vld [vmem:[#allocation13] sm:$0xf]
        %v3010 = vld [vmem:[#allocation13 + $0x4] sm:$0xf]
        %v3011 = vld [vmem:[#allocation13 + $0x8] sm:$0xf]
        %v3012 = vld [vmem:[#allocation13 + $0xc] sm:$0xf]
        %v3013 = vld [vmem:[#allocation13 + $0x10] sm:$0xf]
        %v3014 = vld [vmem:[#allocation13 + $0x14] sm:$0xf]
        %v3015 = vld [vmem:[#allocation13 + $0x18] sm:$0xf]
        %v3016 = vld [vmem:[#allocation13 + $0x1c] sm:$0xf]
        %v3017 = vld [vmem:[#allocation13 + $0x20] sm:$0xf]
        %v3018 = vld [vmem:[#allocation13 + $0x24] sm:$0xf]
        %v3019 = vld [vmem:[#allocation13 + $0x28] sm:$0xf]
        %v3020 = vld [vmem:[#allocation13 + $0x2c] sm:$0xf]
        %v3021 = vld [vmem:[#allocation13 + $0x30] sm:$0xf]
        %v3022 = vld [vmem:[#allocation13 + $0x34] sm:$0xf]
        %v3023 = vld [vmem:[#allocation13 + $0x38] sm:$0xf]
        %v3024 = vld [vmem:[#allocation13 + $0x3c] sm:$0xf]
        %v3025 = vld [vmem:[%s9] sm:$0x1]
        %v3027 = vlaneseq
        %v3028 = vshrl.u32 %v3027, 7
        %v3029 = vsub.s32 0, %v3028
        %v3030 = vrot.slane %v3025, %v3029
        %v3048 = vunpack.c.l.b16 %v3009
        %v3049 = vunpack.c.l.b16 %v3010
        %v3050 = vunpack.c.l.b16 %v3011
        %v3051 = vunpack.c.l.b16 %v3012
        %v3052 = vunpack.c.l.b16 %v3013
        %v3053 = vunpack.c.l.b16 %v3014
        %v3054 = vunpack.c.l.b16 %v3015
        %v3055 = vunpack.c.l.b16 %v3016
        %v3056 = vunpack.c.l.b16 %v3017
        %v3057 = vunpack.c.l.b16 %v3018
        %v3058 = vunpack.c.l.b16 %v3019
        %v3059 = vunpack.c.l.b16 %v3020
        %v3060 = vunpack.c.l.b16 %v3021
        %v3061 = vunpack.c.l.b16 %v3022
        %v3062 = vunpack.c.l.b16 %v3023
        %v3063 = vunpack.c.l.b16 %v3024
        %v3064 = vpack.c.b16 %v3049, %v3048
        %v3065 = vpack.c.b16 %v3051, %v3050
        %v3066 = vpack.c.b16 %v3053, %v3052
        %v3067 = vpack.c.b16 %v3055, %v3054
        %v3068 = vpack.c.b16 %v3057, %v3056
        %v3069 = vpack.c.b16 %v3059, %v3058
        %v3070 = vpack.c.b16 %v3061, %v3060
        %v3071 = vpack.c.b16 %v3063, %v3062
        %3080 = vmatprep.subr.bf16.mxu0 0
        %3081 = vmatpush1.bf16.msra.mxu0 %v3071
        %3082 = vmatprep.subr.bf16.mxu0 0
        %3083 = vmatpush1.bf16.msra.mxu0 %v3070
        %3084 = vmatprep.subr.bf16.mxu0 0
        %3085 = vmatpush1.bf16.msra.mxu0 %v3069
        %3086 = vmatprep.subr.bf16.mxu0 0
        %3087 = vmatpush1.bf16.msra.mxu0 %v3068
        %3088 = vmatprep.subr.bf16.mxu0 0
        %3089 = vmatpush1.bf16.msra.mxu0 %v3067
        %3090 = vmatprep.subr.bf16.mxu0 0
        %3091 = vmatpush1.bf16.msra.mxu0 %v3066
        %3092 = vmatprep.subr.bf16.mxu0 0
        %3093 = vmatpush1.bf16.msra.mxu0 %v3065
        %3094 = vmatprep.subr.bf16.mxu0 0
        %3095 = vmatpush1.bf16.msra.mxu0 %v3064
        %3096 = vmatprep.subr.bf16.mxu0 0
        %3097 = vmatpush2.bf16.msra.mxu0 0
        %3098 = vmatprep.subr.bf16.mxu0 0
        %3099 = vmatpush2.bf16.msra.mxu0 0
        %3100 = vmatprep.subr.bf16.mxu0 0
        %3101 = vmatpush2.bf16.msra.mxu0 0
        %3102 = vmatprep.subr.bf16.mxu0 0
        %3103 = vmatpush2.bf16.msra.mxu0 0
        %3104 = vmatprep.subr.bf16.mxu0 0
        %3105 = vmatpush2.bf16.msra.mxu0 0
        %3106 = vmatprep.subr.bf16.mxu0 0
        %3107 = vmatpush2.bf16.msra.mxu0 0
        %3108 = vmatprep.subr.bf16.mxu0 0
        %3109 = vmatpush2.bf16.msra.mxu0 0
        %3110 = vmatprep.subr.bf16.mxu0 0
        %3111 = vmatpush2.bf16.msra.mxu0 0
        %3112 = vmatprep.mubr.bf16.mxu0 0
        %3113 = vmatmul.mubr.bf16.gmra.mxu0 %v3008
        %v3114 = vpop.f32.mrf.mxu0
        %v3115 = vadd.f32 %v3030, %v3114
        %v3116 = vpop.f32.mrf.mxu0
        %v3117 = vpop.f32.mrf.mxu0
        %v3118 = vadd.f32 %v3030, %v3117
        %v3119 = vpop.f32.mrf.mxu0
        %3120 = vdwg.mxu0
        %3121 = vst [vmem:[%s464] sm:$0xff] %v3115
        %3122 = vst [vmem:[%s464 + $0x8] sm:$0xff] %v3118
        %s3123 = sand.u32 %s253, 1
        %s3124 = scalar_lea.sflag [#allocation4], %s3123
        %s3125 = sand.u32 %s253, 1
        %s3126 = smul.addr %s3125, 16
        %s3127 = scalar_lea.vmem [#allocation14], %s3126
        // Predicated region
        $region89: #{tpu_custom_call.1} parent=59 // pred_check
          %p3128 = pneg %p263
        $region90: #{tpu_custom_call.1} parent=59 // pred_check_branch
          %3130 = sbr.rel (%p3128) target = $region92
        $region91: #{tpu_custom_call.1} parent=59 // pred_region
          %s3131 = smul.u32 2, %s30
          %s3133 = ssub.s32 256, 256
          %3134 = vsyncadd %s3124, %s3133
          %s3135 = smul.addr %s3131, 128
          %s3136 = scalar_lea.hbm %s10, %s3135
          %s3137 = sshll.u32 %s3127, 4
          %s3138 = int_to_ptr.vmem [resolvable:$true] %s3137
          %3143 = dma.vmem_to_hbm [thread:$0]  %s3138, 256, %s3136, %s3124, 128, 128, 8
        $region92: #{tpu_custom_call.1} parent=59 // pred_fallthru
          _
      $region60: #{tpu_custom_call.1} parent=5 // pred_fallthru
        _
      %p3144 = scmp.le.s32.totalorder 2, %s25
      // Predicated region
      $region93: #{tpu_custom_call.1} parent=5 // pred_check
        %p3145 = pneg %p3144
      $region94: #{tpu_custom_call.1} parent=5 // pred_check_branch
        %3147 = sbr.rel (%p3145) target = $region96
      $region95: #{tpu_custom_call.1} parent=5 // pred_region
        %s3148 = ssub.s32 %s25, 2
        // Predicated region
        $region97: #{tpu_custom_call.1} parent=95 // pred_check
          %p3149 = pneg %p269
        $region98: #{tpu_custom_call.1} parent=95 // pred_check_branch
          %3151 = sbr.rel (%p3149) target = $region100
        $region99: #{tpu_custom_call.1} parent=95 // pred_region
          %s3152 = sand.u32 %s254, 1
          %s3153 = scalar_lea.sflag [#allocation4], %s3152
          %s3154 = sand.u32 %s254, 1
          %s3155 = smul.addr %s3154, 16
          %s3156 = scalar_lea.vmem [#allocation14], %s3155
          %3157 = dma.done %s3153, 256
        $region100: #{tpu_custom_call.1} parent=95 // pred_fallthru
          _
      $region96: #{tpu_custom_call.1} parent=5 // pred_fallthru
        _
    $region6: #{tpu_custom_call.1} parent=1 // loop_footer
      %s29 = sadd.s32 1, %s25
    $region7: #{tpu_custom_call.1} parent=1 // loop_footer_branch
      %24 = sbr.rel target = $region3
    $region8: #{tpu_custom_call.1} parent=1 // loop_exit
      _
    %3158 = vsyncpa [#allocation3], 1
    %s3159 = scalar_lea.sflag [#allocation3], 1
    %3160 = vsyncpa %s3159, 1
    %3161 = vsyncpa [#allocation6], 1
    %3162 = vsyncpa [#allocation9], 1
    %3163 = vsyncpa [#allocation12], 1
    %3164 = vsyncpa [#allocation4], 1
    %s3165 = scalar_lea.sflag [#allocation4], 1
    %3166 = vsyncpa %s3165, 1

// kernel: tpu_custom_call.1
$region0: #{tpu_custom_call.1}
  #allocation0 [shape = 'u32[]', space=smem, size = 0x4, offset = 0x4, fixed_abs, tag = 'smem constant byte address 0x4 - core index']
  #allocation1 [shape = 'u32[144,128]{1,0:T(1,128)}', space=vmem, size = 0x12000, scoped, tag = 'internal scratch']
  %s0 = inlined_call_operand.hbm [shape: bf16[4,8,128], index: 0, kind: input, shape index: {}]
  %s1 = inlined_call_operand.hbm [shape: bf16[128,384], index: 1, kind: input, shape index: {}]
  %s2 = inlined_call_operand.hbm [shape: bf16[128,128], index: 2, kind: input, shape index: {}]
  %s3 = inlined_call_operand.vmem [shape: f32[1,128], index: 3, kind: input, shape index: {}]
  %s4 = inlined_call_operand.hbm [shape: bf16[128,128], index: 4, kind: input, shape index: {}]
  %s5 = inlined_call_operand.hbm [shape: bf16[128,256], index: 5, kind: input, shape index: {}]
  %s6 = inlined_call_operand.hbm [shape: bf16[128,128], index: 6, kind: input, shape index: {}]
  %s7 = inlined_call_operand.vmem [shape: f32[1,128], index: 7, kind: input, shape index: {}]
  %s8 = inlined_call_operand.hbm [shape: bf16[128,128], index: 8, kind: input, shape index: {}]
  %s9 = inlined_call_operand.vmem [shape: f32[1,128], index: 9, kind: input, shape index: {}]
  %s10 = inlined_call_operand.hbm [shape: f32[4,8,128], index: 10, kind: output, shape index: {}]
  %s11 = sld [smem:[#allocation0]]
  $region101: #{tpu_custom_call.1} parent=0
    _
  %s13 = ssub.s32 1, %s11
  %s14 = scalar_select 0, %s13, %s11
  $region1: #{tpu_custom_call.1} parent=0
    #allocation2 [shape = 'u8[8192]{0}', space=vmem, size = 0x2000, scoped, tag = 'input window, operand 0']
    #allocation3 [shape = 's32[2]{0}', space=sflag, size = 0x8, scoped, tag = 'scoped memory for tpu_custom_call.1']
    #allocation4 [shape = 's32[2]{0}', space=sflag, size = 0x8, scoped, tag = 'scoped memory for tpu_custom_call.1']
    #allocation5 [shape = 'u8[98304]{0}', space=vmem, size = 0x18000, scoped, tag = 'input window, operand 1, single buffered']
    #allocation6 [shape = 's32[1]{0}', space=sflag, size = 0x4, scoped, tag = 'scoped memory for tpu_custom_call.1']
    #allocation7 [shape = 'u8[32768]{0}', space=vmem, size = 0x8000, scoped, tag = 'input window, operand 2, single buffered']
    #allocation8 [shape = 'u8[32768]{0}', space=vmem, size = 0x8000, scoped, tag = 'input window, operand 4, single buffered']
    #allocation9 [shape = 's32[1]{0}', space=sflag, size = 0x4, scoped, tag = 'scoped memory for tpu_custom_call.1']
    #allocation10 [shape = 'u8[65536]{0}', space=vmem, size = 0x10000, scoped, tag = 'input window, operand 5, single buffered']
    #allocation11 [shape = 'u8[32768]{0}', space=vmem, size = 0x8000, scoped, tag = 'input window, operand 6, single buffered']
    #allocation12 [shape = 's32[1]{0}', space=sflag, size = 0x4, scoped, tag = 'scoped memory for tpu_custom_call.1']
    #allocation13 [shape = 'u8[32768]{0}', space=vmem, size = 0x8000, scoped, tag = 'input window, operand 8, single buffered']
    #allocation14 [shape = 'u8[16384]{0}', space=vmem, size = 0x4000, scoped, tag = 'output window, operand 0']
    %15 = vsyncpa [#allocation3], 0
    %s16 = scalar_lea.sflag [#allocation3], 1
    %17 = vsyncpa %s16, 0
    %18 = vsyncpa [#allocation6], 0
    %19 = vsyncpa [#allocation9], 0
    %20 = vsyncpa [#allocation12], 0
    %21 = vsyncpa [#allocation4], 0
    %s22 = scalar_lea.sflag [#allocation4], 1
    %23 = vsyncpa %s22, 0
    loop: start=0, step=1, limit=4
    $region2: #{tpu_custom_call.1} parent=1 // loop_pre_header
      _
    $region3: #{tpu_custom_call.1} parent=1 // loop_header
      %s25 = sphi 0, %s29
      %p26 = scmp.ge.s32.totalorder %s25, 4
      %s35 = sphi 0, %s37
      %s38 = sphi 0, %s35
      %s39 = sphi 0, %s38
      %s55 = sphi 0, %s39
      %s59 = sphi 0, %s59
      %s61 = sphi 0, %s59
      %s62 = sphi 0, %s61
      %s76 = sphi 0, %s62
      %s80 = sphi 0, %s80
      %s82 = sphi 0, %s80
      %s83 = sphi 0, %s82
      %s97 = sphi 0, %s83
      %s101 = sphi 0, %s101
      %s103 = sphi 0, %s101
      %s104 = sphi 0, %s103
      %s118 = sphi 0, %s104
      %s122 = sphi 0, %s122
      %s124 = sphi 0, %s122
      %s125 = sphi 0, %s124
      %s139 = sphi 0, %s125
      %s143 = sphi 0, %s143
      %s145 = sphi 0, %s143
      %s146 = sphi 0, %s145
      %s160 = sphi 0, %s146
      %s164 = sphi 0, %s164
      %s166 = sphi 0, %s164
      %s167 = sphi 0, %s166
      %s181 = sphi 0, %s167
      %s185 = sphi 0, %s185
      %s187 = sphi 0, %s185
      %s188 = sphi 0, %s187
      %s202 = sphi 0, %s188
      %s206 = sphi 0, %s206
      %s208 = sphi 0, %s206
      %s209 = sphi 0, %s208
      %s223 = sphi 0, %s209
      %s227 = sphi 0, %s227
      %s229 = sphi 0, %s227
      %s230 = sphi 0, %s229
      %s244 = sphi 0, %s230
      %s250 = sphi 0, %s252
      %s253 = sphi 0, %s250
      %s254 = sphi 0, %s253
      %s270 = sphi 0, %s254
    $region4: #{tpu_custom_call.1} parent=1 // loop_header_branch
      %28 = sbr.rel (%p26) target = $region8
    $region5: #{tpu_custom_call.1} parent=1 // loop_body
      %s30 = ssub.s32 %s25, 1
      %s31 = ssub.s32 %s25, 2
      %s32 = sadd.s32 %s25, 1
      %s33 = ssub.s32 %s25, %s32
      %p34 = scmp.eq.s32.totalorder %s33, 0
      %s36 = sadd.s32 %s35, 1
      %s37 = scalar_select %p34, %s35, %s36
      %p40 = pneg %p34
      %p41 = scmp.eq.s32.totalorder %s25, 1
      %p42 = por %p40, %p41
      %p43 = scmp.ne.s32.totalorder %s35, %s38
      %p44 = scmp.eq.s32.totalorder %s25, 0
      %p45 = por %p43, %p44
      %p46 = scmp.ne.s32.totalorder %s35, %s38
      %p47 = scmp.eq.s32.totalorder %s30, 1
      %p48 = por %p46, %p47
      %p49 = scmp.ne.s32.totalorder %s38, %s39
      %p50 = scmp.eq.s32.totalorder %s30, 0
      %p51 = por %p49, %p50
      %p52 = scmp.ne.s32.totalorder %s38, %s39
      %p53 = scmp.eq.s32.totalorder %s31, 1
      %p54 = por %p52, %p53
      %p56 = scmp.ne.s32.totalorder %s39, %s55
      %p57 = scmp.eq.s32.totalorder %s31, 0
      %p58 = por %p56, %p57
      %s60 = sadd.s32 %s59, 1
      %p63 = scmp.eq.s32.totalorder %s25, 1
      %p64 = scmp.ne.s32.totalorder %s59, %s61
      %p65 = scmp.eq.s32.totalorder %s25, 0
      %p66 = por %p64, %p65
      %p67 = scmp.ne.s32.totalorder %s59, %s61
      %p68 = scmp.eq.s32.totalorder %s30, 1
      %p69 = por %p67, %p68
      %p70 = scmp.ne.s32.totalorder %s61, %s62
      %p71 = scmp.eq.s32.totalorder %s30, 0
      %p72 = por %p70, %p71
      %p73 = scmp.ne.s32.totalorder %s61, %s62
      %p74 = scmp.eq.s32.totalorder %s31, 1
      %p75 = por %p73, %p74
      %p77 = scmp.ne.s32.totalorder %s62, %s76
      %p78 = scmp.eq.s32.totalorder %s31, 0
      %p79 = por %p77, %p78
      %s81 = sadd.s32 %s80, 1
      %p84 = scmp.eq.s32.totalorder %s25, 1
      %p85 = scmp.ne.s32.totalorder %s80, %s82
      %p86 = scmp.eq.s32.totalorder %s25, 0
      %p87 = por %p85, %p86
      %p88 = scmp.ne.s32.totalorder %s80, %s82
      %p89 = scmp.eq.s32.totalorder %s30, 1
      %p90 = por %p88, %p89
      %p91 = scmp.ne.s32.totalorder %s82, %s83
      %p92 = scmp.eq.s32.totalorder %s30, 0
      %p93 = por %p91, %p92
      %p94 = scmp.ne.s32.totalorder %s82, %s83
      %p95 = scmp.eq.s32.totalorder %s31, 1
      %p96 = por %p94, %p95
      %p98 = scmp.ne.s32.totalorder %s83, %s97
      %p99 = scmp.eq.s32.totalorder %s31, 0
      %p100 = por %p98, %p99
      %s102 = sadd.s32 %s101, 1
      %p105 = scmp.eq.s32.totalorder %s25, 1
      %p106 = scmp.ne.s32.totalorder %s101, %s103
      %p107 = scmp.eq.s32.totalorder %s25, 0
      %p108 = por %p106, %p107
      %p109 = scmp.ne.s32.totalorder %s101, %s103
      %p110 = scmp.eq.s32.totalorder %s30, 1
      %p111 = por %p109, %p110
      %p112 = scmp.ne.s32.totalorder %s103, %s104
      %p113 = scmp.eq.s32.totalorder %s30, 0
      %p114 = por %p112, %p113
      %p115 = scmp.ne.s32.totalorder %s103, %s104
      %p116 = scmp.eq.s32.totalorder %s31, 1
      %p117 = por %p115, %p116
      %p119 = scmp.ne.s32.totalorder %s104, %s118
      %p120 = scmp.eq.s32.totalorder %s31, 0
      %p121 = por %p119, %p120
      %s123 = sadd.s32 %s122, 1
      %p126 = scmp.eq.s32.totalorder %s25, 1
      %p127 = scmp.ne.s32.totalorder %s122, %s124
      %p128 = scmp.eq.s32.totalorder %s25, 0
      %p129 = por %p127, %p128
      %p130 = scmp.ne.s32.totalorder %s122, %s124
      %p131 = scmp.eq.s32.totalorder %s30, 1
      %p132 = por %p130, %p131
      %p133 = scmp.ne.s32.totalorder %s124, %s125
      %p134 = scmp.eq.s32.totalorder %s30, 0
      %p135 = por %p133, %p134
      %p136 = scmp.ne.s32.totalorder %s124, %s125
      %p137 = scmp.eq.s32.totalorder %s31, 1
      %p138 = por %p136, %p137
      %p140 = scmp.ne.s32.totalorder %s125, %s139
      %p141 = scmp.eq.s32.totalorder %s31, 0
      %p142 = por %p140, %p141
      %s144 = sadd.s32 %s143, 1
      %p147 = scmp.eq.s32.totalorder %s25, 1
      %p148 = scmp.ne.s32.totalorder %s143, %s145
      %p149 = scmp.eq.s32.totalorder %s25, 0
      %p150 = por %p148, %p149
      %p151 = scmp.ne.s32.totalorder %s143, %s145
      %p152 = scmp.eq.s32.totalorder %s30, 1
      %p153 = por %p151, %p152
      %p154 = scmp.ne.s32.totalorder %s145, %s146
      %p155 = scmp.eq.s32.totalorder %s30, 0
      %p156 = por %p154, %p155
      %p157 = scmp.ne.s32.totalorder %s145, %s146
      %p158 = scmp.eq.s32.totalorder %s31, 1
      %p159 = por %p157, %p158
      %p161 = scmp.ne.s32.totalorder %s146, %s160
      %p162 = scmp.eq.s32.totalorder %s31, 0
      %p163 = por %p161, %p162
      %s165 = sadd.s32 %s164, 1
      %p168 = scmp.eq.s32.totalorder %s25, 1
      %p169 = scmp.ne.s32.totalorder %s164, %s166
      %p170 = scmp.eq.s32.totalorder %s25, 0
      %p171 = por %p169, %p170
      %p172 = scmp.ne.s32.totalorder %s164, %s166
      %p173 = scmp.eq.s32.totalorder %s30, 1
      %p174 = por %p172, %p173
      %p175 = scmp.ne.s32.totalorder %s166, %s167
      %p176 = scmp.eq.s32.totalorder %s30, 0
      %p177 = por %p175, %p176
      %p178 = scmp.ne.s32.totalorder %s166, %s167
      %p179 = scmp.eq.s32.totalorder %s31, 1
      %p180 = por %p178, %p179
      %p182 = scmp.ne.s32.totalorder %s167, %s181
      %p183 = scmp.eq.s32.totalorder %s31, 0
      %p184 = por %p182, %p183
      %s186 = sadd.s32 %s185, 1
      %p189 = scmp.eq.s32.totalorder %s25, 1
      %p190 = scmp.ne.s32.totalorder %s185, %s187
      %p191 = scmp.eq.s32.totalorder %s25, 0
      %p192 = por %p190, %p191
      %p193 = scmp.ne.s32.totalorder %s185, %s187
      %p194 = scmp.eq.s32.totalorder %s30, 1
      %p195 = por %p193, %p194
      %p196 = scmp.ne.s32.totalorder %s187, %s188
      %p197 = scmp.eq.s32.totalorder %s30, 0
      %p198 = por %p196, %p197
      %p199 = scmp.ne.s32.totalorder %s187, %s188
      %p200 = scmp.eq.s32.totalorder %s31, 1
      %p201 = por %p199, %p200
      %p203 = scmp.ne.s32.totalorder %s188, %s202
      %p204 = scmp.eq.s32.totalorder %s31, 0
      %p205 = por %p203, %p204
      %s207 = sadd.s32 %s206, 1
      %p210 = scmp.eq.s32.totalorder %s25, 1
      %p211 = scmp.ne.s32.totalorder %s206, %s208
      %p212 = scmp.eq.s32.totalorder %s25, 0
      %p213 = por %p211, %p212
      %p214 = scmp.ne.s32.totalorder %s206, %s208
      %p215 = scmp.eq.s32.totalorder %s30, 1
      %p216 = por %p214, %p215
      %p217 = scmp.ne.s32.totalorder %s208, %s209
      %p218 = scmp.eq.s32.totalorder %s30, 0
      %p219 = por %p217, %p218
      %p220 = scmp.ne.s32.totalorder %s208, %s209
      %p221 = scmp.eq.s32.totalorder %s31, 1
      %p222 = por %p220, %p221
      %p224 = scmp.ne.s32.totalorder %s209, %s223
      %p225 = scmp.eq.s32.totalorder %s31, 0
      %p226 = por %p224, %p225
      %s228 = sadd.s32 %s227, 1
      %p231 = scmp.eq.s32.totalorder %s25, 1
      %p232 = scmp.ne.s32.totalorder %s227, %s229
      %p233 = scmp.eq.s32.totalorder %s25, 0
      %p234 = por %p232, %p233
      %p235 = scmp.ne.s32.totalorder %s227, %s229
      %p236 = scmp.eq.s32.totalorder %s30, 1
      %p237 = por %p235, %p236
      %p238 = scmp.ne.s32.totalorder %s229, %s230
      %p239 = scmp.eq.s32.totalorder %s30, 0
      %p240 = por %p238, %p239
      %p241 = scmp.ne.s32.totalorder %s229, %s230
      %p242 = scmp.eq.s32.totalorder %s31, 1
      %p243 = por %p241, %p242
      %p245 = scmp.ne.s32.totalorder %s230, %s244
      %p246 = scmp.eq.s32.totalorder %s31, 0
      %p247 = por %p245, %p246
      %s248 = ssub.s32 %s25, %s32
      %p249 = scmp.eq.s32.totalorder %s248, 0
      %s251 = sadd.s32 %s250, 1
      %s252 = scalar_select %p249, %s250, %s251
      %p255 = pneg %p249
      %p256 = scmp.eq.s32.totalorder %s25, 1
      %p257 = por %p255, %p256
      %p258 = scmp.ne.s32.totalorder %s250, %s253
      %p259 = scmp.eq.s32.totalorder %s25, 0
      %p260 = por %p258, %p259
      %p261 = scmp.ne.s32.totalorder %s250, %s253
      %p262 = scmp.eq.s32.totalorder %s30, 1
      %p263 = por %p261, %p262
      %p264 = scmp.ne.s32.totalorder %s253, %s254
      %p265 = scmp.eq.s32.totalorder %s30, 0
      %p266 = por %p264, %p265
      %p267 = scmp.ne.s32.totalorder %s253, %s254
      %p268 = scmp.eq.s32.totalorder %s31, 1
      %p269 = por %p267, %p268
      %p271 = scmp.ne.s32.totalorder %s254, %s270
      %p272 = scmp.eq.s32.totalorder %s31, 0
      %p273 = por %p271, %p272
      %p274 = scmp.le.s32.totalorder 1, %s25
      %p275 = scmp.lt.s32.totalorder %s25, 3
      %p276 = pnand %p274, %p275
      %p277 = pneg %p276
      // Predicated region
      $region9: #{tpu_custom_call.1} parent=5 // pred_check
        _
      $region10: #{tpu_custom_call.1} parent=5 // pred_check_branch
        %279 = sbr.rel (%p276) target = $region12
      $region11: #{tpu_custom_call.1} parent=5 // pred_region
        %s280 = ssub.s32 %s25, 1
        // Predicated region
        $region13: #{tpu_custom_call.1} parent=11 // pred_check
          %p281 = pneg %p72
        $region14: #{tpu_custom_call.1} parent=11 // pred_check_branch
          %283 = sbr.rel (%p281) target = $region16
        $region15: #{tpu_custom_call.1} parent=11 // pred_region
          %s285 = ssub.s32 3072, 3072
          %286 = vsyncadd [#allocation6], %s285
          %s287 = sshll.u32 [#allocation5], 4
          %s288 = int_to_ptr.vmem [resolvable:$true] %s287
          %293 = dma.hbm_to_vmem [thread:$0]  %s1, 3072, %s288, [#allocation6], 192, 192, 12
        $region16: #{tpu_custom_call.1} parent=11 // pred_fallthru
          _
        // Predicated region
        $region17: #{tpu_custom_call.1} parent=11 // pred_check
          %p294 = pneg %p93
        $region18: #{tpu_custom_call.1} parent=11 // pred_check_branch
          %296 = sbr.rel (%p294) target = $region20
        $region19: #{tpu_custom_call.1} parent=11 // pred_region
          %s298 = ssub.s32 1024, 1024
          %299 = vsyncadd [#allocation6], %s298
          %s300 = sshll.u32 [#allocation7], 4
          %s301 = int_to_ptr.vmem [resolvable:$true] %s300
          %306 = dma.hbm_to_vmem [thread:$0]  %s2, 1024, %s301, [#allocation6], 64, 64, 4
        $region20: #{tpu_custom_call.1} parent=11 // pred_fallthru
          _
        // Predicated region
        $region21: #{tpu_custom_call.1} parent=11 // pred_check
          %p307 = pneg %p114
        $region22: #{tpu_custom_call.1} parent=11 // pred_check_branch
          %309 = sbr.rel (%p307) target = $region24
        $region23: #{tpu_custom_call.1} parent=11 // pred_region
          _
        $region24: #{tpu_custom_call.1} parent=11 // pred_fallthru
          _
        // Predicated region
        $region25: #{tpu_custom_call.1} parent=11 // pred_check
          %p310 = pneg %p135
        $region26: #{tpu_custom_call.1} parent=11 // pred_check_branch
          %312 = sbr.rel (%p310) target = $region28
        $region27: #{tpu_custom_call.1} parent=11 // pred_region
          %s314 = ssub.s32 1024, 1024
          %315 = vsyncadd [#allocation9], %s314
          %s316 = sshll.u32 [#allocation8], 4
          %s317 = int_to_ptr.vmem [resolvable:$true] %s316
          %322 = dma.hbm_to_vmem [thread:$0]  %s4, 1024, %s317, [#allocation9], 64, 64, 4
        $region28: #{tpu_custom_call.1} parent=11 // pred_fallthru
          _
        // Predicated region
        $region29: #{tpu_custom_call.1} parent=11 // pred_check
          %p323 = pneg %p156
        $region30: #{tpu_custom_call.1} parent=11 // pred_check_branch
          %325 = sbr.rel (%p323) target = $region32
        $region31: #{tpu_custom_call.1} parent=11 // pred_region
          %s327 = ssub.s32 2048, 2048
          %328 = vsyncadd [#allocation9], %s327
          %s329 = sshll.u32 [#allocation10], 4
          %s330 = int_to_ptr.vmem [resolvable:$true] %s329
          %335 = dma.hbm_to_vmem [thread:$0]  %s5, 2048, %s330, [#allocation9], 128, 128, 8
        $region32: #{tpu_custom_call.1} parent=11 // pred_fallthru
          _
        // Predicated region
        $region33: #{tpu_custom_call.1} parent=11 // pred_check
          %p336 = pneg %p177
        $region34: #{tpu_custom_call.1} parent=11 // pred_check_branch
          %338 = sbr.rel (%p336) target = $region36
        $region35: #{tpu_custom_call.1} parent=11 // pred_region
          %s340 = ssub.s32 1024, 1024
          %341 = vsyncadd [#allocation12], %s340
          %s342 = sshll.u32 [#allocation11], 4
          %s343 = int_to_ptr.vmem [resolvable:$true] %s342
          %348 = dma.hbm_to_vmem [thread:$0]  %s6, 1024, %s343, [#allocation12], 64, 64, 4
        $region36: #{tpu_custom_call.1} parent=11 // pred_fallthru
          _
        // Predicated region
        $region37: #{tpu_custom_call.1} parent=11 // pred_check
          %p349 = pneg %p198
        $region38: #{tpu_custom_call.1} parent=11 // pred_check_branch
          %351 = sbr.rel (%p349) target = $region40
        $region39: #{tpu_custom_call.1} parent=11 // pred_region
          _
        $region40: #{tpu_custom_call.1} parent=11 // pred_fallthru
          _
        // Predicated region
        $region41: #{tpu_custom_call.1} parent=11 // pred_check
          %p352 = pneg %p219
        $region42: #{tpu_custom_call.1} parent=11 // pred_check_branch
          %354 = sbr.rel (%p352) target = $region44
        $region43: #{tpu_custom_call.1} parent=11 // pred_region
          %s356 = ssub.s32 1024, 1024
          %357 = vsyncadd [#allocation12], %s356
          %s358 = sshll.u32 [#allocation13], 4
          %s359 = int_to_ptr.vmem [resolvable:$true] %s358
          %364 = dma.hbm_to_vmem [thread:$0]  %s8, 1024, %s359, [#allocation12], 64, 64, 4
        $region44: #{tpu_custom_call.1} parent=11 // pred_fallthru
          _
        // Predicated region
        $region45: #{tpu_custom_call.1} parent=11 // pred_check
          %p365 = pneg %p240
        $region46: #{tpu_custom_call.1} parent=11 // pred_check_branch
          %367 = sbr.rel (%p365) target = $region48
        $region47: #{tpu_custom_call.1} parent=11 // pred_region
          _
        $region48: #{tpu_custom_call.1} parent=11 // pred_fallthru
          _
      $region12: #{tpu_custom_call.1} parent=5 // pred_fallthru
        _
      %p368 = scmp.lt.s32.totalorder %s25, 2
      // Predicated region
      $region49: #{tpu_custom_call.1} parent=5 // pred_check
        %p369 = pneg %p368
      $region50: #{tpu_custom_call.1} parent=5 // pred_check_branch
        %371 = sbr.rel (%p369) target = $region52
      $region51: #{tpu_custom_call.1} parent=5 // pred_region
        // Predicated region
        $region53: #{tpu_custom_call.1} parent=51 // pred_check
          %p372 = pneg %p45
        $region54: #{tpu_custom_call.1} parent=51 // pred_check_branch
          %374 = sbr.rel (%p372) target = $region56
        $region55: #{tpu_custom_call.1} parent=51 // pred_region
          %s375 = sand.u32 %s35, 1
          %s376 = scalar_lea.sflag [#allocation3], %s375
          %s377 = sand.u32 %s35, 1
          %s378 = smul.addr %s377, 8
          %s379 = scalar_lea.vmem [#allocation2], %s378
          %s380 = smul.u32 2, %s25
          %s382 = ssub.s32 128, 128
          %383 = vsyncadd %s376, %s382
          %s384 = smul.addr %s380, 64
          %s385 = scalar_lea.hbm %s0, %s384
          %s386 = sshll.u32 %s379, 4
          %s387 = int_to_ptr.vmem [resolvable:$true] %s386
          %392 = dma.hbm_to_vmem [thread:$0]  %s385, 128, %s387, %s376, 64, 64, 4
        $region56: #{tpu_custom_call.1} parent=51 // pred_fallthru
          _
      $region52: #{tpu_custom_call.1} parent=5 // pred_fallthru
        _
      %p393 = scmp.le.s32.totalorder 1, %s25
      %p394 = scmp.lt.s32.totalorder %s25, 3
      %p395 = pnand %p393, %p394
      %p396 = pneg %p395
      // Predicated region
      $region57: #{tpu_custom_call.1} parent=5 // pred_check
        _
      $region58: #{tpu_custom_call.1} parent=5 // pred_check_branch
        %398 = sbr.rel (%p395) target = $region60
      $region59: #{tpu_custom_call.1} parent=5 // pred_region
        %s399 = ssub.s32 %s25, 1
        %s400 = sand.u32 %s38, 1
        %s401 = scalar_lea.sflag [#allocation3], %s400
        %s402 = sand.u32 %s38, 1
        %s403 = smul.addr %s402, 8
        %s404 = scalar_lea.vmem [#allocation2], %s403
        // Predicated region
        $region61: #{tpu_custom_call.1} parent=59 // pred_check
          %p405 = pneg %p51
        $region62: #{tpu_custom_call.1} parent=59 // pred_check_branch
          %407 = sbr.rel (%p405) target = $region64
        $region63: #{tpu_custom_call.1} parent=59 // pred_region
          %408 = dma.done %s401, 128
        $region64: #{tpu_custom_call.1} parent=59 // pred_fallthru
          _
        // Predicated region
        $region65: #{tpu_custom_call.1} parent=59 // pred_check
          %p409 = pneg %p72
        $region66: #{tpu_custom_call.1} parent=59 // pred_check_branch
          %411 = sbr.rel (%p409) target = $region68
        $region67: #{tpu_custom_call.1} parent=59 // pred_region
          %412 = dma.done [#allocation6], 3072
        $region68: #{tpu_custom_call.1} parent=59 // pred_fallthru
          _
        // Predicated region
        $region69: #{tpu_custom_call.1} parent=59 // pred_check
          %p413 = pneg %p93
        $region70: #{tpu_custom_call.1} parent=59 // pred_check_branch
          %415 = sbr.rel (%p413) target = $region72
        $region71: #{tpu_custom_call.1} parent=59 // pred_region
          %416 = dma.done [#allocation6], 1024
        $region72: #{tpu_custom_call.1} parent=59 // pred_fallthru
          _
        // Predicated region
        $region73: #{tpu_custom_call.1} parent=59 // pred_check
          %p417 = pneg %p135
        $region74: #{tpu_custom_call.1} parent=59 // pred_check_branch
          %419 = sbr.rel (%p417) target = $region76
        $region75: #{tpu_custom_call.1} parent=59 // pred_region
          %420 = dma.done [#allocation9], 1024
        $region76: #{tpu_custom_call.1} parent=59 // pred_fallthru
          _
        // Predicated region
        $region77: #{tpu_custom_call.1} parent=59 // pred_check
          %p421 = pneg %p156
        $region78: #{tpu_custom_call.1} parent=59 // pred_check_branch
          %423 = sbr.rel (%p421) target = $region80
        $region79: #{tpu_custom_call.1} parent=59 // pred_region
          %424 = dma.done [#allocation9], 2048
        $region80: #{tpu_custom_call.1} parent=59 // pred_fallthru
          _
        // Predicated region
        $region81: #{tpu_custom_call.1} parent=59 // pred_check
          %p425 = pneg %p177
        $region82: #{tpu_custom_call.1} parent=59 // pred_check_branch
          %427 = sbr.rel (%p425) target = $region84
        $region83: #{tpu_custom_call.1} parent=59 // pred_region
          %428 = dma.done [#allocation12], 1024
        $region84: #{tpu_custom_call.1} parent=59 // pred_fallthru
          _
        // Predicated region
        $region85: #{tpu_custom_call.1} parent=59 // pred_check
          %p429 = pneg %p219
        $region86: #{tpu_custom_call.1} parent=59 // pred_check_branch
          %431 = sbr.rel (%p429) target = $region88
        $region87: #{tpu_custom_call.1} parent=59 // pred_region
          %432 = dma.done [#allocation12], 1024
        $region88: #{tpu_custom_call.1} parent=59 // pred_fallthru
          _
        %s433 = sand.u32 %s38, 1
        %s434 = scalar_lea.sflag [#allocation3], %s433
        %s435 = sand.u32 %s38, 1
        %s436 = smul.addr %s435, 8
        %s437 = scalar_lea.vmem [#allocation2], %s436
        %p438 = pneg %p51
        %p439 = pneg %p48
        %p440 = pneg %p72
        %p441 = pneg %p69
        %p442 = pneg %p93
        %p443 = pneg %p90
        %p444 = pneg %p114
        %p445 = pneg %p111
        %p446 = pneg %p135
        %p447 = pneg %p132
        %p448 = pneg %p156
        %p449 = pneg %p153
        %p450 = pneg %p177
        %p451 = pneg %p174
        %p452 = pneg %p198
        %p453 = pneg %p195
        %p454 = pneg %p219
        %p455 = pneg %p216
        %p456 = pneg %p240
        %p457 = pneg %p237
        %p458 = pneg %p266
        %p459 = pneg %p263
        %s460 = sand.u32 %s253, 1
        %s461 = scalar_lea.sflag [#allocation4], %s460
        %s462 = sand.u32 %s253, 1
        %s463 = smul.addr %s462, 16
        %s464 = scalar_lea.vmem [#allocation14], %s463
        %s465 = smul.u32 2, %s30
        %s466 = smul.u32 2, %s30
        %v468 = vld [vmem:[%s404] sm:$0xf]
        %v469 = vld [vmem:[%s404 + $0x4] sm:$0xf]
        %v470 = vld [vmem:[#allocation5] sm:$0xff]
        %v471 = vld [vmem:[#allocation5 + $0x8] sm:$0xf]
        %v472 = vld [vmem:[#allocation5 + $0xc] sm:$0xff]
        %v473 = vld [vmem:[#allocation5 + $0x14] sm:$0xf]
        %v474 = vld [vmem:[#allocation5 + $0x18] sm:$0xff]
        %v475 = vld [vmem:[#allocation5 + $0x20] sm:$0xf]
        %v476 = vld [vmem:[#allocation5 + $0x24] sm:$0xff]
        %v477 = vld [vmem:[#allocation5 + $0x2c] sm:$0xf]
        %v478 = vld [vmem:[#allocation5 + $0x30] sm:$0xff]
        %v479 = vld [vmem:[#allocation5 + $0x38] sm:$0xf]
        %v480 = vld [vmem:[#allocation5 + $0x3c] sm:$0xff]
        %v481 = vld [vmem:[#allocation5 + $0x44] sm:$0xf]
        %v482 = vld [vmem:[#allocation5 + $0x48] sm:$0xff]
        %v483 = vld [vmem:[#allocation5 + $0x50] sm:$0xf]
        %v484 = vld [vmem:[#allocation5 + $0x54] sm:$0xff]
        %v485 = vld [vmem:[#allocation5 + $0x5c] sm:$0xf]
        %v486 = vld [vmem:[#allocation5 + $0x60] sm:$0xff]
        %v487 = vld [vmem:[#allocation5 + $0x68] sm:$0xf]
        %v488 = vld [vmem:[#allocation5 + $0x6c] sm:$0xff]
        %v489 = vld [vmem:[#allocation5 + $0x74] sm:$0xf]
        %v490 = vld [vmem:[#allocation5 + $0x78] sm:$0xff]
        %v491 = vld [vmem:[#allocation5 + $0x80] sm:$0xf]
        %v492 = vld [vmem:[#allocation5 + $0x84] sm:$0xff]
        %v493 = vld [vmem:[#allocation5 + $0x8c] sm:$0xf]
        %v494 = vld [vmem:[#allocation5 + $0x90] sm:$0xff]
        %v495 = vld [vmem:[#allocation5 + $0x98] sm:$0xf]
        %v496 = vld [vmem:[#allocation5 + $0x9c] sm:$0xff]
        %v497 = vld [vmem:[#allocation5 + $0xa4] sm:$0xf]
        %v498 = vld [vmem:[#allocation5 + $0xa8] sm:$0xff]
        %v499 = vld [vmem:[#allocation5 + $0xb0] sm:$0xf]
        %v500 = vld [vmem:[#allocation5 + $0xb4] sm:$0xff]
        %v501 = vld [vmem:[#allocation5 + $0xbc] sm:$0xf]
        %v504 = vunpack.c.l.b16 %v468
        %v505 = vunpack.c.l.b16 %v469
        %v506 = vpack.c.b16 %v505, %v504
        %v540 = vunpack.c.l.b16 %v470
        %v541 = vunpack.c.h.b16 %v470
        %v542 = vunpack.c.l.b16 %v471
        %v543 = vunpack.c.l.b16 %v472
        %v544 = vunpack.c.h.b16 %v472
        %v545 = vunpack.c.l.b16 %v473
        %v546 = vunpack.c.l.b16 %v474
        %v547 = vunpack.c.h.b16 %v474
        %v548 = vunpack.c.l.b16 %v475
        %v549 = vunpack.c.l.b16 %v476
        %v550 = vunpack.c.h.b16 %v476
        %v551 = vunpack.c.l.b16 %v477
        %v552 = vunpack.c.l.b16 %v478
        %v553 = vunpack.c.h.b16 %v478
        %v554 = vunpack.c.l.b16 %v479
        %v555 = vunpack.c.l.b16 %v480
        %v556 = vunpack.c.h.b16 %v480
        %v557 = vunpack.c.l.b16 %v481
        %v558 = vunpack.c.l.b16 %v482
        %v559 = vunpack.c.h.b16 %v482
        %v560 = vunpack.c.l.b16 %v483
        %v561 = vunpack.c.l.b16 %v484
        %v562 = vunpack.c.h.b16 %v484
        %v563 = vunpack.c.l.b16 %v485
        %v564 = vunpack.c.l.b16 %v486
        %v565 = vunpack.c.h.b16 %v486
        %v566 = vunpack.c.l.b16 %v487
        %v567 = vunpack.c.l.b16 %v488
        %v568 = vunpack.c.h.b16 %v488
        %v569 = vunpack.c.l.b16 %v489
        %v570 = vunpack.c.l.b16 %v490
        %v571 = vunpack.c.h.b16 %v490
        %v572 = vunpack.c.l.b16 %v491
        %v573 = vunpack.c.l.b16 %v492
        %v574 = vunpack.c.h.b16 %v492
        %v575 = vunpack.c.l.b16 %v493
        %v576 = vunpack.c.l.b16 %v494
        %v577 = vunpack.c.h.b16 %v494
        %v578 = vunpack.c.l.b16 %v495
        %v579 = vunpack.c.l.b16 %v496
        %v580 = vunpack.c.h.b16 %v496
        %v581 = vunpack.c.l.b16 %v497
        %v582 = vunpack.c.l.b16 %v498
        %v583 = vunpack.c.h.b16 %v498
        %v584 = vunpack.c.l.b16 %v499
        %v585 = vunpack.c.l.b16 %v500
        %v586 = vunpack.c.h.b16 %v500
        %v587 = vunpack.c.l.b16 %v501
        %v588 = vpack.c.b16 %v543, %v540
        %v589 = vpack.c.b16 %v544, %v541
        %v590 = vpack.c.b16 %v545, %v542
        %v591 = vpack.c.b16 %v549, %v546
        %v592 = vpack.c.b16 %v550, %v547
        %v593 = vpack.c.b16 %v551, %v548
        %v594 = vpack.c.b16 %v555, %v552
        %v595 = vpack.c.b16 %v556, %v553
        %v596 = vpack.c.b16 %v557, %v554
        %v597 = vpack.c.b16 %v561, %v558
        %v598 = vpack.c.b16 %v562, %v559
        %v599 = vpack.c.b16 %v563, %v560
        %v600 = vpack.c.b16 %v567, %v564
        %v601 = vpack.c.b16 %v568, %v565
        %v602 = vpack.c.b16 %v569, %v566
        %v603 = vpack.c.b16 %v573, %v570
        %v604 = vpack.c.b16 %v574, %v571
        %v605 = vpack.c.b16 %v575, %v572
        %v606 = vpack.c.b16 %v579, %v576
        %v607 = vpack.c.b16 %v580, %v577
        %v608 = vpack.c.b16 %v581, %v578
        %v609 = vpack.c.b16 %v585, %v582
        %v610 = vpack.c.b16 %v586, %v583
        %v611 = vpack.c.b16 %v587, %v584
        %636 = vmatprep.subr.bf16.mxu0 %v610
        %637 = vmatpush1.bf16.msra.mxu0 %v609
        %638 = vmatprep.subr.bf16.mxu0 %v607
        %639 = vmatpush1.bf16.msra.mxu0 %v606
        %640 = vmatprep.subr.bf16.mxu0 %v604
        %641 = vmatpush1.bf16.msra.mxu0 %v603
        %642 = vmatprep.subr.bf16.mxu0 %v601
        %643 = vmatpush1.bf16.msra.mxu0 %v600
        %644 = vmatprep.subr.bf16.mxu0 %v598
        %645 = vmatpush1.bf16.msra.mxu0 %v597
        %646 = vmatprep.subr.bf16.mxu0 %v595
        %647 = vmatpush1.bf16.msra.mxu0 %v594
        %648 = vmatprep.subr.bf16.mxu0 %v592
        %649 = vmatpush1.bf16.msra.mxu0 %v591
        %650 = vmatprep.subr.bf16.mxu0 %v589
        %651 = vmatpush1.bf16.msra.mxu0 %v588
        %652 = vmatprep.subr.bf16.mxu0 0
        %653 = vmatpush2.bf16.msra.mxu0 0
        %654 = vmatprep.subr.bf16.mxu0 0
        %655 = vmatpush2.bf16.msra.mxu0 0
        %656 = vmatprep.subr.bf16.mxu0 0
        %657 = vmatpush2.bf16.msra.mxu0 0
        %658 = vmatprep.subr.bf16.mxu0 0
        %659 = vmatpush2.bf16.msra.mxu0 0
        %660 = vmatprep.subr.bf16.mxu0 0
        %661 = vmatpush2.bf16.msra.mxu0 0
        %662 = vmatprep.subr.bf16.mxu0 0
        %663 = vmatpush2.bf16.msra.mxu0 0
        %664 = vmatprep.subr.bf16.mxu0 0
        %665 = vmatpush2.bf16.msra.mxu0 0
        %666 = vmatprep.subr.bf16.mxu0 0
        %667 = vmatpush2.bf16.msra.mxu0 0
        %668 = vmatprep.mubr.bf16.mxu0 0
        %669 = vmatmul.mubr.bf16.gmra.mxu0 %v506
        %v670 = vpop.f32.mrf.mxu0
        %v671 = vadd.f32 0.0, %v670
        %v672 = vpop.f32.mrf.mxu0
        %v673 = vadd.f32 0.0, %v672
        %v674 = vpop.f32.mrf.mxu0
        %v675 = vadd.f32 0.0, %v674
        %v676 = vpop.f32.mrf.mxu0
        %v677 = vadd.f32 0.0, %v676
        %678 = vdwg.mxu0
        %679 = vmatprep.subr.bf16.mxu0 0
        %680 = vmatpush1.bf16.msra.mxu0 %v611
        %681 = vmatprep.subr.bf16.mxu0 0
        %682 = vmatpush1.bf16.msra.mxu0 %v608
        %683 = vmatprep.subr.bf16.mxu0 0
        %684 = vmatpush1.bf16.msra.mxu0 %v605
        %685 = vmatprep.subr.bf16.mxu0 0
        %686 = vmatpush1.bf16.msra.mxu0 %v602
        %687 = vmatprep.subr.bf16.mxu0 0
        %688 = vmatpush1.bf16.msra.mxu0 %v599
        %689 = vmatprep.subr.bf16.mxu0 0
        %690 = vmatpush1.bf16.msra.mxu0 %v596
        %691 = vmatprep.subr.bf16.mxu0 0
        %692 = vmatpush1.bf16.msra.mxu0 %v593
        %693 = vmatprep.subr.bf16.mxu0 0
        %694 = vmatpush1.bf16.msra.mxu0 %v590
        %695 = vmatprep.subr.bf16.mxu0 0
        %696 = vmatpush2.bf16.msra.mxu0 0
        %697 = vmatprep.subr.bf16.mxu0 0
        %698 = vmatpush2.bf16.msra.mxu0 0
        %699 = vmatprep.subr.bf16.mxu0 0
        %700 = vmatpush2.bf16.msra.mxu0 0
        %701 = vmatprep.subr.bf16.mxu0 0
        %702 = vmatpush2.bf16.msra.mxu0 0
        %703 = vmatprep.subr.bf16.mxu0 0
        %704 = vmatpush2.bf16.msra.mxu0 0
        %705 = vmatprep.subr.bf16.mxu0 0
        %706 = vmatpush2.bf16.msra.mxu0 0
        %707 = vmatprep.subr.bf16.mxu0 0
        %708 = vmatpush2.bf16.msra.mxu0 0
        %709 = vmatprep.subr.bf16.mxu0 0
        %710 = vmatpush2.bf16.msra.mxu0 0
        %711 = vmatprep.mubr.bf16.mxu0 0
        %712 = vmatmul.mubr.bf16.gmra.mxu0 %v506
        %v713 = vpop.f32.mrf.mxu0
        %v714 = vadd.f32 0.0, %v713
        %v715 = vpop.f32.mrf.mxu0
        %v716 = vpop.f32.mrf.mxu0
        %v717 = vadd.f32 0.0, %v716
        %v718 = vpop.f32.mrf.mxu0
        %719 = vdwg.mxu0
        %v720 = vpack.c.bf16 %v675, %v671
        %v721 = vpack.c.bf16 %v677, %v673
        %v722 = vpack.c.bf16 %v717, %v714
        %v724 = vunpack.c.l.b16 %v720
        %v725 = vunpack.c.h.b16 %v720
        %v726 = vpack.c.b16 %v724, %v724
        %v727 = vpack.c.b16 %v725, %v725
        %v729 = vunpack.c.l.b16 %v721
        %v730 = vunpack.c.h.b16 %v721
        %v731 = vpack.c.b16 %v729, %v729
        %v732 = vpack.c.b16 %v730, %v730
        %v734 = vunpack.c.l.b16 %v722
        %v735 = vunpack.c.h.b16 %v722
        %v736 = vpack.c.b16 %v734, %v734
        %v737 = vpack.c.b16 %v735, %v735
        %vm738 = vcmask 261120
        %v740 = vsel %vm738, %v726, 0
        %v743 = vsel %vm738, %v731, 0
        %745 = vmatprep.subr.bf16.mxu0 0
        %746 = vmatpush1.bf16.xpose.msra.mxu0 0
        %747 = vmatprep.subr.bf16.mxu0 0
        %748 = vmatpush1.bf16.xpose.msra.mxu0 0
        %749 = vmatprep.subr.bf16.mxu0 0
        %750 = vmatpush1.bf16.xpose.msra.mxu0 0
        %751 = vmatprep.subr.bf16.mxu0 0
        %752 = vmatpush1.bf16.xpose.msra.mxu0 0
        %753 = vmatprep.subr.bf16.mxu0 0
        %754 = vmatpush1.bf16.xpose.msra.mxu0 0
        %755 = vmatprep.subr.bf16.mxu0 0
        %756 = vmatpush1.bf16.xpose.msra.mxu0 0
        %757 = vmatprep.subr.bf16.mxu0 0
        %758 = vmatpush1.bf16.xpose.msra.mxu0 0
        %759 = vmatprep.subr.bf16.mxu0 0
        %760 = vmatpush1.bf16.xpose.msra.mxu0 %v743
        %761 = vmatprep.subr.bf16.mxu0 0
        %762 = vmatpush2.bf16.xpose.msra.mxu0 0
        %763 = vmatprep.subr.bf16.mxu0 0
        %764 = vmatpush2.bf16.xpose.msra.mxu0 0
        %765 = vmatprep.subr.bf16.mxu0 0
        %766 = vmatpush2.bf16.xpose.msra.mxu0 0
        %767 = vmatprep.subr.bf16.mxu0 0
        %768 = vmatpush2.bf16.xpose.msra.mxu0 0
        %769 = vmatprep.subr.bf16.mxu0 0
        %770 = vmatpush2.bf16.xpose.msra.mxu0 0
        %771 = vmatprep.subr.bf16.mxu0 0
        %772 = vmatpush2.bf16.xpose.msra.mxu0 0
        %773 = vmatprep.subr.bf16.mxu0 0
        %774 = vmatpush2.bf16.xpose.msra.mxu0 0
        %775 = vmatprep.subr.bf16.mxu0 0
        %776 = vmatpush2.bf16.xpose.msra.mxu0 0
        %777 = vmatprep.mubr.bf16.mxu0 0
        %778 = vmatmul.mubr.bf16.gmra.mxu0 %v740
        %v779 = vpop.f32.mrf.mxu0
        %v780 = vadd.f32 0.0, %v779
        %v781 = vpop.f32.mrf.mxu0
        %v782 = vpop.f32.mrf.mxu0
        %v783 = vpop.f32.mrf.mxu0
        %784 = vdwg.mxu0
        %v786 = vsel %vm738, %v727, 0
        %v789 = vsel %vm738, %v732, 0
        %791 = vmatprep.subr.bf16.mxu0 0
        %792 = vmatpush1.bf16.xpose.msra.mxu0 0
        %793 = vmatprep.subr.bf16.mxu0 0
        %794 = vmatpush1.bf16.xpose.msra.mxu0 0
        %795 = vmatprep.subr.bf16.mxu0 0
        %796 = vmatpush1.bf16.xpose.msra.mxu0 0
        %797 = vmatprep.subr.bf16.mxu0 0
        %798 = vmatpush1.bf16.xpose.msra.mxu0 0
        %799 = vmatprep.subr.bf16.mxu0 0
        %800 = vmatpush1.bf16.xpose.msra.mxu0 0
        %801 = vmatprep.subr.bf16.mxu0 0
        %802 = vmatpush1.bf16.xpose.msra.mxu0 0
        %803 = vmatprep.subr.bf16.mxu0 0
        %804 = vmatpush1.bf16.xpose.msra.mxu0 0
        %805 = vmatprep.subr.bf16.mxu0 0
        %806 = vmatpush1.bf16.xpose.msra.mxu0 %v789
        %807 = vmatprep.subr.bf16.mxu0 0
        %808 = vmatpush2.bf16.xpose.msra.mxu0 0
        %809 = vmatprep.subr.bf16.mxu0 0
        %810 = vmatpush2.bf16.xpose.msra.mxu0 0
        %811 = vmatprep.subr.bf16.mxu0 0
        %812 = vmatpush2.bf16.xpose.msra.mxu0 0
        %813 = vmatprep.subr.bf16.mxu0 0
        %814 = vmatpush2.bf16.xpose.msra.mxu0 0
        %815 = vmatprep.subr.bf16.mxu0 0
        %816 = vmatpush2.bf16.xpose.msra.mxu0 0
        %817 = vmatprep.subr.bf16.mxu0 0
        %818 = vmatpush2.bf16.xpose.msra.mxu0 0
        %819 = vmatprep.subr.bf16.mxu0 0
        %820 = vmatpush2.bf16.xpose.msra.mxu0 0
        %821 = vmatprep.subr.bf16.mxu0 0
        %822 = vmatpush2.bf16.xpose.msra.mxu0 0
        %823 = vmatprep.mubr.bf16.mxu0 0
        %824 = vmatmul.mubr.bf16.gmra.mxu0 %v786
        %v825 = vpop.f32.mrf.mxu0
        %v826 = vadd.f32 0.0, %v825
        %v827 = vpop.f32.mrf.mxu0
        %v828 = vpop.f32.mrf.mxu0
        %v829 = vpop.f32.mrf.mxu0
        %830 = vdwg.mxu0
        %vm831 = vcmask 64512
        %v832 = vsel %vm831, %v780, -inf
        %833 = vmax.xlane.f32.xlu0 %v832
        %v834 = vpop.xlane.xlu0 %833
        %v835 = vsel %vm831, %v826, -inf
        %836 = vmax.xlane.f32.xlu0 %v835
        %v837 = vpop.xlane.xlu0 %836
        %v838 = vsub.f32 %v780, %v834
        %v839 = vsub.f32 %v826, %v837
        %v840 = vmul.f32 %v838, 1.442695
        %v841 = vpow.pop %v840
        %v842 = vmul.f32 %v839, 1.442695
        %v843 = vpow.pop %v842
        %v844 = vsel %vm831, %v841, 0.0
        %845 = vadd.xlane.f32.xlu0 %v844
        %v846 = vpop.xlane.xlu0 %845
        %v847 = vsel %vm831, %v843, 0.0
        %848 = vadd.xlane.f32.xlu0 %v847
        %v849 = vpop.xlane.xlu0 %848
        %v850 = vrcp.pop %v846
        %v851 = vrcp.pop %v849
        %v852 = vmul.f32 %v841, %v850
        %v853 = vmul.f32 %v843, %v851
        %v854 = vpack.c.bf16 %v852, %v852
        %v855 = vpack.c.bf16 %v853, %v853
        %v857 = vsel %vm831, %v854, 0
        %vm859 = vcmask 1043456
        %v861 = vsel %vm859, %v736, 0
        %863 = vmatprep.subr.bf16.mxu0 0
        %864 = vmatpush1.bf16.msra.mxu0 0
        %865 = vmatprep.subr.bf16.mxu0 0
        %866 = vmatpush1.bf16.msra.mxu0 0
        %867 = vmatprep.subr.bf16.mxu0 0
        %868 = vmatpush1.bf16.msra.mxu0 0
        %869 = vmatprep.subr.bf16.mxu0 0
        %870 = vmatpush1.bf16.msra.mxu0 0
        %871 = vmatprep.subr.bf16.mxu0 0
        %872 = vmatpush1.bf16.msra.mxu0 0
        %873 = vmatprep.subr.bf16.mxu0 0
        %874 = vmatpush1.bf16.msra.mxu0 0
        %875 = vmatprep.subr.bf16.mxu0 0
        %876 = vmatpush1.bf16.msra.mxu0 0
        %877 = vmatprep.subr.bf16.mxu0 0
        %878 = vmatpush1.bf16.msra.mxu0 %v861
        %879 = vmatprep.subr.bf16.mxu0 0
        %880 = vmatpush2.bf16.msra.mxu0 0
        %881 = vmatprep.subr.bf16.mxu0 0
        %882 = vmatpush2.bf16.msra.mxu0 0
        %883 = vmatprep.subr.bf16.mxu0 0
        %884 = vmatpush2.bf16.msra.mxu0 0
        %885 = vmatprep.subr.bf16.mxu0 0
        %886 = vmatpush2.bf16.msra.mxu0 0
        %887 = vmatprep.subr.bf16.mxu0 0
        %888 = vmatpush2.bf16.msra.mxu0 0
        %889 = vmatprep.subr.bf16.mxu0 0
        %890 = vmatpush2.bf16.msra.mxu0 0
        %891 = vmatprep.subr.bf16.mxu0 0
        %892 = vmatpush2.bf16.msra.mxu0 0
        %893 = vmatprep.subr.bf16.mxu0 0
        %894 = vmatpush2.bf16.msra.mxu0 0
        %895 = vmatprep.mubr.bf16.mxu0 0
        %896 = vmatmul.mubr.bf16.gmra.mxu0 %v857
        %v897 = vpop.f32.mrf.mxu0
        %v898 = vadd.f32 0.0, %v897
        %v899 = vpop.f32.mrf.mxu0
        %v900 = vpop.f32.mrf.mxu0
        %v901 = vpop.f32.mrf.mxu0
        %902 = vdwg.mxu0
        %v904 = vsel %vm831, %v855, 0
        %v907 = vsel %vm859, %v737, 0
        %909 = vmatprep.subr.bf16.mxu0 0
        %910 = vmatpush1.bf16.msra.mxu0 0
        %911 = vmatprep.subr.bf16.mxu0 0
        %912 = vmatpush1.bf16.msra.mxu0 0
        %913 = vmatprep.subr.bf16.mxu0 0
        %914 = vmatpush1.bf16.msra.mxu0 0
        %915 = vmatprep.subr.bf16.mxu0 0
        %916 = vmatpush1.bf16.msra.mxu0 0
        %917 = vmatprep.subr.bf16.mxu0 0
        %918 = vmatpush1.bf16.msra.mxu0 0
        %919 = vmatprep.subr.bf16.mxu0 0
        %920 = vmatpush1.bf16.msra.mxu0 0
        %921 = vmatprep.subr.bf16.mxu0 0
        %922 = vmatpush1.bf16.msra.mxu0 0
        %923 = vmatprep.subr.bf16.mxu0 0
        %924 = vmatpush1.bf16.msra.mxu0 %v907
        %925 = vmatprep.subr.bf16.mxu0 0
        %926 = vmatpush2.bf16.msra.mxu0 0
        %927 = vmatprep.subr.bf16.mxu0 0
        %928 = vmatpush2.bf16.msra.mxu0 0
        %929 = vmatprep.subr.bf16.mxu0 0
        %930 = vmatpush2.bf16.msra.mxu0 0
        %931 = vmatprep.subr.bf16.mxu0 0
        %932 = vmatpush2.bf16.msra.mxu0 0
        %933 = vmatprep.subr.bf16.mxu0 0
        %934 = vmatpush2.bf16.msra.mxu0 0
        %935 = vmatprep.subr.bf16.mxu0 0
        %936 = vmatpush2.bf16.msra.mxu0 0
        %937 = vmatprep.subr.bf16.mxu0 0
        %938 = vmatpush2.bf16.msra.mxu0 0
        %939 = vmatprep.subr.bf16.mxu0 0
        %940 = vmatpush2.bf16.msra.mxu0 0
        %941 = vmatprep.mubr.bf16.mxu0 0
        %942 = vmatmul.mubr.bf16.gmra.mxu0 %v904
        %v943 = vpop.f32.mrf.mxu0
        %v944 = vadd.f32 0.0, %v943
        %v945 = vpop.f32.mrf.mxu0
        %v946 = vpop.f32.mrf.mxu0
        %v947 = vpop.f32.mrf.mxu0
        %948 = vdwg.mxu0
        %v949 = vpack.c.bf16 %v944, %v898
        %950 = vrot.lane.b32.xlu0 %v726, 96
        %v951 = vpop.permute.xlu0 %950
        %952 = vrot.lane.b32.xlu0 %v731, 96
        %v953 = vpop.permute.xlu0 %952
        %v955 = vsel %vm738, %v951, 0
        %v958 = vsel %vm738, %v953, 0
        %960 = vmatprep.subr.bf16.mxu0 0
        %961 = vmatpush1.bf16.xpose.msra.mxu0 0
        %962 = vmatprep.subr.bf16.mxu0 0
        %963 = vmatpush1.bf16.xpose.msra.mxu0 0
        %964 = vmatprep.subr.bf16.mxu0 0
        %965 = vmatpush1.bf16.xpose.msra.mxu0 0
        %966 = vmatprep.subr.bf16.mxu0 0
        %967 = vmatpush1.bf16.xpose.msra.mxu0 0
        %968 = vmatprep.subr.bf16.mxu0 0
        %969 = vmatpush1.bf16.xpose.msra.mxu0 0
        %970 = vmatprep.subr.bf16.mxu0 0
        %971 = vmatpush1.bf16.xpose.msra.mxu0 0
        %972 = vmatprep.subr.bf16.mxu0 0
        %973 = vmatpush1.bf16.xpose.msra.mxu0 0
        %974 = vmatprep.subr.bf16.mxu0 0
        %975 = vmatpush1.bf16.xpose.msra.mxu0 %v958
        %976 = vmatprep.subr.bf16.mxu0 0
        %977 = vmatpush2.bf16.xpose.msra.mxu0 0
        %978 = vmatprep.subr.bf16.mxu0 0
        %979 = vmatpush2.bf16.xpose.msra.mxu0 0
        %980 = vmatprep.subr.bf16.mxu0 0
        %981 = vmatpush2.bf16.xpose.msra.mxu0 0
        %982 = vmatprep.subr.bf16.mxu0 0
        %983 = vmatpush2.bf16.xpose.msra.mxu0 0
        %984 = vmatprep.subr.bf16.mxu0 0
        %985 = vmatpush2.bf16.xpose.msra.mxu0 0
        %986 = vmatprep.subr.bf16.mxu0 0
        %987 = vmatpush2.bf16.xpose.msra.mxu0 0
        %988 = vmatprep.subr.bf16.mxu0 0
        %989 = vmatpush2.bf16.xpose.msra.mxu0 0
        %990 = vmatprep.subr.bf16.mxu0 0
        %991 = vmatpush2.bf16.xpose.msra.mxu0 0
        %992 = vmatprep.mubr.bf16.mxu0 0
        %993 = vmatmul.mubr.bf16.gmra.mxu0 %v955
        %v994 = vpop.f32.mrf.mxu0
        %v995 = vadd.f32 0.0, %v994
        %v996 = vpop.f32.mrf.mxu0
        %v997 = vpop.f32.mrf.mxu0
        %v998 = vpop.f32.mrf.mxu0
        %999 = vdwg.mxu0
        %1000 = vrot.lane.b32.xlu0 %v727, 96
        %v1001 = vpop.permute.xlu0 %1000
        %1002 = vrot.lane.b32.xlu0 %v732, 96
        %v1003 = vpop.permute.xlu0 %1002
        %v1005 = vsel %vm738, %v1001, 0
        %v1008 = vsel %vm738, %v1003, 0
        %1010 = vmatprep.subr.bf16.mxu0 0
        %1011 = vmatpush1.bf16.xpose.msra.mxu0 0
        %1012 = vmatprep.subr.bf16.mxu0 0
        %1013 = vmatpush1.bf16.xpose.msra.mxu0 0
        %1014 = vmatprep.subr.bf16.mxu0 0
        %1015 = vmatpush1.bf16.xpose.msra.mxu0 0
        %1016 = vmatprep.subr.bf16.mxu0 0
        %1017 = vmatpush1.bf16.xpose.msra.mxu0 0
        %1018 = vmatprep.subr.bf16.mxu0 0
        %1019 = vmatpush1.bf16.xpose.msra.mxu0 0
        %1020 = vmatprep.subr.bf16.mxu0 0
        %1021 = vmatpush1.bf16.xpose.msra.mxu0 0
        %1022 = vmatprep.subr.bf16.mxu0 0
        %1023 = vmatpush1.bf16.xpose.msra.mxu0 0
        %1024 = vmatprep.subr.bf16.mxu0 0
        %1025 = vmatpush1.bf16.xpose.msra.mxu0 %v1008
        %1026 = vmatprep.subr.bf16.mxu0 0
        %1027 = vmatpush2.bf16.xpose.msra.mxu0 0
        %1028 = vmatprep.subr.bf16.mxu0 0
        %1029 = vmatpush2.bf16.xpose.msra.mxu0 0
        %1030 = vmatprep.subr.bf16.mxu0 0
        %1031 = vmatpush2.bf16.xpose.msra.mxu0 0
        %1032 = vmatprep.subr.bf16.mxu0 0
        %1033 = vmatpush2.bf16.xpose.msra.mxu0 0
        %1034 = vmatprep.subr.bf16.mxu0 0
        %1035 = vmatpush2.bf16.xpose.msra.mxu0 0
        %1036 = vmatprep.subr.bf16.mxu0 0
        %1037 = vmatpush2.bf16.xpose.msra.mxu0 0
        %1038 = vmatprep.subr.bf16.mxu0 0
        %1039 = vmatpush2.bf16.xpose.msra.mxu0 0
        %1040 = vmatprep.subr.bf16.mxu0 0
        %1041 = vmatpush2.bf16.xpose.msra.mxu0 0
        %1042 = vmatprep.mubr.bf16.mxu0 0
        %1043 = vmatmul.mubr.bf16.gmra.mxu0 %v1005
        %v1044 = vpop.f32.mrf.mxu0
        %v1045 = vadd.f32 0.0, %v1044
        %v1046 = vpop.f32.mrf.mxu0
        %v1047 = vpop.f32.mrf.mxu0
        %v1048 = vpop.f32.mrf.mxu0
        %1049 = vdwg.mxu0
        %v1050 = vsel %vm831, %v995, -inf
        %1051 = vmax.xlane.f32.xlu0 %v1050
        %v1052 = vpop.xlane.xlu0 %1051
        %v1053 = vsel %vm831, %v1045, -inf
        %1054 = vmax.xlane.f32.xlu0 %v1053
        %v1055 = vpop.xlane.xlu0 %1054
        %v1056 = vsub.f32 %v995, %v1052
        %v1057 = vsub.f32 %v1045, %v1055
        %v1058 = vmul.f32 %v1056, 1.442695
        %v1059 = vpow.pop %v1058
        %v1060 = vmul.f32 %v1057, 1.442695
        %v1061 = vpow.pop %v1060
        %v1062 = vsel %vm831, %v1059, 0.0
        %1063 = vadd.xlane.f32.xlu0 %v1062
        %v1064 = vpop.xlane.xlu0 %1063
        %v1065 = vsel %vm831, %v1061, 0.0
        %1066 = vadd.xlane.f32.xlu0 %v1065
        %v1067 = vpop.xlane.xlu0 %1066
        %v1068 = vrcp.pop %v1064
        %v1069 = vrcp.pop %v1067
        %v1070 = vmul.f32 %v1059, %v1068
        %v1071 = vmul.f32 %v1061, %v1069
        %v1072 = vpack.c.bf16 %v1070, %v1070
        %v1073 = vpack.c.bf16 %v1071, %v1071
        %1074 = vrot.lane.b32.xlu0 %v736, 96
        %v1075 = vpop.permute.xlu0 %1074
        %v1077 = vsel %vm831, %v1072, 0
        %v1080 = vsel %vm859, %v1075, 0
        %1082 = vmatprep.subr.bf16.mxu0 0
        %1083 = vmatpush1.bf16.msra.mxu0 0
        %1084 = vmatprep.subr.bf16.mxu0 0
        %1085 = vmatpush1.bf16.msra.mxu0 0
        %1086 = vmatprep.subr.bf16.mxu0 0
        %1087 = vmatpush1.bf16.msra.mxu0 0
        %1088 = vmatprep.subr.bf16.mxu0 0
        %1089 = vmatpush1.bf16.msra.mxu0 0
        %1090 = vmatprep.subr.bf16.mxu0 0
        %1091 = vmatpush1.bf16.msra.mxu0 0
        %1092 = vmatprep.subr.bf16.mxu0 0
        %1093 = vmatpush1.bf16.msra.mxu0 0
        %1094 = vmatprep.subr.bf16.mxu0 0
        %1095 = vmatpush1.bf16.msra.mxu0 0
        %1096 = vmatprep.subr.bf16.mxu0 0
        %1097 = vmatpush1.bf16.msra.mxu0 %v1080
        %1098 = vmatprep.subr.bf16.mxu0 0
        %1099 = vmatpush2.bf16.msra.mxu0 0
        %1100 = vmatprep.subr.bf16.mxu0 0
        %1101 = vmatpush2.bf16.msra.mxu0 0
        %1102 = vmatprep.subr.bf16.mxu0 0
        %1103 = vmatpush2.bf16.msra.mxu0 0
        %1104 = vmatprep.subr.bf16.mxu0 0
        %1105 = vmatpush2.bf16.msra.mxu0 0
        %1106 = vmatprep.subr.bf16.mxu0 0
        %1107 = vmatpush2.bf16.msra.mxu0 0
        %1108 = vmatprep.subr.bf16.mxu0 0
        %1109 = vmatpush2.bf16.msra.mxu0 0
        %1110 = vmatprep.subr.bf16.mxu0 0
        %1111 = vmatpush2.bf16.msra.mxu0 0
        %1112 = vmatprep.subr.bf16.mxu0 0
        %1113 = vmatpush2.bf16.msra.mxu0 0
        %1114 = vmatprep.mubr.bf16.mxu0 0
        %1115 = vmatmul.mubr.bf16.gmra.mxu0 %v1077
        %v1116 = vpop.f32.mrf.mxu0
        %v1117 = vadd.f32 0.0, %v1116
        %v1118 = vpop.f32.mrf.mxu0
        %v1119 = vpop.f32.mrf.mxu0
        %v1120 = vpop.f32.mrf.mxu0
        %1121 = vdwg.mxu0
        %1122 = vrot.lane.b32.xlu0 %v737, 96
        %v1123 = vpop.permute.xlu0 %1122
        %v1125 = vsel %vm831, %v1073, 0
        %v1128 = vsel %vm859, %v1123, 0
        %1130 = vmatprep.subr.bf16.mxu0 0
        %1131 = vmatpush1.bf16.msra.mxu0 0
        %1132 = vmatprep.subr.bf16.mxu0 0
        %1133 = vmatpush1.bf16.msra.mxu0 0
        %1134 = vmatprep.subr.bf16.mxu0 0
        %1135 = vmatpush1.bf16.msra.mxu0 0
        %1136 = vmatprep.subr.bf16.mxu0 0
        %1137 = vmatpush1.bf16.msra.mxu0 0
        %1138 = vmatprep.subr.bf16.mxu0 0
        %1139 = vmatpush1.bf16.msra.mxu0 0
        %1140 = vmatprep.subr.bf16.mxu0 0
        %1141 = vmatpush1.bf16.msra.mxu0 0
        %1142 = vmatprep.subr.bf16.mxu0 0
        %1143 = vmatpush1.bf16.msra.mxu0 0
        %1144 = vmatprep.subr.bf16.mxu0 0
        %1145 = vmatpush1.bf16.msra.mxu0 %v1128
        %1146 = vmatprep.subr.bf16.mxu0 0
        %1147 = vmatpush2.bf16.msra.mxu0 0
        %1148 = vmatprep.subr.bf16.mxu0 0
        %1149 = vmatpush2.bf16.msra.mxu0 0
        %1150 = vmatprep.subr.bf16.mxu0 0
        %1151 = vmatpush2.bf16.msra.mxu0 0
        %1152 = vmatprep.subr.bf16.mxu0 0
        %1153 = vmatpush2.bf16.msra.mxu0 0
        %1154 = vmatprep.subr.bf16.mxu0 0
        %1155 = vmatpush2.bf16.msra.mxu0 0
        %1156 = vmatprep.subr.bf16.mxu0 0
        %1157 = vmatpush2.bf16.msra.mxu0 0
        %1158 = vmatprep.subr.bf16.mxu0 0
        %1159 = vmatpush2.bf16.msra.mxu0 0
        %1160 = vmatprep.subr.bf16.mxu0 0
        %1161 = vmatpush2.bf16.msra.mxu0 0
        %1162 = vmatprep.mubr.bf16.mxu0 0
        %1163 = vmatmul.mubr.bf16.gmra.mxu0 %v1125
        %v1164 = vpop.f32.mrf.mxu0
        %v1165 = vadd.f32 0.0, %v1164
        %v1166 = vpop.f32.mrf.mxu0
        %v1167 = vpop.f32.mrf.mxu0
        %v1168 = vpop.f32.mrf.mxu0
        %1169 = vdwg.mxu0
        %v1170 = vpack.c.bf16 %v1165, %v1117
        %1171 = vrot.lane.b32.xlu0 %v726, 64
        %v1172 = vpop.permute.xlu0 %1171
        %1173 = vrot.lane.b32.xlu0 %v731, 64
        %v1174 = vpop.permute.xlu0 %1173
        %v1176 = vsel %vm738, %v1172, 0
        %v1179 = vsel %vm738, %v1174, 0
        %1181 = vmatprep.subr.bf16.mxu0 0
        %1182 = vmatpush1.bf16.xpose.msra.mxu0 0
        %1183 = vmatprep.subr.bf16.mxu0 0
        %1184 = vmatpush1.bf16.xpose.msra.mxu0 0
        %1185 = vmatprep.subr.bf16.mxu0 0
        %1186 = vmatpush1.bf16.xpose.msra.mxu0 0
        %1187 = vmatprep.subr.bf16.mxu0 0
        %1188 = vmatpush1.bf16.xpose.msra.mxu0 0
        %1189 = vmatprep.subr.bf16.mxu0 0
        %1190 = vmatpush1.bf16.xpose.msra.mxu0 0
        %1191 = vmatprep.subr.bf16.mxu0 0
        %1192 = vmatpush1.bf16.xpose.msra.mxu0 0
        %1193 = vmatprep.subr.bf16.mxu0 0
        %1194 = vmatpush1.bf16.xpose.msra.mxu0 0
        %1195 = vmatprep.subr.bf16.mxu0 0
        %1196 = vmatpush1.bf16.xpose.msra.mxu0 %v1179
        %1197 = vmatprep.subr.bf16.mxu0 0
        %1198 = vmatpush2.bf16.xpose.msra.mxu0 0
        %1199 = vmatprep.subr.bf16.mxu0 0
        %1200 = vmatpush2.bf16.xpose.msra.mxu0 0
        %1201 = vmatprep.subr.bf16.mxu0 0
        %1202 = vmatpush2.bf16.xpose.msra.mxu0 0
        %1203 = vmatprep.subr.bf16.mxu0 0
        %1204 = vmatpush2.bf16.xpose.msra.mxu0 0
        %1205 = vmatprep.subr.bf16.mxu0 0
        %1206 = vmatpush2.bf16.xpose.msra.mxu0 0
        %1207 = vmatprep.subr.bf16.mxu0 0
        %1208 = vmatpush2.bf16.xpose.msra.mxu0 0
        %1209 = vmatprep.subr.bf16.mxu0 0
        %1210 = vmatpush2.bf16.xpose.msra.mxu0 0
        %1211 = vmatprep.subr.bf16.mxu0 0
        %1212 = vmatpush2.bf16.xpose.msra.mxu0 0
        %1213 = vmatprep.mubr.bf16.mxu0 0
        %1214 = vmatmul.mubr.bf16.gmra.mxu0 %v1176
        %v1215 = vpop.f32.mrf.mxu0
        %v1216 = vadd.f32 0.0, %v1215
        %v1217 = vpop.f32.mrf.mxu0
        %v1218 = vpop.f32.mrf.mxu0
        %v1219 = vpop.f32.mrf.mxu0
        %1220 = vdwg.mxu0
        %1221 = vrot.lane.b32.xlu0 %v727, 64
        %v1222 = vpop.permute.xlu0 %1221
        %1223 = vrot.lane.b32.xlu0 %v732, 64
        %v1224 = vpop.permute.xlu0 %1223
        %v1226 = vsel %vm738, %v1222, 0
        %v1229 = vsel %vm738, %v1224, 0
        %1231 = vmatprep.subr.bf16.mxu0 0
        %1232 = vmatpush1.bf16.xpose.msra.mxu0 0
        %1233 = vmatprep.subr.bf16.mxu0 0
        %1234 = vmatpush1.bf16.xpose.msra.mxu0 0
        %1235 = vmatprep.subr.bf16.mxu0 0
        %1236 = vmatpush1.bf16.xpose.msra.mxu0 0
        %1237 = vmatprep.subr.bf16.mxu0 0
        %1238 = vmatpush1.bf16.xpose.msra.mxu0 0
        %1239 = vmatprep.subr.bf16.mxu0 0
        %1240 = vmatpush1.bf16.xpose.msra.mxu0 0
        %1241 = vmatprep.subr.bf16.mxu0 0
        %1242 = vmatpush1.bf16.xpose.msra.mxu0 0
        %1243 = vmatprep.subr.bf16.mxu0 0
        %1244 = vmatpush1.bf16.xpose.msra.mxu0 0
        %1245 = vmatprep.subr.bf16.mxu0 0
        %1246 = vmatpush1.bf16.xpose.msra.mxu0 %v1229
        %1247 = vmatprep.subr.bf16.mxu0 0
        %1248 = vmatpush2.bf16.xpose.msra.mxu0 0
        %1249 = vmatprep.subr.bf16.mxu0 0
        %1250 = vmatpush2.bf16.xpose.msra.mxu0 0
        %1251 = vmatprep.subr.bf16.mxu0 0
        %1252 = vmatpush2.bf16.xpose.msra.mxu0 0
        %1253 = vmatprep.subr.bf16.mxu0 0
        %1254 = vmatpush2.bf16.xpose.msra.mxu0 0
        %1255 = vmatprep.subr.bf16.mxu0 0
        %1256 = vmatpush2.bf16.xpose.msra.mxu0 0
        %1257 = vmatprep.subr.bf16.mxu0 0
        %1258 = vmatpush2.bf16.xpose.msra.mxu0 0
        %1259 = vmatprep.subr.bf16.mxu0 0
        %1260 = vmatpush2.bf16.xpose.msra.mxu0 0
        %1261 = vmatprep.subr.bf16.mxu0 0
        %1262 = vmatpush2.bf16.xpose.msra.mxu0 0
        %1263 = vmatprep.mubr.bf16.mxu0 0
        %1264 = vmatmul.mubr.bf16.gmra.mxu0 %v1226
        %v1265 = vpop.f32.mrf.mxu0
        %v1266 = vadd.f32 0.0, %v1265
        %v1267 = vpop.f32.mrf.mxu0
        %v1268 = vpop.f32.mrf.mxu0
        %v1269 = vpop.f32.mrf.mxu0
        %1270 = vdwg.mxu0
        %v1271 = vsel %vm831, %v1216, -inf
        %1272 = vmax.xlane.f32.xlu0 %v1271
        %v1273 = vpop.xlane.xlu0 %1272
        %v1274 = vsel %vm831, %v1266, -inf
        %1275 = vmax.xlane.f32.xlu0 %v1274
        %v1276 = vpop.xlane.xlu0 %1275
        %v1277 = vsub.f32 %v1216, %v1273
        %v1278 = vsub.f32 %v1266, %v1276
        %v1279 = vmul.f32 %v1277, 1.442695
        %v1280 = vpow.pop %v1279
        %v1281 = vmul.f32 %v1278, 1.442695
        %v1282 = vpow.pop %v1281
        %v1283 = vsel %vm831, %v1280, 0.0
        %1284 = vadd.xlane.f32.xlu0 %v1283
        %v1285 = vpop.xlane.xlu0 %1284
        %v1286 = vsel %vm831, %v1282, 0.0
        %1287 = vadd.xlane.f32.xlu0 %v1286
        %v1288 = vpop.xlane.xlu0 %1287
        %v1289 = vrcp.pop %v1285
        %v1290 = vrcp.pop %v1288
        %v1291 = vmul.f32 %v1280, %v1289
        %v1292 = vmul.f32 %v1282, %v1290
        %v1293 = vpack.c.bf16 %v1291, %v1291
        %v1294 = vpack.c.bf16 %v1292, %v1292
        %1295 = vrot.lane.b32.xlu0 %v736, 64
        %v1296 = vpop.permute.xlu0 %1295
        %v1298 = vsel %vm831, %v1293, 0
        %v1301 = vsel %vm859, %v1296, 0
        %1303 = vmatprep.subr.bf16.mxu0 0
        %1304 = vmatpush1.bf16.msra.mxu0 0
        %1305 = vmatprep.subr.bf16.mxu0 0
        %1306 = vmatpush1.bf16.msra.mxu0 0
        %1307 = vmatprep.subr.bf16.mxu0 0
        %1308 = vmatpush1.bf16.msra.mxu0 0
        %1309 = vmatprep.subr.bf16.mxu0 0
        %1310 = vmatpush1.bf16.msra.mxu0 0
        %1311 = vmatprep.subr.bf16.mxu0 0
        %1312 = vmatpush1.bf16.msra.mxu0 0
        %1313 = vmatprep.subr.bf16.mxu0 0
        %1314 = vmatpush1.bf16.msra.mxu0 0
        %1315 = vmatprep.subr.bf16.mxu0 0
        %1316 = vmatpush1.bf16.msra.mxu0 0
        %1317 = vmatprep.subr.bf16.mxu0 0
        %1318 = vmatpush1.bf16.msra.mxu0 %v1301
        %1319 = vmatprep.subr.bf16.mxu0 0
        %1320 = vmatpush2.bf16.msra.mxu0 0
        %1321 = vmatprep.subr.bf16.mxu0 0
        %1322 = vmatpush2.bf16.msra.mxu0 0
        %1323 = vmatprep.subr.bf16.mxu0 0
        %1324 = vmatpush2.bf16.msra.mxu0 0
        %1325 = vmatprep.subr.bf16.mxu0 0
        %1326 = vmatpush2.bf16.msra.mxu0 0
        %1327 = vmatprep.subr.bf16.mxu0 0
        %1328 = vmatpush2.bf16.msra.mxu0 0
        %1329 = vmatprep.subr.bf16.mxu0 0
        %1330 = vmatpush2.bf16.msra.mxu0 0
        %1331 = vmatprep.subr.bf16.mxu0 0
        %1332 = vmatpush2.bf16.msra.mxu0 0
        %1333 = vmatprep.subr.bf16.mxu0 0
        %1334 = vmatpush2.bf16.msra.mxu0 0
        %1335 = vmatprep.mubr.bf16.mxu0 0
        %1336 = vmatmul.mubr.bf16.gmra.mxu0 %v1298
        %v1337 = vpop.f32.mrf.mxu0
        %v1338 = vadd.f32 0.0, %v1337
        %v1339 = vpop.f32.mrf.mxu0
        %v1340 = vpop.f32.mrf.mxu0
        %v1341 = vpop.f32.mrf.mxu0
        %1342 = vdwg.mxu0
        %1343 = vrot.lane.b32.xlu0 %v737, 64
        %v1344 = vpop.permute.xlu0 %1343
        %v1346 = vsel %vm831, %v1294, 0
        %v1349 = vsel %vm859, %v1344, 0
        %1351 = vmatprep.subr.bf16.mxu0 0
        %1352 = vmatpush1.bf16.msra.mxu0 0
        %1353 = vmatprep.subr.bf16.mxu0 0
        %1354 = vmatpush1.bf16.msra.mxu0 0
        %1355 = vmatprep.subr.bf16.mxu0 0
        %1356 = vmatpush1.bf16.msra.mxu0 0
        %1357 = vmatprep.subr.bf16.mxu0 0
        %1358 = vmatpush1.bf16.msra.mxu0 0
        %1359 = vmatprep.subr.bf16.mxu0 0
        %1360 = vmatpush1.bf16.msra.mxu0 0
        %1361 = vmatprep.subr.bf16.mxu0 0
        %1362 = vmatpush1.bf16.msra.mxu0 0
        %1363 = vmatprep.subr.bf16.mxu0 0
        %1364 = vmatpush1.bf16.msra.mxu0 0
        %1365 = vmatprep.subr.bf16.mxu0 0
        %1366 = vmatpush1.bf16.msra.mxu0 %v1349
        %1367 = vmatprep.subr.bf16.mxu0 0
        %1368 = vmatpush2.bf16.msra.mxu0 0
        %1369 = vmatprep.subr.bf16.mxu0 0
        %1370 = vmatpush2.bf16.msra.mxu0 0
        %1371 = vmatprep.subr.bf16.mxu0 0
        %1372 = vmatpush2.bf16.msra.mxu0 0
        %1373 = vmatprep.subr.bf16.mxu0 0
        %1374 = vmatpush2.bf16.msra.mxu0 0
        %1375 = vmatprep.subr.bf16.mxu0 0
        %1376 = vmatpush2.bf16.msra.mxu0 0
        %1377 = vmatprep.subr.bf16.mxu0 0
        %1378 = vmatpush2.bf16.msra.mxu0 0
        %1379 = vmatprep.subr.bf16.mxu0 0
        %1380 = vmatpush2.bf16.msra.mxu0 0
        %1381 = vmatprep.subr.bf16.mxu0 0
        %1382 = vmatpush2.bf16.msra.mxu0 0
        %1383 = vmatprep.mubr.bf16.mxu0 0
        %1384 = vmatmul.mubr.bf16.gmra.mxu0 %v1346
        %v1385 = vpop.f32.mrf.mxu0
        %v1386 = vadd.f32 0.0, %v1385
        %v1387 = vpop.f32.mrf.mxu0
        %v1388 = vpop.f32.mrf.mxu0
        %v1389 = vpop.f32.mrf.mxu0
        %1390 = vdwg.mxu0
        %v1391 = vpack.c.bf16 %v1386, %v1338
        %1392 = vrot.lane.b32.xlu0 %v726, 32
        %v1393 = vpop.permute.xlu0 %1392
        %1394 = vrot.lane.b32.xlu0 %v731, 32
        %v1395 = vpop.permute.xlu0 %1394
        %v1397 = vsel %vm738, %v1393, 0
        %v1400 = vsel %vm738, %v1395, 0
        %1402 = vmatprep.subr.bf16.mxu0 0
        %1403 = vmatpush1.bf16.xpose.msra.mxu0 0
        %1404 = vmatprep.subr.bf16.mxu0 0
        %1405 = vmatpush1.bf16.xpose.msra.mxu0 0
        %1406 = vmatprep.subr.bf16.mxu0 0
        %1407 = vmatpush1.bf16.xpose.msra.mxu0 0
        %1408 = vmatprep.subr.bf16.mxu0 0
        %1409 = vmatpush1.bf16.xpose.msra.mxu0 0
        %1410 = vmatprep.subr.bf16.mxu0 0
        %1411 = vmatpush1.bf16.xpose.msra.mxu0 0
        %1412 = vmatprep.subr.bf16.mxu0 0
        %1413 = vmatpush1.bf16.xpose.msra.mxu0 0
        %1414 = vmatprep.subr.bf16.mxu0 0
        %1415 = vmatpush1.bf16.xpose.msra.mxu0 0
        %1416 = vmatprep.subr.bf16.mxu0 0
        %1417 = vmatpush1.bf16.xpose.msra.mxu0 %v1400
        %1418 = vmatprep.subr.bf16.mxu0 0
        %1419 = vmatpush2.bf16.xpose.msra.mxu0 0
        %1420 = vmatprep.subr.bf16.mxu0 0
        %1421 = vmatpush2.bf16.xpose.msra.mxu0 0
        %1422 = vmatprep.subr.bf16.mxu0 0
        %1423 = vmatpush2.bf16.xpose.msra.mxu0 0
        %1424 = vmatprep.subr.bf16.mxu0 0
        %1425 = vmatpush2.bf16.xpose.msra.mxu0 0
        %1426 = vmatprep.subr.bf16.mxu0 0
        %1427 = vmatpush2.bf16.xpose.msra.mxu0 0
        %1428 = vmatprep.subr.bf16.mxu0 0
        %1429 = vmatpush2.bf16.xpose.msra.mxu0 0
        %1430 = vmatprep.subr.bf16.mxu0 0
        %1431 = vmatpush2.bf16.xpose.msra.mxu0 0
        %1432 = vmatprep.subr.bf16.mxu0 0
        %1433 = vmatpush2.bf16.xpose.msra.mxu0 0
        %1434 = vmatprep.mubr.bf16.mxu0 0
        %1435 = vmatmul.mubr.bf16.gmra.mxu0 %v1397
        %v1436 = vpop.f32.mrf.mxu0
        %v1437 = vadd.f32 0.0, %v1436
        %v1438 = vpop.f32.mrf.mxu0
        %v1439 = vpop.f32.mrf.mxu0
        %v1440 = vpop.f32.mrf.mxu0
        %1441 = vdwg.mxu0
        %1442 = vrot.lane.b32.xlu0 %v727, 32
        %v1443 = vpop.permute.xlu0 %1442
        %1444 = vrot.lane.b32.xlu0 %v732, 32
        %v1445 = vpop.permute.xlu0 %1444
        %v1447 = vsel %vm738, %v1443, 0
        %v1450 = vsel %vm738, %v1445, 0
        %1452 = vmatprep.subr.bf16.mxu0 0
        %1453 = vmatpush1.bf16.xpose.msra.mxu0 0
        %1454 = vmatprep.subr.bf16.mxu0 0
        %1455 = vmatpush1.bf16.xpose.msra.mxu0 0
        %1456 = vmatprep.subr.bf16.mxu0 0
        %1457 = vmatpush1.bf16.xpose.msra.mxu0 0
        %1458 = vmatprep.subr.bf16.mxu0 0
        %1459 = vmatpush1.bf16.xpose.msra.mxu0 0
        %1460 = vmatprep.subr.bf16.mxu0 0
        %1461 = vmatpush1.bf16.xpose.msra.mxu0 0
        %1462 = vmatprep.subr.bf16.mxu0 0
        %1463 = vmatpush1.bf16.xpose.msra.mxu0 0
        %1464 = vmatprep.subr.bf16.mxu0 0
        %1465 = vmatpush1.bf16.xpose.msra.mxu0 0
        %1466 = vmatprep.subr.bf16.mxu0 0
        %1467 = vmatpush1.bf16.xpose.msra.mxu0 %v1450
        %1468 = vmatprep.subr.bf16.mxu0 0
        %1469 = vmatpush2.bf16.xpose.msra.mxu0 0
        %1470 = vmatprep.subr.bf16.mxu0 0
        %1471 = vmatpush2.bf16.xpose.msra.mxu0 0
        %1472 = vmatprep.subr.bf16.mxu0 0
        %1473 = vmatpush2.bf16.xpose.msra.mxu0 0
        %1474 = vmatprep.subr.bf16.mxu0 0
        %1475 = vmatpush2.bf16.xpose.msra.mxu0 0
        %1476 = vmatprep.subr.bf16.mxu0 0
        %1477 = vmatpush2.bf16.xpose.msra.mxu0 0
        %1478 = vmatprep.subr.bf16.mxu0 0
        %1479 = vmatpush2.bf16.xpose.msra.mxu0 0
        %1480 = vmatprep.subr.bf16.mxu0 0
        %1481 = vmatpush2.bf16.xpose.msra.mxu0 0
        %1482 = vmatprep.subr.bf16.mxu0 0
        %1483 = vmatpush2.bf16.xpose.msra.mxu0 0
        %1484 = vmatprep.mubr.bf16.mxu0 0
        %1485 = vmatmul.mubr.bf16.gmra.mxu0 %v1447
        %v1486 = vpop.f32.mrf.mxu0
        %v1487 = vadd.f32 0.0, %v1486
        %v1488 = vpop.f32.mrf.mxu0
        %v1489 = vpop.f32.mrf.mxu0
        %v1490 = vpop.f32.mrf.mxu0
        %1491 = vdwg.mxu0
        %v1492 = vsel %vm831, %v1437, -inf
        %1493 = vmax.xlane.f32.xlu0 %v1492
        %v1494 = vpop.xlane.xlu0 %1493
        %v1495 = vsel %vm831, %v1487, -inf
        %1496 = vmax.xlane.f32.xlu0 %v1495
        %v1497 = vpop.xlane.xlu0 %1496
        %v1498 = vsub.f32 %v1437, %v1494
        %v1499 = vsub.f32 %v1487, %v1497
        %v1500 = vmul.f32 %v1498, 1.442695
        %v1501 = vpow.pop %v1500
        %v1502 = vmul.f32 %v1499, 1.442695
        %v1503 = vpow.pop %v1502
        %v1504 = vsel %vm831, %v1501, 0.0
        %1505 = vadd.xlane.f32.xlu0 %v1504
        %v1506 = vpop.xlane.xlu0 %1505
        %v1507 = vsel %vm831, %v1503, 0.0
        %1508 = vadd.xlane.f32.xlu0 %v1507
        %v1509 = vpop.xlane.xlu0 %1508
        %v1510 = vrcp.pop %v1506
        %v1511 = vrcp.pop %v1509
        %v1512 = vmul.f32 %v1501, %v1510
        %v1513 = vmul.f32 %v1503, %v1511
        %v1514 = vpack.c.bf16 %v1512, %v1512
        %v1515 = vpack.c.bf16 %v1513, %v1513
        %1516 = vrot.lane.b32.xlu0 %v736, 32
        %v1517 = vpop.permute.xlu0 %1516
        %v1519 = vsel %vm831, %v1514, 0
        %v1522 = vsel %vm859, %v1517, 0
        %1524 = vmatprep.subr.bf16.mxu0 0
        %1525 = vmatpush1.bf16.msra.mxu0 0
        %1526 = vmatprep.subr.bf16.mxu0 0
        %1527 = vmatpush1.bf16.msra.mxu0 0
        %1528 = vmatprep.subr.bf16.mxu0 0
        %1529 = vmatpush1.bf16.msra.mxu0 0
        %1530 = vmatprep.subr.bf16.mxu0 0
        %1531 = vmatpush1.bf16.msra.mxu0 0
        %1532 = vmatprep.subr.bf16.mxu0 0
        %1533 = vmatpush1.bf16.msra.mxu0 0
        %1534 = vmatprep.subr.bf16.mxu0 0
        %1535 = vmatpush1.bf16.msra.mxu0 0
        %1536 = vmatprep.subr.bf16.mxu0 0
        %1537 = vmatpush1.bf16.msra.mxu0 0
        %1538 = vmatprep.subr.bf16.mxu0 0
        %1539 = vmatpush1.bf16.msra.mxu0 %v1522
        %1540 = vmatprep.subr.bf16.mxu0 0
        %1541 = vmatpush2.bf16.msra.mxu0 0
        %1542 = vmatprep.subr.bf16.mxu0 0
        %1543 = vmatpush2.bf16.msra.mxu0 0
        %1544 = vmatprep.subr.bf16.mxu0 0
        %1545 = vmatpush2.bf16.msra.mxu0 0
        %1546 = vmatprep.subr.bf16.mxu0 0
        %1547 = vmatpush2.bf16.msra.mxu0 0
        %1548 = vmatprep.subr.bf16.mxu0 0
        %1549 = vmatpush2.bf16.msra.mxu0 0
        %1550 = vmatprep.subr.bf16.mxu0 0
        %1551 = vmatpush2.bf16.msra.mxu0 0
        %1552 = vmatprep.subr.bf16.mxu0 0
        %1553 = vmatpush2.bf16.msra.mxu0 0
        %1554 = vmatprep.subr.bf16.mxu0 0
        %1555 = vmatpush2.bf16.msra.mxu0 0
        %1556 = vmatprep.mubr.bf16.mxu0 0
        %1557 = vmatmul.mubr.bf16.gmra.mxu0 %v1519
        %v1558 = vpop.f32.mrf.mxu0
        %v1559 = vadd.f32 0.0, %v1558
        %v1560 = vpop.f32.mrf.mxu0
        %v1561 = vpop.f32.mrf.mxu0
        %v1562 = vpop.f32.mrf.mxu0
        %1563 = vdwg.mxu0
        %1564 = vrot.lane.b32.xlu0 %v737, 32
        %v1565 = vpop.permute.xlu0 %1564
        %v1567 = vsel %vm831, %v1515, 0
        %v1570 = vsel %vm859, %v1565, 0
        %1572 = vmatprep.subr.bf16.mxu0 0
        %1573 = vmatpush1.bf16.msra.mxu0 0
        %1574 = vmatprep.subr.bf16.mxu0 0
        %1575 = vmatpush1.bf16.msra.mxu0 0
        %1576 = vmatprep.subr.bf16.mxu0 0
        %1577 = vmatpush1.bf16.msra.mxu0 0
        %1578 = vmatprep.subr.bf16.mxu0 0
        %1579 = vmatpush1.bf16.msra.mxu0 0
        %1580 = vmatprep.subr.bf16.mxu0 0
        %1581 = vmatpush1.bf16.msra.mxu0 0
        %1582 = vmatprep.subr.bf16.mxu0 0
        %1583 = vmatpush1.bf16.msra.mxu0 0
        %1584 = vmatprep.subr.bf16.mxu0 0
        %1585 = vmatpush1.bf16.msra.mxu0 0
        %1586 = vmatprep.subr.bf16.mxu0 0
        %1587 = vmatpush1.bf16.msra.mxu0 %v1570
        %1588 = vmatprep.subr.bf16.mxu0 0
        %1589 = vmatpush2.bf16.msra.mxu0 0
        %1590 = vmatprep.subr.bf16.mxu0 0
        %1591 = vmatpush2.bf16.msra.mxu0 0
        %1592 = vmatprep.subr.bf16.mxu0 0
        %1593 = vmatpush2.bf16.msra.mxu0 0
        %1594 = vmatprep.subr.bf16.mxu0 0
        %1595 = vmatpush2.bf16.msra.mxu0 0
        %1596 = vmatprep.subr.bf16.mxu0 0
        %1597 = vmatpush2.bf16.msra.mxu0 0
        %1598 = vmatprep.subr.bf16.mxu0 0
        %1599 = vmatpush2.bf16.msra.mxu0 0
        %1600 = vmatprep.subr.bf16.mxu0 0
        %1601 = vmatpush2.bf16.msra.mxu0 0
        %1602 = vmatprep.subr.bf16.mxu0 0
        %1603 = vmatpush2.bf16.msra.mxu0 0
        %1604 = vmatprep.mubr.bf16.mxu0 0
        %1605 = vmatmul.mubr.bf16.gmra.mxu0 %v1567
        %v1606 = vpop.f32.mrf.mxu0
        %v1607 = vadd.f32 0.0, %v1606
        %v1608 = vpop.f32.mrf.mxu0
        %v1609 = vpop.f32.mrf.mxu0
        %v1610 = vpop.f32.mrf.mxu0
        %1611 = vdwg.mxu0
        %v1612 = vpack.c.bf16 %v1607, %v1559
        %1614 = vrot.lane.b32.xlu0 %v1170, 32
        %v1615 = vpop.permute.xlu0 %1614
        %1617 = vrot.lane.b32.xlu0 %v1391, 64
        %v1618 = vpop.permute.xlu0 %1617
        %1620 = vrot.lane.b32.xlu0 %v1612, 96
        %v1621 = vpop.permute.xlu0 %1620
        %v1624 = vsel %vm738, %v949, %v1615
        %vm1625 = vcmask 523264
        %v1627 = vsel %vm1625, %v1624, %v1618
        %vm1628 = vcmask 785408
        %v1630 = vsel %vm1628, %v1627, %v1621
        %v1632 = vld [vmem:[#allocation7] sm:$0xf]
        %v1633 = vld [vmem:[#allocation7 + $0x4] sm:$0xf]
        %v1634 = vld [vmem:[#allocation7 + $0x8] sm:$0xf]
        %v1635 = vld [vmem:[#allocation7 + $0xc] sm:$0xf]
        %v1636 = vld [vmem:[#allocation7 + $0x10] sm:$0xf]
        %v1637 = vld [vmem:[#allocation7 + $0x14] sm:$0xf]
        %v1638 = vld [vmem:[#allocation7 + $0x18] sm:$0xf]
        %v1639 = vld [vmem:[#allocation7 + $0x1c] sm:$0xf]
        %v1640 = vld [vmem:[#allocation7 + $0x20] sm:$0xf]
        %v1641 = vld [vmem:[#allocation7 + $0x24] sm:$0xf]
        %v1642 = vld [vmem:[#allocation7 + $0x28] sm:$0xf]
        %v1643 = vld [vmem:[#allocation7 + $0x2c] sm:$0xf]
        %v1644 = vld [vmem:[#allocation7 + $0x30] sm:$0xf]
        %v1645 = vld [vmem:[#allocation7 + $0x34] sm:$0xf]
        %v1646 = vld [vmem:[#allocation7 + $0x38] sm:$0xf]
        %v1647 = vld [vmem:[#allocation7 + $0x3c] sm:$0xf]
        %v1648 = vld [vmem:[%s3] sm:$0x1]
        %v1650 = vlaneseq
        %v1651 = vshrl.u32 %v1650, 7
        %v1652 = vsub.s32 0, %v1651
        %v1653 = vrot.slane %v1648, %v1652
        %v1671 = vunpack.c.l.b16 %v1632
        %v1672 = vunpack.c.l.b16 %v1633
        %v1673 = vunpack.c.l.b16 %v1634
        %v1674 = vunpack.c.l.b16 %v1635
        %v1675 = vunpack.c.l.b16 %v1636
        %v1676 = vunpack.c.l.b16 %v1637
        %v1677 = vunpack.c.l.b16 %v1638
        %v1678 = vunpack.c.l.b16 %v1639
        %v1679 = vunpack.c.l.b16 %v1640
        %v1680 = vunpack.c.l.b16 %v1641
        %v1681 = vunpack.c.l.b16 %v1642
        %v1682 = vunpack.c.l.b16 %v1643
        %v1683 = vunpack.c.l.b16 %v1644
        %v1684 = vunpack.c.l.b16 %v1645
        %v1685 = vunpack.c.l.b16 %v1646
        %v1686 = vunpack.c.l.b16 %v1647
        %v1687 = vpack.c.b16 %v1672, %v1671
        %v1688 = vpack.c.b16 %v1674, %v1673
        %v1689 = vpack.c.b16 %v1676, %v1675
        %v1690 = vpack.c.b16 %v1678, %v1677
        %v1691 = vpack.c.b16 %v1680, %v1679
        %v1692 = vpack.c.b16 %v1682, %v1681
        %v1693 = vpack.c.b16 %v1684, %v1683
        %v1694 = vpack.c.b16 %v1686, %v1685
        %1703 = vmatprep.subr.bf16.mxu0 0
        %1704 = vmatpush1.bf16.msra.mxu0 %v1694
        %1705 = vmatprep.subr.bf16.mxu0 0
        %1706 = vmatpush1.bf16.msra.mxu0 %v1693
        %1707 = vmatprep.subr.bf16.mxu0 0
        %1708 = vmatpush1.bf16.msra.mxu0 %v1692
        %1709 = vmatprep.subr.bf16.mxu0 0
        %1710 = vmatpush1.bf16.msra.mxu0 %v1691
        %1711 = vmatprep.subr.bf16.mxu0 0
        %1712 = vmatpush1.bf16.msra.mxu0 %v1690
        %1713 = vmatprep.subr.bf16.mxu0 0
        %1714 = vmatpush1.bf16.msra.mxu0 %v1689
        %1715 = vmatprep.subr.bf16.mxu0 0
        %1716 = vmatpush1.bf16.msra.mxu0 %v1688
        %1717 = vmatprep.subr.bf16.mxu0 0
        %1718 = vmatpush1.bf16.msra.mxu0 %v1687
        %1719 = vmatprep.subr.bf16.mxu0 0
        %1720 = vmatpush2.bf16.msra.mxu0 0
        %1721 = vmatprep.subr.bf16.mxu0 0
        %1722 = vmatpush2.bf16.msra.mxu0 0
        %1723 = vmatprep.subr.bf16.mxu0 0
        %1724 = vmatpush2.bf16.msra.mxu0 0
        %1725 = vmatprep.subr.bf16.mxu0 0
        %1726 = vmatpush2.bf16.msra.mxu0 0
        %1727 = vmatprep.subr.bf16.mxu0 0
        %1728 = vmatpush2.bf16.msra.mxu0 0
        %1729 = vmatprep.subr.bf16.mxu0 0
        %1730 = vmatpush2.bf16.msra.mxu0 0
        %1731 = vmatprep.subr.bf16.mxu0 0
        %1732 = vmatpush2.bf16.msra.mxu0 0
        %1733 = vmatprep.subr.bf16.mxu0 0
        %1734 = vmatpush2.bf16.msra.mxu0 0
        %1735 = vmatprep.mubr.bf16.mxu0 0
        %1736 = vmatmul.mubr.bf16.gmra.mxu0 %v1630
        %v1737 = vpop.f32.mrf.mxu0
        %v1738 = vadd.f32 %v1653, %v1737
        %v1739 = vpop.f32.mrf.mxu0
        %v1740 = vpop.f32.mrf.mxu0
        %v1741 = vadd.f32 %v1653, %v1740
        %v1742 = vpop.f32.mrf.mxu0
        %1743 = vdwg.mxu0
        %v1744 = vpack.c.bf16 %v1741, %v1738
        %v1745 = vld [vmem:[#allocation8] sm:$0xf]
        %v1746 = vld [vmem:[#allocation8 + $0x4] sm:$0xf]
        %v1747 = vld [vmem:[#allocation8 + $0x8] sm:$0xf]
        %v1748 = vld [vmem:[#allocation8 + $0xc] sm:$0xf]
        %v1749 = vld [vmem:[#allocation8 + $0x10] sm:$0xf]
        %v1750 = vld [vmem:[#allocation8 + $0x14] sm:$0xf]
        %v1751 = vld [vmem:[#allocation8 + $0x18] sm:$0xf]
        %v1752 = vld [vmem:[#allocation8 + $0x1c] sm:$0xf]
        %v1753 = vld [vmem:[#allocation8 + $0x20] sm:$0xf]
        %v1754 = vld [vmem:[#allocation8 + $0x24] sm:$0xf]
        %v1755 = vld [vmem:[#allocation8 + $0x28] sm:$0xf]
        %v1756 = vld [vmem:[#allocation8 + $0x2c] sm:$0xf]
        %v1757 = vld [vmem:[#allocation8 + $0x30] sm:$0xf]
        %v1758 = vld [vmem:[#allocation8 + $0x34] sm:$0xf]
        %v1759 = vld [vmem:[#allocation8 + $0x38] sm:$0xf]
        %v1760 = vld [vmem:[#allocation8 + $0x3c] sm:$0xf]
        %v1777 = vunpack.c.l.b16 %v1745
        %v1778 = vunpack.c.l.b16 %v1746
        %v1779 = vunpack.c.l.b16 %v1747
        %v1780 = vunpack.c.l.b16 %v1748
        %v1781 = vunpack.c.l.b16 %v1749
        %v1782 = vunpack.c.l.b16 %v1750
        %v1783 = vunpack.c.l.b16 %v1751
        %v1784 = vunpack.c.l.b16 %v1752
        %v1785 = vunpack.c.l.b16 %v1753
        %v1786 = vunpack.c.l.b16 %v1754
        %v1787 = vunpack.c.l.b16 %v1755
        %v1788 = vunpack.c.l.b16 %v1756
        %v1789 = vunpack.c.l.b16 %v1757
        %v1790 = vunpack.c.l.b16 %v1758
        %v1791 = vunpack.c.l.b16 %v1759
        %v1792 = vunpack.c.l.b16 %v1760
        %v1793 = vpack.c.b16 %v1778, %v1777
        %v1794 = vpack.c.b16 %v1780, %v1779
        %v1795 = vpack.c.b16 %v1782, %v1781
        %v1796 = vpack.c.b16 %v1784, %v1783
        %v1797 = vpack.c.b16 %v1786, %v1785
        %v1798 = vpack.c.b16 %v1788, %v1787
        %v1799 = vpack.c.b16 %v1790, %v1789
        %v1800 = vpack.c.b16 %v1792, %v1791
        %1809 = vmatprep.subr.bf16.mxu0 0
        %1810 = vmatpush1.bf16.msra.mxu0 %v1800
        %1811 = vmatprep.subr.bf16.mxu0 0
        %1812 = vmatpush1.bf16.msra.mxu0 %v1799
        %1813 = vmatprep.subr.bf16.mxu0 0
        %1814 = vmatpush1.bf16.msra.mxu0 %v1798
        %1815 = vmatprep.subr.bf16.mxu0 0
        %1816 = vmatpush1.bf16.msra.mxu0 %v1797
        %1817 = vmatprep.subr.bf16.mxu0 0
        %1818 = vmatpush1.bf16.msra.mxu0 %v1796
        %1819 = vmatprep.subr.bf16.mxu0 0
        %1820 = vmatpush1.bf16.msra.mxu0 %v1795
        %1821 = vmatprep.subr.bf16.mxu0 0
        %1822 = vmatpush1.bf16.msra.mxu0 %v1794
        %1823 = vmatprep.subr.bf16.mxu0 0
        %1824 = vmatpush1.bf16.msra.mxu0 %v1793
        %1825 = vmatprep.subr.bf16.mxu0 0
        %1826 = vmatpush2.bf16.msra.mxu0 0
        %1827 = vmatprep.subr.bf16.mxu0 0
        %1828 = vmatpush2.bf16.msra.mxu0 0
        %1829 = vmatprep.subr.bf16.mxu0 0
        %1830 = vmatpush2.bf16.msra.mxu0 0
        %1831 = vmatprep.subr.bf16.mxu0 0
        %1832 = vmatpush2.bf16.msra.mxu0 0
        %1833 = vmatprep.subr.bf16.mxu0 0
        %1834 = vmatpush2.bf16.msra.mxu0 0
        %1835 = vmatprep.subr.bf16.mxu0 0
        %1836 = vmatpush2.bf16.msra.mxu0 0
        %1837 = vmatprep.subr.bf16.mxu0 0
        %1838 = vmatpush2.bf16.msra.mxu0 0
        %1839 = vmatprep.subr.bf16.mxu0 0
        %1840 = vmatpush2.bf16.msra.mxu0 0
        %1841 = vmatprep.mubr.bf16.mxu0 0
        %1842 = vmatmul.mubr.bf16.gmra.mxu0 %v1744
        %v1843 = vpop.f32.mrf.mxu0
        %v1844 = vadd.f32 0.0, %v1843
        %v1845 = vpop.f32.mrf.mxu0
        %v1846 = vpop.f32.mrf.mxu0
        %v1847 = vadd.f32 0.0, %v1846
        %v1848 = vpop.f32.mrf.mxu0
        %1849 = vdwg.mxu0
        %v1850 = vpack.c.bf16 %v1847, %v1844
        %v1851 = vld [vmem:[#allocation10] sm:$0xff]
        %v1852 = vld [vmem:[#allocation10 + $0x8] sm:$0xff]
        %v1853 = vld [vmem:[#allocation10 + $0x10] sm:$0xff]
        %v1854 = vld [vmem:[#allocation10 + $0x18] sm:$0xff]
        %v1855 = vld [vmem:[#allocation10 + $0x20] sm:$0xff]
        %v1856 = vld [vmem:[#allocation10 + $0x28] sm:$0xff]
        %v1857 = vld [vmem:[#allocation10 + $0x30] sm:$0xff]
        %v1858 = vld [vmem:[#allocation10 + $0x38] sm:$0xff]
        %v1859 = vld [vmem:[#allocation10 + $0x40] sm:$0xff]
        %v1860 = vld [vmem:[#allocation10 + $0x48] sm:$0xff]
        %v1861 = vld [vmem:[#allocation10 + $0x50] sm:$0xff]
        %v1862 = vld [vmem:[#allocation10 + $0x58] sm:$0xff]
        %v1863 = vld [vmem:[#allocation10 + $0x60] sm:$0xff]
        %v1864 = vld [vmem:[#allocation10 + $0x68] sm:$0xff]
        %v1865 = vld [vmem:[#allocation10 + $0x70] sm:$0xff]
        %v1866 = vld [vmem:[#allocation10 + $0x78] sm:$0xff]
        %v1883 = vunpack.c.l.b16 %v1851
        %v1884 = vunpack.c.h.b16 %v1851
        %v1885 = vunpack.c.l.b16 %v1852
        %v1886 = vunpack.c.h.b16 %v1852
        %v1887 = vunpack.c.l.b16 %v1853
        %v1888 = vunpack.c.h.b16 %v1853
        %v1889 = vunpack.c.l.b16 %v1854
        %v1890 = vunpack.c.h.b16 %v1854
        %v1891 = vunpack.c.l.b16 %v1855
        %v1892 = vunpack.c.h.b16 %v1855
        %v1893 = vunpack.c.l.b16 %v1856
        %v1894 = vunpack.c.h.b16 %v1856
        %v1895 = vunpack.c.l.b16 %v1857
        %v1896 = vunpack.c.h.b16 %v1857
        %v1897 = vunpack.c.l.b16 %v1858
        %v1898 = vunpack.c.h.b16 %v1858
        %v1899 = vunpack.c.l.b16 %v1859
        %v1900 = vunpack.c.h.b16 %v1859
        %v1901 = vunpack.c.l.b16 %v1860
        %v1902 = vunpack.c.h.b16 %v1860
        %v1903 = vunpack.c.l.b16 %v1861
        %v1904 = vunpack.c.h.b16 %v1861
        %v1905 = vunpack.c.l.b16 %v1862
        %v1906 = vunpack.c.h.b16 %v1862
        %v1907 = vunpack.c.l.b16 %v1863
        %v1908 = vunpack.c.h.b16 %v1863
        %v1909 = vunpack.c.l.b16 %v1864
        %v1910 = vunpack.c.h.b16 %v1864
        %v1911 = vunpack.c.l.b16 %v1865
        %v1912 = vunpack.c.h.b16 %v1865
        %v1913 = vunpack.c.l.b16 %v1866
        %v1914 = vunpack.c.h.b16 %v1866
        %v1915 = vpack.c.b16 %v1885, %v1883
        %v1916 = vpack.c.b16 %v1886, %v1884
        %v1917 = vpack.c.b16 %v1889, %v1887
        %v1918 = vpack.c.b16 %v1890, %v1888
        %v1919 = vpack.c.b16 %v1893, %v1891
        %v1920 = vpack.c.b16 %v1894, %v1892
        %v1921 = vpack.c.b16 %v1897, %v1895
        %v1922 = vpack.c.b16 %v1898, %v1896
        %v1923 = vpack.c.b16 %v1901, %v1899
        %v1924 = vpack.c.b16 %v1902, %v1900
        %v1925 = vpack.c.b16 %v1905, %v1903
        %v1926 = vpack.c.b16 %v1906, %v1904
        %v1927 = vpack.c.b16 %v1909, %v1907
        %v1928 = vpack.c.b16 %v1910, %v1908
        %v1929 = vpack.c.b16 %v1913, %v1911
        %v1930 = vpack.c.b16 %v1914, %v1912
        %1947 = vmatprep.subr.bf16.mxu0 %v1930
        %1948 = vmatpush1.bf16.msra.mxu0 %v1929
        %1949 = vmatprep.subr.bf16.mxu0 %v1928
        %1950 = vmatpush1.bf16.msra.mxu0 %v1927
        %1951 = vmatprep.subr.bf16.mxu0 %v1926
        %1952 = vmatpush1.bf16.msra.mxu0 %v1925
        %1953 = vmatprep.subr.bf16.mxu0 %v1924
        %1954 = vmatpush1.bf16.msra.mxu0 %v1923
        %1955 = vmatprep.subr.bf16.mxu0 %v1922
        %1956 = vmatpush1.bf16.msra.mxu0 %v1921
        %1957 = vmatprep.subr.bf16.mxu0 %v1920
        %1958 = vmatpush1.bf16.msra.mxu0 %v1919
        %1959 = vmatprep.subr.bf16.mxu0 %v1918
        %1960 = vmatpush1.bf16.msra.mxu0 %v1917
        %1961 = vmatprep.subr.bf16.mxu0 %v1916
        %1962 = vmatpush1.bf16.msra.mxu0 %v1915
        %1963 = vmatprep.subr.bf16.mxu0 0
        %1964 = vmatpush2.bf16.msra.mxu0 0
        %1965 = vmatprep.subr.bf16.mxu0 0
        %1966 = vmatpush2.bf16.msra.mxu0 0
        %1967 = vmatprep.subr.bf16.mxu0 0
        %1968 = vmatpush2.bf16.msra.mxu0 0
        %1969 = vmatprep.subr.bf16.mxu0 0
        %1970 = vmatpush2.bf16.msra.mxu0 0
        %1971 = vmatprep.subr.bf16.mxu0 0
        %1972 = vmatpush2.bf16.msra.mxu0 0
        %1973 = vmatprep.subr.bf16.mxu0 0
        %1974 = vmatpush2.bf16.msra.mxu0 0
        %1975 = vmatprep.subr.bf16.mxu0 0
        %1976 = vmatpush2.bf16.msra.mxu0 0
        %1977 = vmatprep.subr.bf16.mxu0 0
        %1978 = vmatpush2.bf16.msra.mxu0 0
        %1979 = vmatprep.mubr.bf16.mxu0 0
        %1980 = vmatmul.mubr.bf16.gmra.mxu0 %v506
        %v1981 = vpop.f32.mrf.mxu0
        %v1982 = vadd.f32 0.0, %v1981
        %v1983 = vpop.f32.mrf.mxu0
        %v1984 = vadd.f32 0.0, %v1983
        %v1985 = vpop.f32.mrf.mxu0
        %v1986 = vadd.f32 0.0, %v1985
        %v1987 = vpop.f32.mrf.mxu0
        %v1988 = vadd.f32 0.0, %v1987
        %1989 = vdwg.mxu0
        %v1990 = vpack.c.bf16 %v1986, %v1982
        %v1991 = vpack.c.bf16 %v1988, %v1984
        %v1993 = vunpack.c.l.b16 %v1850
        %v1994 = vunpack.c.h.b16 %v1850
        %v1995 = vpack.c.b16 %v1993, %v1993
        %v1996 = vpack.c.b16 %v1994, %v1994
        %v1998 = vunpack.c.l.b16 %v1990
        %v1999 = vunpack.c.h.b16 %v1990
        %v2000 = vpack.c.b16 %v1998, %v1998
        %v2001 = vpack.c.b16 %v1999, %v1999
        %v2003 = vunpack.c.l.b16 %v1991
        %v2004 = vunpack.c.h.b16 %v1991
        %v2005 = vpack.c.b16 %v2003, %v2003
        %v2006 = vpack.c.b16 %v2004, %v2004
        %v2008 = vsel %vm738, %v1995, 0
        %v2011 = vsel %vm738, %v2000, 0
        %2013 = vmatprep.subr.bf16.mxu0 0
        %2014 = vmatpush1.bf16.xpose.msra.mxu0 0
        %2015 = vmatprep.subr.bf16.mxu0 0
        %2016 = vmatpush1.bf16.xpose.msra.mxu0 0
        %2017 = vmatprep.subr.bf16.mxu0 0
        %2018 = vmatpush1.bf16.xpose.msra.mxu0 0
        %2019 = vmatprep.subr.bf16.mxu0 0
        %2020 = vmatpush1.bf16.xpose.msra.mxu0 0
        %2021 = vmatprep.subr.bf16.mxu0 0
        %2022 = vmatpush1.bf16.xpose.msra.mxu0 0
        %2023 = vmatprep.subr.bf16.mxu0 0
        %2024 = vmatpush1.bf16.xpose.msra.mxu0 0
        %2025 = vmatprep.subr.bf16.mxu0 0
        %2026 = vmatpush1.bf16.xpose.msra.mxu0 0
        %2027 = vmatprep.subr.bf16.mxu0 0
        %2028 = vmatpush1.bf16.xpose.msra.mxu0 %v2011
        %2029 = vmatprep.subr.bf16.mxu0 0
        %2030 = vmatpush2.bf16.xpose.msra.mxu0 0
        %2031 = vmatprep.subr.bf16.mxu0 0
        %2032 = vmatpush2.bf16.xpose.msra.mxu0 0
        %2033 = vmatprep.subr.bf16.mxu0 0
        %2034 = vmatpush2.bf16.xpose.msra.mxu0 0
        %2035 = vmatprep.subr.bf16.mxu0 0
        %2036 = vmatpush2.bf16.xpose.msra.mxu0 0
        %2037 = vmatprep.subr.bf16.mxu0 0
        %2038 = vmatpush2.bf16.xpose.msra.mxu0 0
        %2039 = vmatprep.subr.bf16.mxu0 0
        %2040 = vmatpush2.bf16.xpose.msra.mxu0 0
        %2041 = vmatprep.subr.bf16.mxu0 0
        %2042 = vmatpush2.bf16.xpose.msra.mxu0 0
        %2043 = vmatprep.subr.bf16.mxu0 0
        %2044 = vmatpush2.bf16.xpose.msra.mxu0 0
        %2045 = vmatprep.mubr.bf16.mxu0 0
        %2046 = vmatmul.mubr.bf16.gmra.mxu0 %v2008
        %v2047 = vpop.f32.mrf.mxu0
        %v2048 = vadd.f32 0.0, %v2047
        %v2049 = vpop.f32.mrf.mxu0
        %v2050 = vpop.f32.mrf.mxu0
        %v2051 = vpop.f32.mrf.mxu0
        %2052 = vdwg.mxu0
        %v2054 = vsel %vm738, %v1996, 0
        %v2057 = vsel %vm738, %v2001, 0
        %2059 = vmatprep.subr.bf16.mxu0 0
        %2060 = vmatpush1.bf16.xpose.msra.mxu0 0
        %2061 = vmatprep.subr.bf16.mxu0 0
        %2062 = vmatpush1.bf16.xpose.msra.mxu0 0
        %2063 = vmatprep.subr.bf16.mxu0 0
        %2064 = vmatpush1.bf16.xpose.msra.mxu0 0
        %2065 = vmatprep.subr.bf16.mxu0 0
        %2066 = vmatpush1.bf16.xpose.msra.mxu0 0
        %2067 = vmatprep.subr.bf16.mxu0 0
        %2068 = vmatpush1.bf16.xpose.msra.mxu0 0
        %2069 = vmatprep.subr.bf16.mxu0 0
        %2070 = vmatpush1.bf16.xpose.msra.mxu0 0
        %2071 = vmatprep.subr.bf16.mxu0 0
        %2072 = vmatpush1.bf16.xpose.msra.mxu0 0
        %2073 = vmatprep.subr.bf16.mxu0 0
        %2074 = vmatpush1.bf16.xpose.msra.mxu0 %v2057
        %2075 = vmatprep.subr.bf16.mxu0 0
        %2076 = vmatpush2.bf16.xpose.msra.mxu0 0
        %2077 = vmatprep.subr.bf16.mxu0 0
        %2078 = vmatpush2.bf16.xpose.msra.mxu0 0
        %2079 = vmatprep.subr.bf16.mxu0 0
        %2080 = vmatpush2.bf16.xpose.msra.mxu0 0
        %2081 = vmatprep.subr.bf16.mxu0 0
        %2082 = vmatpush2.bf16.xpose.msra.mxu0 0
        %2083 = vmatprep.subr.bf16.mxu0 0
        %2084 = vmatpush2.bf16.xpose.msra.mxu0 0
        %2085 = vmatprep.subr.bf16.mxu0 0
        %2086 = vmatpush2.bf16.xpose.msra.mxu0 0
        %2087 = vmatprep.subr.bf16.mxu0 0
        %2088 = vmatpush2.bf16.xpose.msra.mxu0 0
        %2089 = vmatprep.subr.bf16.mxu0 0
        %2090 = vmatpush2.bf16.xpose.msra.mxu0 0
        %2091 = vmatprep.mubr.bf16.mxu0 0
        %2092 = vmatmul.mubr.bf16.gmra.mxu0 %v2054
        %v2093 = vpop.f32.mrf.mxu0
        %v2094 = vadd.f32 0.0, %v2093
        %v2095 = vpop.f32.mrf.mxu0
        %v2096 = vpop.f32.mrf.mxu0
        %v2097 = vpop.f32.mrf.mxu0
        %2098 = vdwg.mxu0
        %v2099 = vsel %vm831, %v2048, -inf
        %2100 = vmax.xlane.f32.xlu0 %v2099
        %v2101 = vpop.xlane.xlu0 %2100
        %v2102 = vsel %vm831, %v2094, -inf
        %2103 = vmax.xlane.f32.xlu0 %v2102
        %v2104 = vpop.xlane.xlu0 %2103
        %v2105 = vsub.f32 %v2048, %v2101
        %v2106 = vsub.f32 %v2094, %v2104
        %v2107 = vmul.f32 %v2105, 1.442695
        %v2108 = vpow.pop %v2107
        %v2109 = vmul.f32 %v2106, 1.442695
        %v2110 = vpow.pop %v2109
        %v2111 = vsel %vm831, %v2108, 0.0
        %2112 = vadd.xlane.f32.xlu0 %v2111
        %v2113 = vpop.xlane.xlu0 %2112
        %v2114 = vsel %vm831, %v2110, 0.0
        %2115 = vadd.xlane.f32.xlu0 %v2114
        %v2116 = vpop.xlane.xlu0 %2115
        %v2117 = vrcp.pop %v2113
        %v2118 = vrcp.pop %v2116
        %v2119 = vmul.f32 %v2108, %v2117
        %v2120 = vmul.f32 %v2110, %v2118
        %v2121 = vpack.c.bf16 %v2119, %v2119
        %v2122 = vpack.c.bf16 %v2120, %v2120
        %v2124 = vsel %vm831, %v2121, 0
        %v2127 = vsel %vm859, %v2005, 0
        %2129 = vmatprep.subr.bf16.mxu0 0
        %2130 = vmatpush1.bf16.msra.mxu0 0
        %2131 = vmatprep.subr.bf16.mxu0 0
        %2132 = vmatpush1.bf16.msra.mxu0 0
        %2133 = vmatprep.subr.bf16.mxu0 0
        %2134 = vmatpush1.bf16.msra.mxu0 0
        %2135 = vmatprep.subr.bf16.mxu0 0
        %2136 = vmatpush1.bf16.msra.mxu0 0
        %2137 = vmatprep.subr.bf16.mxu0 0
        %2138 = vmatpush1.bf16.msra.mxu0 0
        %2139 = vmatprep.subr.bf16.mxu0 0
        %2140 = vmatpush1.bf16.msra.mxu0 0
        %2141 = vmatprep.subr.bf16.mxu0 0
        %2142 = vmatpush1.bf16.msra.mxu0 0
        %2143 = vmatprep.subr.bf16.mxu0 0
        %2144 = vmatpush1.bf16.msra.mxu0 %v2127
        %2145 = vmatprep.subr.bf16.mxu0 0
        %2146 = vmatpush2.bf16.msra.mxu0 0
        %2147 = vmatprep.subr.bf16.mxu0 0
        %2148 = vmatpush2.bf16.msra.mxu0 0
        %2149 = vmatprep.subr.bf16.mxu0 0
        %2150 = vmatpush2.bf16.msra.mxu0 0
        %2151 = vmatprep.subr.bf16.mxu0 0
        %2152 = vmatpush2.bf16.msra.mxu0 0
        %2153 = vmatprep.subr.bf16.mxu0 0
        %2154 = vmatpush2.bf16.msra.mxu0 0
        %2155 = vmatprep.subr.bf16.mxu0 0
        %2156 = vmatpush2.bf16.msra.mxu0 0
        %2157 = vmatprep.subr.bf16.mxu0 0
        %2158 = vmatpush2.bf16.msra.mxu0 0
        %2159 = vmatprep.subr.bf16.mxu0 0
        %2160 = vmatpush2.bf16.msra.mxu0 0
        %2161 = vmatprep.mubr.bf16.mxu0 0
        %2162 = vmatmul.mubr.bf16.gmra.mxu0 %v2124
        %v2163 = vpop.f32.mrf.mxu0
        %v2164 = vadd.f32 0.0, %v2163
        %v2165 = vpop.f32.mrf.mxu0
        %v2166 = vpop.f32.mrf.mxu0
        %v2167 = vpop.f32.mrf.mxu0
        %2168 = vdwg.mxu0
        %v2170 = vsel %vm831, %v2122, 0
        %v2173 = vsel %vm859, %v2006, 0
        %2175 = vmatprep.subr.bf16.mxu0 0
        %2176 = vmatpush1.bf16.msra.mxu0 0
        %2177 = vmatprep.subr.bf16.mxu0 0
        %2178 = vmatpush1.bf16.msra.mxu0 0
        %2179 = vmatprep.subr.bf16.mxu0 0
        %2180 = vmatpush1.bf16.msra.mxu0 0
        %2181 = vmatprep.subr.bf16.mxu0 0
        %2182 = vmatpush1.bf16.msra.mxu0 0
        %2183 = vmatprep.subr.bf16.mxu0 0
        %2184 = vmatpush1.bf16.msra.mxu0 0
        %2185 = vmatprep.subr.bf16.mxu0 0
        %2186 = vmatpush1.bf16.msra.mxu0 0
        %2187 = vmatprep.subr.bf16.mxu0 0
        %2188 = vmatpush1.bf16.msra.mxu0 0
        %2189 = vmatprep.subr.bf16.mxu0 0
        %2190 = vmatpush1.bf16.msra.mxu0 %v2173
        %2191 = vmatprep.subr.bf16.mxu0 0
        %2192 = vmatpush2.bf16.msra.mxu0 0
        %2193 = vmatprep.subr.bf16.mxu0 0
        %2194 = vmatpush2.bf16.msra.mxu0 0
        %2195 = vmatprep.subr.bf16.mxu0 0
        %2196 = vmatpush2.bf16.msra.mxu0 0
        %2197 = vmatprep.subr.bf16.mxu0 0
        %2198 = vmatpush2.bf16.msra.mxu0 0
        %2199 = vmatprep.subr.bf16.mxu0 0
        %2200 = vmatpush2.bf16.msra.mxu0 0
        %2201 = vmatprep.subr.bf16.mxu0 0
        %2202 = vmatpush2.bf16.msra.mxu0 0
        %2203 = vmatprep.subr.bf16.mxu0 0
        %2204 = vmatpush2.bf16.msra.mxu0 0
        %2205 = vmatprep.subr.bf16.mxu0 0
        %2206 = vmatpush2.bf16.msra.mxu0 0
        %2207 = vmatprep.mubr.bf16.mxu0 0
        %2208 = vmatmul.mubr.bf16.gmra.mxu0 %v2170
        %v2209 = vpop.f32.mrf.mxu0
        %v2210 = vadd.f32 0.0, %v2209
        %v2211 = vpop.f32.mrf.mxu0
        %v2212 = vpop.f32.mrf.mxu0
        %v2213 = vpop.f32.mrf.mxu0
        %2214 = vdwg.mxu0
        %v2215 = vpack.c.bf16 %v2210, %v2164
        %2216 = vrot.lane.b32.xlu0 %v1995, 96
        %v2217 = vpop.permute.xlu0 %2216
        %2218 = vrot.lane.b32.xlu0 %v2000, 96
        %v2219 = vpop.permute.xlu0 %2218
        %v2221 = vsel %vm738, %v2217, 0
        %v2224 = vsel %vm738, %v2219, 0
        %2226 = vmatprep.subr.bf16.mxu0 0
        %2227 = vmatpush1.bf16.xpose.msra.mxu0 0
        %2228 = vmatprep.subr.bf16.mxu0 0
        %2229 = vmatpush1.bf16.xpose.msra.mxu0 0
        %2230 = vmatprep.subr.bf16.mxu0 0
        %2231 = vmatpush1.bf16.xpose.msra.mxu0 0
        %2232 = vmatprep.subr.bf16.mxu0 0
        %2233 = vmatpush1.bf16.xpose.msra.mxu0 0
        %2234 = vmatprep.subr.bf16.mxu0 0
        %2235 = vmatpush1.bf16.xpose.msra.mxu0 0
        %2236 = vmatprep.subr.bf16.mxu0 0
        %2237 = vmatpush1.bf16.xpose.msra.mxu0 0
        %2238 = vmatprep.subr.bf16.mxu0 0
        %2239 = vmatpush1.bf16.xpose.msra.mxu0 0
        %2240 = vmatprep.subr.bf16.mxu0 0
        %2241 = vmatpush1.bf16.xpose.msra.mxu0 %v2224
        %2242 = vmatprep.subr.bf16.mxu0 0
        %2243 = vmatpush2.bf16.xpose.msra.mxu0 0
        %2244 = vmatprep.subr.bf16.mxu0 0
        %2245 = vmatpush2.bf16.xpose.msra.mxu0 0
        %2246 = vmatprep.subr.bf16.mxu0 0
        %2247 = vmatpush2.bf16.xpose.msra.mxu0 0
        %2248 = vmatprep.subr.bf16.mxu0 0
        %2249 = vmatpush2.bf16.xpose.msra.mxu0 0
        %2250 = vmatprep.subr.bf16.mxu0 0
        %2251 = vmatpush2.bf16.xpose.msra.mxu0 0
        %2252 = vmatprep.subr.bf16.mxu0 0
        %2253 = vmatpush2.bf16.xpose.msra.mxu0 0
        %2254 = vmatprep.subr.bf16.mxu0 0
        %2255 = vmatpush2.bf16.xpose.msra.mxu0 0
        %2256 = vmatprep.subr.bf16.mxu0 0
        %2257 = vmatpush2.bf16.xpose.msra.mxu0 0
        %2258 = vmatprep.mubr.bf16.mxu0 0
        %2259 = vmatmul.mubr.bf16.gmra.mxu0 %v2221
        %v2260 = vpop.f32.mrf.mxu0
        %v2261 = vadd.f32 0.0, %v2260
        %v2262 = vpop.f32.mrf.mxu0
        %v2263 = vpop.f32.mrf.mxu0
        %v2264 = vpop.f32.mrf.mxu0
        %2265 = vdwg.mxu0
        %2266 = vrot.lane.b32.xlu0 %v1996, 96
        %v2267 = vpop.permute.xlu0 %2266
        %2268 = vrot.lane.b32.xlu0 %v2001, 96
        %v2269 = vpop.permute.xlu0 %2268
        %v2271 = vsel %vm738, %v2267, 0
        %v2274 = vsel %vm738, %v2269, 0
        %2276 = vmatprep.subr.bf16.mxu0 0
        %2277 = vmatpush1.bf16.xpose.msra.mxu0 0
        %2278 = vmatprep.subr.bf16.mxu0 0
        %2279 = vmatpush1.bf16.xpose.msra.mxu0 0
        %2280 = vmatprep.subr.bf16.mxu0 0
        %2281 = vmatpush1.bf16.xpose.msra.mxu0 0
        %2282 = vmatprep.subr.bf16.mxu0 0
        %2283 = vmatpush1.bf16.xpose.msra.mxu0 0
        %2284 = vmatprep.subr.bf16.mxu0 0
        %2285 = vmatpush1.bf16.xpose.msra.mxu0 0
        %2286 = vmatprep.subr.bf16.mxu0 0
        %2287 = vmatpush1.bf16.xpose.msra.mxu0 0
        %2288 = vmatprep.subr.bf16.mxu0 0
        %2289 = vmatpush1.bf16.xpose.msra.mxu0 0
        %2290 = vmatprep.subr.bf16.mxu0 0
        %2291 = vmatpush1.bf16.xpose.msra.mxu0 %v2274
        %2292 = vmatprep.subr.bf16.mxu0 0
        %2293 = vmatpush2.bf16.xpose.msra.mxu0 0
        %2294 = vmatprep.subr.bf16.mxu0 0
        %2295 = vmatpush2.bf16.xpose.msra.mxu0 0
        %2296 = vmatprep.subr.bf16.mxu0 0
        %2297 = vmatpush2.bf16.xpose.msra.mxu0 0
        %2298 = vmatprep.subr.bf16.mxu0 0
        %2299 = vmatpush2.bf16.xpose.msra.mxu0 0
        %2300 = vmatprep.subr.bf16.mxu0 0
        %2301 = vmatpush2.bf16.xpose.msra.mxu0 0
        %2302 = vmatprep.subr.bf16.mxu0 0
        %2303 = vmatpush2.bf16.xpose.msra.mxu0 0
        %2304 = vmatprep.subr.bf16.mxu0 0
        %2305 = vmatpush2.bf16.xpose.msra.mxu0 0
        %2306 = vmatprep.subr.bf16.mxu0 0
        %2307 = vmatpush2.bf16.xpose.msra.mxu0 0
        %2308 = vmatprep.mubr.bf16.mxu0 0
        %2309 = vmatmul.mubr.bf16.gmra.mxu0 %v2271
        %v2310 = vpop.f32.mrf.mxu0
        %v2311 = vadd.f32 0.0, %v2310
        %v2312 = vpop.f32.mrf.mxu0
        %v2313 = vpop.f32.mrf.mxu0
        %v2314 = vpop.f32.mrf.mxu0
        %2315 = vdwg.mxu0
        %v2316 = vsel %vm831, %v2261, -inf
        %2317 = vmax.xlane.f32.xlu0 %v2316
        %v2318 = vpop.xlane.xlu0 %2317
        %v2319 = vsel %vm831, %v2311, -inf
        %2320 = vmax.xlane.f32.xlu0 %v2319
        %v2321 = vpop.xlane.xlu0 %2320
        %v2322 = vsub.f32 %v2261, %v2318
        %v2323 = vsub.f32 %v2311, %v2321
        %v2324 = vmul.f32 %v2322, 1.442695
        %v2325 = vpow.pop %v2324
        %v2326 = vmul.f32 %v2323, 1.442695
        %v2327 = vpow.pop %v2326
        %v2328 = vsel %vm831, %v2325, 0.0
        %2329 = vadd.xlane.f32.xlu0 %v2328
        %v2330 = vpop.xlane.xlu0 %2329
        %v2331 = vsel %vm831, %v2327, 0.0
        %2332 = vadd.xlane.f32.xlu0 %v2331
        %v2333 = vpop.xlane.xlu0 %2332
        %v2334 = vrcp.pop %v2330
        %v2335 = vrcp.pop %v2333
        %v2336 = vmul.f32 %v2325, %v2334
        %v2337 = vmul.f32 %v2327, %v2335
        %v2338 = vpack.c.bf16 %v2336, %v2336
        %v2339 = vpack.c.bf16 %v2337, %v2337
        %2340 = vrot.lane.b32.xlu0 %v2005, 96
        %v2341 = vpop.permute.xlu0 %2340
        %v2343 = vsel %vm831, %v2338, 0
        %v2346 = vsel %vm859, %v2341, 0
        %2348 = vmatprep.subr.bf16.mxu0 0
        %2349 = vmatpush1.bf16.msra.mxu0 0
        %2350 = vmatprep.subr.bf16.mxu0 0
        %2351 = vmatpush1.bf16.msra.mxu0 0
        %2352 = vmatprep.subr.bf16.mxu0 0
        %2353 = vmatpush1.bf16.msra.mxu0 0
        %2354 = vmatprep.subr.bf16.mxu0 0
        %2355 = vmatpush1.bf16.msra.mxu0 0
        %2356 = vmatprep.subr.bf16.mxu0 0
        %2357 = vmatpush1.bf16.msra.mxu0 0
        %2358 = vmatprep.subr.bf16.mxu0 0
        %2359 = vmatpush1.bf16.msra.mxu0 0
        %2360 = vmatprep.subr.bf16.mxu0 0
        %2361 = vmatpush1.bf16.msra.mxu0 0
        %2362 = vmatprep.subr.bf16.mxu0 0
        %2363 = vmatpush1.bf16.msra.mxu0 %v2346
        %2364 = vmatprep.subr.bf16.mxu0 0
        %2365 = vmatpush2.bf16.msra.mxu0 0
        %2366 = vmatprep.subr.bf16.mxu0 0
        %2367 = vmatpush2.bf16.msra.mxu0 0
        %2368 = vmatprep.subr.bf16.mxu0 0
        %2369 = vmatpush2.bf16.msra.mxu0 0
        %2370 = vmatprep.subr.bf16.mxu0 0
        %2371 = vmatpush2.bf16.msra.mxu0 0
        %2372 = vmatprep.subr.bf16.mxu0 0
        %2373 = vmatpush2.bf16.msra.mxu0 0
        %2374 = vmatprep.subr.bf16.mxu0 0
        %2375 = vmatpush2.bf16.msra.mxu0 0
        %2376 = vmatprep.subr.bf16.mxu0 0
        %2377 = vmatpush2.bf16.msra.mxu0 0
        %2378 = vmatprep.subr.bf16.mxu0 0
        %2379 = vmatpush2.bf16.msra.mxu0 0
        %2380 = vmatprep.mubr.bf16.mxu0 0
        %2381 = vmatmul.mubr.bf16.gmra.mxu0 %v2343
        %v2382 = vpop.f32.mrf.mxu0
        %v2383 = vadd.f32 0.0, %v2382
        %v2384 = vpop.f32.mrf.mxu0
        %v2385 = vpop.f32.mrf.mxu0
        %v2386 = vpop.f32.mrf.mxu0
        %2387 = vdwg.mxu0
        %2388 = vrot.lane.b32.xlu0 %v2006, 96
        %v2389 = vpop.permute.xlu0 %2388
        %v2391 = vsel %vm831, %v2339, 0
        %v2394 = vsel %vm859, %v2389, 0
        %2396 = vmatprep.subr.bf16.mxu0 0
        %2397 = vmatpush1.bf16.msra.mxu0 0
        %2398 = vmatprep.subr.bf16.mxu0 0
        %2399 = vmatpush1.bf16.msra.mxu0 0
        %2400 = vmatprep.subr.bf16.mxu0 0
        %2401 = vmatpush1.bf16.msra.mxu0 0
        %2402 = vmatprep.subr.bf16.mxu0 0
        %2403 = vmatpush1.bf16.msra.mxu0 0
        %2404 = vmatprep.subr.bf16.mxu0 0
        %2405 = vmatpush1.bf16.msra.mxu0 0
        %2406 = vmatprep.subr.bf16.mxu0 0
        %2407 = vmatpush1.bf16.msra.mxu0 0
        %2408 = vmatprep.subr.bf16.mxu0 0
        %2409 = vmatpush1.bf16.msra.mxu0 0
        %2410 = vmatprep.subr.bf16.mxu0 0
        %2411 = vmatpush1.bf16.msra.mxu0 %v2394
        %2412 = vmatprep.subr.bf16.mxu0 0
        %2413 = vmatpush2.bf16.msra.mxu0 0
        %2414 = vmatprep.subr.bf16.mxu0 0
        %2415 = vmatpush2.bf16.msra.mxu0 0
        %2416 = vmatprep.subr.bf16.mxu0 0
        %2417 = vmatpush2.bf16.msra.mxu0 0
        %2418 = vmatprep.subr.bf16.mxu0 0
        %2419 = vmatpush2.bf16.msra.mxu0 0
        %2420 = vmatprep.subr.bf16.mxu0 0
        %2421 = vmatpush2.bf16.msra.mxu0 0
        %2422 = vmatprep.subr.bf16.mxu0 0
        %2423 = vmatpush2.bf16.msra.mxu0 0
        %2424 = vmatprep.subr.bf16.mxu0 0
        %2425 = vmatpush2.bf16.msra.mxu0 0
        %2426 = vmatprep.subr.bf16.mxu0 0
        %2427 = vmatpush2.bf16.msra.mxu0 0
        %2428 = vmatprep.mubr.bf16.mxu0 0
        %2429 = vmatmul.mubr.bf16.gmra.mxu0 %v2391
        %v2430 = vpop.f32.mrf.mxu0
        %v2431 = vadd.f32 0.0, %v2430
        %v2432 = vpop.f32.mrf.mxu0
        %v2433 = vpop.f32.mrf.mxu0
        %v2434 = vpop.f32.mrf.mxu0
        %2435 = vdwg.mxu0
        %v2436 = vpack.c.bf16 %v2431, %v2383
        %2437 = vrot.lane.b32.xlu0 %v1995, 64
        %v2438 = vpop.permute.xlu0 %2437
        %2439 = vrot.lane.b32.xlu0 %v2000, 64
        %v2440 = vpop.permute.xlu0 %2439
        %v2442 = vsel %vm738, %v2438, 0
        %v2445 = vsel %vm738, %v2440, 0
        %2447 = vmatprep.subr.bf16.mxu0 0
        %2448 = vmatpush1.bf16.xpose.msra.mxu0 0
        %2449 = vmatprep.subr.bf16.mxu0 0
        %2450 = vmatpush1.bf16.xpose.msra.mxu0 0
        %2451 = vmatprep.subr.bf16.mxu0 0
        %2452 = vmatpush1.bf16.xpose.msra.mxu0 0
        %2453 = vmatprep.subr.bf16.mxu0 0
        %2454 = vmatpush1.bf16.xpose.msra.mxu0 0
        %2455 = vmatprep.subr.bf16.mxu0 0
        %2456 = vmatpush1.bf16.xpose.msra.mxu0 0
        %2457 = vmatprep.subr.bf16.mxu0 0
        %2458 = vmatpush1.bf16.xpose.msra.mxu0 0
        %2459 = vmatprep.subr.bf16.mxu0 0
        %2460 = vmatpush1.bf16.xpose.msra.mxu0 0
        %2461 = vmatprep.subr.bf16.mxu0 0
        %2462 = vmatpush1.bf16.xpose.msra.mxu0 %v2445
        %2463 = vmatprep.subr.bf16.mxu0 0
        %2464 = vmatpush2.bf16.xpose.msra.mxu0 0
        %2465 = vmatprep.subr.bf16.mxu0 0
        %2466 = vmatpush2.bf16.xpose.msra.mxu0 0
        %2467 = vmatprep.subr.bf16.mxu0 0
        %2468 = vmatpush2.bf16.xpose.msra.mxu0 0
        %2469 = vmatprep.subr.bf16.mxu0 0
        %2470 = vmatpush2.bf16.xpose.msra.mxu0 0
        %2471 = vmatprep.subr.bf16.mxu0 0
        %2472 = vmatpush2.bf16.xpose.msra.mxu0 0
        %2473 = vmatprep.subr.bf16.mxu0 0
        %2474 = vmatpush2.bf16.xpose.msra.mxu0 0
        %2475 = vmatprep.subr.bf16.mxu0 0
        %2476 = vmatpush2.bf16.xpose.msra.mxu0 0
        %2477 = vmatprep.subr.bf16.mxu0 0
        %2478 = vmatpush2.bf16.xpose.msra.mxu0 0
        %2479 = vmatprep.mubr.bf16.mxu0 0
        %2480 = vmatmul.mubr.bf16.gmra.mxu0 %v2442
        %v2481 = vpop.f32.mrf.mxu0
        %v2482 = vadd.f32 0.0, %v2481
        %v2483 = vpop.f32.mrf.mxu0
        %v2484 = vpop.f32.mrf.mxu0
        %v2485 = vpop.f32.mrf.mxu0
        %2486 = vdwg.mxu0
        %2487 = vrot.lane.b32.xlu0 %v1996, 64
        %v2488 = vpop.permute.xlu0 %2487
        %2489 = vrot.lane.b32.xlu0 %v2001, 64
        %v2490 = vpop.permute.xlu0 %2489
        %v2492 = vsel %vm738, %v2488, 0
        %v2495 = vsel %vm738, %v2490, 0
        %2497 = vmatprep.subr.bf16.mxu0 0
        %2498 = vmatpush1.bf16.xpose.msra.mxu0 0
        %2499 = vmatprep.subr.bf16.mxu0 0
        %2500 = vmatpush1.bf16.xpose.msra.mxu0 0
        %2501 = vmatprep.subr.bf16.mxu0 0
        %2502 = vmatpush1.bf16.xpose.msra.mxu0 0
        %2503 = vmatprep.subr.bf16.mxu0 0
        %2504 = vmatpush1.bf16.xpose.msra.mxu0 0
        %2505 = vmatprep.subr.bf16.mxu0 0
        %2506 = vmatpush1.bf16.xpose.msra.mxu0 0
        %2507 = vmatprep.subr.bf16.mxu0 0
        %2508 = vmatpush1.bf16.xpose.msra.mxu0 0
        %2509 = vmatprep.subr.bf16.mxu0 0
        %2510 = vmatpush1.bf16.xpose.msra.mxu0 0
        %2511 = vmatprep.subr.bf16.mxu0 0
        %2512 = vmatpush1.bf16.xpose.msra.mxu0 %v2495
        %2513 = vmatprep.subr.bf16.mxu0 0
        %2514 = vmatpush2.bf16.xpose.msra.mxu0 0
        %2515 = vmatprep.subr.bf16.mxu0 0
        %2516 = vmatpush2.bf16.xpose.msra.mxu0 0
        %2517 = vmatprep.subr.bf16.mxu0 0
        %2518 = vmatpush2.bf16.xpose.msra.mxu0 0
        %2519 = vmatprep.subr.bf16.mxu0 0
        %2520 = vmatpush2.bf16.xpose.msra.mxu0 0
        %2521 = vmatprep.subr.bf16.mxu0 0
        %2522 = vmatpush2.bf16.xpose.msra.mxu0 0
        %2523 = vmatprep.subr.bf16.mxu0 0
        %2524 = vmatpush2.bf16.xpose.msra.mxu0 0
        %2525 = vmatprep.subr.bf16.mxu0 0
        %2526 = vmatpush2.bf16.xpose.msra.mxu0 0
        %2527 = vmatprep.subr.bf16.mxu0 0
        %2528 = vmatpush2.bf16.xpose.msra.mxu0 0
        %2529 = vmatprep.mubr.bf16.mxu0 0
        %2530 = vmatmul.mubr.bf16.gmra.mxu0 %v2492
        %v2531 = vpop.f32.mrf.mxu0
        %v2532 = vadd.f32 0.0, %v2531
        %v2533 = vpop.f32.mrf.mxu0
        %v2534 = vpop.f32.mrf.mxu0
        %v2535 = vpop.f32.mrf.mxu0
        %2536 = vdwg.mxu0
        %v2537 = vsel %vm831, %v2482, -inf
        %2538 = vmax.xlane.f32.xlu0 %v2537
        %v2539 = vpop.xlane.xlu0 %2538
        %v2540 = vsel %vm831, %v2532, -inf
        %2541 = vmax.xlane.f32.xlu0 %v2540
        %v2542 = vpop.xlane.xlu0 %2541
        %v2543 = vsub.f32 %v2482, %v2539
        %v2544 = vsub.f32 %v2532, %v2542
        %v2545 = vmul.f32 %v2543, 1.442695
        %v2546 = vpow.pop %v2545
        %v2547 = vmul.f32 %v2544, 1.442695
        %v2548 = vpow.pop %v2547
        %v2549 = vsel %vm831, %v2546, 0.0
        %2550 = vadd.xlane.f32.xlu0 %v2549
        %v2551 = vpop.xlane.xlu0 %2550
        %v2552 = vsel %vm831, %v2548, 0.0
        %2553 = vadd.xlane.f32.xlu0 %v2552
        %v2554 = vpop.xlane.xlu0 %2553
        %v2555 = vrcp.pop %v2551
        %v2556 = vrcp.pop %v2554
        %v2557 = vmul.f32 %v2546, %v2555
        %v2558 = vmul.f32 %v2548, %v2556
        %v2559 = vpack.c.bf16 %v2557, %v2557
        %v2560 = vpack.c.bf16 %v2558, %v2558
        %2561 = vrot.lane.b32.xlu0 %v2005, 64
        %v2562 = vpop.permute.xlu0 %2561
        %v2564 = vsel %vm831, %v2559, 0
        %v2567 = vsel %vm859, %v2562, 0
        %2569 = vmatprep.subr.bf16.mxu0 0
        %2570 = vmatpush1.bf16.msra.mxu0 0
        %2571 = vmatprep.subr.bf16.mxu0 0
        %2572 = vmatpush1.bf16.msra.mxu0 0
        %2573 = vmatprep.subr.bf16.mxu0 0
        %2574 = vmatpush1.bf16.msra.mxu0 0
        %2575 = vmatprep.subr.bf16.mxu0 0
        %2576 = vmatpush1.bf16.msra.mxu0 0
        %2577 = vmatprep.subr.bf16.mxu0 0
        %2578 = vmatpush1.bf16.msra.mxu0 0
        %2579 = vmatprep.subr.bf16.mxu0 0
        %2580 = vmatpush1.bf16.msra.mxu0 0
        %2581 = vmatprep.subr.bf16.mxu0 0
        %2582 = vmatpush1.bf16.msra.mxu0 0
        %2583 = vmatprep.subr.bf16.mxu0 0
        %2584 = vmatpush1.bf16.msra.mxu0 %v2567
        %2585 = vmatprep.subr.bf16.mxu0 0
        %2586 = vmatpush2.bf16.msra.mxu0 0
        %2587 = vmatprep.subr.bf16.mxu0 0
        %2588 = vmatpush2.bf16.msra.mxu0 0
        %2589 = vmatprep.subr.bf16.mxu0 0
        %2590 = vmatpush2.bf16.msra.mxu0 0
        %2591 = vmatprep.subr.bf16.mxu0 0
        %2592 = vmatpush2.bf16.msra.mxu0 0
        %2593 = vmatprep.subr.bf16.mxu0 0
        %2594 = vmatpush2.bf16.msra.mxu0 0
        %2595 = vmatprep.subr.bf16.mxu0 0
        %2596 = vmatpush2.bf16.msra.mxu0 0
        %2597 = vmatprep.subr.bf16.mxu0 0
        %2598 = vmatpush2.bf16.msra.mxu0 0
        %2599 = vmatprep.subr.bf16.mxu0 0
        %2600 = vmatpush2.bf16.msra.mxu0 0
        %2601 = vmatprep.mubr.bf16.mxu0 0
        %2602 = vmatmul.mubr.bf16.gmra.mxu0 %v2564
        %v2603 = vpop.f32.mrf.mxu0
        %v2604 = vadd.f32 0.0, %v2603
        %v2605 = vpop.f32.mrf.mxu0
        %v2606 = vpop.f32.mrf.mxu0
        %v2607 = vpop.f32.mrf.mxu0
        %2608 = vdwg.mxu0
        %2609 = vrot.lane.b32.xlu0 %v2006, 64
        %v2610 = vpop.permute.xlu0 %2609
        %v2612 = vsel %vm831, %v2560, 0
        %v2615 = vsel %vm859, %v2610, 0
        %2617 = vmatprep.subr.bf16.mxu0 0
        %2618 = vmatpush1.bf16.msra.mxu0 0
        %2619 = vmatprep.subr.bf16.mxu0 0
        %2620 = vmatpush1.bf16.msra.mxu0 0
        %2621 = vmatprep.subr.bf16.mxu0 0
        %2622 = vmatpush1.bf16.msra.mxu0 0
        %2623 = vmatprep.subr.bf16.mxu0 0
        %2624 = vmatpush1.bf16.msra.mxu0 0
        %2625 = vmatprep.subr.bf16.mxu0 0
        %2626 = vmatpush1.bf16.msra.mxu0 0
        %2627 = vmatprep.subr.bf16.mxu0 0
        %2628 = vmatpush1.bf16.msra.mxu0 0
        %2629 = vmatprep.subr.bf16.mxu0 0
        %2630 = vmatpush1.bf16.msra.mxu0 0
        %2631 = vmatprep.subr.bf16.mxu0 0
        %2632 = vmatpush1.bf16.msra.mxu0 %v2615
        %2633 = vmatprep.subr.bf16.mxu0 0
        %2634 = vmatpush2.bf16.msra.mxu0 0
        %2635 = vmatprep.subr.bf16.mxu0 0
        %2636 = vmatpush2.bf16.msra.mxu0 0
        %2637 = vmatprep.subr.bf16.mxu0 0
        %2638 = vmatpush2.bf16.msra.mxu0 0
        %2639 = vmatprep.subr.bf16.mxu0 0
        %2640 = vmatpush2.bf16.msra.mxu0 0
        %2641 = vmatprep.subr.bf16.mxu0 0
        %2642 = vmatpush2.bf16.msra.mxu0 0
        %2643 = vmatprep.subr.bf16.mxu0 0
        %2644 = vmatpush2.bf16.msra.mxu0 0
        %2645 = vmatprep.subr.bf16.mxu0 0
        %2646 = vmatpush2.bf16.msra.mxu0 0
        %2647 = vmatprep.subr.bf16.mxu0 0
        %2648 = vmatpush2.bf16.msra.mxu0 0
        %2649 = vmatprep.mubr.bf16.mxu0 0
        %2650 = vmatmul.mubr.bf16.gmra.mxu0 %v2612
        %v2651 = vpop.f32.mrf.mxu0
        %v2652 = vadd.f32 0.0, %v2651
        %v2653 = vpop.f32.mrf.mxu0
        %v2654 = vpop.f32.mrf.mxu0
        %v2655 = vpop.f32.mrf.mxu0
        %2656 = vdwg.mxu0
        %v2657 = vpack.c.bf16 %v2652, %v2604
        %2658 = vrot.lane.b32.xlu0 %v1995, 32
        %v2659 = vpop.permute.xlu0 %2658
        %2660 = vrot.lane.b32.xlu0 %v2000, 32
        %v2661 = vpop.permute.xlu0 %2660
        %v2663 = vsel %vm738, %v2659, 0
        %v2666 = vsel %vm738, %v2661, 0
        %2668 = vmatprep.subr.bf16.mxu0 0
        %2669 = vmatpush1.bf16.xpose.msra.mxu0 0
        %2670 = vmatprep.subr.bf16.mxu0 0
        %2671 = vmatpush1.bf16.xpose.msra.mxu0 0
        %2672 = vmatprep.subr.bf16.mxu0 0
        %2673 = vmatpush1.bf16.xpose.msra.mxu0 0
        %2674 = vmatprep.subr.bf16.mxu0 0
        %2675 = vmatpush1.bf16.xpose.msra.mxu0 0
        %2676 = vmatprep.subr.bf16.mxu0 0
        %2677 = vmatpush1.bf16.xpose.msra.mxu0 0
        %2678 = vmatprep.subr.bf16.mxu0 0
        %2679 = vmatpush1.bf16.xpose.msra.mxu0 0
        %2680 = vmatprep.subr.bf16.mxu0 0
        %2681 = vmatpush1.bf16.xpose.msra.mxu0 0
        %2682 = vmatprep.subr.bf16.mxu0 0
        %2683 = vmatpush1.bf16.xpose.msra.mxu0 %v2666
        %2684 = vmatprep.subr.bf16.mxu0 0
        %2685 = vmatpush2.bf16.xpose.msra.mxu0 0
        %2686 = vmatprep.subr.bf16.mxu0 0
        %2687 = vmatpush2.bf16.xpose.msra.mxu0 0
        %2688 = vmatprep.subr.bf16.mxu0 0
        %2689 = vmatpush2.bf16.xpose.msra.mxu0 0
        %2690 = vmatprep.subr.bf16.mxu0 0
        %2691 = vmatpush2.bf16.xpose.msra.mxu0 0
        %2692 = vmatprep.subr.bf16.mxu0 0
        %2693 = vmatpush2.bf16.xpose.msra.mxu0 0
        %2694 = vmatprep.subr.bf16.mxu0 0
        %2695 = vmatpush2.bf16.xpose.msra.mxu0 0
        %2696 = vmatprep.subr.bf16.mxu0 0
        %2697 = vmatpush2.bf16.xpose.msra.mxu0 0
        %2698 = vmatprep.subr.bf16.mxu0 0
        %2699 = vmatpush2.bf16.xpose.msra.mxu0 0
        %2700 = vmatprep.mubr.bf16.mxu0 0
        %2701 = vmatmul.mubr.bf16.gmra.mxu0 %v2663
        %v2702 = vpop.f32.mrf.mxu0
        %v2703 = vadd.f32 0.0, %v2702
        %v2704 = vpop.f32.mrf.mxu0
        %v2705 = vpop.f32.mrf.mxu0
        %v2706 = vpop.f32.mrf.mxu0
        %2707 = vdwg.mxu0
        %2708 = vrot.lane.b32.xlu0 %v1996, 32
        %v2709 = vpop.permute.xlu0 %2708
        %2710 = vrot.lane.b32.xlu0 %v2001, 32
        %v2711 = vpop.permute.xlu0 %2710
        %v2713 = vsel %vm738, %v2709, 0
        %v2716 = vsel %vm738, %v2711, 0
        %2718 = vmatprep.subr.bf16.mxu0 0
        %2719 = vmatpush1.bf16.xpose.msra.mxu0 0
        %2720 = vmatprep.subr.bf16.mxu0 0
        %2721 = vmatpush1.bf16.xpose.msra.mxu0 0
        %2722 = vmatprep.subr.bf16.mxu0 0
        %2723 = vmatpush1.bf16.xpose.msra.mxu0 0
        %2724 = vmatprep.subr.bf16.mxu0 0
        %2725 = vmatpush1.bf16.xpose.msra.mxu0 0
        %2726 = vmatprep.subr.bf16.mxu0 0
        %2727 = vmatpush1.bf16.xpose.msra.mxu0 0
        %2728 = vmatprep.subr.bf16.mxu0 0
        %2729 = vmatpush1.bf16.xpose.msra.mxu0 0
        %2730 = vmatprep.subr.bf16.mxu0 0
        %2731 = vmatpush1.bf16.xpose.msra.mxu0 0
        %2732 = vmatprep.subr.bf16.mxu0 0
        %2733 = vmatpush1.bf16.xpose.msra.mxu0 %v2716
        %2734 = vmatprep.subr.bf16.mxu0 0
        %2735 = vmatpush2.bf16.xpose.msra.mxu0 0
        %2736 = vmatprep.subr.bf16.mxu0 0
        %2737 = vmatpush2.bf16.xpose.msra.mxu0 0
        %2738 = vmatprep.subr.bf16.mxu0 0
        %2739 = vmatpush2.bf16.xpose.msra.mxu0 0
        %2740 = vmatprep.subr.bf16.mxu0 0
        %2741 = vmatpush2.bf16.xpose.msra.mxu0 0
        %2742 = vmatprep.subr.bf16.mxu0 0
        %2743 = vmatpush2.bf16.xpose.msra.mxu0 0
        %2744 = vmatprep.subr.bf16.mxu0 0
        %2745 = vmatpush2.bf16.xpose.msra.mxu0 0
        %2746 = vmatprep.subr.bf16.mxu0 0
        %2747 = vmatpush2.bf16.xpose.msra.mxu0 0
        %2748 = vmatprep.subr.bf16.mxu0 0
        %2749 = vmatpush2.bf16.xpose.msra.mxu0 0
        %2750 = vmatprep.mubr.bf16.mxu0 0
        %2751 = vmatmul.mubr.bf16.gmra.mxu0 %v2713
        %v2752 = vpop.f32.mrf.mxu0
        %v2753 = vadd.f32 0.0, %v2752
        %v2754 = vpop.f32.mrf.mxu0
        %v2755 = vpop.f32.mrf.mxu0
        %v2756 = vpop.f32.mrf.mxu0
        %2757 = vdwg.mxu0
        %v2758 = vsel %vm831, %v2703, -inf
        %2759 = vmax.xlane.f32.xlu0 %v2758
        %v2760 = vpop.xlane.xlu0 %2759
        %v2761 = vsel %vm831, %v2753, -inf
        %2762 = vmax.xlane.f32.xlu0 %v2761
        %v2763 = vpop.xlane.xlu0 %2762
        %v2764 = vsub.f32 %v2703, %v2760
        %v2765 = vsub.f32 %v2753, %v2763
        %v2766 = vmul.f32 %v2764, 1.442695
        %v2767 = vpow.pop %v2766
        %v2768 = vmul.f32 %v2765, 1.442695
        %v2769 = vpow.pop %v2768
        %v2770 = vsel %vm831, %v2767, 0.0
        %2771 = vadd.xlane.f32.xlu0 %v2770
        %v2772 = vpop.xlane.xlu0 %2771
        %v2773 = vsel %vm831, %v2769, 0.0
        %2774 = vadd.xlane.f32.xlu0 %v2773
        %v2775 = vpop.xlane.xlu0 %2774
        %v2776 = vrcp.pop %v2772
        %v2777 = vrcp.pop %v2775
        %v2778 = vmul.f32 %v2767, %v2776
        %v2779 = vmul.f32 %v2769, %v2777
        %v2780 = vpack.c.bf16 %v2778, %v2778
        %v2781 = vpack.c.bf16 %v2779, %v2779
        %2782 = vrot.lane.b32.xlu0 %v2005, 32
        %v2783 = vpop.permute.xlu0 %2782
        %v2785 = vsel %vm831, %v2780, 0
        %v2788 = vsel %vm859, %v2783, 0
        %2790 = vmatprep.subr.bf16.mxu0 0
        %2791 = vmatpush1.bf16.msra.mxu0 0
        %2792 = vmatprep.subr.bf16.mxu0 0
        %2793 = vmatpush1.bf16.msra.mxu0 0
        %2794 = vmatprep.subr.bf16.mxu0 0
        %2795 = vmatpush1.bf16.msra.mxu0 0
        %2796 = vmatprep.subr.bf16.mxu0 0
        %2797 = vmatpush1.bf16.msra.mxu0 0
        %2798 = vmatprep.subr.bf16.mxu0 0
        %2799 = vmatpush1.bf16.msra.mxu0 0
        %2800 = vmatprep.subr.bf16.mxu0 0
        %2801 = vmatpush1.bf16.msra.mxu0 0
        %2802 = vmatprep.subr.bf16.mxu0 0
        %2803 = vmatpush1.bf16.msra.mxu0 0
        %2804 = vmatprep.subr.bf16.mxu0 0
        %2805 = vmatpush1.bf16.msra.mxu0 %v2788
        %2806 = vmatprep.subr.bf16.mxu0 0
        %2807 = vmatpush2.bf16.msra.mxu0 0
        %2808 = vmatprep.subr.bf16.mxu0 0
        %2809 = vmatpush2.bf16.msra.mxu0 0
        %2810 = vmatprep.subr.bf16.mxu0 0
        %2811 = vmatpush2.bf16.msra.mxu0 0
        %2812 = vmatprep.subr.bf16.mxu0 0
        %2813 = vmatpush2.bf16.msra.mxu0 0
        %2814 = vmatprep.subr.bf16.mxu0 0
        %2815 = vmatpush2.bf16.msra.mxu0 0
        %2816 = vmatprep.subr.bf16.mxu0 0
        %2817 = vmatpush2.bf16.msra.mxu0 0
        %2818 = vmatprep.subr.bf16.mxu0 0
        %2819 = vmatpush2.bf16.msra.mxu0 0
        %2820 = vmatprep.subr.bf16.mxu0 0
        %2821 = vmatpush2.bf16.msra.mxu0 0
        %2822 = vmatprep.mubr.bf16.mxu0 0
        %2823 = vmatmul.mubr.bf16.gmra.mxu0 %v2785
        %v2824 = vpop.f32.mrf.mxu0
        %v2825 = vadd.f32 0.0, %v2824
        %v2826 = vpop.f32.mrf.mxu0
        %v2827 = vpop.f32.mrf.mxu0
        %v2828 = vpop.f32.mrf.mxu0
        %2829 = vdwg.mxu0
        %2830 = vrot.lane.b32.xlu0 %v2006, 32
        %v2831 = vpop.permute.xlu0 %2830
        %v2833 = vsel %vm831, %v2781, 0
        %v2836 = vsel %vm859, %v2831, 0
        %2838 = vmatprep.subr.bf16.mxu0 0
        %2839 = vmatpush1.bf16.msra.mxu0 0
        %2840 = vmatprep.subr.bf16.mxu0 0
        %2841 = vmatpush1.bf16.msra.mxu0 0
        %2842 = vmatprep.subr.bf16.mxu0 0
        %2843 = vmatpush1.bf16.msra.mxu0 0
        %2844 = vmatprep.subr.bf16.mxu0 0
        %2845 = vmatpush1.bf16.msra.mxu0 0
        %2846 = vmatprep.subr.bf16.mxu0 0
        %2847 = vmatpush1.bf16.msra.mxu0 0
        %2848 = vmatprep.subr.bf16.mxu0 0
        %2849 = vmatpush1.bf16.msra.mxu0 0
        %2850 = vmatprep.subr.bf16.mxu0 0
        %2851 = vmatpush1.bf16.msra.mxu0 0
        %2852 = vmatprep.subr.bf16.mxu0 0
        %2853 = vmatpush1.bf16.msra.mxu0 %v2836
        %2854 = vmatprep.subr.bf16.mxu0 0
        %2855 = vmatpush2.bf16.msra.mxu0 0
        %2856 = vmatprep.subr.bf16.mxu0 0
        %2857 = vmatpush2.bf16.msra.mxu0 0
        %2858 = vmatprep.subr.bf16.mxu0 0
        %2859 = vmatpush2.bf16.msra.mxu0 0
        %2860 = vmatprep.subr.bf16.mxu0 0
        %2861 = vmatpush2.bf16.msra.mxu0 0
        %2862 = vmatprep.subr.bf16.mxu0 0
        %2863 = vmatpush2.bf16.msra.mxu0 0
        %2864 = vmatprep.subr.bf16.mxu0 0
        %2865 = vmatpush2.bf16.msra.mxu0 0
        %2866 = vmatprep.subr.bf16.mxu0 0
        %2867 = vmatpush2.bf16.msra.mxu0 0
        %2868 = vmatprep.subr.bf16.mxu0 0
        %2869 = vmatpush2.bf16.msra.mxu0 0
        %2870 = vmatprep.mubr.bf16.mxu0 0
        %2871 = vmatmul.mubr.bf16.gmra.mxu0 %v2833
        %v2872 = vpop.f32.mrf.mxu0
        %v2873 = vadd.f32 0.0, %v2872
        %v2874 = vpop.f32.mrf.mxu0
        %v2875 = vpop.f32.mrf.mxu0
        %v2876 = vpop.f32.mrf.mxu0
        %2877 = vdwg.mxu0
        %v2878 = vpack.c.bf16 %v2873, %v2825
        %2880 = vrot.lane.b32.xlu0 %v2436, 32
        %v2881 = vpop.permute.xlu0 %2880
        %2883 = vrot.lane.b32.xlu0 %v2657, 64
        %v2884 = vpop.permute.xlu0 %2883
        %2886 = vrot.lane.b32.xlu0 %v2878, 96
        %v2887 = vpop.permute.xlu0 %2886
        %v2890 = vsel %vm738, %v2215, %v2881
        %v2892 = vsel %vm1625, %v2890, %v2884
        %v2894 = vsel %vm1628, %v2892, %v2887
        %v2896 = vld [vmem:[#allocation11] sm:$0xf]
        %v2897 = vld [vmem:[#allocation11 + $0x4] sm:$0xf]
        %v2898 = vld [vmem:[#allocation11 + $0x8] sm:$0xf]
        %v2899 = vld [vmem:[#allocation11 + $0xc] sm:$0xf]
        %v2900 = vld [vmem:[#allocation11 + $0x10] sm:$0xf]
        %v2901 = vld [vmem:[#allocation11 + $0x14] sm:$0xf]
        %v2902 = vld [vmem:[#allocation11 + $0x18] sm:$0xf]
        %v2903 = vld [vmem:[#allocation11 + $0x1c] sm:$0xf]
        %v2904 = vld [vmem:[#allocation11 + $0x20] sm:$0xf]
        %v2905 = vld [vmem:[#allocation11 + $0x24] sm:$0xf]
        %v2906 = vld [vmem:[#allocation11 + $0x28] sm:$0xf]
        %v2907 = vld [vmem:[#allocation11 + $0x2c] sm:$0xf]
        %v2908 = vld [vmem:[#allocation11 + $0x30] sm:$0xf]
        %v2909 = vld [vmem:[#allocation11 + $0x34] sm:$0xf]
        %v2910 = vld [vmem:[#allocation11 + $0x38] sm:$0xf]
        %v2911 = vld [vmem:[#allocation11 + $0x3c] sm:$0xf]
        %v2912 = vld [vmem:[%s7] sm:$0x1]
        %v2914 = vlaneseq
        %v2915 = vshrl.u32 %v2914, 7
        %v2916 = vsub.s32 0, %v2915
        %v2917 = vrot.slane %v2912, %v2916
        %v2935 = vunpack.c.l.b16 %v2896
        %v2936 = vunpack.c.l.b16 %v2897
        %v2937 = vunpack.c.l.b16 %v2898
        %v2938 = vunpack.c.l.b16 %v2899
        %v2939 = vunpack.c.l.b16 %v2900
        %v2940 = vunpack.c.l.b16 %v2901
        %v2941 = vunpack.c.l.b16 %v2902
        %v2942 = vunpack.c.l.b16 %v2903
        %v2943 = vunpack.c.l.b16 %v2904
        %v2944 = vunpack.c.l.b16 %v2905
        %v2945 = vunpack.c.l.b16 %v2906
        %v2946 = vunpack.c.l.b16 %v2907
        %v2947 = vunpack.c.l.b16 %v2908
        %v2948 = vunpack.c.l.b16 %v2909
        %v2949 = vunpack.c.l.b16 %v2910
        %v2950 = vunpack.c.l.b16 %v2911
        %v2951 = vpack.c.b16 %v2936, %v2935
        %v2952 = vpack.c.b16 %v2938, %v2937
        %v2953 = vpack.c.b16 %v2940, %v2939
        %v2954 = vpack.c.b16 %v2942, %v2941
        %v2955 = vpack.c.b16 %v2944, %v2943
        %v2956 = vpack.c.b16 %v2946, %v2945
        %v2957 = vpack.c.b16 %v2948, %v2947
        %v2958 = vpack.c.b16 %v2950, %v2949
        %2967 = vmatprep.subr.bf16.mxu0 0
        %2968 = vmatpush1.bf16.msra.mxu0 %v2958
        %2969 = vmatprep.subr.bf16.mxu0 0
        %2970 = vmatpush1.bf16.msra.mxu0 %v2957
        %2971 = vmatprep.subr.bf16.mxu0 0
        %2972 = vmatpush1.bf16.msra.mxu0 %v2956
        %2973 = vmatprep.subr.bf16.mxu0 0
        %2974 = vmatpush1.bf16.msra.mxu0 %v2955
        %2975 = vmatprep.subr.bf16.mxu0 0
        %2976 = vmatpush1.bf16.msra.mxu0 %v2954
        %2977 = vmatprep.subr.bf16.mxu0 0
        %2978 = vmatpush1.bf16.msra.mxu0 %v2953
        %2979 = vmatprep.subr.bf16.mxu0 0
        %2980 = vmatpush1.bf16.msra.mxu0 %v2952
        %2981 = vmatprep.subr.bf16.mxu0 0
        %2982 = vmatpush1.bf16.msra.mxu0 %v2951
        %2983 = vmatprep.subr.bf16.mxu0 0
        %2984 = vmatpush2.bf16.msra.mxu0 0
        %2985 = vmatprep.subr.bf16.mxu0 0
        %2986 = vmatpush2.bf16.msra.mxu0 0
        %2987 = vmatprep.subr.bf16.mxu0 0
        %2988 = vmatpush2.bf16.msra.mxu0 0
        %2989 = vmatprep.subr.bf16.mxu0 0
        %2990 = vmatpush2.bf16.msra.mxu0 0
        %2991 = vmatprep.subr.bf16.mxu0 0
        %2992 = vmatpush2.bf16.msra.mxu0 0
        %2993 = vmatprep.subr.bf16.mxu0 0
        %2994 = vmatpush2.bf16.msra.mxu0 0
        %2995 = vmatprep.subr.bf16.mxu0 0
        %2996 = vmatpush2.bf16.msra.mxu0 0
        %2997 = vmatprep.subr.bf16.mxu0 0
        %2998 = vmatpush2.bf16.msra.mxu0 0
        %2999 = vmatprep.mubr.bf16.mxu0 0
        %3000 = vmatmul.mubr.bf16.gmra.mxu0 %v2894
        %v3001 = vpop.f32.mrf.mxu0
        %v3002 = vadd.f32 %v2917, %v3001
        %v3003 = vpop.f32.mrf.mxu0
        %v3004 = vpop.f32.mrf.mxu0
        %v3005 = vadd.f32 %v2917, %v3004
        %v3006 = vpop.f32.mrf.mxu0
        %3007 = vdwg.mxu0
        %v3008 = vpack.c.bf16 %v3005, %v3002
        %v3009 = vld [vmem:[#allocation13] sm:$0xf]
        %v3010 = vld [vmem:[#allocation13 + $0x4] sm:$0xf]
        %v3011 = vld [vmem:[#allocation13 + $0x8] sm:$0xf]
        %v3012 = vld [vmem:[#allocation13 + $0xc] sm:$0xf]
        %v3013 = vld [vmem:[#allocation13 + $0x10] sm:$0xf]
        %v3014 = vld [vmem:[#allocation13 + $0x14] sm:$0xf]
        %v3015 = vld [vmem:[#allocation13 + $0x18] sm:$0xf]
        %v3016 = vld [vmem:[#allocation13 + $0x1c] sm:$0xf]
        %v3017 = vld [vmem:[#allocation13 + $0x20] sm:$0xf]
        %v3018 = vld [vmem:[#allocation13 + $0x24] sm:$0xf]
        %v3019 = vld [vmem:[#allocation13 + $0x28] sm:$0xf]
        %v3020 = vld [vmem:[#allocation13 + $0x2c] sm:$0xf]
        %v3021 = vld [vmem:[#allocation13 + $0x30] sm:$0xf]
        %v3022 = vld [vmem:[#allocation13 + $0x34] sm:$0xf]
        %v3023 = vld [vmem:[#allocation13 + $0x38] sm:$0xf]
        %v3024 = vld [vmem:[#allocation13 + $0x3c] sm:$0xf]
        %v3025 = vld [vmem:[%s9] sm:$0x1]
        %v3027 = vlaneseq
        %v3028 = vshrl.u32 %v3027, 7
        %v3029 = vsub.s32 0, %v3028
        %v3030 = vrot.slane %v3025, %v3029
        %v3048 = vunpack.c.l.b16 %v3009
        %v3049 = vunpack.c.l.b16 %v3010
        %v3050 = vunpack.c.l.b16 %v3011
        %v3051 = vunpack.c.l.b16 %v3012
        %v3052 = vunpack.c.l.b16 %v3013
        %v3053 = vunpack.c.l.b16 %v3014
        %v3054 = vunpack.c.l.b16 %v3015
        %v3055 = vunpack.c.l.b16 %v3016
        %v3056 = vunpack.c.l.b16 %v3017
        %v3057 = vunpack.c.l.b16 %v3018
        %v3058 = vunpack.c.l.b16 %v3019
        %v3059 = vunpack.c.l.b16 %v3020
        %v3060 = vunpack.c.l.b16 %v3021
        %v3061 = vunpack.c.l.b16 %v3022
        %v3062 = vunpack.c.l.b16 %v3023
        %v3063 = vunpack.c.l.b16 %v3024
        %v3064 = vpack.c.b16 %v3049, %v3048
        %v3065 = vpack.c.b16 %v3051, %v3050
        %v3066 = vpack.c.b16 %v3053, %v3052
        %v3067 = vpack.c.b16 %v3055, %v3054
        %v3068 = vpack.c.b16 %v3057, %v3056
        %v3069 = vpack.c.b16 %v3059, %v3058
        %v3070 = vpack.c.b16 %v3061, %v3060
        %v3071 = vpack.c.b16 %v3063, %v3062
        %3080 = vmatprep.subr.bf16.mxu0 0
        %3081 = vmatpush1.bf16.msra.mxu0 %v3071
        %3082 = vmatprep.subr.bf16.mxu0 0
        %3083 = vmatpush1.bf16.msra.mxu0 %v3070
        %3084 = vmatprep.subr.bf16.mxu0 0
        %3085 = vmatpush1.bf16.msra.mxu0 %v3069
        %3086 = vmatprep.subr.bf16.mxu0 0
        %3087 = vmatpush1.bf16.msra.mxu0 %v3068
        %3088 = vmatprep.subr.bf16.mxu0 0
        %3089 = vmatpush1.bf16.msra.mxu0 %v3067
        %3090 = vmatprep.subr.bf16.mxu0 0
        %3091 = vmatpush1.bf16.msra.mxu0 %v3066
        %3092 = vmatprep.subr.bf16.mxu0 0
        %3093 = vmatpush1.bf16.msra.mxu0 %v3065
        %3094 = vmatprep.subr.bf16.mxu0 0
        %3095 = vmatpush1.bf16.msra.mxu0 %v3064
        %3096 = vmatprep.subr.bf16.mxu0 0
        %3097 = vmatpush2.bf16.msra.mxu0 0
        %3098 = vmatprep.subr.bf16.mxu0 0
        %3099 = vmatpush2.bf16.msra.mxu0 0
        %3100 = vmatprep.subr.bf16.mxu0 0
        %3101 = vmatpush2.bf16.msra.mxu0 0
        %3102 = vmatprep.subr.bf16.mxu0 0
        %3103 = vmatpush2.bf16.msra.mxu0 0
        %3104 = vmatprep.subr.bf16.mxu0 0
        %3105 = vmatpush2.bf16.msra.mxu0 0
        %3106 = vmatprep.subr.bf16.mxu0 0
        %3107 = vmatpush2.bf16.msra.mxu0 0
        %3108 = vmatprep.subr.bf16.mxu0 0
        %3109 = vmatpush2.bf16.msra.mxu0 0
        %3110 = vmatprep.subr.bf16.mxu0 0
        %3111 = vmatpush2.bf16.msra.mxu0 0
        %3112 = vmatprep.mubr.bf16.mxu0 0
        %3113 = vmatmul.mubr.bf16.gmra.mxu0 %v3008
        %v3114 = vpop.f32.mrf.mxu0
        %v3115 = vadd.f32 %v3030, %v3114
        %v3116 = vpop.f32.mrf.mxu0
        %v3117 = vpop.f32.mrf.mxu0
        %v3118 = vadd.f32 %v3030, %v3117
        %v3119 = vpop.f32.mrf.mxu0
        %3120 = vdwg.mxu0
        %3121 = vst [vmem:[%s464] sm:$0xff] %v3115
        %3122 = vst [vmem:[%s464 + $0x8] sm:$0xff] %v3118
        %s3123 = sand.u32 %s253, 1
        %s3124 = scalar_lea.sflag [#allocation4], %s3123
        %s3125 = sand.u32 %s253, 1
        %s3126 = smul.addr %s3125, 16
        %s3127 = scalar_lea.vmem [#allocation14], %s3126
        // Predicated region
        $region89: #{tpu_custom_call.1} parent=59 // pred_check
          %p3128 = pneg %p263
        $region90: #{tpu_custom_call.1} parent=59 // pred_check_branch
          %3130 = sbr.rel (%p3128) target = $region92
        $region91: #{tpu_custom_call.1} parent=59 // pred_region
          %s3131 = smul.u32 2, %s30
          %s3133 = ssub.s32 256, 256
          %3134 = vsyncadd %s3124, %s3133
          %s3135 = smul.addr %s3131, 128
          %s3136 = scalar_lea.hbm %s10, %s3135
          %s3137 = sshll.u32 %s3127, 4
          %s3138 = int_to_ptr.vmem [resolvable:$true] %s3137
          %3143 = dma.vmem_to_hbm [thread:$0]  %s3138, 256, %s3136, %s3124, 128, 128, 8
        $region92: #{tpu_custom_call.1} parent=59 // pred_fallthru
          _
      $region60: #{tpu_custom_call.1} parent=5 // pred_fallthru
        _
      %p3144 = scmp.le.s32.totalorder 2, %s25
      // Predicated region
      $region93: #{tpu_custom_call.1} parent=5 // pred_check
        %p3145 = pneg %p3144
      $region94: #{tpu_custom_call.1} parent=5 // pred_check_branch
        %3147 = sbr.rel (%p3145) target = $region96
      $region95: #{tpu_custom_call.1} parent=5 // pred_region
        %s3148 = ssub.s32 %s25, 2
        // Predicated region
        $region97: #{tpu_custom_call.1} parent=95 // pred_check
          %p3149 = pneg %p269
        $region98: #{tpu_custom_call.1} parent=95 // pred_check_branch
          %3151 = sbr.rel (%p3149) target = $region100
        $region99: #{tpu_custom_call.1} parent=95 // pred_region
          %s3152 = sand.u32 %s254, 1
          %s3153 = scalar_lea.sflag [#allocation4], %s3152
          %s3154 = sand.u32 %s254, 1
          %s3155 = smul.addr %s3154, 16
          %s3156 = scalar_lea.vmem [#allocation14], %s3155
          %3157 = dma.done %s3153, 256
        $region100: #{tpu_custom_call.1} parent=95 // pred_fallthru
          _
      $region96: #{tpu_custom_call.1} parent=5 // pred_fallthru
        _
    $region6: #{tpu_custom_call.1} parent=1 // loop_footer
      %s29 = sadd.s32 1, %s25
    $region7: #{tpu_custom_call.1} parent=1 // loop_footer_branch
      %24 = sbr.rel target = $region3
    $region8: #{tpu_custom_call.1} parent=1 // loop_exit
      _
    %3158 = vsyncpa [#allocation3], 1
    %s3159 = scalar_lea.sflag [#allocation3], 1
    %3160 = vsyncpa %s3159, 1
    %3161 = vsyncpa [#allocation6], 1
    %3162 = vsyncpa [#allocation9], 1
    %3163 = vsyncpa [#allocation12], 1
    %3164 = vsyncpa [#allocation4], 1
    %s3165 = scalar_lea.sflag [#allocation4], 1
    %3166 = vsyncpa %s3165, 1

</llo_original>
